<compile_context>
chip_gen: v6e
topology: v6e:2x2x1
jax: 0.10.0
libtpu: 0.0.40
codegen_flags: <defaults>
</compile_context>

<pallas_src>
import functools
import math

import jax
import jax.numpy as jnp
import numpy as np
from jax.experimental import pallas as pl
from jax.experimental.pallas import tpu as pltpu


# MXU operand dtype (accumulation is always f32). Set to jnp.float32 to disable.
MXU_DTYPE = jnp.bfloat16


# ----------------------------------------------------------------------------
# Host-side precomputation
# ----------------------------------------------------------------------------
def build_decomp_matrix(L, kernel_sizes):
    """Series_decomp_multi trend operator as a single (L, L) matrix.

    trend = A @ x where each moving average uses replicate padding and exactly
    `ks` taps ((ks-1)//2 left, ks//2 right), averaged equally over kernel sizes.
    """
    A = np.zeros((L, L), np.float64)
    for ks in kernel_sizes:
        a = (ks - 1) // 2
        b = ks - 1 - a
        for i in range(L):
            for off in range(-a, b + 1):
                j = min(max(i + off, 0), L - 1)
                A[i, j] += 1.0 / ks
    A /= float(len(kernel_sizes))
    return jnp.asarray(A, jnp.float32)


def _block_diag(*mats):
    rows = sum(m.shape[0] for m in mats)
    cols = sum(m.shape[1] for m in mats)
    out = jnp.zeros((rows, cols), mats[0].dtype)
    r = c = 0
    for m in mats:
        out = out.at[r:r + m.shape[0], c:c + m.shape[1]].set(m)
        r += m.shape[0]
        c += m.shape[1]
    return out


# ----------------------------------------------------------------------------
# Fused per-layer Pallas kernel
# ----------------------------------------------------------------------------
def _decoder_layer_kernel(
    cross_ref, x_ref, trend_in_ref, A_ref,
    wqkv_s_ref, bqkv_s_ref, wo_s_ref, bo_s_ref,
    wq_c_ref, bq_c_ref, wkv_c_ref, bkv_c_ref, wo_c_ref, bo_c_ref,
    w1_ref, w2_ref, w1h_ref, b1h_ref, w2h_ref, b2h_ref,
    season_out_ref, trend_out_ref,
    *, n_heads, pred_len, activation):
    f32 = jnp.float32
    x = x_ref[...]          # (L, D)  season input for this batch element
    cross = cross_ref[...]  # (Lc, D)
    A = A_ref[...]          # (L, L)  decomposition operator (f32)
    L, D = x.shape
    dh = D // n_heads
    scale = 1.0 / math.sqrt(dh)

    def mx(v):
        return v.astype(MXU_DTYPE)

    def mha(q, k, v, wo, bo):
        # per-head scaled-dot-product attention; heads unrolled inside the kernel.
        # Cast q/k/v once and transpose K once (instead of per-head).
        q_m = mx(q)
        kT_m = mx(k).T           # (D, Lk)
        v_m = mx(v)
        heads = []
        for h in range(n_heads):
            sl = slice(h * dh, (h + 1) * dh)
            s = jnp.dot(q_m[:, sl], kT_m[sl, :],
                        preferred_element_type=f32) * scale   # (Lq, Lk)
            s = s - jnp.max(s, axis=-1, keepdims=True)
            p = jnp.exp(s)
            p = p / jnp.sum(p, axis=-1, keepdims=True)
            heads.append(jnp.dot(mx(p), v_m[:, sl], preferred_element_type=f32))
        o = jnp.concatenate(heads, axis=-1)                     # (Lq, D)
        return jnp.dot(mx(o), mx(wo), preferred_element_type=f32) + bo

    def decomp(xx):
        trend = jnp.dot(A, xx, preferred_element_type=f32)      # (L, D) f32
        return trend, xx - trend

    # ---- self attention (fused QKV) + residual + decomp --------------------
    qkv = (jnp.dot(mx(x), mx(wqkv_s_ref[...]), preferred_element_type=f32)
           + bqkv_s_ref[...])                                   # (L, 3D)
    attn_s = mha(qkv[:, :D], qkv[:, D:2 * D], qkv[:, 2 * D:],
                 wo_s_ref[...], bo_s_ref[...])
    x1 = x + attn_s
    t1, s1 = decomp(x1)

    # ---- cross attention (fused KV) + residual + decomp --------------------
    q_c = (jnp.dot(mx(s1), mx(wq_c_ref[...]), preferred_element_type=f32)
           + bq_c_ref[...])
    kv_c = (jnp.dot(mx(cross), mx(wkv_c_ref[...]), preferred_element_type=f32)
            + bkv_c_ref[...])                                   # (Lc, 2D)
    attn_c = mha(q_c, kv_c[:, :D], kv_c[:, D:], wo_c_ref[...], bo_c_ref[...])
    x2 = s1 + attn_c
    t2, s2 = decomp(x2)

    # ---- 1x1-conv FFN (fused conv1+conv2, bias=False) + residual + decomp ---
    h = jnp.dot(mx(s2), mx(w1_ref[...]), preferred_element_type=f32)
    if activation == "relu":
        h = jnp.maximum(h, 0.0)
    else:
        h = jax.nn.gelu(h, approximate=True)
    y = jnp.dot(mx(h), mx(w2_ref[...]), preferred_element_type=f32)
    x3 = y + s2
    t3, s3 = decomp(x3)
    season_out_ref[...] = s3.astype(season_out_ref.dtype)

    # ---- fused trend heads: block-diag W1, final d_ff->1 as lane reduction --
    P = pred_len
    tcat = jnp.concatenate(
        [t1[L - P:, :], t2[L - P:, :], t3[L - P:, :]], axis=-1)  # (P, 3D)
    hh = (jnp.dot(mx(tcat), mx(w1h_ref[...]), preferred_element_type=f32)
          + b1h_ref[...])                                        # (P, 3F)
    tr = jnp.sum(hh * w2h_ref[...], axis=-1, keepdims=True) + b2h_ref[...]  # (P, 1)
    trend_out_ref[...] = (trend_in_ref[...] + tr).astype(trend_out_ref.dtype)


# ----------------------------------------------------------------------------
# Wrappers
# ----------------------------------------------------------------------------
def decoder_layer_forward(p, A, cross_info, dec_season, dec_trend,
                          *, n_heads, pred_len, activation):
    B, Ld, D = dec_season.shape
    Lc = cross_info.shape[1]
    F = p["w1"].shape[1]
    assert D % n_heads == 0
    trend_in = dec_trend[:, -pred_len:, :]                       # (B, P, 1)

    bmap = lambda b: (b, 0, 0)      # per-batch blocks
    wmap = lambda b: (0, 0)         # shared weights (block index constant -> no re-DMA)

    in_specs = [
        pl.BlockSpec((None, Lc, D), bmap),         # cross_info
        pl.BlockSpec((None, Ld, D), bmap),         # dec_season
        pl.BlockSpec((None, pred_len, 1), bmap),   # dec_trend[:, -P:, :]
        pl.BlockSpec((Ld, Ld), wmap),              # A (decomposition operator, f32)
        pl.BlockSpec((D, 3 * D), wmap),            # wqkv_s (bf16)
        pl.BlockSpec((1, 3 * D), wmap),            # bqkv_s
        pl.BlockSpec((D, D), wmap),                # wo_s   (bf16)
        pl.BlockSpec((1, D), wmap),                # bo_s
        pl.BlockSpec((D, D), wmap),                # wq_c   (bf16)
        pl.BlockSpec((1, D), wmap),                # bq_c
        pl.BlockSpec((D, 2 * D), wmap),            # wkv_c  (bf16)
        pl.BlockSpec((1, 2 * D), wmap),            # bkv_c
        pl.BlockSpec((D, D), wmap),                # wo_c   (bf16)
        pl.BlockSpec((1, D), wmap),                # bo_c
        pl.BlockSpec((D, F), wmap),                # w1 (conv1, bf16)
        pl.BlockSpec((F, D), wmap),                # w2 (conv2, bf16)
        pl.BlockSpec((3 * D, 3 * F), wmap),        # w1h (block-diag trend heads, bf16)
        pl.BlockSpec((1, 3 * F), wmap),            # b1h
        pl.BlockSpec((1, 3 * F), wmap),            # w2h (rows of the 3 d_ff->1 weights, f32)
        pl.BlockSpec((1, 1), wmap),                # b2h (summed biases)
    ]
    out_specs = (pl.BlockSpec((None, Ld, D), bmap),
                 pl.BlockSpec((None, pred_len, 1), bmap))
    out_shape = (jax.ShapeDtypeStruct((B, Ld, D), jnp.float32),
                 jax.ShapeDtypeStruct((B, pred_len, 1), jnp.float32))

    return pl.pallas_call(
        functools.partial(_decoder_layer_kernel, n_heads=n_heads,
                          pred_len=pred_len, activation=activation),
        grid=(B,),
        in_specs=in_specs,
        out_specs=out_specs,
        out_shape=out_shape,
        compiler_params=pltpu.CompilerParams(dimension_semantics=("parallel",)),
    )(cross_info, dec_season, trend_in, A,
      p["wqkv_s"], p["bqkv_s"], p["wo_s"], p["bo_s"],
      p["wq_c"], p["bq_c"], p["wkv_c"], p["bkv_c"], p["wo_c"], p["bo_c"],
      p["w1"], p["w2"], p["w1h"], p["b1h"], p["w2h"], p["b2h"])


@functools.partial(jax.jit, static_argnames=("n_heads", "pred_len", "activation"))
def decoder_stack_forward(params_list, A, cross_info, dec_season, dec_trend,
                          *, n_heads, pred_len, activation="relu"):
    for p in params_list:
        dec_season, dec_trend = decoder_layer_forward(
            p, A, cross_info, dec_season, dec_trend,
            n_heads=n_heads, pred_len=pred_len, activation=activation)
    return dec_season, dec_trend


# ----------------------------------------------------------------------------
# Deterministic parameter init (PyTorch-like layout) + fusion into kernel layout
# ----------------------------------------------------------------------------
def _lin_init(key, fan_in, fan_out, scale=0.05):
    kw, kb = jax.random.split(key)
    w = jax.random.normal(kw, (fan_in, fan_out), jnp.float32) * scale
    b = jax.random.normal(kb, (fan_out,), jnp.float32) * scale
    return w, b


def _attn_init(key, d_model):
    ks = jax.random.split(key, 4)
    wq, bq = _lin_init(ks[0], d_model, d_model)
    wk, bk = _lin_init(ks[1], d_model, d_model)
    wv, bv = _lin_init(ks[2], d_model, d_model)
    wo, bo = _lin_init(ks[3], d_model, d_model)
    return dict(wq=wq, bq=bq, wk=wk, bk=bk, wv=wv, bv=bv, wo=wo, bo=bo)


def init_decoder_params(key, args):
    d_model, d_ff = args["d_model"], args["d_ff"]
    ks = jax.random.split(key, 10)
    p = {
        "self_attn": _attn_init(ks[0], d_model),
        "cross_attn": _attn_init(ks[1], d_model),
        # conv1/conv2 have bias=False in the reference module.
        "conv1_w": jax.random.normal(ks[2], (d_model, d_ff), jnp.float32) * 0.05,
        "conv2_w": jax.random.normal(ks[3], (d_ff, d_model), jnp.float32) * 0.05,
    }
    for i, (ka, kb) in enumerate(((ks[4], ks[5]), (ks[6], ks[7]), (ks[8], ks[9])),
                                 start=1):
        w1, b1 = _lin_init(ka, d_model, d_ff)
        w2, b2 = _lin_init(kb, d_ff, 1)
        p[f"lin{i}_1_w"], p[f"lin{i}_1_b"] = w1, b1
        p[f"lin{i}_2_w"], p[f"lin{i}_2_b"] = w2, b2
    return p


def fuse_layer_params(p):
    """Pack per-layer parameters into the fused layouts consumed by the kernel.

    MXU-bound weight matrices are pre-cast to MXU_DTYPE (bf16) on the host:
    halves their DMA bytes and removes per-grid-step casts inside the kernel
    without changing the math (the kernel casts the operands anyway).
    """
    mxd = MXU_DTYPE
    sa, ca = p["self_attn"], p["cross_attn"]
    return {
        "wqkv_s": jnp.concatenate([sa["wq"], sa["wk"], sa["wv"]], axis=1).astype(mxd),
        "bqkv_s": jnp.concatenate([sa["bq"], sa["bk"], sa["bv"]])[None, :],
        "wo_s": sa["wo"].astype(mxd), "bo_s": sa["bo"][None, :],
        "wq_c": ca["wq"].astype(mxd), "bq_c": ca["bq"][None, :],
        "wkv_c": jnp.concatenate([ca["wk"], ca["wv"]], axis=1).astype(mxd),
        "bkv_c": jnp.concatenate([ca["bk"], ca["bv"]])[None, :],
        "wo_c": ca["wo"].astype(mxd), "bo_c": ca["bo"][None, :],
        "w1": p["conv1_w"].astype(mxd), "w2": p["conv2_w"].astype(mxd),
        "w1h": _block_diag(p["lin1_1_w"], p["lin2_1_w"], p["lin3_1_w"]).astype(mxd),
        "b1h": jnp.concatenate([p["lin1_1_b"], p["lin2_1_b"], p["lin3_1_b"]])[None, :],
        "w2h": jnp.concatenate([p["lin1_2_w"][:, 0], p["lin2_2_w"][:, 0],
                                p["lin3_2_w"][:, 0]])[None, :],
        "b2h": (p["lin1_2_b"] + p["lin2_2_b"] + p["lin3_2_b"]).reshape(1, 1),
    }


# ----------------------------------------------------------------------------
# Demo
# ----------------------------------------------------------------------------
if __name__ == "__main__":
    args = dict(d_model=32, d_ff=64, n_heads=4, pred_len=8,
                moving_avg=(3, 5), decoder_layers=2,
                dropout=0.0, activation="relu")

    B, Ld, Lc = 2, 16, 12
    key = jax.random.PRNGKey(0)
    k_ci, k_ds, k_dt, k_p = jax.random.split(key, 4)

    cross_info = jax.random.normal(k_ci, (B, Lc, args["d_model"]), jnp.float32)
    dec_season = jax.random.normal(k_ds, (B, Ld, args["d_model"]), jnp.float32)
    dec_trend = jax.random.normal(k_dt, (B, Ld, 1), jnp.float32)

    layer_keys = jax.random.split(k_p, args["decoder_layers"])
    params = [fuse_layer_params(init_decoder_params(lk, args)) for lk in layer_keys]

    A = build_decomp_matrix(Ld, args["moving_avg"])

    out_season, out_trend = decoder_stack_forward(
        params, A, cross_info, dec_season, dec_trend,
        n_heads=args["n_heads"], pred_len=args["pred_len"],
        activation=args["activation"])
    jax.block_until_ready((out_season, out_trend))
    assert out_season.shape == (B, Ld, args["d_model"])
    assert out_trend.shape == (B, args["pred_len"], 1)
    assert bool(jnp.all(jnp.isfinite(out_season))) and bool(jnp.all(jnp.isfinite(out_trend)))
    print("KERNEL_OK")
</pallas_src>

<mosaic_0001>
module attributes {stable_mosaic.version = 11 : i64} {
  func.func @_decoder_layer_kernel(%arg0: i32, %arg1: memref<1x12x32xf32, #tpu.memory_space<vmem>>, %arg2: memref<1x16x32xf32, #tpu.memory_space<vmem>>, %arg3: memref<1x8x1xf32, #tpu.memory_space<vmem>>, %arg4: memref<16x16xf32, #tpu.memory_space<vmem>>, %arg5: memref<32x96xbf16, #tpu.memory_space<vmem>>, %arg6: memref<1x96xf32, #tpu.memory_space<vmem>>, %arg7: memref<32x32xbf16, #tpu.memory_space<vmem>>, %arg8: memref<1x32xf32, #tpu.memory_space<vmem>>, %arg9: memref<32x32xbf16, #tpu.memory_space<vmem>>, %arg10: memref<1x32xf32, #tpu.memory_space<vmem>>, %arg11: memref<32x64xbf16, #tpu.memory_space<vmem>>, %arg12: memref<1x64xf32, #tpu.memory_space<vmem>>, %arg13: memref<32x32xbf16, #tpu.memory_space<vmem>>, %arg14: memref<1x32xf32, #tpu.memory_space<vmem>>, %arg15: memref<32x64xbf16, #tpu.memory_space<vmem>>, %arg16: memref<64x32xbf16, #tpu.memory_space<vmem>>, %arg17: memref<96x192xbf16, #tpu.memory_space<vmem>>, %arg18: memref<1x192xf32, #tpu.memory_space<vmem>>, %arg19: memref<1x192xf32, #tpu.memory_space<vmem>>, %arg20: memref<1x1xf32, #tpu.memory_space<vmem>>, %arg21: memref<1x16x32xf32, #tpu.memory_space<vmem>>, %arg22: memref<1x8x1xf32, #tpu.memory_space<vmem>>) attributes {dimension_semantics = [#tpu.dimension_semantics<parallel>], iteration_bounds = array<i64: 2>, scalar_prefetch = 0 : i64, scratch_operands = 0 : i64, tpu.core_type = #tpu.core_type<tc>, window_params = [{transform_indices = @transform_0, window_bounds = array<i64: 1, 12, 32>}, {transform_indices = @transform_1, window_bounds = array<i64: 1, 16, 32>}, {transform_indices = @transform_2, window_bounds = array<i64: 1, 8, 1>}, {pipeline_mode = #tpu.pipeline_mode<synchronous>, transform_indices = @transform_3, window_bounds = array<i64: 16, 16>}, {pipeline_mode = #tpu.pipeline_mode<synchronous>, transform_indices = @transform_4, window_bounds = array<i64: 32, 96>}, {pipeline_mode = #tpu.pipeline_mode<synchronous>, transform_indices = @transform_5, window_bounds = array<i64: 1, 96>}, {pipeline_mode = #tpu.pipeline_mode<synchronous>, transform_indices = @transform_6, window_bounds = array<i64: 32, 32>}, {pipeline_mode = #tpu.pipeline_mode<synchronous>, transform_indices = @transform_7, window_bounds = array<i64: 1, 32>}, {pipeline_mode = #tpu.pipeline_mode<synchronous>, transform_indices = @transform_8, window_bounds = array<i64: 32, 32>}, {pipeline_mode = #tpu.pipeline_mode<synchronous>, transform_indices = @transform_9, window_bounds = array<i64: 1, 32>}, {pipeline_mode = #tpu.pipeline_mode<synchronous>, transform_indices = @transform_10, window_bounds = array<i64: 32, 64>}, {pipeline_mode = #tpu.pipeline_mode<synchronous>, transform_indices = @transform_11, window_bounds = array<i64: 1, 64>}, {pipeline_mode = #tpu.pipeline_mode<synchronous>, transform_indices = @transform_12, window_bounds = array<i64: 32, 32>}, {pipeline_mode = #tpu.pipeline_mode<synchronous>, transform_indices = @transform_13, window_bounds = array<i64: 1, 32>}, {pipeline_mode = #tpu.pipeline_mode<synchronous>, transform_indices = @transform_14, window_bounds = array<i64: 32, 64>}, {pipeline_mode = #tpu.pipeline_mode<synchronous>, transform_indices = @transform_15, window_bounds = array<i64: 64, 32>}, {pipeline_mode = #tpu.pipeline_mode<synchronous>, transform_indices = @transform_16, window_bounds = array<i64: 96, 192>}, {pipeline_mode = #tpu.pipeline_mode<synchronous>, transform_indices = @transform_17, window_bounds = array<i64: 1, 192>}, {pipeline_mode = #tpu.pipeline_mode<synchronous>, transform_indices = @transform_18, window_bounds = array<i64: 1, 192>}, {pipeline_mode = #tpu.pipeline_mode<synchronous>, transform_indices = @transform_19, window_bounds = array<i64: 1, 1>}, {transform_indices = @transform_20, window_bounds = array<i64: 1, 16, 32>}, {transform_indices = @transform_21, window_bounds = array<i64: 1, 8, 1>}]} {
    %c0 = arith.constant 0 : index
    %c0_0 = arith.constant 0 : index
    %c0_1 = arith.constant 0 : index
    %0 = vector.load %arg2[%c0, %c0_0, %c0_1] : memref<1x16x32xf32, #tpu.memory_space<vmem>>, vector<1x16x32xf32>
    %1 = vector.shape_cast %0 : vector<1x16x32xf32> to vector<16x32xf32>
    %c0_2 = arith.constant 0 : index
    %c0_3 = arith.constant 0 : index
    %c0_4 = arith.constant 0 : index
    %2 = vector.load %arg1[%c0_2, %c0_3, %c0_4] : memref<1x12x32xf32, #tpu.memory_space<vmem>>, vector<1x12x32xf32>
    %3 = vector.shape_cast %2 : vector<1x12x32xf32> to vector<12x32xf32>
    %c0_5 = arith.constant 0 : index
    %c0_6 = arith.constant 0 : index
    %4 = vector.load %arg4[%c0_5, %c0_6] : memref<16x16xf32, #tpu.memory_space<vmem>>, vector<16x16xf32>
    %5 = arith.truncf %1 : vector<16x32xf32> to vector<16x32xbf16>
    %c0_7 = arith.constant 0 : index
    %c0_8 = arith.constant 0 : index
    %6 = vector.load %arg5[%c0_7, %c0_8] : memref<32x96xbf16, #tpu.memory_space<vmem>>, vector<32x96xbf16>
    %cst = arith.constant dense<0.000000e+00> : vector<16x96xf32>
    %7 = tpu.matmul %5, %6, %cst {dimension_numbers = #tpu.dot_dimension_numbers<[1], [0], [0], [1], [0, 0, 1, 1], [], []>} : vector<16x32xbf16>, vector<32x96xbf16>, vector<16x96xf32> -> vector<16x96xf32>
    %c0_9 = arith.constant 0 : index
    %c0_10 = arith.constant 0 : index
    %8 = vector.load %arg6[%c0_9, %c0_10] : memref<1x96xf32, #tpu.memory_space<vmem>>, vector<1x96xf32>
    %9 = vector.broadcast %8 : vector<1x96xf32> to vector<16x96xf32>
    %10 = arith.addf %7, %9 : vector<16x96xf32>
    %11 = vector.extract_strided_slice %10 {offsets = [0, 0], sizes = [16, 32], strides = [1, 1]} : vector<16x96xf32> to vector<16x32xf32>
    %12 = vector.extract_strided_slice %10 {offsets = [0, 32], sizes = [16, 32], strides = [1, 1]} : vector<16x96xf32> to vector<16x32xf32>
    %13 = vector.extract_strided_slice %10 {offsets = [0, 64], sizes = [16, 32], strides = [1, 1]} : vector<16x96xf32> to vector<16x32xf32>
    %c0_11 = arith.constant 0 : index
    %c0_12 = arith.constant 0 : index
    %14 = vector.load %arg7[%c0_11, %c0_12] : memref<32x32xbf16, #tpu.memory_space<vmem>>, vector<32x32xbf16>
    %c0_13 = arith.constant 0 : index
    %c0_14 = arith.constant 0 : index
    %15 = vector.load %arg8[%c0_13, %c0_14] : memref<1x32xf32, #tpu.memory_space<vmem>>, vector<1x32xf32>
    %16 = arith.truncf %11 : vector<16x32xf32> to vector<16x32xbf16>
    %17 = arith.truncf %12 : vector<16x32xf32> to vector<16x32xbf16>
    %18 = tpu.transpose %17, [1, 0] : vector<16x32xbf16> -> vector<32x16xbf16>
    %19 = arith.truncf %13 : vector<16x32xf32> to vector<16x32xbf16>
    %20 = vector.extract_strided_slice %16 {offsets = [0, 0], sizes = [16, 8], strides = [1, 1]} : vector<16x32xbf16> to vector<16x8xbf16>
    %21 = vector.extract_strided_slice %18 {offsets = [0, 0], sizes = [8, 16], strides = [1, 1]} : vector<32x16xbf16> to vector<8x16xbf16>
    %cst_15 = arith.constant dense<0.000000e+00> : vector<16x16xf32>
    %22 = tpu.matmul %20, %21, %cst_15 {dimension_numbers = #tpu.dot_dimension_numbers<[1], [0], [0], [1], [0, 0, 1, 1], [], []>} : vector<16x8xbf16>, vector<8x16xbf16>, vector<16x16xf32> -> vector<16x16xf32>
    %cst_16 = arith.constant 0.353553385 : f32
    %23 = vector.broadcast %cst_16 : f32 to vector<16x16xf32>
    %24 = arith.mulf %22, %23 : vector<16x16xf32>
    %cst_17 = arith.constant dense<0xFF800000> : vector<16xf32>
    %25 = vector.multi_reduction <maximumf>, %24, %cst_17 [1] : vector<16x16xf32> to vector<16xf32>
    %26 = vector.shape_cast %25 : vector<16xf32> to vector<16x1xf32>
    %27 = vector.broadcast %26 : vector<16x1xf32> to vector<16x16xf32>
    %28 = arith.subf %24, %27 : vector<16x16xf32>
    %29 = math.exp %28 : vector<16x16xf32>
    %cst_18 = arith.constant dense<0.000000e+00> : vector<16xf32>
    %30 = vector.multi_reduction <add>, %29, %cst_18 [1] : vector<16x16xf32> to vector<16xf32>
    %31 = vector.shape_cast %30 : vector<16xf32> to vector<16x1xf32>
    %32 = vector.broadcast %31 : vector<16x1xf32> to vector<16x16xf32>
    %33 = arith.divf %29, %32 : vector<16x16xf32>
    %34 = arith.truncf %33 : vector<16x16xf32> to vector<16x16xbf16>
    %35 = vector.extract_strided_slice %19 {offsets = [0, 0], sizes = [16, 8], strides = [1, 1]} : vector<16x32xbf16> to vector<16x8xbf16>
    %cst_19 = arith.constant dense<0.000000e+00> : vector<16x8xf32>
    %36 = tpu.matmul %34, %35, %cst_19 {dimension_numbers = #tpu.dot_dimension_numbers<[1], [0], [0], [1], [0, 0, 1, 1], [], []>} : vector<16x16xbf16>, vector<16x8xbf16>, vector<16x8xf32> -> vector<16x8xf32>
    %37 = vector.extract_strided_slice %16 {offsets = [0, 8], sizes = [16, 8], strides = [1, 1]} : vector<16x32xbf16> to vector<16x8xbf16>
    %38 = vector.extract_strided_slice %18 {offsets = [8, 0], sizes = [8, 16], strides = [1, 1]} : vector<32x16xbf16> to vector<8x16xbf16>
    %cst_20 = arith.constant dense<0.000000e+00> : vector<16x16xf32>
    %39 = tpu.matmul %37, %38, %cst_20 {dimension_numbers = #tpu.dot_dimension_numbers<[1], [0], [0], [1], [0, 0, 1, 1], [], []>} : vector<16x8xbf16>, vector<8x16xbf16>, vector<16x16xf32> -> vector<16x16xf32>
    %cst_21 = arith.constant 0.353553385 : f32
    %40 = vector.broadcast %cst_21 : f32 to vector<16x16xf32>
    %41 = arith.mulf %39, %40 : vector<16x16xf32>
    %cst_22 = arith.constant dense<0xFF800000> : vector<16xf32>
    %42 = vector.multi_reduction <maximumf>, %41, %cst_22 [1] : vector<16x16xf32> to vector<16xf32>
    %43 = vector.shape_cast %42 : vector<16xf32> to vector<16x1xf32>
    %44 = vector.broadcast %43 : vector<16x1xf32> to vector<16x16xf32>
    %45 = arith.subf %41, %44 : vector<16x16xf32>
    %46 = math.exp %45 : vector<16x16xf32>
    %cst_23 = arith.constant dense<0.000000e+00> : vector<16xf32>
    %47 = vector.multi_reduction <add>, %46, %cst_23 [1] : vector<16x16xf32> to vector<16xf32>
    %48 = vector.shape_cast %47 : vector<16xf32> to vector<16x1xf32>
    %49 = vector.broadcast %48 : vector<16x1xf32> to vector<16x16xf32>
    %50 = arith.divf %46, %49 : vector<16x16xf32>
    %51 = arith.truncf %50 : vector<16x16xf32> to vector<16x16xbf16>
    %52 = vector.extract_strided_slice %19 {offsets = [0, 8], sizes = [16, 8], strides = [1, 1]} : vector<16x32xbf16> to vector<16x8xbf16>
    %cst_24 = arith.constant dense<0.000000e+00> : vector<16x8xf32>
    %53 = tpu.matmul %51, %52, %cst_24 {dimension_numbers = #tpu.dot_dimension_numbers<[1], [0], [0], [1], [0, 0, 1, 1], [], []>} : vector<16x16xbf16>, vector<16x8xbf16>, vector<16x8xf32> -> vector<16x8xf32>
    %54 = vector.extract_strided_slice %16 {offsets = [0, 16], sizes = [16, 8], strides = [1, 1]} : vector<16x32xbf16> to vector<16x8xbf16>
    %55 = vector.extract_strided_slice %18 {offsets = [16, 0], sizes = [8, 16], strides = [1, 1]} : vector<32x16xbf16> to vector<8x16xbf16>
    %cst_25 = arith.constant dense<0.000000e+00> : vector<16x16xf32>
    %56 = tpu.matmul %54, %55, %cst_25 {dimension_numbers = #tpu.dot_dimension_numbers<[1], [0], [0], [1], [0, 0, 1, 1], [], []>} : vector<16x8xbf16>, vector<8x16xbf16>, vector<16x16xf32> -> vector<16x16xf32>
    %cst_26 = arith.constant 0.353553385 : f32
    %57 = vector.broadcast %cst_26 : f32 to vector<16x16xf32>
    %58 = arith.mulf %56, %57 : vector<16x16xf32>
    %cst_27 = arith.constant dense<0xFF800000> : vector<16xf32>
    %59 = vector.multi_reduction <maximumf>, %58, %cst_27 [1] : vector<16x16xf32> to vector<16xf32>
    %60 = vector.shape_cast %59 : vector<16xf32> to vector<16x1xf32>
    %61 = vector.broadcast %60 : vector<16x1xf32> to vector<16x16xf32>
    %62 = arith.subf %58, %61 : vector<16x16xf32>
    %63 = math.exp %62 : vector<16x16xf32>
    %cst_28 = arith.constant dense<0.000000e+00> : vector<16xf32>
    %64 = vector.multi_reduction <add>, %63, %cst_28 [1] : vector<16x16xf32> to vector<16xf32>
    %65 = vector.shape_cast %64 : vector<16xf32> to vector<16x1xf32>
    %66 = vector.broadcast %65 : vector<16x1xf32> to vector<16x16xf32>
    %67 = arith.divf %63, %66 : vector<16x16xf32>
    %68 = arith.truncf %67 : vector<16x16xf32> to vector<16x16xbf16>
    %69 = vector.extract_strided_slice %19 {offsets = [0, 16], sizes = [16, 8], strides = [1, 1]} : vector<16x32xbf16> to vector<16x8xbf16>
    %cst_29 = arith.constant dense<0.000000e+00> : vector<16x8xf32>
    %70 = tpu.matmul %68, %69, %cst_29 {dimension_numbers = #tpu.dot_dimension_numbers<[1], [0], [0], [1], [0, 0, 1, 1], [], []>} : vector<16x16xbf16>, vector<16x8xbf16>, vector<16x8xf32> -> vector<16x8xf32>
    %71 = vector.extract_strided_slice %16 {offsets = [0, 24], sizes = [16, 8], strides = [1, 1]} : vector<16x32xbf16> to vector<16x8xbf16>
    %72 = vector.extract_strided_slice %18 {offsets = [24, 0], sizes = [8, 16], strides = [1, 1]} : vector<32x16xbf16> to vector<8x16xbf16>
    %cst_30 = arith.constant dense<0.000000e+00> : vector<16x16xf32>
    %73 = tpu.matmul %71, %72, %cst_30 {dimension_numbers = #tpu.dot_dimension_numbers<[1], [0], [0], [1], [0, 0, 1, 1], [], []>} : vector<16x8xbf16>, vector<8x16xbf16>, vector<16x16xf32> -> vector<16x16xf32>
    %cst_31 = arith.constant 0.353553385 : f32
    %74 = vector.broadcast %cst_31 : f32 to vector<16x16xf32>
    %75 = arith.mulf %73, %74 : vector<16x16xf32>
    %cst_32 = arith.constant dense<0xFF800000> : vector<16xf32>
    %76 = vector.multi_reduction <maximumf>, %75, %cst_32 [1] : vector<16x16xf32> to vector<16xf32>
    %77 = vector.shape_cast %76 : vector<16xf32> to vector<16x1xf32>
    %78 = vector.broadcast %77 : vector<16x1xf32> to vector<16x16xf32>
    %79 = arith.subf %75, %78 : vector<16x16xf32>
    %80 = math.exp %79 : vector<16x16xf32>
    %cst_33 = arith.constant dense<0.000000e+00> : vector<16xf32>
    %81 = vector.multi_reduction <add>, %80, %cst_33 [1] : vector<16x16xf32> to vector<16xf32>
    %82 = vector.shape_cast %81 : vector<16xf32> to vector<16x1xf32>
    %83 = vector.broadcast %82 : vector<16x1xf32> to vector<16x16xf32>
    %84 = arith.divf %80, %83 : vector<16x16xf32>
    %85 = arith.truncf %84 : vector<16x16xf32> to vector<16x16xbf16>
    %86 = vector.extract_strided_slice %19 {offsets = [0, 24], sizes = [16, 8], strides = [1, 1]} : vector<16x32xbf16> to vector<16x8xbf16>
    %cst_34 = arith.constant dense<0.000000e+00> : vector<16x8xf32>
    %87 = tpu.matmul %85, %86, %cst_34 {dimension_numbers = #tpu.dot_dimension_numbers<[1], [0], [0], [1], [0, 0, 1, 1], [], []>} : vector<16x16xbf16>, vector<16x8xbf16>, vector<16x8xf32> -> vector<16x8xf32>
    %88 = tpu.concatenate %36, %53, %70, %87 in 1 : vector<16x8xf32>, vector<16x8xf32>, vector<16x8xf32>, vector<16x8xf32> -> vector<16x32xf32>
    %89 = arith.truncf %88 : vector<16x32xf32> to vector<16x32xbf16>
    %cst_35 = arith.constant dense<0.000000e+00> : vector<16x32xf32>
    %90 = tpu.matmul %89, %14, %cst_35 {dimension_numbers = #tpu.dot_dimension_numbers<[1], [0], [0], [1], [0, 0, 1, 1], [], []>} : vector<16x32xbf16>, vector<32x32xbf16>, vector<16x32xf32> -> vector<16x32xf32>
    %91 = vector.broadcast %15 : vector<1x32xf32> to vector<16x32xf32>
    %92 = arith.addf %90, %91 : vector<16x32xf32>
    %93 = arith.addf %1, %92 : vector<16x32xf32>
    %cst_36 = arith.constant dense<0.000000e+00> : vector<16x32xf32>
    %94 = tpu.matmul %4, %93, %cst_36 {dimension_numbers = #tpu.dot_dimension_numbers<[1], [0], [0], [1], [0, 0, 1, 1], [], []>} : vector<16x16xf32>, vector<16x32xf32>, vector<16x32xf32> -> vector<16x32xf32>
    %95 = arith.subf %93, %94 : vector<16x32xf32>
    %96 = arith.truncf %95 : vector<16x32xf32> to vector<16x32xbf16>
    %c0_37 = arith.constant 0 : index
    %c0_38 = arith.constant 0 : index
    %97 = vector.load %arg9[%c0_37, %c0_38] : memref<32x32xbf16, #tpu.memory_space<vmem>>, vector<32x32xbf16>
    %cst_39 = arith.constant dense<0.000000e+00> : vector<16x32xf32>
    %98 = tpu.matmul %96, %97, %cst_39 {dimension_numbers = #tpu.dot_dimension_numbers<[1], [0], [0], [1], [0, 0, 1, 1], [], []>} : vector<16x32xbf16>, vector<32x32xbf16>, vector<16x32xf32> -> vector<16x32xf32>
    %c0_40 = arith.constant 0 : index
    %c0_41 = arith.constant 0 : index
    %99 = vector.load %arg10[%c0_40, %c0_41] : memref<1x32xf32, #tpu.memory_space<vmem>>, vector<1x32xf32>
    %100 = vector.broadcast %99 : vector<1x32xf32> to vector<16x32xf32>
    %101 = arith.addf %98, %100 : vector<16x32xf32>
    %102 = arith.truncf %3 : vector<12x32xf32> to vector<12x32xbf16>
    %c0_42 = arith.constant 0 : index
    %c0_43 = arith.constant 0 : index
    %103 = vector.load %arg11[%c0_42, %c0_43] : memref<32x64xbf16, #tpu.memory_space<vmem>>, vector<32x64xbf16>
    %cst_44 = arith.constant dense<0.000000e+00> : vector<12x64xf32>
    %104 = tpu.matmul %102, %103, %cst_44 {dimension_numbers = #tpu.dot_dimension_numbers<[1], [0], [0], [1], [0, 0, 1, 1], [], []>} : vector<12x32xbf16>, vector<32x64xbf16>, vector<12x64xf32> -> vector<12x64xf32>
    %c0_45 = arith.constant 0 : index
    %c0_46 = arith.constant 0 : index
    %105 = vector.load %arg12[%c0_45, %c0_46] : memref<1x64xf32, #tpu.memory_space<vmem>>, vector<1x64xf32>
    %106 = vector.broadcast %105 : vector<1x64xf32> to vector<12x64xf32>
    %107 = arith.addf %104, %106 : vector<12x64xf32>
    %108 = vector.extract_strided_slice %107 {offsets = [0, 0], sizes = [12, 32], strides = [1, 1]} : vector<12x64xf32> to vector<12x32xf32>
    %109 = vector.extract_strided_slice %107 {offsets = [0, 32], sizes = [12, 32], strides = [1, 1]} : vector<12x64xf32> to vector<12x32xf32>
    %c0_47 = arith.constant 0 : index
    %c0_48 = arith.constant 0 : index
    %110 = vector.load %arg13[%c0_47, %c0_48] : memref<32x32xbf16, #tpu.memory_space<vmem>>, vector<32x32xbf16>
    %c0_49 = arith.constant 0 : index
    %c0_50 = arith.constant 0 : index
    %111 = vector.load %arg14[%c0_49, %c0_50] : memref<1x32xf32, #tpu.memory_space<vmem>>, vector<1x32xf32>
    %112 = arith.truncf %101 : vector<16x32xf32> to vector<16x32xbf16>
    %113 = arith.truncf %108 : vector<12x32xf32> to vector<12x32xbf16>
    %114 = tpu.transpose %113, [1, 0] : vector<12x32xbf16> -> vector<32x12xbf16>
    %115 = arith.truncf %109 : vector<12x32xf32> to vector<12x32xbf16>
    %116 = vector.extract_strided_slice %112 {offsets = [0, 0], sizes = [16, 8], strides = [1, 1]} : vector<16x32xbf16> to vector<16x8xbf16>
    %117 = vector.extract_strided_slice %114 {offsets = [0, 0], sizes = [8, 12], strides = [1, 1]} : vector<32x12xbf16> to vector<8x12xbf16>
    %cst_51 = arith.constant dense<0.000000e+00> : vector<16x12xf32>
    %118 = tpu.matmul %116, %117, %cst_51 {dimension_numbers = #tpu.dot_dimension_numbers<[1], [0], [0], [1], [0, 0, 1, 1], [], []>} : vector<16x8xbf16>, vector<8x12xbf16>, vector<16x12xf32> -> vector<16x12xf32>
    %cst_52 = arith.constant 0.353553385 : f32
    %119 = vector.broadcast %cst_52 : f32 to vector<16x12xf32>
    %120 = arith.mulf %118, %119 : vector<16x12xf32>
    %cst_53 = arith.constant dense<0xFF800000> : vector<16xf32>
    %121 = vector.multi_reduction <maximumf>, %120, %cst_53 [1] : vector<16x12xf32> to vector<16xf32>
    %122 = vector.shape_cast %121 : vector<16xf32> to vector<16x1xf32>
    %123 = vector.broadcast %122 : vector<16x1xf32> to vector<16x12xf32>
    %124 = arith.subf %120, %123 : vector<16x12xf32>
    %125 = math.exp %124 : vector<16x12xf32>
    %cst_54 = arith.constant dense<0.000000e+00> : vector<16xf32>
    %126 = vector.multi_reduction <add>, %125, %cst_54 [1] : vector<16x12xf32> to vector<16xf32>
    %127 = vector.shape_cast %126 : vector<16xf32> to vector<16x1xf32>
    %128 = vector.broadcast %127 : vector<16x1xf32> to vector<16x12xf32>
    %129 = arith.divf %125, %128 : vector<16x12xf32>
    %130 = arith.truncf %129 : vector<16x12xf32> to vector<16x12xbf16>
    %131 = vector.extract_strided_slice %115 {offsets = [0, 0], sizes = [12, 8], strides = [1, 1]} : vector<12x32xbf16> to vector<12x8xbf16>
    %cst_55 = arith.constant dense<0.000000e+00> : vector<16x8xf32>
    %132 = tpu.matmul %130, %131, %cst_55 {dimension_numbers = #tpu.dot_dimension_numbers<[1], [0], [0], [1], [0, 0, 1, 1], [], []>} : vector<16x12xbf16>, vector<12x8xbf16>, vector<16x8xf32> -> vector<16x8xf32>
    %133 = vector.extract_strided_slice %112 {offsets = [0, 8], sizes = [16, 8], strides = [1, 1]} : vector<16x32xbf16> to vector<16x8xbf16>
    %134 = vector.extract_strided_slice %114 {offsets = [8, 0], sizes = [8, 12], strides = [1, 1]} : vector<32x12xbf16> to vector<8x12xbf16>
    %cst_56 = arith.constant dense<0.000000e+00> : vector<16x12xf32>
    %135 = tpu.matmul %133, %134, %cst_56 {dimension_numbers = #tpu.dot_dimension_numbers<[1], [0], [0], [1], [0, 0, 1, 1], [], []>} : vector<16x8xbf16>, vector<8x12xbf16>, vector<16x12xf32> -> vector<16x12xf32>
    %cst_57 = arith.constant 0.353553385 : f32
    %136 = vector.broadcast %cst_57 : f32 to vector<16x12xf32>
    %137 = arith.mulf %135, %136 : vector<16x12xf32>
    %cst_58 = arith.constant dense<0xFF800000> : vector<16xf32>
    %138 = vector.multi_reduction <maximumf>, %137, %cst_58 [1] : vector<16x12xf32> to vector<16xf32>
    %139 = vector.shape_cast %138 : vector<16xf32> to vector<16x1xf32>
    %140 = vector.broadcast %139 : vector<16x1xf32> to vector<16x12xf32>
    %141 = arith.subf %137, %140 : vector<16x12xf32>
    %142 = math.exp %141 : vector<16x12xf32>
    %cst_59 = arith.constant dense<0.000000e+00> : vector<16xf32>
    %143 = vector.multi_reduction <add>, %142, %cst_59 [1] : vector<16x12xf32> to vector<16xf32>
    %144 = vector.shape_cast %143 : vector<16xf32> to vector<16x1xf32>
    %145 = vector.broadcast %144 : vector<16x1xf32> to vector<16x12xf32>
    %146 = arith.divf %142, %145 : vector<16x12xf32>
    %147 = arith.truncf %146 : vector<16x12xf32> to vector<16x12xbf16>
    %148 = vector.extract_strided_slice %115 {offsets = [0, 8], sizes = [12, 8], strides = [1, 1]} : vector<12x32xbf16> to vector<12x8xbf16>
    %cst_60 = arith.constant dense<0.000000e+00> : vector<16x8xf32>
    %149 = tpu.matmul %147, %148, %cst_60 {dimension_numbers = #tpu.dot_dimension_numbers<[1], [0], [0], [1], [0, 0, 1, 1], [], []>} : vector<16x12xbf16>, vector<12x8xbf16>, vector<16x8xf32> -> vector<16x8xf32>
    %150 = vector.extract_strided_slice %112 {offsets = [0, 16], sizes = [16, 8], strides = [1, 1]} : vector<16x32xbf16> to vector<16x8xbf16>
    %151 = vector.extract_strided_slice %114 {offsets = [16, 0], sizes = [8, 12], strides = [1, 1]} : vector<32x12xbf16> to vector<8x12xbf16>
    %cst_61 = arith.constant dense<0.000000e+00> : vector<16x12xf32>
    %152 = tpu.matmul %150, %151, %cst_61 {dimension_numbers = #tpu.dot_dimension_numbers<[1], [0], [0], [1], [0, 0, 1, 1], [], []>} : vector<16x8xbf16>, vector<8x12xbf16>, vector<16x12xf32> -> vector<16x12xf32>
    %cst_62 = arith.constant 0.353553385 : f32
    %153 = vector.broadcast %cst_62 : f32 to vector<16x12xf32>
    %154 = arith.mulf %152, %153 : vector<16x12xf32>
    %cst_63 = arith.constant dense<0xFF800000> : vector<16xf32>
    %155 = vector.multi_reduction <maximumf>, %154, %cst_63 [1] : vector<16x12xf32> to vector<16xf32>
    %156 = vector.shape_cast %155 : vector<16xf32> to vector<16x1xf32>
    %157 = vector.broadcast %156 : vector<16x1xf32> to vector<16x12xf32>
    %158 = arith.subf %154, %157 : vector<16x12xf32>
    %159 = math.exp %158 : vector<16x12xf32>
    %cst_64 = arith.constant dense<0.000000e+00> : vector<16xf32>
    %160 = vector.multi_reduction <add>, %159, %cst_64 [1] : vector<16x12xf32> to vector<16xf32>
    %161 = vector.shape_cast %160 : vector<16xf32> to vector<16x1xf32>
    %162 = vector.broadcast %161 : vector<16x1xf32> to vector<16x12xf32>
    %163 = arith.divf %159, %162 : vector<16x12xf32>
    %164 = arith.truncf %163 : vector<16x12xf32> to vector<16x12xbf16>
    %165 = vector.extract_strided_slice %115 {offsets = [0, 16], sizes = [12, 8], strides = [1, 1]} : vector<12x32xbf16> to vector<12x8xbf16>
    %cst_65 = arith.constant dense<0.000000e+00> : vector<16x8xf32>
    %166 = tpu.matmul %164, %165, %cst_65 {dimension_numbers = #tpu.dot_dimension_numbers<[1], [0], [0], [1], [0, 0, 1, 1], [], []>} : vector<16x12xbf16>, vector<12x8xbf16>, vector<16x8xf32> -> vector<16x8xf32>
    %167 = vector.extract_strided_slice %112 {offsets = [0, 24], sizes = [16, 8], strides = [1, 1]} : vector<16x32xbf16> to vector<16x8xbf16>
    %168 = vector.extract_strided_slice %114 {offsets = [24, 0], sizes = [8, 12], strides = [1, 1]} : vector<32x12xbf16> to vector<8x12xbf16>
    %cst_66 = arith.constant dense<0.000000e+00> : vector<16x12xf32>
    %169 = tpu.matmul %167, %168, %cst_66 {dimension_numbers = #tpu.dot_dimension_numbers<[1], [0], [0], [1], [0, 0, 1, 1], [], []>} : vector<16x8xbf16>, vector<8x12xbf16>, vector<16x12xf32> -> vector<16x12xf32>
    %cst_67 = arith.constant 0.353553385 : f32
    %170 = vector.broadcast %cst_67 : f32 to vector<16x12xf32>
    %171 = arith.mulf %169, %170 : vector<16x12xf32>
    %cst_68 = arith.constant dense<0xFF800000> : vector<16xf32>
    %172 = vector.multi_reduction <maximumf>, %171, %cst_68 [1] : vector<16x12xf32> to vector<16xf32>
    %173 = vector.shape_cast %172 : vector<16xf32> to vector<16x1xf32>
    %174 = vector.broadcast %173 : vector<16x1xf32> to vector<16x12xf32>
    %175 = arith.subf %171, %174 : vector<16x12xf32>
    %176 = math.exp %175 : vector<16x12xf32>
    %cst_69 = arith.constant dense<0.000000e+00> : vector<16xf32>
    %177 = vector.multi_reduction <add>, %176, %cst_69 [1] : vector<16x12xf32> to vector<16xf32>
    %178 = vector.shape_cast %177 : vector<16xf32> to vector<16x1xf32>
    %179 = vector.broadcast %178 : vector<16x1xf32> to vector<16x12xf32>
    %180 = arith.divf %176, %179 : vector<16x12xf32>
    %181 = arith.truncf %180 : vector<16x12xf32> to vector<16x12xbf16>
    %182 = vector.extract_strided_slice %115 {offsets = [0, 24], sizes = [12, 8], strides = [1, 1]} : vector<12x32xbf16> to vector<12x8xbf16>
    %cst_70 = arith.constant dense<0.000000e+00> : vector<16x8xf32>
    %183 = tpu.matmul %181, %182, %cst_70 {dimension_numbers = #tpu.dot_dimension_numbers<[1], [0], [0], [1], [0, 0, 1, 1], [], []>} : vector<16x12xbf16>, vector<12x8xbf16>, vector<16x8xf32> -> vector<16x8xf32>
    %184 = tpu.concatenate %132, %149, %166, %183 in 1 : vector<16x8xf32>, vector<16x8xf32>, vector<16x8xf32>, vector<16x8xf32> -> vector<16x32xf32>
    %185 = arith.truncf %184 : vector<16x32xf32> to vector<16x32xbf16>
    %cst_71 = arith.constant dense<0.000000e+00> : vector<16x32xf32>
    %186 = tpu.matmul %185, %110, %cst_71 {dimension_numbers = #tpu.dot_dimension_numbers<[1], [0], [0], [1], [0, 0, 1, 1], [], []>} : vector<16x32xbf16>, vector<32x32xbf16>, vector<16x32xf32> -> vector<16x32xf32>
    %187 = vector.broadcast %111 : vector<1x32xf32> to vector<16x32xf32>
    %188 = arith.addf %186, %187 : vector<16x32xf32>
    %189 = arith.addf %95, %188 : vector<16x32xf32>
    %cst_72 = arith.constant dense<0.000000e+00> : vector<16x32xf32>
    %190 = tpu.matmul %4, %189, %cst_72 {dimension_numbers = #tpu.dot_dimension_numbers<[1], [0], [0], [1], [0, 0, 1, 1], [], []>} : vector<16x16xf32>, vector<16x32xf32>, vector<16x32xf32> -> vector<16x32xf32>
    %191 = arith.subf %189, %190 : vector<16x32xf32>
    %192 = arith.truncf %191 : vector<16x32xf32> to vector<16x32xbf16>
    %c0_73 = arith.constant 0 : index
    %c0_74 = arith.constant 0 : index
    %193 = vector.load %arg15[%c0_73, %c0_74] : memref<32x64xbf16, #tpu.memory_space<vmem>>, vector<32x64xbf16>
    %cst_75 = arith.constant dense<0.000000e+00> : vector<16x64xf32>
    %194 = tpu.matmul %192, %193, %cst_75 {dimension_numbers = #tpu.dot_dimension_numbers<[1], [0], [0], [1], [0, 0, 1, 1], [], []>} : vector<16x32xbf16>, vector<32x64xbf16>, vector<16x64xf32> -> vector<16x64xf32>
    %cst_76 = arith.constant 0.000000e+00 : f32
    %195 = vector.broadcast %cst_76 : f32 to vector<16x64xf32>
    %196 = arith.maximumf %194, %195 : vector<16x64xf32>
    %197 = arith.truncf %196 : vector<16x64xf32> to vector<16x64xbf16>
    %c0_77 = arith.constant 0 : index
    %c0_78 = arith.constant 0 : index
    %198 = vector.load %arg16[%c0_77, %c0_78] : memref<64x32xbf16, #tpu.memory_space<vmem>>, vector<64x32xbf16>
    %cst_79 = arith.constant dense<0.000000e+00> : vector<16x32xf32>
    %199 = tpu.matmul %197, %198, %cst_79 {dimension_numbers = #tpu.dot_dimension_numbers<[1], [0], [0], [1], [0, 0, 1, 1], [], []>} : vector<16x64xbf16>, vector<64x32xbf16>, vector<16x32xf32> -> vector<16x32xf32>
    %200 = arith.addf %199, %191 : vector<16x32xf32>
    %cst_80 = arith.constant dense<0.000000e+00> : vector<16x32xf32>
    %201 = tpu.matmul %4, %200, %cst_80 {dimension_numbers = #tpu.dot_dimension_numbers<[1], [0], [0], [1], [0, 0, 1, 1], [], []>} : vector<16x16xf32>, vector<16x32xf32>, vector<16x32xf32> -> vector<16x32xf32>
    %202 = arith.subf %200, %201 : vector<16x32xf32>
    %c0_81 = arith.constant 0 : index
    %c0_82 = arith.constant 0 : index
    %c0_83 = arith.constant 0 : index
    %203 = vector.load %arg21[%c0_81, %c0_82, %c0_83] : memref<1x16x32xf32, #tpu.memory_space<vmem>>, vector<1x16x32xf32>
    %204 = vector.shape_cast %203 : vector<1x16x32xf32> to vector<16x32xf32>
    %205 = vector.shape_cast %202 : vector<16x32xf32> to vector<1x16x32xf32>
    tpu.vector_store %arg21[%c0_81, %c0_82, %c0_83], %205 {strides = array<i32>} : memref<1x16x32xf32, #tpu.memory_space<vmem>>, vector<1x16x32xf32>,
    %206 = vector.extract_strided_slice %94 {offsets = [8, 0], sizes = [8, 32], strides = [1, 1]} : vector<16x32xf32> to vector<8x32xf32>
    %207 = vector.extract_strided_slice %190 {offsets = [8, 0], sizes = [8, 32], strides = [1, 1]} : vector<16x32xf32> to vector<8x32xf32>
    %208 = vector.extract_strided_slice %201 {offsets = [8, 0], sizes = [8, 32], strides = [1, 1]} : vector<16x32xf32> to vector<8x32xf32>
    %209 = tpu.concatenate %206, %207, %208 in 1 : vector<8x32xf32>, vector<8x32xf32>, vector<8x32xf32> -> vector<8x96xf32>
    %210 = arith.truncf %209 : vector<8x96xf32> to vector<8x96xbf16>
    %c0_84 = arith.constant 0 : index
    %c0_85 = arith.constant 0 : index
    %211 = vector.load %arg17[%c0_84, %c0_85] : memref<96x192xbf16, #tpu.memory_space<vmem>>, vector<96x192xbf16>
    %cst_86 = arith.constant dense<0.000000e+00> : vector<8x192xf32>
    %212 = tpu.matmul %210, %211, %cst_86 {dimension_numbers = #tpu.dot_dimension_numbers<[1], [0], [0], [1], [0, 0, 1, 1], [], []>} : vector<8x96xbf16>, vector<96x192xbf16>, vector<8x192xf32> -> vector<8x192xf32>
    %c0_87 = arith.constant 0 : index
    %c0_88 = arith.constant 0 : index
    %213 = vector.load %arg18[%c0_87, %c0_88] : memref<1x192xf32, #tpu.memory_space<vmem>>, vector<1x192xf32>
    %214 = vector.broadcast %213 : vector<1x192xf32> to vector<8x192xf32>
    %215 = arith.addf %212, %214 : vector<8x192xf32>
    %c0_89 = arith.constant 0 : index
    %c0_90 = arith.constant 0 : index
    %216 = vector.load %arg19[%c0_89, %c0_90] : memref<1x192xf32, #tpu.memory_space<vmem>>, vector<1x192xf32>
    %217 = vector.broadcast %216 : vector<1x192xf32> to vector<8x192xf32>
    %218 = arith.mulf %215, %217 : vector<8x192xf32>
    %cst_91 = arith.constant dense<0.000000e+00> : vector<8xf32>
    %219 = vector.multi_reduction <add>, %218, %cst_91 [1] : vector<8x192xf32> to vector<8xf32>
    %220 = vector.shape_cast %219 : vector<8xf32> to vector<8x1xf32>
    %c0_92 = arith.constant 0 : index
    %c0_93 = arith.constant 0 : index
    %221 = vector.load %arg20[%c0_92, %c0_93] : memref<1x1xf32, #tpu.memory_space<vmem>>, vector<1x1xf32>
    %222 = vector.broadcast %221 : vector<1x1xf32> to vector<8x1xf32>
    %223 = arith.addf %220, %222 : vector<8x1xf32>
    %c0_94 = arith.constant 0 : index
    %c0_95 = arith.constant 0 : index
    %c0_96 = arith.constant 0 : index
    %224 = vector.load %arg3[%c0_94, %c0_95, %c0_96] : memref<1x8x1xf32, #tpu.memory_space<vmem>>, vector<1x8x1xf32>
    %225 = vector.shape_cast %224 : vector<1x8x1xf32> to vector<8x1xf32>
    %226 = arith.addf %225, %223 : vector<8x1xf32>
    %c0_97 = arith.constant 0 : index
    %c0_98 = arith.constant 0 : index
    %c0_99 = arith.constant 0 : index
    %227 = vector.load %arg22[%c0_97, %c0_98, %c0_99] : memref<1x8x1xf32, #tpu.memory_space<vmem>>, vector<1x8x1xf32>
    %228 = vector.shape_cast %227 : vector<1x8x1xf32> to vector<8x1xf32>
    %229 = vector.shape_cast %226 : vector<8x1xf32> to vector<1x8x1xf32>
    tpu.vector_store %arg22[%c0_97, %c0_98, %c0_99], %229 {strides = array<i32>} : memref<1x8x1xf32, #tpu.memory_space<vmem>>, vector<1x8x1xf32>,
    return
  }
  func.func @transform_0(%arg0: i32) -> (i32, i32, i32) {
    %c0_i32 = arith.constant 0 : i32
    %c0_i32_0 = arith.constant 0 : i32
    %c0_i32_1 = arith.constant 0 : i32
    return %arg0, %c0_i32, %c0_i32_0 : i32, i32, i32
  }
  func.func @transform_1(%arg0: i32) -> (i32, i32, i32) {
    %c0_i32 = arith.constant 0 : i32
    %c0_i32_0 = arith.constant 0 : i32
    %c0_i32_1 = arith.constant 0 : i32
    return %arg0, %c0_i32, %c0_i32_0 : i32, i32, i32
  }
  func.func @transform_2(%arg0: i32) -> (i32, i32, i32) {
    %c0_i32 = arith.constant 0 : i32
    %c0_i32_0 = arith.constant 0 : i32
    %c0_i32_1 = arith.constant 0 : i32
    return %arg0, %c0_i32, %c0_i32_0 : i32, i32, i32
  }
  func.func @transform_3(%arg0: i32) -> (i32, i32) {
    %c0_i32 = arith.constant 0 : i32
    %c0_i32_0 = arith.constant 0 : i32
    %c0_i32_1 = arith.constant 0 : i32
    return %c0_i32, %c0_i32_0 : i32, i32
  }
  func.func @transform_4(%arg0: i32) -> (i32, i32) {
    %c0_i32 = arith.constant 0 : i32
    %c0_i32_0 = arith.constant 0 : i32
    %c0_i32_1 = arith.constant 0 : i32
    return %c0_i32, %c0_i32_0 : i32, i32
  }
  func.func @transform_5(%arg0: i32) -> (i32, i32) {
    %c0_i32 = arith.constant 0 : i32
    %c0_i32_0 = arith.constant 0 : i32
    %c0_i32_1 = arith.constant 0 : i32
    return %c0_i32, %c0_i32_0 : i32, i32
  }
  func.func @transform_6(%arg0: i32) -> (i32, i32) {
    %c0_i32 = arith.constant 0 : i32
    %c0_i32_0 = arith.constant 0 : i32
    %c0_i32_1 = arith.constant 0 : i32
    return %c0_i32, %c0_i32_0 : i32, i32
  }
  func.func @transform_7(%arg0: i32) -> (i32, i32) {
    %c0_i32 = arith.constant 0 : i32
    %c0_i32_0 = arith.constant 0 : i32
    %c0_i32_1 = arith.constant 0 : i32
    return %c0_i32, %c0_i32_0 : i32, i32
  }
  func.func @transform_8(%arg0: i32) -> (i32, i32) {
    %c0_i32 = arith.constant 0 : i32
    %c0_i32_0 = arith.constant 0 : i32
    %c0_i32_1 = arith.constant 0 : i32
    return %c0_i32, %c0_i32_0 : i32, i32
  }
  func.func @transform_9(%arg0: i32) -> (i32, i32) {
    %c0_i32 = arith.constant 0 : i32
    %c0_i32_0 = arith.constant 0 : i32
    %c0_i32_1 = arith.constant 0 : i32
    return %c0_i32, %c0_i32_0 : i32, i32
  }
  func.func @transform_10(%arg0: i32) -> (i32, i32) {
    %c0_i32 = arith.constant 0 : i32
    %c0_i32_0 = arith.constant 0 : i32
    %c0_i32_1 = arith.constant 0 : i32
    return %c0_i32, %c0_i32_0 : i32, i32
  }
  func.func @transform_11(%arg0: i32) -> (i32, i32) {
    %c0_i32 = arith.constant 0 : i32
    %c0_i32_0 = arith.constant 0 : i32
    %c0_i32_1 = arith.constant 0 : i32
    return %c0_i32, %c0_i32_0 : i32, i32
  }
  func.func @transform_12(%arg0: i32) -> (i32, i32) {
    %c0_i32 = arith.constant 0 : i32
    %c0_i32_0 = arith.constant 0 : i32
    %c0_i32_1 = arith.constant 0 : i32
    return %c0_i32, %c0_i32_0 : i32, i32
  }
  func.func @transform_13(%arg0: i32) -> (i32, i32) {
    %c0_i32 = arith.constant 0 : i32
    %c0_i32_0 = arith.constant 0 : i32
    %c0_i32_1 = arith.constant 0 : i32
    return %c0_i32, %c0_i32_0 : i32, i32
  }
  func.func @transform_14(%arg0: i32) -> (i32, i32) {
    %c0_i32 = arith.constant 0 : i32
    %c0_i32_0 = arith.constant 0 : i32
    %c0_i32_1 = arith.constant 0 : i32
    return %c0_i32, %c0_i32_0 : i32, i32
  }
  func.func @transform_15(%arg0: i32) -> (i32, i32) {
    %c0_i32 = arith.constant 0 : i32
    %c0_i32_0 = arith.constant 0 : i32
    %c0_i32_1 = arith.constant 0 : i32
    return %c0_i32, %c0_i32_0 : i32, i32
  }
  func.func @transform_16(%arg0: i32) -> (i32, i32) {
    %c0_i32 = arith.constant 0 : i32
    %c0_i32_0 = arith.constant 0 : i32
    %c0_i32_1 = arith.constant 0 : i32
    return %c0_i32, %c0_i32_0 : i32, i32
  }
  func.func @transform_17(%arg0: i32) -> (i32, i32) {
    %c0_i32 = arith.constant 0 : i32
    %c0_i32_0 = arith.constant 0 : i32
    %c0_i32_1 = arith.constant 0 : i32
    return %c0_i32, %c0_i32_0 : i32, i32
  }
  func.func @transform_18(%arg0: i32) -> (i32, i32) {
    %c0_i32 = arith.constant 0 : i32
    %c0_i32_0 = arith.constant 0 : i32
    %c0_i32_1 = arith.constant 0 : i32
    return %c0_i32, %c0_i32_0 : i32, i32
  }
  func.func @transform_19(%arg0: i32) -> (i32, i32) {
    %c0_i32 = arith.constant 0 : i32
    %c0_i32_0 = arith.constant 0 : i32
    %c0_i32_1 = arith.constant 0 : i32
    return %c0_i32, %c0_i32_0 : i32, i32
  }
  func.func @transform_20(%arg0: i32) -> (i32, i32, i32) {
    %c0_i32 = arith.constant 0 : i32
    %c0_i32_0 = arith.constant 0 : i32
    %c0_i32_1 = arith.constant 0 : i32
    return %arg0, %c0_i32, %c0_i32_0 : i32, i32, i32
  }
  func.func @transform_21(%arg0: i32) -> (i32, i32, i32) {
    %c0_i32 = arith.constant 0 : i32
    %c0_i32_0 = arith.constant 0 : i32
    %c0_i32_1 = arith.constant 0 : i32
    return %arg0, %c0_i32, %c0_i32_0 : i32, i32, i32
  }
}

module attributes {stable_mosaic.version = 11 : i64} {
  func.func @_decoder_layer_kernel(%arg0: i32, %arg1: memref<1x12x32xf32, #tpu.memory_space<vmem>>, %arg2: memref<1x16x32xf32, #tpu.memory_space<vmem>>, %arg3: memref<1x8x1xf32, #tpu.memory_space<vmem>>, %arg4: memref<16x16xf32, #tpu.memory_space<vmem>>, %arg5: memref<32x96xbf16, #tpu.memory_space<vmem>>, %arg6: memref<1x96xf32, #tpu.memory_space<vmem>>, %arg7: memref<32x32xbf16, #tpu.memory_space<vmem>>, %arg8: memref<1x32xf32, #tpu.memory_space<vmem>>, %arg9: memref<32x32xbf16, #tpu.memory_space<vmem>>, %arg10: memref<1x32xf32, #tpu.memory_space<vmem>>, %arg11: memref<32x64xbf16, #tpu.memory_space<vmem>>, %arg12: memref<1x64xf32, #tpu.memory_space<vmem>>, %arg13: memref<32x32xbf16, #tpu.memory_space<vmem>>, %arg14: memref<1x32xf32, #tpu.memory_space<vmem>>, %arg15: memref<32x64xbf16, #tpu.memory_space<vmem>>, %arg16: memref<64x32xbf16, #tpu.memory_space<vmem>>, %arg17: memref<96x192xbf16, #tpu.memory_space<vmem>>, %arg18: memref<1x192xf32, #tpu.memory_space<vmem>>, %arg19: memref<1x192xf32, #tpu.memory_space<vmem>>, %arg20: memref<1x1xf32, #tpu.memory_space<vmem>>, %arg21: memref<1x16x32xf32, #tpu.memory_space<vmem>>, %arg22: memref<1x8x1xf32, #tpu.memory_space<vmem>>) attributes {dimension_semantics = [#tpu.dimension_semantics<parallel>], iteration_bounds = array<i64: 2>, scalar_prefetch = 0 : i64, scratch_operands = 0 : i64, tpu.core_type = #tpu.core_type<tc>, window_params = [{transform_indices = @transform_0, window_bounds = array<i64: 1, 12, 32>}, {transform_indices = @transform_1, window_bounds = array<i64: 1, 16, 32>}, {transform_indices = @transform_2, window_bounds = array<i64: 1, 8, 1>}, {pipeline_mode = #tpu.pipeline_mode<synchronous>, transform_indices = @transform_3, window_bounds = array<i64: 16, 16>}, {pipeline_mode = #tpu.pipeline_mode<synchronous>, transform_indices = @transform_4, window_bounds = array<i64: 32, 96>}, {pipeline_mode = #tpu.pipeline_mode<synchronous>, transform_indices = @transform_5, window_bounds = array<i64: 1, 96>}, {pipeline_mode = #tpu.pipeline_mode<synchronous>, transform_indices = @transform_6, window_bounds = array<i64: 32, 32>}, {pipeline_mode = #tpu.pipeline_mode<synchronous>, transform_indices = @transform_7, window_bounds = array<i64: 1, 32>}, {pipeline_mode = #tpu.pipeline_mode<synchronous>, transform_indices = @transform_8, window_bounds = array<i64: 32, 32>}, {pipeline_mode = #tpu.pipeline_mode<synchronous>, transform_indices = @transform_9, window_bounds = array<i64: 1, 32>}, {pipeline_mode = #tpu.pipeline_mode<synchronous>, transform_indices = @transform_10, window_bounds = array<i64: 32, 64>}, {pipeline_mode = #tpu.pipeline_mode<synchronous>, transform_indices = @transform_11, window_bounds = array<i64: 1, 64>}, {pipeline_mode = #tpu.pipeline_mode<synchronous>, transform_indices = @transform_12, window_bounds = array<i64: 32, 32>}, {pipeline_mode = #tpu.pipeline_mode<synchronous>, transform_indices = @transform_13, window_bounds = array<i64: 1, 32>}, {pipeline_mode = #tpu.pipeline_mode<synchronous>, transform_indices = @transform_14, window_bounds = array<i64: 32, 64>}, {pipeline_mode = #tpu.pipeline_mode<synchronous>, transform_indices = @transform_15, window_bounds = array<i64: 64, 32>}, {pipeline_mode = #tpu.pipeline_mode<synchronous>, transform_indices = @transform_16, window_bounds = array<i64: 96, 192>}, {pipeline_mode = #tpu.pipeline_mode<synchronous>, transform_indices = @transform_17, window_bounds = array<i64: 1, 192>}, {pipeline_mode = #tpu.pipeline_mode<synchronous>, transform_indices = @transform_18, window_bounds = array<i64: 1, 192>}, {pipeline_mode = #tpu.pipeline_mode<synchronous>, transform_indices = @transform_19, window_bounds = array<i64: 1, 1>}, {transform_indices = @transform_20, window_bounds = array<i64: 1, 16, 32>}, {transform_indices = @transform_21, window_bounds = array<i64: 1, 8, 1>}]} {
    %c0 = arith.constant 0 : index
    %c0_0 = arith.constant 0 : index
    %c0_1 = arith.constant 0 : index
    %0 = vector.load %arg2[%c0, %c0_0, %c0_1] : memref<1x16x32xf32, #tpu.memory_space<vmem>>, vector<1x16x32xf32>
    %1 = vector.shape_cast %0 : vector<1x16x32xf32> to vector<16x32xf32>
    %c0_2 = arith.constant 0 : index
    %c0_3 = arith.constant 0 : index
    %c0_4 = arith.constant 0 : index
    %2 = vector.load %arg1[%c0_2, %c0_3, %c0_4] : memref<1x12x32xf32, #tpu.memory_space<vmem>>, vector<1x12x32xf32>
    %3 = vector.shape_cast %2 : vector<1x12x32xf32> to vector<12x32xf32>
    %c0_5 = arith.constant 0 : index
    %c0_6 = arith.constant 0 : index
    %4 = vector.load %arg4[%c0_5, %c0_6] : memref<16x16xf32, #tpu.memory_space<vmem>>, vector<16x16xf32>
    %5 = arith.truncf %1 : vector<16x32xf32> to vector<16x32xbf16>
    %c0_7 = arith.constant 0 : index
    %c0_8 = arith.constant 0 : index
    %6 = vector.load %arg5[%c0_7, %c0_8] : memref<32x96xbf16, #tpu.memory_space<vmem>>, vector<32x96xbf16>
    %cst = arith.constant dense<0.000000e+00> : vector<16x96xf32>
    %7 = tpu.matmul %5, %6, %cst {dimension_numbers = #tpu.dot_dimension_numbers<[1], [0], [0], [1], [0, 0, 1, 1], [], []>} : vector<16x32xbf16>, vector<32x96xbf16>, vector<16x96xf32> -> vector<16x96xf32>
    %c0_9 = arith.constant 0 : index
    %c0_10 = arith.constant 0 : index
    %8 = vector.load %arg6[%c0_9, %c0_10] : memref<1x96xf32, #tpu.memory_space<vmem>>, vector<1x96xf32>
    %9 = vector.broadcast %8 : vector<1x96xf32> to vector<16x96xf32>
    %10 = arith.addf %7, %9 : vector<16x96xf32>
    %11 = vector.extract_strided_slice %10 {offsets = [0, 0], sizes = [16, 32], strides = [1, 1]} : vector<16x96xf32> to vector<16x32xf32>
    %12 = vector.extract_strided_slice %10 {offsets = [0, 32], sizes = [16, 32], strides = [1, 1]} : vector<16x96xf32> to vector<16x32xf32>
    %13 = vector.extract_strided_slice %10 {offsets = [0, 64], sizes = [16, 32], strides = [1, 1]} : vector<16x96xf32> to vector<16x32xf32>
    %c0_11 = arith.constant 0 : index
    %c0_12 = arith.constant 0 : index
    %14 = vector.load %arg7[%c0_11, %c0_12] : memref<32x32xbf16, #tpu.memory_space<vmem>>, vector<32x32xbf16>
    %c0_13 = arith.constant 0 : index
    %c0_14 = arith.constant 0 : index
    %15 = vector.load %arg8[%c0_13, %c0_14] : memref<1x32xf32, #tpu.memory_space<vmem>>, vector<1x32xf32>
    %16 = arith.truncf %11 : vector<16x32xf32> to vector<16x32xbf16>
    %17 = arith.truncf %12 : vector<16x32xf32> to vector<16x32xbf16>
    %18 = tpu.transpose %17, [1, 0] : vector<16x32xbf16> -> vector<32x16xbf16>
    %19 = arith.truncf %13 : vector<16x32xf32> to vector<16x32xbf16>
    %20 = vector.extract_strided_slice %16 {offsets = [0, 0], sizes = [16, 8], strides = [1, 1]} : vector<16x32xbf16> to vector<16x8xbf16>
    %21 = vector.extract_strided_slice %18 {offsets = [0, 0], sizes = [8, 16], strides = [1, 1]} : vector<32x16xbf16> to vector<8x16xbf16>
    %cst_15 = arith.constant dense<0.000000e+00> : vector<16x16xf32>
    %22 = tpu.matmul %20, %21, %cst_15 {dimension_numbers = #tpu.dot_dimension_numbers<[1], [0], [0], [1], [0, 0, 1, 1], [], []>} : vector<16x8xbf16>, vector<8x16xbf16>, vector<16x16xf32> -> vector<16x16xf32>
    %cst_16 = arith.constant 0.353553385 : f32
    %23 = vector.broadcast %cst_16 : f32 to vector<16x16xf32>
    %24 = arith.mulf %22, %23 : vector<16x16xf32>
    %cst_17 = arith.constant dense<0xFF800000> : vector<16xf32>
    %25 = vector.multi_reduction <maximumf>, %24, %cst_17 [1] : vector<16x16xf32> to vector<16xf32>
    %26 = vector.shape_cast %25 : vector<16xf32> to vector<16x1xf32>
    %27 = vector.broadcast %26 : vector<16x1xf32> to vector<16x16xf32>
    %28 = arith.subf %24, %27 : vector<16x16xf32>
    %29 = math.exp %28 : vector<16x16xf32>
    %cst_18 = arith.constant dense<0.000000e+00> : vector<16xf32>
    %30 = vector.multi_reduction <add>, %29, %cst_18 [1] : vector<16x16xf32> to vector<16xf32>
    %31 = vector.shape_cast %30 : vector<16xf32> to vector<16x1xf32>
    %32 = vector.broadcast %31 : vector<16x1xf32> to vector<16x16xf32>
    %33 = arith.divf %29, %32 : vector<16x16xf32>
    %34 = arith.truncf %33 : vector<16x16xf32> to vector<16x16xbf16>
    %35 = vector.extract_strided_slice %19 {offsets = [0, 0], sizes = [16, 8], strides = [1, 1]} : vector<16x32xbf16> to vector<16x8xbf16>
    %cst_19 = arith.constant dense<0.000000e+00> : vector<16x8xf32>
    %36 = tpu.matmul %34, %35, %cst_19 {dimension_numbers = #tpu.dot_dimension_numbers<[1], [0], [0], [1], [0, 0, 1, 1], [], []>} : vector<16x16xbf16>, vector<16x8xbf16>, vector<16x8xf32> -> vector<16x8xf32>
    %37 = vector.extract_strided_slice %16 {offsets = [0, 8], sizes = [16, 8], strides = [1, 1]} : vector<16x32xbf16> to vector<16x8xbf16>
    %38 = vector.extract_strided_slice %18 {offsets = [8, 0], sizes = [8, 16], strides = [1, 1]} : vector<32x16xbf16> to vector<8x16xbf16>
    %cst_20 = arith.constant dense<0.000000e+00> : vector<16x16xf32>
    %39 = tpu.matmul %37, %38, %cst_20 {dimension_numbers = #tpu.dot_dimension_numbers<[1], [0], [0], [1], [0, 0, 1, 1], [], []>} : vector<16x8xbf16>, vector<8x16xbf16>, vector<16x16xf32> -> vector<16x16xf32>
    %cst_21 = arith.constant 0.353553385 : f32
    %40 = vector.broadcast %cst_21 : f32 to vector<16x16xf32>
    %41 = arith.mulf %39, %40 : vector<16x16xf32>
    %cst_22 = arith.constant dense<0xFF800000> : vector<16xf32>
    %42 = vector.multi_reduction <maximumf>, %41, %cst_22 [1] : vector<16x16xf32> to vector<16xf32>
    %43 = vector.shape_cast %42 : vector<16xf32> to vector<16x1xf32>
    %44 = vector.broadcast %43 : vector<16x1xf32> to vector<16x16xf32>
    %45 = arith.subf %41, %44 : vector<16x16xf32>
    %46 = math.exp %45 : vector<16x16xf32>
    %cst_23 = arith.constant dense<0.000000e+00> : vector<16xf32>
    %47 = vector.multi_reduction <add>, %46, %cst_23 [1] : vector<16x16xf32> to vector<16xf32>
    %48 = vector.shape_cast %47 : vector<16xf32> to vector<16x1xf32>
    %49 = vector.broadcast %48 : vector<16x1xf32> to vector<16x16xf32>
    %50 = arith.divf %46, %49 : vector<16x16xf32>
    %51 = arith.truncf %50 : vector<16x16xf32> to vector<16x16xbf16>
    %52 = vector.extract_strided_slice %19 {offsets = [0, 8], sizes = [16, 8], strides = [1, 1]} : vector<16x32xbf16> to vector<16x8xbf16>
    %cst_24 = arith.constant dense<0.000000e+00> : vector<16x8xf32>
    %53 = tpu.matmul %51, %52, %cst_24 {dimension_numbers = #tpu.dot_dimension_numbers<[1], [0], [0], [1], [0, 0, 1, 1], [], []>} : vector<16x16xbf16>, vector<16x8xbf16>, vector<16x8xf32> -> vector<16x8xf32>
    %54 = vector.extract_strided_slice %16 {offsets = [0, 16], sizes = [16, 8], strides = [1, 1]} : vector<16x32xbf16> to vector<16x8xbf16>
    %55 = vector.extract_strided_slice %18 {offsets = [16, 0], sizes = [8, 16], strides = [1, 1]} : vector<32x16xbf16> to vector<8x16xbf16>
    %cst_25 = arith.constant dense<0.000000e+00> : vector<16x16xf32>
    %56 = tpu.matmul %54, %55, %cst_25 {dimension_numbers = #tpu.dot_dimension_numbers<[1], [0], [0], [1], [0, 0, 1, 1], [], []>} : vector<16x8xbf16>, vector<8x16xbf16>, vector<16x16xf32> -> vector<16x16xf32>
    %cst_26 = arith.constant 0.353553385 : f32
    %57 = vector.broadcast %cst_26 : f32 to vector<16x16xf32>
    %58 = arith.mulf %56, %57 : vector<16x16xf32>
    %cst_27 = arith.constant dense<0xFF800000> : vector<16xf32>
    %59 = vector.multi_reduction <maximumf>, %58, %cst_27 [1] : vector<16x16xf32> to vector<16xf32>
    %60 = vector.shape_cast %59 : vector<16xf32> to vector<16x1xf32>
    %61 = vector.broadcast %60 : vector<16x1xf32> to vector<16x16xf32>
    %62 = arith.subf %58, %61 : vector<16x16xf32>
    %63 = math.exp %62 : vector<16x16xf32>
    %cst_28 = arith.constant dense<0.000000e+00> : vector<16xf32>
    %64 = vector.multi_reduction <add>, %63, %cst_28 [1] : vector<16x16xf32> to vector<16xf32>
    %65 = vector.shape_cast %64 : vector<16xf32> to vector<16x1xf32>
    %66 = vector.broadcast %65 : vector<16x1xf32> to vector<16x16xf32>
    %67 = arith.divf %63, %66 : vector<16x16xf32>
    %68 = arith.truncf %67 : vector<16x16xf32> to vector<16x16xbf16>
    %69 = vector.extract_strided_slice %19 {offsets = [0, 16], sizes = [16, 8], strides = [1, 1]} : vector<16x32xbf16> to vector<16x8xbf16>
    %cst_29 = arith.constant dense<0.000000e+00> : vector<16x8xf32>
    %70 = tpu.matmul %68, %69, %cst_29 {dimension_numbers = #tpu.dot_dimension_numbers<[1], [0], [0], [1], [0, 0, 1, 1], [], []>} : vector<16x16xbf16>, vector<16x8xbf16>, vector<16x8xf32> -> vector<16x8xf32>
    %71 = vector.extract_strided_slice %16 {offsets = [0, 24], sizes = [16, 8], strides = [1, 1]} : vector<16x32xbf16> to vector<16x8xbf16>
    %72 = vector.extract_strided_slice %18 {offsets = [24, 0], sizes = [8, 16], strides = [1, 1]} : vector<32x16xbf16> to vector<8x16xbf16>
    %cst_30 = arith.constant dense<0.000000e+00> : vector<16x16xf32>
    %73 = tpu.matmul %71, %72, %cst_30 {dimension_numbers = #tpu.dot_dimension_numbers<[1], [0], [0], [1], [0, 0, 1, 1], [], []>} : vector<16x8xbf16>, vector<8x16xbf16>, vector<16x16xf32> -> vector<16x16xf32>
    %cst_31 = arith.constant 0.353553385 : f32
    %74 = vector.broadcast %cst_31 : f32 to vector<16x16xf32>
    %75 = arith.mulf %73, %74 : vector<16x16xf32>
    %cst_32 = arith.constant dense<0xFF800000> : vector<16xf32>
    %76 = vector.multi_reduction <maximumf>, %75, %cst_32 [1] : vector<16x16xf32> to vector<16xf32>
    %77 = vector.shape_cast %76 : vector<16xf32> to vector<16x1xf32>
    %78 = vector.broadcast %77 : vector<16x1xf32> to vector<16x16xf32>
    %79 = arith.subf %75, %78 : vector<16x16xf32>
    %80 = math.exp %79 : vector<16x16xf32>
    %cst_33 = arith.constant dense<0.000000e+00> : vector<16xf32>
    %81 = vector.multi_reduction <add>, %80, %cst_33 [1] : vector<16x16xf32> to vector<16xf32>
    %82 = vector.shape_cast %81 : vector<16xf32> to vector<16x1xf32>
    %83 = vector.broadcast %82 : vector<16x1xf32> to vector<16x16xf32>
    %84 = arith.divf %80, %83 : vector<16x16xf32>
    %85 = arith.truncf %84 : vector<16x16xf32> to vector<16x16xbf16>
    %86 = vector.extract_strided_slice %19 {offsets = [0, 24], sizes = [16, 8], strides = [1, 1]} : vector<16x32xbf16> to vector<16x8xbf16>
    %cst_34 = arith.constant dense<0.000000e+00> : vector<16x8xf32>
    %87 = tpu.matmul %85, %86, %cst_34 {dimension_numbers = #tpu.dot_dimension_numbers<[1], [0], [0], [1], [0, 0, 1, 1], [], []>} : vector<16x16xbf16>, vector<16x8xbf16>, vector<16x8xf32> -> vector<16x8xf32>
    %88 = tpu.concatenate %36, %53, %70, %87 in 1 : vector<16x8xf32>, vector<16x8xf32>, vector<16x8xf32>, vector<16x8xf32> -> vector<16x32xf32>
    %89 = arith.truncf %88 : vector<16x32xf32> to vector<16x32xbf16>
    %cst_35 = arith.constant dense<0.000000e+00> : vector<16x32xf32>
    %90 = tpu.matmul %89, %14, %cst_35 {dimension_numbers = #tpu.dot_dimension_numbers<[1], [0], [0], [1], [0, 0, 1, 1], [], []>} : vector<16x32xbf16>, vector<32x32xbf16>, vector<16x32xf32> -> vector<16x32xf32>
    %91 = vector.broadcast %15 : vector<1x32xf32> to vector<16x32xf32>
    %92 = arith.addf %90, %91 : vector<16x32xf32>
    %93 = arith.addf %1, %92 : vector<16x32xf32>
    %cst_36 = arith.constant dense<0.000000e+00> : vector<16x32xf32>
    %94 = tpu.matmul %4, %93, %cst_36 {dimension_numbers = #tpu.dot_dimension_numbers<[1], [0], [0], [1], [0, 0, 1, 1], [], []>} : vector<16x16xf32>, vector<16x32xf32>, vector<16x32xf32> -> vector<16x32xf32>
    %95 = arith.subf %93, %94 : vector<16x32xf32>
    %96 = arith.truncf %95 : vector<16x32xf32> to vector<16x32xbf16>
    %c0_37 = arith.constant 0 : index
    %c0_38 = arith.constant 0 : index
    %97 = vector.load %arg9[%c0_37, %c0_38] : memref<32x32xbf16, #tpu.memory_space<vmem>>, vector<32x32xbf16>
    %cst_39 = arith.constant dense<0.000000e+00> : vector<16x32xf32>
    %98 = tpu.matmul %96, %97, %cst_39 {dimension_numbers = #tpu.dot_dimension_numbers<[1], [0], [0], [1], [0, 0, 1, 1], [], []>} : vector<16x32xbf16>, vector<32x32xbf16>, vector<16x32xf32> -> vector<16x32xf32>
    %c0_40 = arith.constant 0 : index
    %c0_41 = arith.constant 0 : index
    %99 = vector.load %arg10[%c0_40, %c0_41] : memref<1x32xf32, #tpu.memory_space<vmem>>, vector<1x32xf32>
    %100 = vector.broadcast %99 : vector<1x32xf32> to vector<16x32xf32>
    %101 = arith.addf %98, %100 : vector<16x32xf32>
    %102 = arith.truncf %3 : vector<12x32xf32> to vector<12x32xbf16>
    %c0_42 = arith.constant 0 : index
    %c0_43 = arith.constant 0 : index
    %103 = vector.load %arg11[%c0_42, %c0_43] : memref<32x64xbf16, #tpu.memory_space<vmem>>, vector<32x64xbf16>
    %cst_44 = arith.constant dense<0.000000e+00> : vector<12x64xf32>
    %104 = tpu.matmul %102, %103, %cst_44 {dimension_numbers = #tpu.dot_dimension_numbers<[1], [0], [0], [1], [0, 0, 1, 1], [], []>} : vector<12x32xbf16>, vector<32x64xbf16>, vector<12x64xf32> -> vector<12x64xf32>
    %c0_45 = arith.constant 0 : index
    %c0_46 = arith.constant 0 : index
    %105 = vector.load %arg12[%c0_45, %c0_46] : memref<1x64xf32, #tpu.memory_space<vmem>>, vector<1x64xf32>
    %106 = vector.broadcast %105 : vector<1x64xf32> to vector<12x64xf32>
    %107 = arith.addf %104, %106 : vector<12x64xf32>
    %108 = vector.extract_strided_slice %107 {offsets = [0, 0], sizes = [12, 32], strides = [1, 1]} : vector<12x64xf32> to vector<12x32xf32>
    %109 = vector.extract_strided_slice %107 {offsets = [0, 32], sizes = [12, 32], strides = [1, 1]} : vector<12x64xf32> to vector<12x32xf32>
    %c0_47 = arith.constant 0 : index
    %c0_48 = arith.constant 0 : index
    %110 = vector.load %arg13[%c0_47, %c0_48] : memref<32x32xbf16, #tpu.memory_space<vmem>>, vector<32x32xbf16>
    %c0_49 = arith.constant 0 : index
    %c0_50 = arith.constant 0 : index
    %111 = vector.load %arg14[%c0_49, %c0_50] : memref<1x32xf32, #tpu.memory_space<vmem>>, vector<1x32xf32>
    %112 = arith.truncf %101 : vector<16x32xf32> to vector<16x32xbf16>
    %113 = arith.truncf %108 : vector<12x32xf32> to vector<12x32xbf16>
    %114 = tpu.transpose %113, [1, 0] : vector<12x32xbf16> -> vector<32x12xbf16>
    %115 = arith.truncf %109 : vector<12x32xf32> to vector<12x32xbf16>
    %116 = vector.extract_strided_slice %112 {offsets = [0, 0], sizes = [16, 8], strides = [1, 1]} : vector<16x32xbf16> to vector<16x8xbf16>
    %117 = vector.extract_strided_slice %114 {offsets = [0, 0], sizes = [8, 12], strides = [1, 1]} : vector<32x12xbf16> to vector<8x12xbf16>
    %cst_51 = arith.constant dense<0.000000e+00> : vector<16x12xf32>
    %118 = tpu.matmul %116, %117, %cst_51 {dimension_numbers = #tpu.dot_dimension_numbers<[1], [0], [0], [1], [0, 0, 1, 1], [], []>} : vector<16x8xbf16>, vector<8x12xbf16>, vector<16x12xf32> -> vector<16x12xf32>
    %cst_52 = arith.constant 0.353553385 : f32
    %119 = vector.broadcast %cst_52 : f32 to vector<16x12xf32>
    %120 = arith.mulf %118, %119 : vector<16x12xf32>
    %cst_53 = arith.constant dense<0xFF800000> : vector<16xf32>
    %121 = vector.multi_reduction <maximumf>, %120, %cst_53 [1] : vector<16x12xf32> to vector<16xf32>
    %122 = vector.shape_cast %121 : vector<16xf32> to vector<16x1xf32>
    %123 = vector.broadcast %122 : vector<16x1xf32> to vector<16x12xf32>
    %124 = arith.subf %120, %123 : vector<16x12xf32>
    %125 = math.exp %124 : vector<16x12xf32>
    %cst_54 = arith.constant dense<0.000000e+00> : vector<16xf32>
    %126 = vector.multi_reduction <add>, %125, %cst_54 [1] : vector<16x12xf32> to vector<16xf32>
    %127 = vector.shape_cast %126 : vector<16xf32> to vector<16x1xf32>
    %128 = vector.broadcast %127 : vector<16x1xf32> to vector<16x12xf32>
    %129 = arith.divf %125, %128 : vector<16x12xf32>
    %130 = arith.truncf %129 : vector<16x12xf32> to vector<16x12xbf16>
    %131 = vector.extract_strided_slice %115 {offsets = [0, 0], sizes = [12, 8], strides = [1, 1]} : vector<12x32xbf16> to vector<12x8xbf16>
    %cst_55 = arith.constant dense<0.000000e+00> : vector<16x8xf32>
    %132 = tpu.matmul %130, %131, %cst_55 {dimension_numbers = #tpu.dot_dimension_numbers<[1], [0], [0], [1], [0, 0, 1, 1], [], []>} : vector<16x12xbf16>, vector<12x8xbf16>, vector<16x8xf32> -> vector<16x8xf32>
    %133 = vector.extract_strided_slice %112 {offsets = [0, 8], sizes = [16, 8], strides = [1, 1]} : vector<16x32xbf16> to vector<16x8xbf16>
    %134 = vector.extract_strided_slice %114 {offsets = [8, 0], sizes = [8, 12], strides = [1, 1]} : vector<32x12xbf16> to vector<8x12xbf16>
    %cst_56 = arith.constant dense<0.000000e+00> : vector<16x12xf32>
    %135 = tpu.matmul %133, %134, %cst_56 {dimension_numbers = #tpu.dot_dimension_numbers<[1], [0], [0], [1], [0, 0, 1, 1], [], []>} : vector<16x8xbf16>, vector<8x12xbf16>, vector<16x12xf32> -> vector<16x12xf32>
    %cst_57 = arith.constant 0.353553385 : f32
    %136 = vector.broadcast %cst_57 : f32 to vector<16x12xf32>
    %137 = arith.mulf %135, %136 : vector<16x12xf32>
    %cst_58 = arith.constant dense<0xFF800000> : vector<16xf32>
    %138 = vector.multi_reduction <maximumf>, %137, %cst_58 [1] : vector<16x12xf32> to vector<16xf32>
    %139 = vector.shape_cast %138 : vector<16xf32> to vector<16x1xf32>
    %140 = vector.broadcast %139 : vector<16x1xf32> to vector<16x12xf32>
    %141 = arith.subf %137, %140 : vector<16x12xf32>
    %142 = math.exp %141 : vector<16x12xf32>
    %cst_59 = arith.constant dense<0.000000e+00> : vector<16xf32>
    %143 = vector.multi_reduction <add>, %142, %cst_59 [1] : vector<16x12xf32> to vector<16xf32>
    %144 = vector.shape_cast %143 : vector<16xf32> to vector<16x1xf32>
    %145 = vector.broadcast %144 : vector<16x1xf32> to vector<16x12xf32>
    %146 = arith.divf %142, %145 : vector<16x12xf32>
    %147 = arith.truncf %146 : vector<16x12xf32> to vector<16x12xbf16>
    %148 = vector.extract_strided_slice %115 {offsets = [0, 8], sizes = [12, 8], strides = [1, 1]} : vector<12x32xbf16> to vector<12x8xbf16>
    %cst_60 = arith.constant dense<0.000000e+00> : vector<16x8xf32>
    %149 = tpu.matmul %147, %148, %cst_60 {dimension_numbers = #tpu.dot_dimension_numbers<[1], [0], [0], [1], [0, 0, 1, 1], [], []>} : vector<16x12xbf16>, vector<12x8xbf16>, vector<16x8xf32> -> vector<16x8xf32>
    %150 = vector.extract_strided_slice %112 {offsets = [0, 16], sizes = [16, 8], strides = [1, 1]} : vector<16x32xbf16> to vector<16x8xbf16>
    %151 = vector.extract_strided_slice %114 {offsets = [16, 0], sizes = [8, 12], strides = [1, 1]} : vector<32x12xbf16> to vector<8x12xbf16>
    %cst_61 = arith.constant dense<0.000000e+00> : vector<16x12xf32>
    %152 = tpu.matmul %150, %151, %cst_61 {dimension_numbers = #tpu.dot_dimension_numbers<[1], [0], [0], [1], [0, 0, 1, 1], [], []>} : vector<16x8xbf16>, vector<8x12xbf16>, vector<16x12xf32> -> vector<16x12xf32>
    %cst_62 = arith.constant 0.353553385 : f32
    %153 = vector.broadcast %cst_62 : f32 to vector<16x12xf32>
    %154 = arith.mulf %152, %153 : vector<16x12xf32>
    %cst_63 = arith.constant dense<0xFF800000> : vector<16xf32>
    %155 = vector.multi_reduction <maximumf>, %154, %cst_63 [1] : vector<16x12xf32> to vector<16xf32>
    %156 = vector.shape_cast %155 : vector<16xf32> to vector<16x1xf32>
    %157 = vector.broadcast %156 : vector<16x1xf32> to vector<16x12xf32>
    %158 = arith.subf %154, %157 : vector<16x12xf32>
    %159 = math.exp %158 : vector<16x12xf32>
    %cst_64 = arith.constant dense<0.000000e+00> : vector<16xf32>
    %160 = vector.multi_reduction <add>, %159, %cst_64 [1] : vector<16x12xf32> to vector<16xf32>
    %161 = vector.shape_cast %160 : vector<16xf32> to vector<16x1xf32>
    %162 = vector.broadcast %161 : vector<16x1xf32> to vector<16x12xf32>
    %163 = arith.divf %159, %162 : vector<16x12xf32>
    %164 = arith.truncf %163 : vector<16x12xf32> to vector<16x12xbf16>
    %165 = vector.extract_strided_slice %115 {offsets = [0, 16], sizes = [12, 8], strides = [1, 1]} : vector<12x32xbf16> to vector<12x8xbf16>
    %cst_65 = arith.constant dense<0.000000e+00> : vector<16x8xf32>
    %166 = tpu.matmul %164, %165, %cst_65 {dimension_numbers = #tpu.dot_dimension_numbers<[1], [0], [0], [1], [0, 0, 1, 1], [], []>} : vector<16x12xbf16>, vector<12x8xbf16>, vector<16x8xf32> -> vector<16x8xf32>
    %167 = vector.extract_strided_slice %112 {offsets = [0, 24], sizes = [16, 8], strides = [1, 1]} : vector<16x32xbf16> to vector<16x8xbf16>
    %168 = vector.extract_strided_slice %114 {offsets = [24, 0], sizes = [8, 12], strides = [1, 1]} : vector<32x12xbf16> to vector<8x12xbf16>
    %cst_66 = arith.constant dense<0.000000e+00> : vector<16x12xf32>
    %169 = tpu.matmul %167, %168, %cst_66 {dimension_numbers = #tpu.dot_dimension_numbers<[1], [0], [0], [1], [0, 0, 1, 1], [], []>} : vector<16x8xbf16>, vector<8x12xbf16>, vector<16x12xf32> -> vector<16x12xf32>
    %cst_67 = arith.constant 0.353553385 : f32
    %170 = vector.broadcast %cst_67 : f32 to vector<16x12xf32>
    %171 = arith.mulf %169, %170 : vector<16x12xf32>
    %cst_68 = arith.constant dense<0xFF800000> : vector<16xf32>
    %172 = vector.multi_reduction <maximumf>, %171, %cst_68 [1] : vector<16x12xf32> to vector<16xf32>
    %173 = vector.shape_cast %172 : vector<16xf32> to vector<16x1xf32>
    %174 = vector.broadcast %173 : vector<16x1xf32> to vector<16x12xf32>
    %175 = arith.subf %171, %174 : vector<16x12xf32>
    %176 = math.exp %175 : vector<16x12xf32>
    %cst_69 = arith.constant dense<0.000000e+00> : vector<16xf32>
    %177 = vector.multi_reduction <add>, %176, %cst_69 [1] : vector<16x12xf32> to vector<16xf32>
    %178 = vector.shape_cast %177 : vector<16xf32> to vector<16x1xf32>
    %179 = vector.broadcast %178 : vector<16x1xf32> to vector<16x12xf32>
    %180 = arith.divf %176, %179 : vector<16x12xf32>
    %181 = arith.truncf %180 : vector<16x12xf32> to vector<16x12xbf16>
    %182 = vector.extract_strided_slice %115 {offsets = [0, 24], sizes = [12, 8], strides = [1, 1]} : vector<12x32xbf16> to vector<12x8xbf16>
    %cst_70 = arith.constant dense<0.000000e+00> : vector<16x8xf32>
    %183 = tpu.matmul %181, %182, %cst_70 {dimension_numbers = #tpu.dot_dimension_numbers<[1], [0], [0], [1], [0, 0, 1, 1], [], []>} : vector<16x12xbf16>, vector<12x8xbf16>, vector<16x8xf32> -> vector<16x8xf32>
    %184 = tpu.concatenate %132, %149, %166, %183 in 1 : vector<16x8xf32>, vector<16x8xf32>, vector<16x8xf32>, vector<16x8xf32> -> vector<16x32xf32>
    %185 = arith.truncf %184 : vector<16x32xf32> to vector<16x32xbf16>
    %cst_71 = arith.constant dense<0.000000e+00> : vector<16x32xf32>
    %186 = tpu.matmul %185, %110, %cst_71 {dimension_numbers = #tpu.dot_dimension_numbers<[1], [0], [0], [1], [0, 0, 1, 1], [], []>} : vector<16x32xbf16>, vector<32x32xbf16>, vector<16x32xf32> -> vector<16x32xf32>
    %187 = vector.broadcast %111 : vector<1x32xf32> to vector<16x32xf32>
    %188 = arith.addf %186, %187 : vector<16x32xf32>
    %189 = arith.addf %95, %188 : vector<16x32xf32>
    %cst_72 = arith.constant dense<0.000000e+00> : vector<16x32xf32>
    %190 = tpu.matmul %4, %189, %cst_72 {dimension_numbers = #tpu.dot_dimension_numbers<[1], [0], [0], [1], [0, 0, 1, 1], [], []>} : vector<16x16xf32>, vector<16x32xf32>, vector<16x32xf32> -> vector<16x32xf32>
    %191 = arith.subf %189, %190 : vector<16x32xf32>
    %192 = arith.truncf %191 : vector<16x32xf32> to vector<16x32xbf16>
    %c0_73 = arith.constant 0 : index
    %c0_74 = arith.constant 0 : index
    %193 = vector.load %arg15[%c0_73, %c0_74] : memref<32x64xbf16, #tpu.memory_space<vmem>>, vector<32x64xbf16>
    %cst_75 = arith.constant dense<0.000000e+00> : vector<16x64xf32>
    %194 = tpu.matmul %192, %193, %cst_75 {dimension_numbers = #tpu.dot_dimension_numbers<[1], [0], [0], [1], [0, 0, 1, 1], [], []>} : vector<16x32xbf16>, vector<32x64xbf16>, vector<16x64xf32> -> vector<16x64xf32>
    %cst_76 = arith.constant 0.000000e+00 : f32
    %195 = vector.broadcast %cst_76 : f32 to vector<16x64xf32>
    %196 = arith.maximumf %194, %195 : vector<16x64xf32>
    %197 = arith.truncf %196 : vector<16x64xf32> to vector<16x64xbf16>
    %c0_77 = arith.constant 0 : index
    %c0_78 = arith.constant 0 : index
    %198 = vector.load %arg16[%c0_77, %c0_78] : memref<64x32xbf16, #tpu.memory_space<vmem>>, vector<64x32xbf16>
    %cst_79 = arith.constant dense<0.000000e+00> : vector<16x32xf32>
    %199 = tpu.matmul %197, %198, %cst_79 {dimension_numbers = #tpu.dot_dimension_numbers<[1], [0], [0], [1], [0, 0, 1, 1], [], []>} : vector<16x64xbf16>, vector<64x32xbf16>, vector<16x32xf32> -> vector<16x32xf32>
    %200 = arith.addf %199, %191 : vector<16x32xf32>
    %cst_80 = arith.constant dense<0.000000e+00> : vector<16x32xf32>
    %201 = tpu.matmul %4, %200, %cst_80 {dimension_numbers = #tpu.dot_dimension_numbers<[1], [0], [0], [1], [0, 0, 1, 1], [], []>} : vector<16x16xf32>, vector<16x32xf32>, vector<16x32xf32> -> vector<16x32xf32>
    %202 = arith.subf %200, %201 : vector<16x32xf32>
    %c0_81 = arith.constant 0 : index
    %c0_82 = arith.constant 0 : index
    %c0_83 = arith.constant 0 : index
    %203 = vector.load %arg21[%c0_81, %c0_82, %c0_83] : memref<1x16x32xf32, #tpu.memory_space<vmem>>, vector<1x16x32xf32>
    %204 = vector.shape_cast %203 : vector<1x16x32xf32> to vector<16x32xf32>
    %205 = vector.shape_cast %202 : vector<16x32xf32> to vector<1x16x32xf32>
    tpu.vector_store %arg21[%c0_81, %c0_82, %c0_83], %205 {strides = array<i32>} : memref<1x16x32xf32, #tpu.memory_space<vmem>>, vector<1x16x32xf32>,
    %206 = vector.extract_strided_slice %94 {offsets = [8, 0], sizes = [8, 32], strides = [1, 1]} : vector<16x32xf32> to vector<8x32xf32>
    %207 = vector.extract_strided_slice %190 {offsets = [8, 0], sizes = [8, 32], strides = [1, 1]} : vector<16x32xf32> to vector<8x32xf32>
    %208 = vector.extract_strided_slice %201 {offsets = [8, 0], sizes = [8, 32], strides = [1, 1]} : vector<16x32xf32> to vector<8x32xf32>
    %209 = tpu.concatenate %206, %207, %208 in 1 : vector<8x32xf32>, vector<8x32xf32>, vector<8x32xf32> -> vector<8x96xf32>
    %210 = arith.truncf %209 : vector<8x96xf32> to vector<8x96xbf16>
    %c0_84 = arith.constant 0 : index
    %c0_85 = arith.constant 0 : index
    %211 = vector.load %arg17[%c0_84, %c0_85] : memref<96x192xbf16, #tpu.memory_space<vmem>>, vector<96x192xbf16>
    %cst_86 = arith.constant dense<0.000000e+00> : vector<8x192xf32>
    %212 = tpu.matmul %210, %211, %cst_86 {dimension_numbers = #tpu.dot_dimension_numbers<[1], [0], [0], [1], [0, 0, 1, 1], [], []>} : vector<8x96xbf16>, vector<96x192xbf16>, vector<8x192xf32> -> vector<8x192xf32>
    %c0_87 = arith.constant 0 : index
    %c0_88 = arith.constant 0 : index
    %213 = vector.load %arg18[%c0_87, %c0_88] : memref<1x192xf32, #tpu.memory_space<vmem>>, vector<1x192xf32>
    %214 = vector.broadcast %213 : vector<1x192xf32> to vector<8x192xf32>
    %215 = arith.addf %212, %214 : vector<8x192xf32>
    %c0_89 = arith.constant 0 : index
    %c0_90 = arith.constant 0 : index
    %216 = vector.load %arg19[%c0_89, %c0_90] : memref<1x192xf32, #tpu.memory_space<vmem>>, vector<1x192xf32>
    %217 = vector.broadcast %216 : vector<1x192xf32> to vector<8x192xf32>
    %218 = arith.mulf %215, %217 : vector<8x192xf32>
    %cst_91 = arith.constant dense<0.000000e+00> : vector<8xf32>
    %219 = vector.multi_reduction <add>, %218, %cst_91 [1] : vector<8x192xf32> to vector<8xf32>
    %220 = vector.shape_cast %219 : vector<8xf32> to vector<8x1xf32>
    %c0_92 = arith.constant 0 : index
    %c0_93 = arith.constant 0 : index
    %221 = vector.load %arg20[%c0_92, %c0_93] : memref<1x1xf32, #tpu.memory_space<vmem>>, vector<1x1xf32>
    %222 = vector.broadcast %221 : vector<1x1xf32> to vector<8x1xf32>
    %223 = arith.addf %220, %222 : vector<8x1xf32>
    %c0_94 = arith.constant 0 : index
    %c0_95 = arith.constant 0 : index
    %c0_96 = arith.constant 0 : index
    %224 = vector.load %arg3[%c0_94, %c0_95, %c0_96] : memref<1x8x1xf32, #tpu.memory_space<vmem>>, vector<1x8x1xf32>
    %225 = vector.shape_cast %224 : vector<1x8x1xf32> to vector<8x1xf32>
    %226 = arith.addf %225, %223 : vector<8x1xf32>
    %c0_97 = arith.constant 0 : index
    %c0_98 = arith.constant 0 : index
    %c0_99 = arith.constant 0 : index
    %227 = vector.load %arg22[%c0_97, %c0_98, %c0_99] : memref<1x8x1xf32, #tpu.memory_space<vmem>>, vector<1x8x1xf32>
    %228 = vector.shape_cast %227 : vector<1x8x1xf32> to vector<8x1xf32>
    %229 = vector.shape_cast %226 : vector<8x1xf32> to vector<1x8x1xf32>
    tpu.vector_store %arg22[%c0_97, %c0_98, %c0_99], %229 {strides = array<i32>} : memref<1x8x1xf32, #tpu.memory_space<vmem>>, vector<1x8x1xf32>,
    return
  }
  func.func @transform_0(%arg0: i32) -> (i32, i32, i32) {
    %c0_i32 = arith.constant 0 : i32
    %c0_i32_0 = arith.constant 0 : i32
    %c0_i32_1 = arith.constant 0 : i32
    return %arg0, %c0_i32, %c0_i32_0 : i32, i32, i32
  }
  func.func @transform_1(%arg0: i32) -> (i32, i32, i32) {
    %c0_i32 = arith.constant 0 : i32
    %c0_i32_0 = arith.constant 0 : i32
    %c0_i32_1 = arith.constant 0 : i32
    return %arg0, %c0_i32, %c0_i32_0 : i32, i32, i32
  }
  func.func @transform_2(%arg0: i32) -> (i32, i32, i32) {
    %c0_i32 = arith.constant 0 : i32
    %c0_i32_0 = arith.constant 0 : i32
    %c0_i32_1 = arith.constant 0 : i32
    return %arg0, %c0_i32, %c0_i32_0 : i32, i32, i32
  }
  func.func @transform_3(%arg0: i32) -> (i32, i32) {
    %c0_i32 = arith.constant 0 : i32
    %c0_i32_0 = arith.constant 0 : i32
    %c0_i32_1 = arith.constant 0 : i32
    return %c0_i32, %c0_i32_0 : i32, i32
  }
  func.func @transform_4(%arg0: i32) -> (i32, i32) {
    %c0_i32 = arith.constant 0 : i32
    %c0_i32_0 = arith.constant 0 : i32
    %c0_i32_1 = arith.constant 0 : i32
    return %c0_i32, %c0_i32_0 : i32, i32
  }
  func.func @transform_5(%arg0: i32) -> (i32, i32) {
    %c0_i32 = arith.constant 0 : i32
    %c0_i32_0 = arith.constant 0 : i32
    %c0_i32_1 = arith.constant 0 : i32
    return %c0_i32, %c0_i32_0 : i32, i32
  }
  func.func @transform_6(%arg0: i32) -> (i32, i32) {
    %c0_i32 = arith.constant 0 : i32
    %c0_i32_0 = arith.constant 0 : i32
    %c0_i32_1 = arith.constant 0 : i32
    return %c0_i32, %c0_i32_0 : i32, i32
  }
  func.func @transform_7(%arg0: i32) -> (i32, i32) {
    %c0_i32 = arith.constant 0 : i32
    %c0_i32_0 = arith.constant 0 : i32
    %c0_i32_1 = arith.constant 0 : i32
    return %c0_i32, %c0_i32_0 : i32, i32
  }
  func.func @transform_8(%arg0: i32) -> (i32, i32) {
    %c0_i32 = arith.constant 0 : i32
    %c0_i32_0 = arith.constant 0 : i32
    %c0_i32_1 = arith.constant 0 : i32
    return %c0_i32, %c0_i32_0 : i32, i32
  }
  func.func @transform_9(%arg0: i32) -> (i32, i32) {
    %c0_i32 = arith.constant 0 : i32
    %c0_i32_0 = arith.constant 0 : i32
    %c0_i32_1 = arith.constant 0 : i32
    return %c0_i32, %c0_i32_0 : i32, i32
  }
  func.func @transform_10(%arg0: i32) -> (i32, i32) {
    %c0_i32 = arith.constant 0 : i32
    %c0_i32_0 = arith.constant 0 : i32
    %c0_i32_1 = arith.constant 0 : i32
    return %c0_i32, %c0_i32_0 : i32, i32
  }
  func.func @transform_11(%arg0: i32) -> (i32, i32) {
    %c0_i32 = arith.constant 0 : i32
    %c0_i32_0 = arith.constant 0 : i32
    %c0_i32_1 = arith.constant 0 : i32
    return %c0_i32, %c0_i32_0 : i32, i32
  }
  func.func @transform_12(%arg0: i32) -> (i32, i32) {
    %c0_i32 = arith.constant 0 : i32
    %c0_i32_0 = arith.constant 0 : i32
    %c0_i32_1 = arith.constant 0 : i32
    return %c0_i32, %c0_i32_0 : i32, i32
  }
  func.func @transform_13(%arg0: i32) -> (i32, i32) {
    %c0_i32 = arith.constant 0 : i32
    %c0_i32_0 = arith.constant 0 : i32
    %c0_i32_1 = arith.constant 0 : i32
    return %c0_i32, %c0_i32_0 : i32, i32
  }
  func.func @transform_14(%arg0: i32) -> (i32, i32) {
    %c0_i32 = arith.constant 0 : i32
    %c0_i32_0 = arith.constant 0 : i32
    %c0_i32_1 = arith.constant 0 : i32
    return %c0_i32, %c0_i32_0 : i32, i32
  }
  func.func @transform_15(%arg0: i32) -> (i32, i32) {
    %c0_i32 = arith.constant 0 : i32
    %c0_i32_0 = arith.constant 0 : i32
    %c0_i32_1 = arith.constant 0 : i32
    return %c0_i32, %c0_i32_0 : i32, i32
  }
  func.func @transform_16(%arg0: i32) -> (i32, i32) {
    %c0_i32 = arith.constant 0 : i32
    %c0_i32_0 = arith.constant 0 : i32
    %c0_i32_1 = arith.constant 0 : i32
    return %c0_i32, %c0_i32_0 : i32, i32
  }
  func.func @transform_17(%arg0: i32) -> (i32, i32) {
    %c0_i32 = arith.constant 0 : i32
    %c0_i32_0 = arith.constant 0 : i32
    %c0_i32_1 = arith.constant 0 : i32
    return %c0_i32, %c0_i32_0 : i32, i32
  }
  func.func @transform_18(%arg0: i32) -> (i32, i32) {
    %c0_i32 = arith.constant 0 : i32
    %c0_i32_0 = arith.constant 0 : i32
    %c0_i32_1 = arith.constant 0 : i32
    return %c0_i32, %c0_i32_0 : i32, i32
  }
  func.func @transform_19(%arg0: i32) -> (i32, i32) {
    %c0_i32 = arith.constant 0 : i32
    %c0_i32_0 = arith.constant 0 : i32
    %c0_i32_1 = arith.constant 0 : i32
    return %c0_i32, %c0_i32_0 : i32, i32
  }
  func.func @transform_20(%arg0: i32) -> (i32, i32, i32) {
    %c0_i32 = arith.constant 0 : i32
    %c0_i32_0 = arith.constant 0 : i32
    %c0_i32_1 = arith.constant 0 : i32
    return %arg0, %c0_i32, %c0_i32_0 : i32, i32, i32
  }
  func.func @transform_21(%arg0: i32) -> (i32, i32, i32) {
    %c0_i32 = arith.constant 0 : i32
    %c0_i32_0 = arith.constant 0 : i32
    %c0_i32_1 = arith.constant 0 : i32
    return %arg0, %c0_i32, %c0_i32_0 : i32, i32, i32
  }
}

</mosaic_0001>

<llo_original>
// kernel: decoder_stack_forward.2
$region0: #{decoder_stack_forward.2}
  #allocation0 [shape = 'u32[]', space=smem, size = 0x4, offset = 0x4, fixed_abs, tag = 'smem constant byte address 0x4 - core index']
  #allocation1 [shape = 'u32[144,128]{1,0:T(1,128)}', space=vmem, size = 0x12000, scoped, tag = 'internal scratch']
  #allocation2 [shape = 'f32[1,1]{1,0:T(1,128)S(1)}', space=vmem, size = 0x200, scoped, tag = 'scoped memory for decoder_stack_forward.2']
  %s0 = inlined_call_operand.vmem [shape: f32[2,12,32], index: 0, kind: input, shape index: {}]
  %s1 = inlined_call_operand.vmem [shape: f32[2,16,32], index: 1, kind: input, shape index: {}]
  %s2 = inlined_call_operand.vmem [shape: f32[2,8,1], index: 2, kind: input, shape index: {}]
  %s3 = inlined_call_operand.vmem [shape: f32[16,16], index: 3, kind: input, shape index: {}]
  %s4 = inlined_call_operand.hbm [shape: bf16[32,96], index: 4, kind: input, shape index: {}]
  %s5 = inlined_call_operand.hbm [shape: f32[1,96], index: 5, kind: input, shape index: {}]
  %s6 = inlined_call_operand.hbm [shape: bf16[32,32], index: 6, kind: input, shape index: {}]
  %s7 = inlined_call_operand.hbm [shape: f32[1,32], index: 7, kind: input, shape index: {}]
  %s8 = inlined_call_operand.hbm [shape: bf16[32,32], index: 8, kind: input, shape index: {}]
  %s9 = inlined_call_operand.hbm [shape: f32[1,32], index: 9, kind: input, shape index: {}]
  %s10 = inlined_call_operand.hbm [shape: bf16[32,64], index: 10, kind: input, shape index: {}]
  %s11 = inlined_call_operand.hbm [shape: f32[1,64], index: 11, kind: input, shape index: {}]
  %s12 = inlined_call_operand.hbm [shape: bf16[32,32], index: 12, kind: input, shape index: {}]
  %s13 = inlined_call_operand.hbm [shape: f32[1,32], index: 13, kind: input, shape index: {}]
  %s14 = inlined_call_operand.hbm [shape: bf16[32,64], index: 14, kind: input, shape index: {}]
  %s15 = inlined_call_operand.vmem [shape: bf16[64,32], index: 15, kind: input, shape index: {}]
  %s16 = inlined_call_operand.vmem [shape: bf16[96,192], index: 16, kind: input, shape index: {}]
  %s17 = inlined_call_operand.hbm [shape: f32[1,192], index: 17, kind: input, shape index: {}]
  %s18 = inlined_call_operand.hbm [shape: f32[1,192], index: 18, kind: input, shape index: {}]
  %s19 = inlined_call_operand.<no memory space> [shape: f32[1,1], index: 19, kind: input, shape index: {}]
  %s20 = inlined_call_operand.vmem [shape: f32[2,16,32], index: 20, kind: output, shape index: {0}]
  %s21 = inlined_call_operand.vmem [shape: f32[2,8,1], index: 21, kind: output, shape index: {1}]
  %22 = xla_tuple %s20, %s21
  %s23 = sld [smem:[#allocation0]]
  $region173: #{decoder_stack_forward.2} parent=0
    _
  %s25 = ssub.s32 1, %s23
  %s26 = scalar_select 0, %s25, %s23
  %v27 = vstv %s19
  %28 = vst [vmem:[#allocation2] sm:$0x1] %v27
  $region1: #{decoder_stack_forward.2} parent=0
    #allocation3 [shape = 'u8[8192]{0}', space=vmem, size = 0x2000, scoped, tag = 'input window, operand 4, single buffered']
    #allocation4 [shape = 's32[2]{0}', space=sflag, size = 0x8, scoped, tag = 'scoped memory for decoder_stack_forward.2']
    #allocation5 [shape = 'u8[512]{0}', space=vmem, size = 0x400, scoped, tag = 'input window, operand 5, single buffered']
    #allocation6 [shape = 's32[1]{0}', space=sflag, size = 0x4, scoped, tag = 'scoped memory for decoder_stack_forward.2']
    #allocation7 [shape = 'u8[8192]{0}', space=vmem, size = 0x2000, scoped, tag = 'input window, operand 6, single buffered']
    #allocation8 [shape = 'u8[512]{0}', space=vmem, size = 0x400, scoped, tag = 'input window, operand 7, single buffered']
    #allocation9 [shape = 's32[1]{0}', space=sflag, size = 0x4, scoped, tag = 'scoped memory for decoder_stack_forward.2']
    #allocation10 [shape = 'u8[8192]{0}', space=vmem, size = 0x2000, scoped, tag = 'input window, operand 8, single buffered']
    #allocation11 [shape = 'u8[512]{0}', space=vmem, size = 0x400, scoped, tag = 'input window, operand 9, single buffered']
    #allocation12 [shape = 's32[1]{0}', space=sflag, size = 0x4, scoped, tag = 'scoped memory for decoder_stack_forward.2']
    #allocation13 [shape = 'u8[8192]{0}', space=vmem, size = 0x2000, scoped, tag = 'input window, operand 10, single buffered']
    #allocation14 [shape = 'u8[512]{0}', space=vmem, size = 0x400, scoped, tag = 'input window, operand 11, single buffered']
    #allocation15 [shape = 's32[1]{0}', space=sflag, size = 0x4, scoped, tag = 'scoped memory for decoder_stack_forward.2']
    #allocation16 [shape = 'u8[8192]{0}', space=vmem, size = 0x2000, scoped, tag = 'input window, operand 12, single buffered']
    #allocation17 [shape = 'u8[512]{0}', space=vmem, size = 0x400, scoped, tag = 'input window, operand 13, single buffered']
    #allocation18 [shape = 's32[1]{0}', space=sflag, size = 0x4, scoped, tag = 'scoped memory for decoder_stack_forward.2']
    #allocation19 [shape = 'u8[8192]{0}', space=vmem, size = 0x2000, scoped, tag = 'input window, operand 14, single buffered']
    #allocation20 [shape = 'u8[1024]{0}', space=vmem, size = 0x400, scoped, tag = 'input window, operand 17, single buffered']
    #allocation21 [shape = 's32[1]{0}', space=sflag, size = 0x4, scoped, tag = 'scoped memory for decoder_stack_forward.2']
    #allocation22 [shape = 'u8[1024]{0}', space=vmem, size = 0x400, scoped, tag = 'input window, operand 18, single buffered']
    %29 = vsyncpa [#allocation4], 0
    %30 = vsyncpa [#allocation6], 0
    %31 = vsyncpa [#allocation9], 0
    %32 = vsyncpa [#allocation12], 0
    %33 = vsyncpa [#allocation15], 0
    %34 = vsyncpa [#allocation18], 0
    %35 = vsyncpa [#allocation21], 0
    loop: start=0, step=1, limit=4
    $region2: #{decoder_stack_forward.2} parent=1 // loop_pre_header
      _
    $region3: #{decoder_stack_forward.2} parent=1 // loop_header
      %s37 = sphi 0, %s41
      %p38 = scmp.ge.s32.totalorder %s37, 4
      %s47 = sphi 0, %s49
      %s50 = sphi 0, %s47
      %s51 = sphi 0, %s50
      %s67 = sphi 0, %s51
      %s73 = sphi 0, %s75
      %s76 = sphi 0, %s73
      %s77 = sphi 0, %s76
      %s93 = sphi 0, %s77
      %s99 = sphi 0, %s101
      %s102 = sphi 0, %s99
      %s103 = sphi 0, %s102
      %s119 = sphi 0, %s103
      %s123 = sphi 0, %s123
      %s125 = sphi 0, %s123
      %s126 = sphi 0, %s125
      %s140 = sphi 0, %s126
      %s144 = sphi 0, %s144
      %s146 = sphi 0, %s144
      %s147 = sphi 0, %s146
      %s161 = sphi 0, %s147
      %s165 = sphi 0, %s165
      %s167 = sphi 0, %s165
      %s168 = sphi 0, %s167
      %s182 = sphi 0, %s168
      %s186 = sphi 0, %s186
      %s188 = sphi 0, %s186
      %s189 = sphi 0, %s188
      %s203 = sphi 0, %s189
      %s207 = sphi 0, %s207
      %s209 = sphi 0, %s207
      %s210 = sphi 0, %s209
      %s224 = sphi 0, %s210
      %s228 = sphi 0, %s228
      %s230 = sphi 0, %s228
      %s231 = sphi 0, %s230
      %s245 = sphi 0, %s231
      %s249 = sphi 0, %s249
      %s251 = sphi 0, %s249
      %s252 = sphi 0, %s251
      %s266 = sphi 0, %s252
      %s270 = sphi 0, %s270
      %s272 = sphi 0, %s270
      %s273 = sphi 0, %s272
      %s287 = sphi 0, %s273
      %s291 = sphi 0, %s291
      %s293 = sphi 0, %s291
      %s294 = sphi 0, %s293
      %s308 = sphi 0, %s294
      %s312 = sphi 0, %s312
      %s314 = sphi 0, %s312
      %s315 = sphi 0, %s314
      %s329 = sphi 0, %s315
      %s333 = sphi 0, %s333
      %s335 = sphi 0, %s333
      %s336 = sphi 0, %s335
      %s350 = sphi 0, %s336
      %s354 = sphi 0, %s354
      %s356 = sphi 0, %s354
      %s357 = sphi 0, %s356
      %s371 = sphi 0, %s357
      %s375 = sphi 0, %s375
      %s377 = sphi 0, %s375
      %s378 = sphi 0, %s377
      %s392 = sphi 0, %s378
      %s396 = sphi 0, %s396
      %s398 = sphi 0, %s396
      %s399 = sphi 0, %s398
      %s413 = sphi 0, %s399
      %s417 = sphi 0, %s417
      %s419 = sphi 0, %s417
      %s420 = sphi 0, %s419
      %s434 = sphi 0, %s420
      %s438 = sphi 0, %s438
      %s440 = sphi 0, %s438
      %s441 = sphi 0, %s440
      %s455 = sphi 0, %s441
      %s459 = sphi 0, %s459
      %s461 = sphi 0, %s459
      %s462 = sphi 0, %s461
      %s476 = sphi 0, %s462
      %s482 = sphi 0, %s484
      %s485 = sphi 0, %s482
      %s486 = sphi 0, %s485
      %s502 = sphi 0, %s486
      %s508 = sphi 0, %s510
      %s511 = sphi 0, %s508
      %s512 = sphi 0, %s511
      %s528 = sphi 0, %s512
    $region4: #{decoder_stack_forward.2} parent=1 // loop_header_branch
      %40 = sbr.rel (%p38) target = $region8
    $region5: #{decoder_stack_forward.2} parent=1 // loop_body
      %s42 = ssub.s32 %s37, 1
      %s43 = ssub.s32 %s37, 2
      %s44 = sadd.s32 %s37, 1
      %s45 = ssub.s32 %s37, %s44
      %p46 = scmp.eq.s32.totalorder %s45, 0
      %s48 = sadd.s32 %s47, 1
      %s49 = scalar_select %p46, %s47, %s48
      %p52 = pneg %p46
      %p53 = scmp.eq.s32.totalorder %s37, 1
      %p54 = por %p52, %p53
      %p55 = scmp.ne.s32.totalorder %s47, %s50
      %p56 = scmp.eq.s32.totalorder %s37, 0
      %p57 = por %p55, %p56
      %p58 = scmp.ne.s32.totalorder %s47, %s50
      %p59 = scmp.eq.s32.totalorder %s42, 1
      %p60 = por %p58, %p59
      %p61 = scmp.ne.s32.totalorder %s50, %s51
      %p62 = scmp.eq.s32.totalorder %s42, 0
      %p63 = por %p61, %p62
      %p64 = scmp.ne.s32.totalorder %s50, %s51
      %p65 = scmp.eq.s32.totalorder %s43, 1
      %p66 = por %p64, %p65
      %p68 = scmp.ne.s32.totalorder %s51, %s67
      %p69 = scmp.eq.s32.totalorder %s43, 0
      %p70 = por %p68, %p69
      %s71 = ssub.s32 %s37, %s44
      %p72 = scmp.eq.s32.totalorder %s71, 0
      %s74 = sadd.s32 %s73, 1
      %s75 = scalar_select %p72, %s73, %s74
      %p78 = pneg %p72
      %p79 = scmp.eq.s32.totalorder %s37, 1
      %p80 = por %p78, %p79
      %p81 = scmp.ne.s32.totalorder %s73, %s76
      %p82 = scmp.eq.s32.totalorder %s37, 0
      %p83 = por %p81, %p82
      %p84 = scmp.ne.s32.totalorder %s73, %s76
      %p85 = scmp.eq.s32.totalorder %s42, 1
      %p86 = por %p84, %p85
      %p87 = scmp.ne.s32.totalorder %s76, %s77
      %p88 = scmp.eq.s32.totalorder %s42, 0
      %p89 = por %p87, %p88
      %p90 = scmp.ne.s32.totalorder %s76, %s77
      %p91 = scmp.eq.s32.totalorder %s43, 1
      %p92 = por %p90, %p91
      %p94 = scmp.ne.s32.totalorder %s77, %s93
      %p95 = scmp.eq.s32.totalorder %s43, 0
      %p96 = por %p94, %p95
      %s97 = ssub.s32 %s37, %s44
      %p98 = scmp.eq.s32.totalorder %s97, 0
      %s100 = sadd.s32 %s99, 1
      %s101 = scalar_select %p98, %s99, %s100
      %p104 = pneg %p98
      %p105 = scmp.eq.s32.totalorder %s37, 1
      %p106 = por %p104, %p105
      %p107 = scmp.ne.s32.totalorder %s99, %s102
      %p108 = scmp.eq.s32.totalorder %s37, 0
      %p109 = por %p107, %p108
      %p110 = scmp.ne.s32.totalorder %s99, %s102
      %p111 = scmp.eq.s32.totalorder %s42, 1
      %p112 = por %p110, %p111
      %p113 = scmp.ne.s32.totalorder %s102, %s103
      %p114 = scmp.eq.s32.totalorder %s42, 0
      %p115 = por %p113, %p114
      %p116 = scmp.ne.s32.totalorder %s102, %s103
      %p117 = scmp.eq.s32.totalorder %s43, 1
      %p118 = por %p116, %p117
      %p120 = scmp.ne.s32.totalorder %s103, %s119
      %p121 = scmp.eq.s32.totalorder %s43, 0
      %p122 = por %p120, %p121
      %s124 = sadd.s32 %s123, 1
      %p127 = scmp.eq.s32.totalorder %s37, 1
      %p128 = scmp.ne.s32.totalorder %s123, %s125
      %p129 = scmp.eq.s32.totalorder %s37, 0
      %p130 = por %p128, %p129
      %p131 = scmp.ne.s32.totalorder %s123, %s125
      %p132 = scmp.eq.s32.totalorder %s42, 1
      %p133 = por %p131, %p132
      %p134 = scmp.ne.s32.totalorder %s125, %s126
      %p135 = scmp.eq.s32.totalorder %s42, 0
      %p136 = por %p134, %p135
      %p137 = scmp.ne.s32.totalorder %s125, %s126
      %p138 = scmp.eq.s32.totalorder %s43, 1
      %p139 = por %p137, %p138
      %p141 = scmp.ne.s32.totalorder %s126, %s140
      %p142 = scmp.eq.s32.totalorder %s43, 0
      %p143 = por %p141, %p142
      %s145 = sadd.s32 %s144, 1
      %p148 = scmp.eq.s32.totalorder %s37, 1
      %p149 = scmp.ne.s32.totalorder %s144, %s146
      %p150 = scmp.eq.s32.totalorder %s37, 0
      %p151 = por %p149, %p150
      %p152 = scmp.ne.s32.totalorder %s144, %s146
      %p153 = scmp.eq.s32.totalorder %s42, 1
      %p154 = por %p152, %p153
      %p155 = scmp.ne.s32.totalorder %s146, %s147
      %p156 = scmp.eq.s32.totalorder %s42, 0
      %p157 = por %p155, %p156
      %p158 = scmp.ne.s32.totalorder %s146, %s147
      %p159 = scmp.eq.s32.totalorder %s43, 1
      %p160 = por %p158, %p159
      %p162 = scmp.ne.s32.totalorder %s147, %s161
      %p163 = scmp.eq.s32.totalorder %s43, 0
      %p164 = por %p162, %p163
      %s166 = sadd.s32 %s165, 1
      %p169 = scmp.eq.s32.totalorder %s37, 1
      %p170 = scmp.ne.s32.totalorder %s165, %s167
      %p171 = scmp.eq.s32.totalorder %s37, 0
      %p172 = por %p170, %p171
      %p173 = scmp.ne.s32.totalorder %s165, %s167
      %p174 = scmp.eq.s32.totalorder %s42, 1
      %p175 = por %p173, %p174
      %p176 = scmp.ne.s32.totalorder %s167, %s168
      %p177 = scmp.eq.s32.totalorder %s42, 0
      %p178 = por %p176, %p177
      %p179 = scmp.ne.s32.totalorder %s167, %s168
      %p180 = scmp.eq.s32.totalorder %s43, 1
      %p181 = por %p179, %p180
      %p183 = scmp.ne.s32.totalorder %s168, %s182
      %p184 = scmp.eq.s32.totalorder %s43, 0
      %p185 = por %p183, %p184
      %s187 = sadd.s32 %s186, 1
      %p190 = scmp.eq.s32.totalorder %s37, 1
      %p191 = scmp.ne.s32.totalorder %s186, %s188
      %p192 = scmp.eq.s32.totalorder %s37, 0
      %p193 = por %p191, %p192
      %p194 = scmp.ne.s32.totalorder %s186, %s188
      %p195 = scmp.eq.s32.totalorder %s42, 1
      %p196 = por %p194, %p195
      %p197 = scmp.ne.s32.totalorder %s188, %s189
      %p198 = scmp.eq.s32.totalorder %s42, 0
      %p199 = por %p197, %p198
      %p200 = scmp.ne.s32.totalorder %s188, %s189
      %p201 = scmp.eq.s32.totalorder %s43, 1
      %p202 = por %p200, %p201
      %p204 = scmp.ne.s32.totalorder %s189, %s203
      %p205 = scmp.eq.s32.totalorder %s43, 0
      %p206 = por %p204, %p205
      %s208 = sadd.s32 %s207, 1
      %p211 = scmp.eq.s32.totalorder %s37, 1
      %p212 = scmp.ne.s32.totalorder %s207, %s209
      %p213 = scmp.eq.s32.totalorder %s37, 0
      %p214 = por %p212, %p213
      %p215 = scmp.ne.s32.totalorder %s207, %s209
      %p216 = scmp.eq.s32.totalorder %s42, 1
      %p217 = por %p215, %p216
      %p218 = scmp.ne.s32.totalorder %s209, %s210
      %p219 = scmp.eq.s32.totalorder %s42, 0
      %p220 = por %p218, %p219
      %p221 = scmp.ne.s32.totalorder %s209, %s210
      %p222 = scmp.eq.s32.totalorder %s43, 1
      %p223 = por %p221, %p222
      %p225 = scmp.ne.s32.totalorder %s210, %s224
      %p226 = scmp.eq.s32.totalorder %s43, 0
      %p227 = por %p225, %p226
      %s229 = sadd.s32 %s228, 1
      %p232 = scmp.eq.s32.totalorder %s37, 1
      %p233 = scmp.ne.s32.totalorder %s228, %s230
      %p234 = scmp.eq.s32.totalorder %s37, 0
      %p235 = por %p233, %p234
      %p236 = scmp.ne.s32.totalorder %s228, %s230
      %p237 = scmp.eq.s32.totalorder %s42, 1
      %p238 = por %p236, %p237
      %p239 = scmp.ne.s32.totalorder %s230, %s231
      %p240 = scmp.eq.s32.totalorder %s42, 0
      %p241 = por %p239, %p240
      %p242 = scmp.ne.s32.totalorder %s230, %s231
      %p243 = scmp.eq.s32.totalorder %s43, 1
      %p244 = por %p242, %p243
      %p246 = scmp.ne.s32.totalorder %s231, %s245
      %p247 = scmp.eq.s32.totalorder %s43, 0
      %p248 = por %p246, %p247
      %s250 = sadd.s32 %s249, 1
      %p253 = scmp.eq.s32.totalorder %s37, 1
      %p254 = scmp.ne.s32.totalorder %s249, %s251
      %p255 = scmp.eq.s32.totalorder %s37, 0
      %p256 = por %p254, %p255
      %p257 = scmp.ne.s32.totalorder %s249, %s251
      %p258 = scmp.eq.s32.totalorder %s42, 1
      %p259 = por %p257, %p258
      %p260 = scmp.ne.s32.totalorder %s251, %s252
      %p261 = scmp.eq.s32.totalorder %s42, 0
      %p262 = por %p260, %p261
      %p263 = scmp.ne.s32.totalorder %s251, %s252
      %p264 = scmp.eq.s32.totalorder %s43, 1
      %p265 = por %p263, %p264
      %p267 = scmp.ne.s32.totalorder %s252, %s266
      %p268 = scmp.eq.s32.totalorder %s43, 0
      %p269 = por %p267, %p268
      %s271 = sadd.s32 %s270, 1
      %p274 = scmp.eq.s32.totalorder %s37, 1
      %p275 = scmp.ne.s32.totalorder %s270, %s272
      %p276 = scmp.eq.s32.totalorder %s37, 0
      %p277 = por %p275, %p276
      %p278 = scmp.ne.s32.totalorder %s270, %s272
      %p279 = scmp.eq.s32.totalorder %s42, 1
      %p280 = por %p278, %p279
      %p281 = scmp.ne.s32.totalorder %s272, %s273
      %p282 = scmp.eq.s32.totalorder %s42, 0
      %p283 = por %p281, %p282
      %p284 = scmp.ne.s32.totalorder %s272, %s273
      %p285 = scmp.eq.s32.totalorder %s43, 1
      %p286 = por %p284, %p285
      %p288 = scmp.ne.s32.totalorder %s273, %s287
      %p289 = scmp.eq.s32.totalorder %s43, 0
      %p290 = por %p288, %p289
      %s292 = sadd.s32 %s291, 1
      %p295 = scmp.eq.s32.totalorder %s37, 1
      %p296 = scmp.ne.s32.totalorder %s291, %s293
      %p297 = scmp.eq.s32.totalorder %s37, 0
      %p298 = por %p296, %p297
      %p299 = scmp.ne.s32.totalorder %s291, %s293
      %p300 = scmp.eq.s32.totalorder %s42, 1
      %p301 = por %p299, %p300
      %p302 = scmp.ne.s32.totalorder %s293, %s294
      %p303 = scmp.eq.s32.totalorder %s42, 0
      %p304 = por %p302, %p303
      %p305 = scmp.ne.s32.totalorder %s293, %s294
      %p306 = scmp.eq.s32.totalorder %s43, 1
      %p307 = por %p305, %p306
      %p309 = scmp.ne.s32.totalorder %s294, %s308
      %p310 = scmp.eq.s32.totalorder %s43, 0
      %p311 = por %p309, %p310
      %s313 = sadd.s32 %s312, 1
      %p316 = scmp.eq.s32.totalorder %s37, 1
      %p317 = scmp.ne.s32.totalorder %s312, %s314
      %p318 = scmp.eq.s32.totalorder %s37, 0
      %p319 = por %p317, %p318
      %p320 = scmp.ne.s32.totalorder %s312, %s314
      %p321 = scmp.eq.s32.totalorder %s42, 1
      %p322 = por %p320, %p321
      %p323 = scmp.ne.s32.totalorder %s314, %s315
      %p324 = scmp.eq.s32.totalorder %s42, 0
      %p325 = por %p323, %p324
      %p326 = scmp.ne.s32.totalorder %s314, %s315
      %p327 = scmp.eq.s32.totalorder %s43, 1
      %p328 = por %p326, %p327
      %p330 = scmp.ne.s32.totalorder %s315, %s329
      %p331 = scmp.eq.s32.totalorder %s43, 0
      %p332 = por %p330, %p331
      %s334 = sadd.s32 %s333, 1
      %p337 = scmp.eq.s32.totalorder %s37, 1
      %p338 = scmp.ne.s32.totalorder %s333, %s335
      %p339 = scmp.eq.s32.totalorder %s37, 0
      %p340 = por %p338, %p339
      %p341 = scmp.ne.s32.totalorder %s333, %s335
      %p342 = scmp.eq.s32.totalorder %s42, 1
      %p343 = por %p341, %p342
      %p344 = scmp.ne.s32.totalorder %s335, %s336
      %p345 = scmp.eq.s32.totalorder %s42, 0
      %p346 = por %p344, %p345
      %p347 = scmp.ne.s32.totalorder %s335, %s336
      %p348 = scmp.eq.s32.totalorder %s43, 1
      %p349 = por %p347, %p348
      %p351 = scmp.ne.s32.totalorder %s336, %s350
      %p352 = scmp.eq.s32.totalorder %s43, 0
      %p353 = por %p351, %p352
      %s355 = sadd.s32 %s354, 1
      %p358 = scmp.eq.s32.totalorder %s37, 1
      %p359 = scmp.ne.s32.totalorder %s354, %s356
      %p360 = scmp.eq.s32.totalorder %s37, 0
      %p361 = por %p359, %p360
      %p362 = scmp.ne.s32.totalorder %s354, %s356
      %p363 = scmp.eq.s32.totalorder %s42, 1
      %p364 = por %p362, %p363
      %p365 = scmp.ne.s32.totalorder %s356, %s357
      %p366 = scmp.eq.s32.totalorder %s42, 0
      %p367 = por %p365, %p366
      %p368 = scmp.ne.s32.totalorder %s356, %s357
      %p369 = scmp.eq.s32.totalorder %s43, 1
      %p370 = por %p368, %p369
      %p372 = scmp.ne.s32.totalorder %s357, %s371
      %p373 = scmp.eq.s32.totalorder %s43, 0
      %p374 = por %p372, %p373
      %s376 = sadd.s32 %s375, 1
      %p379 = scmp.eq.s32.totalorder %s37, 1
      %p380 = scmp.ne.s32.totalorder %s375, %s377
      %p381 = scmp.eq.s32.totalorder %s37, 0
      %p382 = por %p380, %p381
      %p383 = scmp.ne.s32.totalorder %s375, %s377
      %p384 = scmp.eq.s32.totalorder %s42, 1
      %p385 = por %p383, %p384
      %p386 = scmp.ne.s32.totalorder %s377, %s378
      %p387 = scmp.eq.s32.totalorder %s42, 0
      %p388 = por %p386, %p387
      %p389 = scmp.ne.s32.totalorder %s377, %s378
      %p390 = scmp.eq.s32.totalorder %s43, 1
      %p391 = por %p389, %p390
      %p393 = scmp.ne.s32.totalorder %s378, %s392
      %p394 = scmp.eq.s32.totalorder %s43, 0
      %p395 = por %p393, %p394
      %s397 = sadd.s32 %s396, 1
      %p400 = scmp.eq.s32.totalorder %s37, 1
      %p401 = scmp.ne.s32.totalorder %s396, %s398
      %p402 = scmp.eq.s32.totalorder %s37, 0
      %p403 = por %p401, %p402
      %p404 = scmp.ne.s32.totalorder %s396, %s398
      %p405 = scmp.eq.s32.totalorder %s42, 1
      %p406 = por %p404, %p405
      %p407 = scmp.ne.s32.totalorder %s398, %s399
      %p408 = scmp.eq.s32.totalorder %s42, 0
      %p409 = por %p407, %p408
      %p410 = scmp.ne.s32.totalorder %s398, %s399
      %p411 = scmp.eq.s32.totalorder %s43, 1
      %p412 = por %p410, %p411
      %p414 = scmp.ne.s32.totalorder %s399, %s413
      %p415 = scmp.eq.s32.totalorder %s43, 0
      %p416 = por %p414, %p415
      %s418 = sadd.s32 %s417, 1
      %p421 = scmp.eq.s32.totalorder %s37, 1
      %p422 = scmp.ne.s32.totalorder %s417, %s419
      %p423 = scmp.eq.s32.totalorder %s37, 0
      %p424 = por %p422, %p423
      %p425 = scmp.ne.s32.totalorder %s417, %s419
      %p426 = scmp.eq.s32.totalorder %s42, 1
      %p427 = por %p425, %p426
      %p428 = scmp.ne.s32.totalorder %s419, %s420
      %p429 = scmp.eq.s32.totalorder %s42, 0
      %p430 = por %p428, %p429
      %p431 = scmp.ne.s32.totalorder %s419, %s420
      %p432 = scmp.eq.s32.totalorder %s43, 1
      %p433 = por %p431, %p432
      %p435 = scmp.ne.s32.totalorder %s420, %s434
      %p436 = scmp.eq.s32.totalorder %s43, 0
      %p437 = por %p435, %p436
      %s439 = sadd.s32 %s438, 1
      %p442 = scmp.eq.s32.totalorder %s37, 1
      %p443 = scmp.ne.s32.totalorder %s438, %s440
      %p444 = scmp.eq.s32.totalorder %s37, 0
      %p445 = por %p443, %p444
      %p446 = scmp.ne.s32.totalorder %s438, %s440
      %p447 = scmp.eq.s32.totalorder %s42, 1
      %p448 = por %p446, %p447
      %p449 = scmp.ne.s32.totalorder %s440, %s441
      %p450 = scmp.eq.s32.totalorder %s42, 0
      %p451 = por %p449, %p450
      %p452 = scmp.ne.s32.totalorder %s440, %s441
      %p453 = scmp.eq.s32.totalorder %s43, 1
      %p454 = por %p452, %p453
      %p456 = scmp.ne.s32.totalorder %s441, %s455
      %p457 = scmp.eq.s32.totalorder %s43, 0
      %p458 = por %p456, %p457
      %s460 = sadd.s32 %s459, 1
      %p463 = scmp.eq.s32.totalorder %s37, 1
      %p464 = scmp.ne.s32.totalorder %s459, %s461
      %p465 = scmp.eq.s32.totalorder %s37, 0
      %p466 = por %p464, %p465
      %p467 = scmp.ne.s32.totalorder %s459, %s461
      %p468 = scmp.eq.s32.totalorder %s42, 1
      %p469 = por %p467, %p468
      %p470 = scmp.ne.s32.totalorder %s461, %s462
      %p471 = scmp.eq.s32.totalorder %s42, 0
      %p472 = por %p470, %p471
      %p473 = scmp.ne.s32.totalorder %s461, %s462
      %p474 = scmp.eq.s32.totalorder %s43, 1
      %p475 = por %p473, %p474
      %p477 = scmp.ne.s32.totalorder %s462, %s476
      %p478 = scmp.eq.s32.totalorder %s43, 0
      %p479 = por %p477, %p478
      %s480 = ssub.s32 %s37, %s44
      %p481 = scmp.eq.s32.totalorder %s480, 0
      %s483 = sadd.s32 %s482, 1
      %s484 = scalar_select %p481, %s482, %s483
      %p487 = pneg %p481
      %p488 = scmp.eq.s32.totalorder %s37, 1
      %p489 = por %p487, %p488
      %p490 = scmp.ne.s32.totalorder %s482, %s485
      %p491 = scmp.eq.s32.totalorder %s37, 0
      %p492 = por %p490, %p491
      %p493 = scmp.ne.s32.totalorder %s482, %s485
      %p494 = scmp.eq.s32.totalorder %s42, 1
      %p495 = por %p493, %p494
      %p496 = scmp.ne.s32.totalorder %s485, %s486
      %p497 = scmp.eq.s32.totalorder %s42, 0
      %p498 = por %p496, %p497
      %p499 = scmp.ne.s32.totalorder %s485, %s486
      %p500 = scmp.eq.s32.totalorder %s43, 1
      %p501 = por %p499, %p500
      %p503 = scmp.ne.s32.totalorder %s486, %s502
      %p504 = scmp.eq.s32.totalorder %s43, 0
      %p505 = por %p503, %p504
      %s506 = ssub.s32 %s37, %s44
      %p507 = scmp.eq.s32.totalorder %s506, 0
      %s509 = sadd.s32 %s508, 1
      %s510 = scalar_select %p507, %s508, %s509
      %p513 = pneg %p507
      %p514 = scmp.eq.s32.totalorder %s37, 1
      %p515 = por %p513, %p514
      %p516 = scmp.ne.s32.totalorder %s508, %s511
      %p517 = scmp.eq.s32.totalorder %s37, 0
      %p518 = por %p516, %p517
      %p519 = scmp.ne.s32.totalorder %s508, %s511
      %p520 = scmp.eq.s32.totalorder %s42, 1
      %p521 = por %p519, %p520
      %p522 = scmp.ne.s32.totalorder %s511, %s512
      %p523 = scmp.eq.s32.totalorder %s42, 0
      %p524 = por %p522, %p523
      %p525 = scmp.ne.s32.totalorder %s511, %s512
      %p526 = scmp.eq.s32.totalorder %s43, 1
      %p527 = por %p525, %p526
      %p529 = scmp.ne.s32.totalorder %s512, %s528
      %p530 = scmp.eq.s32.totalorder %s43, 0
      %p531 = por %p529, %p530
      %p532 = scmp.le.s32.totalorder 1, %s37
      %p533 = scmp.lt.s32.totalorder %s37, 3
      %p534 = pnand %p532, %p533
      %p535 = pneg %p534
      // Predicated region
      $region9: #{decoder_stack_forward.2} parent=5 // pred_check
        _
      $region10: #{decoder_stack_forward.2} parent=5 // pred_check_branch
        %537 = sbr.rel (%p534) target = $region12
      $region11: #{decoder_stack_forward.2} parent=5 // pred_region
        %s538 = ssub.s32 %s37, 1
        // Predicated region
        $region13: #{decoder_stack_forward.2} parent=11 // pred_check
          %p539 = pneg %p136
        $region14: #{decoder_stack_forward.2} parent=11 // pred_check_branch
          %541 = sbr.rel (%p539) target = $region16
        $region15: #{decoder_stack_forward.2} parent=11 // pred_region
          _
        $region16: #{decoder_stack_forward.2} parent=11 // pred_fallthru
          _
        // Predicated region
        $region17: #{decoder_stack_forward.2} parent=11 // pred_check
          %p542 = pneg %p157
        $region18: #{decoder_stack_forward.2} parent=11 // pred_check_branch
          %544 = sbr.rel (%p542) target = $region20
        $region19: #{decoder_stack_forward.2} parent=11 // pred_region
          %s546 = ssub.s32 256, 256
          %547 = vsyncadd [#allocation4], %s546
          %s548 = sshll.u32 [#allocation3], 4
          %s549 = int_to_ptr.vmem [resolvable:$true] %s548
          %554 = dma.hbm_to_vmem [thread:$0]  %s4, 256, %s549, [#allocation4], 64, 64, 4
        $region20: #{decoder_stack_forward.2} parent=11 // pred_fallthru
          _
        // Predicated region
        $region21: #{decoder_stack_forward.2} parent=11 // pred_check
          %p555 = pneg %p178
        $region22: #{decoder_stack_forward.2} parent=11 // pred_check_branch
          %557 = sbr.rel (%p555) target = $region24
        $region23: #{decoder_stack_forward.2} parent=11 // pred_region
          %s559 = ssub.s32 16, 16
          %560 = vsyncadd [#allocation6], %s559
          %s562 = sshll.u32 [#allocation5], 4
          %s563 = int_to_ptr.vmem [resolvable:$true] %s562
          %565 = dma.hbm_to_vmem [thread:$0]  %s5, 16, %s563, [#allocation6]
        $region24: #{decoder_stack_forward.2} parent=11 // pred_fallthru
          _
        // Predicated region
        $region25: #{decoder_stack_forward.2} parent=11 // pred_check
          %p566 = pneg %p199
        $region26: #{decoder_stack_forward.2} parent=11 // pred_check_branch
          %568 = sbr.rel (%p566) target = $region28
        $region27: #{decoder_stack_forward.2} parent=11 // pred_region
          %s570 = ssub.s32 256, 256
          %571 = vsyncadd [#allocation6], %s570
          %s572 = sshll.u32 [#allocation7], 4
          %s573 = int_to_ptr.vmem [resolvable:$true] %s572
          %578 = dma.hbm_to_vmem [thread:$0]  %s6, 256, %s573, [#allocation6], 64, 64, 4
        $region28: #{decoder_stack_forward.2} parent=11 // pred_fallthru
          _
        // Predicated region
        $region29: #{decoder_stack_forward.2} parent=11 // pred_check
          %p579 = pneg %p220
        $region30: #{decoder_stack_forward.2} parent=11 // pred_check_branch
          %581 = sbr.rel (%p579) target = $region32
        $region31: #{decoder_stack_forward.2} parent=11 // pred_region
          %s583 = ssub.s32 16, 16
          %584 = vsyncadd [#allocation9], %s583
          %s586 = sshll.u32 [#allocation8], 4
          %s587 = int_to_ptr.vmem [resolvable:$true] %s586
          %589 = dma.hbm_to_vmem [thread:$0]  %s7, 16, %s587, [#allocation9]
        $region32: #{decoder_stack_forward.2} parent=11 // pred_fallthru
          _
        // Predicated region
        $region33: #{decoder_stack_forward.2} parent=11 // pred_check
          %p590 = pneg %p241
        $region34: #{decoder_stack_forward.2} parent=11 // pred_check_branch
          %592 = sbr.rel (%p590) target = $region36
        $region35: #{decoder_stack_forward.2} parent=11 // pred_region
          %s594 = ssub.s32 256, 256
          %595 = vsyncadd [#allocation9], %s594
          %s596 = sshll.u32 [#allocation10], 4
          %s597 = int_to_ptr.vmem [resolvable:$true] %s596
          %602 = dma.hbm_to_vmem [thread:$0]  %s8, 256, %s597, [#allocation9], 64, 64, 4
        $region36: #{decoder_stack_forward.2} parent=11 // pred_fallthru
          _
        // Predicated region
        $region37: #{decoder_stack_forward.2} parent=11 // pred_check
          %p603 = pneg %p262
        $region38: #{decoder_stack_forward.2} parent=11 // pred_check_branch
          %605 = sbr.rel (%p603) target = $region40
        $region39: #{decoder_stack_forward.2} parent=11 // pred_region
          %s607 = ssub.s32 16, 16
          %608 = vsyncadd [#allocation12], %s607
          %s610 = sshll.u32 [#allocation11], 4
          %s611 = int_to_ptr.vmem [resolvable:$true] %s610
          %613 = dma.hbm_to_vmem [thread:$0]  %s9, 16, %s611, [#allocation12]
        $region40: #{decoder_stack_forward.2} parent=11 // pred_fallthru
          _
        // Predicated region
        $region41: #{decoder_stack_forward.2} parent=11 // pred_check
          %p614 = pneg %p283
        $region42: #{decoder_stack_forward.2} parent=11 // pred_check_branch
          %616 = sbr.rel (%p614) target = $region44
        $region43: #{decoder_stack_forward.2} parent=11 // pred_region
          %s618 = ssub.s32 256, 256
          %619 = vsyncadd [#allocation12], %s618
          %s620 = sshll.u32 [#allocation13], 4
          %s621 = int_to_ptr.vmem [resolvable:$true] %s620
          %626 = dma.hbm_to_vmem [thread:$0]  %s10, 256, %s621, [#allocation12], 64, 64, 4
        $region44: #{decoder_stack_forward.2} parent=11 // pred_fallthru
          _
        // Predicated region
        $region45: #{decoder_stack_forward.2} parent=11 // pred_check
          %p627 = pneg %p304
        $region46: #{decoder_stack_forward.2} parent=11 // pred_check_branch
          %629 = sbr.rel (%p627) target = $region48
        $region47: #{decoder_stack_forward.2} parent=11 // pred_region
          %s631 = ssub.s32 16, 16
          %632 = vsyncadd [#allocation15], %s631
          %s634 = sshll.u32 [#allocation14], 4
          %s635 = int_to_ptr.vmem [resolvable:$true] %s634
          %637 = dma.hbm_to_vmem [thread:$0]  %s11, 16, %s635, [#allocation15]
        $region48: #{decoder_stack_forward.2} parent=11 // pred_fallthru
          _
        // Predicated region
        $region49: #{decoder_stack_forward.2} parent=11 // pred_check
          %p638 = pneg %p325
        $region50: #{decoder_stack_forward.2} parent=11 // pred_check_branch
          %640 = sbr.rel (%p638) target = $region52
        $region51: #{decoder_stack_forward.2} parent=11 // pred_region
          %s642 = ssub.s32 256, 256
          %643 = vsyncadd [#allocation15], %s642
          %s644 = sshll.u32 [#allocation16], 4
          %s645 = int_to_ptr.vmem [resolvable:$true] %s644
          %650 = dma.hbm_to_vmem [thread:$0]  %s12, 256, %s645, [#allocation15], 64, 64, 4
        $region52: #{decoder_stack_forward.2} parent=11 // pred_fallthru
          _
        // Predicated region
        $region53: #{decoder_stack_forward.2} parent=11 // pred_check
          %p651 = pneg %p346
        $region54: #{decoder_stack_forward.2} parent=11 // pred_check_branch
          %653 = sbr.rel (%p651) target = $region56
        $region55: #{decoder_stack_forward.2} parent=11 // pred_region
          %s655 = ssub.s32 16, 16
          %656 = vsyncadd [#allocation18], %s655
          %s658 = sshll.u32 [#allocation17], 4
          %s659 = int_to_ptr.vmem [resolvable:$true] %s658
          %661 = dma.hbm_to_vmem [thread:$0]  %s13, 16, %s659, [#allocation18]
        $region56: #{decoder_stack_forward.2} parent=11 // pred_fallthru
          _
        // Predicated region
        $region57: #{decoder_stack_forward.2} parent=11 // pred_check
          %p662 = pneg %p367
        $region58: #{decoder_stack_forward.2} parent=11 // pred_check_branch
          %664 = sbr.rel (%p662) target = $region60
        $region59: #{decoder_stack_forward.2} parent=11 // pred_region
          %s666 = ssub.s32 256, 256
          %667 = vsyncadd [#allocation18], %s666
          %s668 = sshll.u32 [#allocation19], 4
          %s669 = int_to_ptr.vmem [resolvable:$true] %s668
          %674 = dma.hbm_to_vmem [thread:$0]  %s14, 256, %s669, [#allocation18], 64, 64, 4
        $region60: #{decoder_stack_forward.2} parent=11 // pred_fallthru
          _
        // Predicated region
        $region61: #{decoder_stack_forward.2} parent=11 // pred_check
          %p675 = pneg %p388
        $region62: #{decoder_stack_forward.2} parent=11 // pred_check_branch
          %677 = sbr.rel (%p675) target = $region64
        $region63: #{decoder_stack_forward.2} parent=11 // pred_region
          _
        $region64: #{decoder_stack_forward.2} parent=11 // pred_fallthru
          _
        // Predicated region
        $region65: #{decoder_stack_forward.2} parent=11 // pred_check
          %p678 = pneg %p409
        $region66: #{decoder_stack_forward.2} parent=11 // pred_check_branch
          %680 = sbr.rel (%p678) target = $region68
        $region67: #{decoder_stack_forward.2} parent=11 // pred_region
          _
        $region68: #{decoder_stack_forward.2} parent=11 // pred_fallthru
          _
        // Predicated region
        $region69: #{decoder_stack_forward.2} parent=11 // pred_check
          %p681 = pneg %p430
        $region70: #{decoder_stack_forward.2} parent=11 // pred_check_branch
          %683 = sbr.rel (%p681) target = $region72
        $region71: #{decoder_stack_forward.2} parent=11 // pred_region
          %s685 = ssub.s32 32, 32
          %686 = vsyncadd [#allocation21], %s685
          %s688 = sshll.u32 [#allocation20], 4
          %s689 = int_to_ptr.vmem [resolvable:$true] %s688
          %691 = dma.hbm_to_vmem [thread:$0]  %s17, 32, %s689, [#allocation21]
        $region72: #{decoder_stack_forward.2} parent=11 // pred_fallthru
          _
        // Predicated region
        $region73: #{decoder_stack_forward.2} parent=11 // pred_check
          %p692 = pneg %p451
        $region74: #{decoder_stack_forward.2} parent=11 // pred_check_branch
          %694 = sbr.rel (%p692) target = $region76
        $region75: #{decoder_stack_forward.2} parent=11 // pred_region
          %s696 = ssub.s32 32, 32
          %697 = vsyncadd [#allocation21], %s696
          %s699 = sshll.u32 [#allocation22], 4
          %s700 = int_to_ptr.vmem [resolvable:$true] %s699
          %702 = dma.hbm_to_vmem [thread:$0]  %s18, 32, %s700, [#allocation21]
        $region76: #{decoder_stack_forward.2} parent=11 // pred_fallthru
          _
        // Predicated region
        $region77: #{decoder_stack_forward.2} parent=11 // pred_check
          %p703 = pneg %p472
        $region78: #{decoder_stack_forward.2} parent=11 // pred_check_branch
          %705 = sbr.rel (%p703) target = $region80
        $region79: #{decoder_stack_forward.2} parent=11 // pred_region
          _
        $region80: #{decoder_stack_forward.2} parent=11 // pred_fallthru
          _
      $region12: #{decoder_stack_forward.2} parent=5 // pred_fallthru
        _
      %p706 = scmp.lt.s32.totalorder %s37, 2
      // Predicated region
      $region81: #{decoder_stack_forward.2} parent=5 // pred_check
        %p707 = pneg %p706
      $region82: #{decoder_stack_forward.2} parent=5 // pred_check_branch
        %709 = sbr.rel (%p707) target = $region84
      $region83: #{decoder_stack_forward.2} parent=5 // pred_region
        // Predicated region
        $region85: #{decoder_stack_forward.2} parent=83 // pred_check
          %p710 = pneg %p57
        $region86: #{decoder_stack_forward.2} parent=83 // pred_check_branch
          %712 = sbr.rel (%p710) target = $region88
        $region87: #{decoder_stack_forward.2} parent=83 // pred_region
          %p713 = scmp.lt.s32.totalorder %s37, 1
          %s714 = scalar_select %p713, %s37, 1
          %s715 = smul.addr %s714, 2
          %s716 = smul.addr %s715, 8
          %s717 = scalar_lea.vmem %s0, %s716
        $region88: #{decoder_stack_forward.2} parent=83 // pred_fallthru
          _
        // Predicated region
        $region89: #{decoder_stack_forward.2} parent=83 // pred_check
          %p718 = pneg %p83
        $region90: #{decoder_stack_forward.2} parent=83 // pred_check_branch
          %720 = sbr.rel (%p718) target = $region92
        $region91: #{decoder_stack_forward.2} parent=83 // pred_region
          %p721 = scmp.lt.s32.totalorder %s37, 1
          %s722 = scalar_select %p721, %s37, 1
          %s723 = smul.addr %s722, 2
          %s724 = smul.addr %s723, 8
          %s725 = scalar_lea.vmem %s1, %s724
        $region92: #{decoder_stack_forward.2} parent=83 // pred_fallthru
          _
        // Predicated region
        $region93: #{decoder_stack_forward.2} parent=83 // pred_check
          %p726 = pneg %p109
        $region94: #{decoder_stack_forward.2} parent=83 // pred_check_branch
          %728 = sbr.rel (%p726) target = $region96
        $region95: #{decoder_stack_forward.2} parent=83 // pred_region
          %p729 = scmp.lt.s32.totalorder %s37, 1
          %s730 = scalar_select %p729, %s37, 1
          %s731 = smul.addr %s730, 8
          %s732 = scalar_lea.vmem %s2, %s731
        $region96: #{decoder_stack_forward.2} parent=83 // pred_fallthru
          _
      $region84: #{decoder_stack_forward.2} parent=5 // pred_fallthru
        _
      %p733 = scmp.le.s32.totalorder 1, %s37
      %p734 = scmp.lt.s32.totalorder %s37, 3
      %p735 = pnand %p733, %p734
      %p736 = pneg %p735
      // Predicated region
      $region97: #{decoder_stack_forward.2} parent=5 // pred_check
        _
      $region98: #{decoder_stack_forward.2} parent=5 // pred_check_branch
        %738 = sbr.rel (%p735) target = $region100
      $region99: #{decoder_stack_forward.2} parent=5 // pred_region
        %s739 = ssub.s32 %s37, 1
        // Predicated region
        $region101: #{decoder_stack_forward.2} parent=99 // pred_check
          %p740 = pneg %p157
        $region102: #{decoder_stack_forward.2} parent=99 // pred_check_branch
          %742 = sbr.rel (%p740) target = $region104
        $region103: #{decoder_stack_forward.2} parent=99 // pred_region
          %743 = dma.done [#allocation4], 256
        $region104: #{decoder_stack_forward.2} parent=99 // pred_fallthru
          _
        // Predicated region
        $region105: #{decoder_stack_forward.2} parent=99 // pred_check
          %p744 = pneg %p178
        $region106: #{decoder_stack_forward.2} parent=99 // pred_check_branch
          %746 = sbr.rel (%p744) target = $region108
        $region107: #{decoder_stack_forward.2} parent=99 // pred_region
          %747 = dma.done [#allocation6], 16
        $region108: #{decoder_stack_forward.2} parent=99 // pred_fallthru
          _
        // Predicated region
        $region109: #{decoder_stack_forward.2} parent=99 // pred_check
          %p748 = pneg %p199
        $region110: #{decoder_stack_forward.2} parent=99 // pred_check_branch
          %750 = sbr.rel (%p748) target = $region112
        $region111: #{decoder_stack_forward.2} parent=99 // pred_region
          %751 = dma.done [#allocation6], 256
        $region112: #{decoder_stack_forward.2} parent=99 // pred_fallthru
          _
        // Predicated region
        $region113: #{decoder_stack_forward.2} parent=99 // pred_check
          %p752 = pneg %p220
        $region114: #{decoder_stack_forward.2} parent=99 // pred_check_branch
          %754 = sbr.rel (%p752) target = $region116
        $region115: #{decoder_stack_forward.2} parent=99 // pred_region
          %755 = dma.done [#allocation9], 16
        $region116: #{decoder_stack_forward.2} parent=99 // pred_fallthru
          _
        // Predicated region
        $region117: #{decoder_stack_forward.2} parent=99 // pred_check
          %p756 = pneg %p241
        $region118: #{decoder_stack_forward.2} parent=99 // pred_check_branch
          %758 = sbr.rel (%p756) target = $region120
        $region119: #{decoder_stack_forward.2} parent=99 // pred_region
          %759 = dma.done [#allocation9], 256
        $region120: #{decoder_stack_forward.2} parent=99 // pred_fallthru
          _
        // Predicated region
        $region121: #{decoder_stack_forward.2} parent=99 // pred_check
          %p760 = pneg %p262
        $region122: #{decoder_stack_forward.2} parent=99 // pred_check_branch
          %762 = sbr.rel (%p760) target = $region124
        $region123: #{decoder_stack_forward.2} parent=99 // pred_region
          %763 = dma.done [#allocation12], 16
        $region124: #{decoder_stack_forward.2} parent=99 // pred_fallthru
          _
        // Predicated region
        $region125: #{decoder_stack_forward.2} parent=99 // pred_check
          %p764 = pneg %p283
        $region126: #{decoder_stack_forward.2} parent=99 // pred_check_branch
          %766 = sbr.rel (%p764) target = $region128
        $region127: #{decoder_stack_forward.2} parent=99 // pred_region
          %767 = dma.done [#allocation12], 256
        $region128: #{decoder_stack_forward.2} parent=99 // pred_fallthru
          _
        // Predicated region
        $region129: #{decoder_stack_forward.2} parent=99 // pred_check
          %p768 = pneg %p304
        $region130: #{decoder_stack_forward.2} parent=99 // pred_check_branch
          %770 = sbr.rel (%p768) target = $region132
        $region131: #{decoder_stack_forward.2} parent=99 // pred_region
          %771 = dma.done [#allocation15], 16
        $region132: #{decoder_stack_forward.2} parent=99 // pred_fallthru
          _
        // Predicated region
        $region133: #{decoder_stack_forward.2} parent=99 // pred_check
          %p772 = pneg %p325
        $region134: #{decoder_stack_forward.2} parent=99 // pred_check_branch
          %774 = sbr.rel (%p772) target = $region136
        $region135: #{decoder_stack_forward.2} parent=99 // pred_region
          %775 = dma.done [#allocation15], 256
        $region136: #{decoder_stack_forward.2} parent=99 // pred_fallthru
          _
        // Predicated region
        $region137: #{decoder_stack_forward.2} parent=99 // pred_check
          %p776 = pneg %p346
        $region138: #{decoder_stack_forward.2} parent=99 // pred_check_branch
          %778 = sbr.rel (%p776) target = $region140
        $region139: #{decoder_stack_forward.2} parent=99 // pred_region
          %779 = dma.done [#allocation18], 16
        $region140: #{decoder_stack_forward.2} parent=99 // pred_fallthru
          _
        // Predicated region
        $region141: #{decoder_stack_forward.2} parent=99 // pred_check
          %p780 = pneg %p367
        $region142: #{decoder_stack_forward.2} parent=99 // pred_check_branch
          %782 = sbr.rel (%p780) target = $region144
        $region143: #{decoder_stack_forward.2} parent=99 // pred_region
          %783 = dma.done [#allocation18], 256
        $region144: #{decoder_stack_forward.2} parent=99 // pred_fallthru
          _
        // Predicated region
        $region145: #{decoder_stack_forward.2} parent=99 // pred_check
          %p784 = pneg %p430
        $region146: #{decoder_stack_forward.2} parent=99 // pred_check_branch
          %786 = sbr.rel (%p784) target = $region148
        $region147: #{decoder_stack_forward.2} parent=99 // pred_region
          %787 = dma.done [#allocation21], 32
        $region148: #{decoder_stack_forward.2} parent=99 // pred_fallthru
          _
        // Predicated region
        $region149: #{decoder_stack_forward.2} parent=99 // pred_check
          %p788 = pneg %p451
        $region150: #{decoder_stack_forward.2} parent=99 // pred_check_branch
          %790 = sbr.rel (%p788) target = $region152
        $region151: #{decoder_stack_forward.2} parent=99 // pred_region
          %791 = dma.done [#allocation21], 32
        $region152: #{decoder_stack_forward.2} parent=99 // pred_fallthru
          _
        %p792 = scmp.lt.s32.totalorder %s42, 1
        %s793 = scalar_select %p792, %s42, 1
        %s794 = smul.addr %s793, 2
        %s795 = smul.addr %s794, 8
        %s796 = scalar_lea.vmem %s0, %s795
        %p797 = pneg %p63
        %p798 = pneg %p60
        %p799 = scmp.lt.s32.totalorder %s42, 1
        %s800 = scalar_select %p799, %s42, 1
        %s801 = smul.addr %s800, 2
        %s802 = smul.addr %s801, 8
        %s803 = scalar_lea.vmem %s1, %s802
        %p804 = pneg %p89
        %p805 = pneg %p86
        %p806 = scmp.lt.s32.totalorder %s42, 1
        %s807 = scalar_select %p806, %s42, 1
        %s808 = smul.addr %s807, 8
        %s809 = scalar_lea.vmem %s2, %s808
        %p810 = pneg %p115
        %p811 = pneg %p112
        %p812 = pneg %p136
        %p813 = pneg %p133
        %p814 = pneg %p157
        %p815 = pneg %p154
        %p816 = pneg %p178
        %p817 = pneg %p175
        %p818 = pneg %p199
        %p819 = pneg %p196
        %p820 = pneg %p220
        %p821 = pneg %p217
        %p822 = pneg %p241
        %p823 = pneg %p238
        %p824 = pneg %p262
        %p825 = pneg %p259
        %p826 = pneg %p283
        %p827 = pneg %p280
        %p828 = pneg %p304
        %p829 = pneg %p301
        %p830 = pneg %p325
        %p831 = pneg %p322
        %p832 = pneg %p346
        %p833 = pneg %p343
        %p834 = pneg %p367
        %p835 = pneg %p364
        %p836 = pneg %p388
        %p837 = pneg %p385
        %p838 = pneg %p409
        %p839 = pneg %p406
        %p840 = pneg %p430
        %p841 = pneg %p427
        %p842 = pneg %p451
        %p843 = pneg %p448
        %p844 = pneg %p472
        %p845 = pneg %p469
        %p846 = pneg %p498
        %p847 = pneg %p495
        %p848 = scmp.lt.s32.totalorder %s42, 1
        %s849 = scalar_select %p848, %s42, 1
        %s850 = smul.addr %s849, 2
        %s851 = smul.addr %s850, 8
        %s852 = scalar_lea.vmem %s20, %s851
        %p853 = pneg %p524
        %p854 = pneg %p521
        %p855 = scmp.lt.s32.totalorder %s42, 1
        %s856 = scalar_select %p855, %s42, 1
        %s857 = smul.addr %s856, 8
        %s858 = scalar_lea.vmem %s21, %s857
        %p859 = scmp.lt.s32.totalorder %s42, 1
        %s860 = scalar_select %p859, %s42, 1
        %s861 = smul.addr %s860, 2
        %s862 = smul.addr %s861, 8
        %s863 = scalar_lea.vmem %s0, %s862
        %p864 = scmp.lt.s32.totalorder %s42, 1
        %s865 = scalar_select %p864, %s42, 1
        %s866 = smul.addr %s865, 2
        %s867 = smul.addr %s866, 8
        %s868 = scalar_lea.vmem %s1, %s867
        %p869 = scmp.lt.s32.totalorder %s42, 1
        %s870 = scalar_select %p869, %s42, 1
        %s871 = smul.addr %s870, 8
        %s872 = scalar_lea.vmem %s2, %s871
        %p873 = scmp.lt.s32.totalorder %s42, 1
        %s874 = scalar_select %p873, %s42, 1
        %s875 = smul.addr %s874, 2
        %s876 = smul.addr %s875, 8
        %s877 = scalar_lea.vmem %s20, %s876
        %p878 = scmp.lt.s32.totalorder %s42, 1
        %s879 = scalar_select %p878, %s42, 1
        %s880 = smul.addr %s879, 8
        %s881 = scalar_lea.vmem %s21, %s880
        %v883 = vld [vmem:[%s868] sm:$0xff]
        %v884 = vld [vmem:[%s868 + $0x8] sm:$0xff]
        %v885 = vld [vmem:[%s863] sm:$0xff]
        %v886 = vld [vmem:[%s863 + $0x8] sm:$0xf]
        %v887 = vld [vmem:[%s3] sm:$0xff]
        %v888 = vld [vmem:[%s3 + $0x8] sm:$0xff]
        %v889 = vpack.c.bf16 %v884, %v883
        %v890 = vld [vmem:[#allocation3] sm:$0xf]
        %v891 = vld [vmem:[#allocation3 + $0x4] sm:$0xf]
        %v892 = vld [vmem:[#allocation3 + $0x8] sm:$0xf]
        %v893 = vld [vmem:[#allocation3 + $0xc] sm:$0xf]
        %v894 = vld [vmem:[#allocation5] sm:$0x1]
        %v896 = vlaneseq
        %v897 = vshrl.u32 %v896, 7
        %v898 = vsub.s32 0, %v897
        %v899 = vrot.slane %v894, %v898
        %v905 = vunpack.c.l.b16 %v890
        %v906 = vunpack.c.l.b16 %v891
        %v907 = vunpack.c.l.b16 %v892
        %v908 = vunpack.c.l.b16 %v893
        %v909 = vpack.c.b16 %v906, %v905
        %v910 = vpack.c.b16 %v908, %v907
        %vm913 = vcmask 261120
        %v915 = vsel %vm913, %v889, 0
        %917 = vmatprep.subr.bf16.mxu0 0
        %918 = vmatpush1.bf16.msra.mxu0 0
        %919 = vmatprep.subr.bf16.mxu0 0
        %920 = vmatpush1.bf16.msra.mxu0 0
        %921 = vmatprep.subr.bf16.mxu0 0
        %922 = vmatpush1.bf16.msra.mxu0 0
        %923 = vmatprep.subr.bf16.mxu0 0
        %924 = vmatpush1.bf16.msra.mxu0 0
        %925 = vmatprep.subr.bf16.mxu0 0
        %926 = vmatpush1.bf16.msra.mxu0 0
        %927 = vmatprep.subr.bf16.mxu0 0
        %928 = vmatpush1.bf16.msra.mxu0 0
        %929 = vmatprep.subr.bf16.mxu0 0
        %930 = vmatpush1.bf16.msra.mxu0 %v910
        %931 = vmatprep.subr.bf16.mxu0 0
        %932 = vmatpush1.bf16.msra.mxu0 %v909
        %933 = vmatprep.subr.bf16.mxu0 0
        %934 = vmatpush2.bf16.msra.mxu0 0
        %935 = vmatprep.subr.bf16.mxu0 0
        %936 = vmatpush2.bf16.msra.mxu0 0
        %937 = vmatprep.subr.bf16.mxu0 0
        %938 = vmatpush2.bf16.msra.mxu0 0
        %939 = vmatprep.subr.bf16.mxu0 0
        %940 = vmatpush2.bf16.msra.mxu0 0
        %941 = vmatprep.subr.bf16.mxu0 0
        %942 = vmatpush2.bf16.msra.mxu0 0
        %943 = vmatprep.subr.bf16.mxu0 0
        %944 = vmatpush2.bf16.msra.mxu0 0
        %945 = vmatprep.subr.bf16.mxu0 0
        %946 = vmatpush2.bf16.msra.mxu0 0
        %947 = vmatprep.subr.bf16.mxu0 0
        %948 = vmatpush2.bf16.msra.mxu0 0
        %949 = vmatprep.mubr.bf16.mxu0 0
        %950 = vmatmul.mubr.bf16.gmra.mxu0 %v915
        %v951 = vpop.f32.mrf.mxu0
        %v952 = vadd.f32 %v899, %v951
        %v953 = vpop.f32.mrf.mxu0
        %v954 = vpop.f32.mrf.mxu0
        %v955 = vadd.f32 %v899, %v954
        %v956 = vpop.f32.mrf.mxu0
        %957 = vdwg.mxu0
        %v958 = vld [vmem:[#allocation7] sm:$0xf]
        %v959 = vld [vmem:[#allocation7 + $0x4] sm:$0xf]
        %v960 = vld [vmem:[#allocation7 + $0x8] sm:$0xf]
        %v961 = vld [vmem:[#allocation7 + $0xc] sm:$0xf]
        %v962 = vld [vmem:[#allocation8] sm:$0x1]
        %v963 = vpack.c.bf16 %v955, %v952
        %965 = vrot.lane.b32.xlu0 %v963, 96
        %v966 = vpop.permute.xlu0 %965
        %vm967 = vcmask 64512
        %v969 = vsel %vm967, %v963, 0
        %v972 = vsel %vm967, %v966, 0
        %974 = vmatprep.subr.bf16.mxu0 0
        %975 = vmatpush1.bf16.xpose.msra.mxu0 0
        %976 = vmatprep.subr.bf16.mxu0 0
        %977 = vmatpush1.bf16.xpose.msra.mxu0 0
        %978 = vmatprep.subr.bf16.mxu0 0
        %979 = vmatpush1.bf16.xpose.msra.mxu0 0
        %980 = vmatprep.subr.bf16.mxu0 0
        %981 = vmatpush1.bf16.xpose.msra.mxu0 0
        %982 = vmatprep.subr.bf16.mxu0 0
        %983 = vmatpush1.bf16.xpose.msra.mxu0 0
        %984 = vmatprep.subr.bf16.mxu0 0
        %985 = vmatpush1.bf16.xpose.msra.mxu0 0
        %986 = vmatprep.subr.bf16.mxu0 0
        %987 = vmatpush1.bf16.xpose.msra.mxu0 0
        %988 = vmatprep.subr.bf16.mxu0 0
        %989 = vmatpush1.bf16.xpose.msra.mxu0 %v972
        %990 = vmatprep.subr.bf16.mxu0 0
        %991 = vmatpush2.bf16.xpose.msra.mxu0 0
        %992 = vmatprep.subr.bf16.mxu0 0
        %993 = vmatpush2.bf16.xpose.msra.mxu0 0
        %994 = vmatprep.subr.bf16.mxu0 0
        %995 = vmatpush2.bf16.xpose.msra.mxu0 0
        %996 = vmatprep.subr.bf16.mxu0 0
        %997 = vmatpush2.bf16.xpose.msra.mxu0 0
        %998 = vmatprep.subr.bf16.mxu0 0
        %999 = vmatpush2.bf16.xpose.msra.mxu0 0
        %1000 = vmatprep.subr.bf16.mxu0 0
        %1001 = vmatpush2.bf16.xpose.msra.mxu0 0
        %1002 = vmatprep.subr.bf16.mxu0 0
        %1003 = vmatpush2.bf16.xpose.msra.mxu0 0
        %1004 = vmatprep.subr.bf16.mxu0 0
        %1005 = vmatpush2.bf16.xpose.msra.mxu0 0
        %1006 = vmatprep.mubr.bf16.mxu0 0
        %1007 = vmatmul.mubr.bf16.gmra.mxu0 %v969
        %v1008 = vpop.f32.mrf.mxu0
        %v1009 = vadd.f32 0.0, %v1008
        %v1010 = vpop.f32.mrf.mxu0
        %v1011 = vpop.f32.mrf.mxu0
        %v1012 = vadd.f32 0.0, %v1011
        %v1013 = vpop.f32.mrf.mxu0
        %1014 = vdwg.mxu0
        %v1015 = vmul.f32 %v1009, 0.35355338
        %v1016 = vmul.f32 %v1012, 0.35355338
        %vm1017 = vcmask 130048
        %v1018 = vsel %vm1017, %v1015, -inf
        %1019 = vmax.xlane.f32.xlu0 %v1018
        %v1020 = vpop.xlane.xlu0 %1019
        %v1021 = vsel %vm1017, %v1016, -inf
        %1022 = vmax.xlane.f32.xlu0 %v1021
        %v1023 = vpop.xlane.xlu0 %1022
        %v1024 = vsub.f32 %v1015, %v1020
        %v1025 = vsub.f32 %v1016, %v1023
        %v1026 = vmul.f32 %v1024, 1.442695
        %v1027 = vpow.pop %v1026
        %v1028 = vmul.f32 %v1025, 1.442695
        %v1029 = vpow.pop %v1028
        %v1030 = vsel %vm1017, %v1027, 0.0
        %1031 = vadd.xlane.f32.xlu0 %v1030
        %v1032 = vpop.xlane.xlu0 %1031
        %v1033 = vsel %vm1017, %v1029, 0.0
        %1034 = vadd.xlane.f32.xlu0 %v1033
        %v1035 = vpop.xlane.xlu0 %1034
        %v1036 = vrcp.pop %v1032
        %v1037 = vmul.f32 %v1027, %v1036
        %v1038 = vrcp.pop %v1035
        %v1039 = vmul.f32 %v1029, %v1038
        %v1040 = vpack.c.bf16 %v1039, %v1037
        %1041 = vrot.lane.b32.xlu0 %v963, 64
        %v1042 = vpop.permute.xlu0 %1041
        %v1045 = vsel %vm1017, %v1040, 0
        %1047 = vmatprep.subr.bf16.mxu0 0
        %1048 = vmatpush1.bf16.msra.mxu0 0
        %1049 = vmatprep.subr.bf16.mxu0 0
        %1050 = vmatpush1.bf16.msra.mxu0 0
        %1051 = vmatprep.subr.bf16.mxu0 0
        %1052 = vmatpush1.bf16.msra.mxu0 0
        %1053 = vmatprep.subr.bf16.mxu0 0
        %1054 = vmatpush1.bf16.msra.mxu0 0
        %1055 = vmatprep.subr.bf16.mxu0 0
        %1056 = vmatpush1.bf16.msra.mxu0 0
        %1057 = vmatprep.subr.bf16.mxu0 0
        %1058 = vmatpush1.bf16.msra.mxu0 0
        %1059 = vmatprep.subr.bf16.mxu0 0
        %1060 = vmatpush1.bf16.msra.mxu0 0
        %1061 = vmatprep.subr.bf16.mxu0 0
        %1062 = vmatpush1.bf16.msra.mxu0 %v1042
        %1063 = vmatprep.subr.bf16.mxu0 0
        %1064 = vmatpush2.bf16.msra.mxu0 0
        %1065 = vmatprep.subr.bf16.mxu0 0
        %1066 = vmatpush2.bf16.msra.mxu0 0
        %1067 = vmatprep.subr.bf16.mxu0 0
        %1068 = vmatpush2.bf16.msra.mxu0 0
        %1069 = vmatprep.subr.bf16.mxu0 0
        %1070 = vmatpush2.bf16.msra.mxu0 0
        %1071 = vmatprep.subr.bf16.mxu0 0
        %1072 = vmatpush2.bf16.msra.mxu0 0
        %1073 = vmatprep.subr.bf16.mxu0 0
        %1074 = vmatpush2.bf16.msra.mxu0 0
        %1075 = vmatprep.subr.bf16.mxu0 0
        %1076 = vmatpush2.bf16.msra.mxu0 0
        %1077 = vmatprep.subr.bf16.mxu0 0
        %1078 = vmatpush2.bf16.msra.mxu0 0
        %1079 = vmatprep.mubr.bf16.mxu0 0
        %1080 = vmatmul.mubr.bf16.gmra.mxu0 %v1045
        %v1081 = vpop.f32.mrf.mxu0
        %v1082 = vadd.f32 0.0, %v1081
        %v1083 = vpop.f32.mrf.mxu0
        %v1084 = vpop.f32.mrf.mxu0
        %v1085 = vadd.f32 0.0, %v1084
        %v1086 = vpop.f32.mrf.mxu0
        %1087 = vdwg.mxu0
        %1088 = vrot.lane.b32.xlu0 %v963, 120
        %v1089 = vpop.permute.xlu0 %1088
        %1090 = vrot.lane.b32.xlu0 %v963, 88
        %v1091 = vpop.permute.xlu0 %1090
        %v1093 = vsel %vm967, %v1089, 0
        %v1096 = vsel %vm967, %v1091, 0
        %1098 = vmatprep.subr.bf16.mxu0 0
        %1099 = vmatpush1.bf16.xpose.msra.mxu0 0
        %1100 = vmatprep.subr.bf16.mxu0 0
        %1101 = vmatpush1.bf16.xpose.msra.mxu0 0
        %1102 = vmatprep.subr.bf16.mxu0 0
        %1103 = vmatpush1.bf16.xpose.msra.mxu0 0
        %1104 = vmatprep.subr.bf16.mxu0 0
        %1105 = vmatpush1.bf16.xpose.msra.mxu0 0
        %1106 = vmatprep.subr.bf16.mxu0 0
        %1107 = vmatpush1.bf16.xpose.msra.mxu0 0
        %1108 = vmatprep.subr.bf16.mxu0 0
        %1109 = vmatpush1.bf16.xpose.msra.mxu0 0
        %1110 = vmatprep.subr.bf16.mxu0 0
        %1111 = vmatpush1.bf16.xpose.msra.mxu0 0
        %1112 = vmatprep.subr.bf16.mxu0 0
        %1113 = vmatpush1.bf16.xpose.msra.mxu0 %v1096
        %1114 = vmatprep.subr.bf16.mxu0 0
        %1115 = vmatpush2.bf16.xpose.msra.mxu0 0
        %1116 = vmatprep.subr.bf16.mxu0 0
        %1117 = vmatpush2.bf16.xpose.msra.mxu0 0
        %1118 = vmatprep.subr.bf16.mxu0 0
        %1119 = vmatpush2.bf16.xpose.msra.mxu0 0
        %1120 = vmatprep.subr.bf16.mxu0 0
        %1121 = vmatpush2.bf16.xpose.msra.mxu0 0
        %1122 = vmatprep.subr.bf16.mxu0 0
        %1123 = vmatpush2.bf16.xpose.msra.mxu0 0
        %1124 = vmatprep.subr.bf16.mxu0 0
        %1125 = vmatpush2.bf16.xpose.msra.mxu0 0
        %1126 = vmatprep.subr.bf16.mxu0 0
        %1127 = vmatpush2.bf16.xpose.msra.mxu0 0
        %1128 = vmatprep.subr.bf16.mxu0 0
        %1129 = vmatpush2.bf16.xpose.msra.mxu0 0
        %1130 = vmatprep.mubr.bf16.mxu0 0
        %1131 = vmatmul.mubr.bf16.gmra.mxu0 %v1093
        %v1132 = vpop.f32.mrf.mxu0
        %v1133 = vadd.f32 0.0, %v1132
        %v1134 = vpop.f32.mrf.mxu0
        %v1135 = vpop.f32.mrf.mxu0
        %v1136 = vadd.f32 0.0, %v1135
        %v1137 = vpop.f32.mrf.mxu0
        %1138 = vdwg.mxu0
        %v1139 = vmul.f32 %v1133, 0.35355338
        %v1140 = vmul.f32 %v1136, 0.35355338
        %v1141 = vsel %vm1017, %v1139, -inf
        %1142 = vmax.xlane.f32.xlu0 %v1141
        %v1143 = vpop.xlane.xlu0 %1142
        %v1144 = vsel %vm1017, %v1140, -inf
        %1145 = vmax.xlane.f32.xlu0 %v1144
        %v1146 = vpop.xlane.xlu0 %1145
        %v1147 = vsub.f32 %v1139, %v1143
        %v1148 = vsub.f32 %v1140, %v1146
        %v1149 = vmul.f32 %v1147, 1.442695
        %v1150 = vpow.pop %v1149
        %v1151 = vmul.f32 %v1148, 1.442695
        %v1152 = vpow.pop %v1151
        %v1153 = vsel %vm1017, %v1150, 0.0
        %1154 = vadd.xlane.f32.xlu0 %v1153
        %v1155 = vpop.xlane.xlu0 %1154
        %v1156 = vsel %vm1017, %v1152, 0.0
        %1157 = vadd.xlane.f32.xlu0 %v1156
        %v1158 = vpop.xlane.xlu0 %1157
        %v1159 = vrcp.pop %v1155
        %v1160 = vmul.f32 %v1150, %v1159
        %v1161 = vrcp.pop %v1158
        %v1162 = vmul.f32 %v1152, %v1161
        %v1163 = vpack.c.bf16 %v1162, %v1160
        %1164 = vrot.lane.b32.xlu0 %v963, 56
        %v1165 = vpop.permute.xlu0 %1164
        %v1168 = vsel %vm1017, %v1163, 0
        %1170 = vmatprep.subr.bf16.mxu0 0
        %1171 = vmatpush1.bf16.msra.mxu0 0
        %1172 = vmatprep.subr.bf16.mxu0 0
        %1173 = vmatpush1.bf16.msra.mxu0 0
        %1174 = vmatprep.subr.bf16.mxu0 0
        %1175 = vmatpush1.bf16.msra.mxu0 0
        %1176 = vmatprep.subr.bf16.mxu0 0
        %1177 = vmatpush1.bf16.msra.mxu0 0
        %1178 = vmatprep.subr.bf16.mxu0 0
        %1179 = vmatpush1.bf16.msra.mxu0 0
        %1180 = vmatprep.subr.bf16.mxu0 0
        %1181 = vmatpush1.bf16.msra.mxu0 0
        %1182 = vmatprep.subr.bf16.mxu0 0
        %1183 = vmatpush1.bf16.msra.mxu0 0
        %1184 = vmatprep.subr.bf16.mxu0 0
        %1185 = vmatpush1.bf16.msra.mxu0 %v1165
        %1186 = vmatprep.subr.bf16.mxu0 0
        %1187 = vmatpush2.bf16.msra.mxu0 0
        %1188 = vmatprep.subr.bf16.mxu0 0
        %1189 = vmatpush2.bf16.msra.mxu0 0
        %1190 = vmatprep.subr.bf16.mxu0 0
        %1191 = vmatpush2.bf16.msra.mxu0 0
        %1192 = vmatprep.subr.bf16.mxu0 0
        %1193 = vmatpush2.bf16.msra.mxu0 0
        %1194 = vmatprep.subr.bf16.mxu0 0
        %1195 = vmatpush2.bf16.msra.mxu0 0
        %1196 = vmatprep.subr.bf16.mxu0 0
        %1197 = vmatpush2.bf16.msra.mxu0 0
        %1198 = vmatprep.subr.bf16.mxu0 0
        %1199 = vmatpush2.bf16.msra.mxu0 0
        %1200 = vmatprep.subr.bf16.mxu0 0
        %1201 = vmatpush2.bf16.msra.mxu0 0
        %1202 = vmatprep.mubr.bf16.mxu0 0
        %1203 = vmatmul.mubr.bf16.gmra.mxu0 %v1168
        %v1204 = vpop.f32.mrf.mxu0
        %v1205 = vadd.f32 0.0, %v1204
        %v1206 = vpop.f32.mrf.mxu0
        %v1207 = vpop.f32.mrf.mxu0
        %v1208 = vadd.f32 0.0, %v1207
        %v1209 = vpop.f32.mrf.mxu0
        %1210 = vdwg.mxu0
        %1211 = vrot.lane.b32.xlu0 %v963, 112
        %v1212 = vpop.permute.xlu0 %1211
        %1213 = vrot.lane.b32.xlu0 %v963, 80
        %v1214 = vpop.permute.xlu0 %1213
        %v1216 = vsel %vm967, %v1212, 0
        %v1219 = vsel %vm967, %v1214, 0
        %1221 = vmatprep.subr.bf16.mxu0 0
        %1222 = vmatpush1.bf16.xpose.msra.mxu0 0
        %1223 = vmatprep.subr.bf16.mxu0 0
        %1224 = vmatpush1.bf16.xpose.msra.mxu0 0
        %1225 = vmatprep.subr.bf16.mxu0 0
        %1226 = vmatpush1.bf16.xpose.msra.mxu0 0
        %1227 = vmatprep.subr.bf16.mxu0 0
        %1228 = vmatpush1.bf16.xpose.msra.mxu0 0
        %1229 = vmatprep.subr.bf16.mxu0 0
        %1230 = vmatpush1.bf16.xpose.msra.mxu0 0
        %1231 = vmatprep.subr.bf16.mxu0 0
        %1232 = vmatpush1.bf16.xpose.msra.mxu0 0
        %1233 = vmatprep.subr.bf16.mxu0 0
        %1234 = vmatpush1.bf16.xpose.msra.mxu0 0
        %1235 = vmatprep.subr.bf16.mxu0 0
        %1236 = vmatpush1.bf16.xpose.msra.mxu0 %v1219
        %1237 = vmatprep.subr.bf16.mxu0 0
        %1238 = vmatpush2.bf16.xpose.msra.mxu0 0
        %1239 = vmatprep.subr.bf16.mxu0 0
        %1240 = vmatpush2.bf16.xpose.msra.mxu0 0
        %1241 = vmatprep.subr.bf16.mxu0 0
        %1242 = vmatpush2.bf16.xpose.msra.mxu0 0
        %1243 = vmatprep.subr.bf16.mxu0 0
        %1244 = vmatpush2.bf16.xpose.msra.mxu0 0
        %1245 = vmatprep.subr.bf16.mxu0 0
        %1246 = vmatpush2.bf16.xpose.msra.mxu0 0
        %1247 = vmatprep.subr.bf16.mxu0 0
        %1248 = vmatpush2.bf16.xpose.msra.mxu0 0
        %1249 = vmatprep.subr.bf16.mxu0 0
        %1250 = vmatpush2.bf16.xpose.msra.mxu0 0
        %1251 = vmatprep.subr.bf16.mxu0 0
        %1252 = vmatpush2.bf16.xpose.msra.mxu0 0
        %1253 = vmatprep.mubr.bf16.mxu0 0
        %1254 = vmatmul.mubr.bf16.gmra.mxu0 %v1216
        %v1255 = vpop.f32.mrf.mxu0
        %v1256 = vadd.f32 0.0, %v1255
        %v1257 = vpop.f32.mrf.mxu0
        %v1258 = vpop.f32.mrf.mxu0
        %v1259 = vadd.f32 0.0, %v1258
        %v1260 = vpop.f32.mrf.mxu0
        %1261 = vdwg.mxu0
        %v1262 = vmul.f32 %v1256, 0.35355338
        %v1263 = vmul.f32 %v1259, 0.35355338
        %v1264 = vsel %vm1017, %v1262, -inf
        %1265 = vmax.xlane.f32.xlu0 %v1264
        %v1266 = vpop.xlane.xlu0 %1265
        %v1267 = vsel %vm1017, %v1263, -inf
        %1268 = vmax.xlane.f32.xlu0 %v1267
        %v1269 = vpop.xlane.xlu0 %1268
        %v1270 = vsub.f32 %v1262, %v1266
        %v1271 = vsub.f32 %v1263, %v1269
        %v1272 = vmul.f32 %v1270, 1.442695
        %v1273 = vpow.pop %v1272
        %v1274 = vmul.f32 %v1271, 1.442695
        %v1275 = vpow.pop %v1274
        %v1276 = vsel %vm1017, %v1273, 0.0
        %1277 = vadd.xlane.f32.xlu0 %v1276
        %v1278 = vpop.xlane.xlu0 %1277
        %v1279 = vsel %vm1017, %v1275, 0.0
        %1280 = vadd.xlane.f32.xlu0 %v1279
        %v1281 = vpop.xlane.xlu0 %1280
        %v1282 = vrcp.pop %v1278
        %v1283 = vmul.f32 %v1273, %v1282
        %v1284 = vrcp.pop %v1281
        %v1285 = vmul.f32 %v1275, %v1284
        %v1286 = vpack.c.bf16 %v1285, %v1283
        %1287 = vrot.lane.b32.xlu0 %v963, 48
        %v1288 = vpop.permute.xlu0 %1287
        %v1291 = vsel %vm1017, %v1286, 0
        %1293 = vmatprep.subr.bf16.mxu0 0
        %1294 = vmatpush1.bf16.msra.mxu0 0
        %1295 = vmatprep.subr.bf16.mxu0 0
        %1296 = vmatpush1.bf16.msra.mxu0 0
        %1297 = vmatprep.subr.bf16.mxu0 0
        %1298 = vmatpush1.bf16.msra.mxu0 0
        %1299 = vmatprep.subr.bf16.mxu0 0
        %1300 = vmatpush1.bf16.msra.mxu0 0
        %1301 = vmatprep.subr.bf16.mxu0 0
        %1302 = vmatpush1.bf16.msra.mxu0 0
        %1303 = vmatprep.subr.bf16.mxu0 0
        %1304 = vmatpush1.bf16.msra.mxu0 0
        %1305 = vmatprep.subr.bf16.mxu0 0
        %1306 = vmatpush1.bf16.msra.mxu0 0
        %1307 = vmatprep.subr.bf16.mxu0 0
        %1308 = vmatpush1.bf16.msra.mxu0 %v1288
        %1309 = vmatprep.subr.bf16.mxu0 0
        %1310 = vmatpush2.bf16.msra.mxu0 0
        %1311 = vmatprep.subr.bf16.mxu0 0
        %1312 = vmatpush2.bf16.msra.mxu0 0
        %1313 = vmatprep.subr.bf16.mxu0 0
        %1314 = vmatpush2.bf16.msra.mxu0 0
        %1315 = vmatprep.subr.bf16.mxu0 0
        %1316 = vmatpush2.bf16.msra.mxu0 0
        %1317 = vmatprep.subr.bf16.mxu0 0
        %1318 = vmatpush2.bf16.msra.mxu0 0
        %1319 = vmatprep.subr.bf16.mxu0 0
        %1320 = vmatpush2.bf16.msra.mxu0 0
        %1321 = vmatprep.subr.bf16.mxu0 0
        %1322 = vmatpush2.bf16.msra.mxu0 0
        %1323 = vmatprep.subr.bf16.mxu0 0
        %1324 = vmatpush2.bf16.msra.mxu0 0
        %1325 = vmatprep.mubr.bf16.mxu0 0
        %1326 = vmatmul.mubr.bf16.gmra.mxu0 %v1291
        %v1327 = vpop.f32.mrf.mxu0
        %v1328 = vadd.f32 0.0, %v1327
        %v1329 = vpop.f32.mrf.mxu0
        %v1330 = vpop.f32.mrf.mxu0
        %v1331 = vadd.f32 0.0, %v1330
        %v1332 = vpop.f32.mrf.mxu0
        %1333 = vdwg.mxu0
        %1334 = vrot.lane.b32.xlu0 %v963, 104
        %v1335 = vpop.permute.xlu0 %1334
        %1336 = vrot.lane.b32.xlu0 %v963, 72
        %v1337 = vpop.permute.xlu0 %1336
        %v1339 = vsel %vm967, %v1335, 0
        %v1342 = vsel %vm967, %v1337, 0
        %1344 = vmatprep.subr.bf16.mxu0 0
        %1345 = vmatpush1.bf16.xpose.msra.mxu0 0
        %1346 = vmatprep.subr.bf16.mxu0 0
        %1347 = vmatpush1.bf16.xpose.msra.mxu0 0
        %1348 = vmatprep.subr.bf16.mxu0 0
        %1349 = vmatpush1.bf16.xpose.msra.mxu0 0
        %1350 = vmatprep.subr.bf16.mxu0 0
        %1351 = vmatpush1.bf16.xpose.msra.mxu0 0
        %1352 = vmatprep.subr.bf16.mxu0 0
        %1353 = vmatpush1.bf16.xpose.msra.mxu0 0
        %1354 = vmatprep.subr.bf16.mxu0 0
        %1355 = vmatpush1.bf16.xpose.msra.mxu0 0
        %1356 = vmatprep.subr.bf16.mxu0 0
        %1357 = vmatpush1.bf16.xpose.msra.mxu0 0
        %1358 = vmatprep.subr.bf16.mxu0 0
        %1359 = vmatpush1.bf16.xpose.msra.mxu0 %v1342
        %1360 = vmatprep.subr.bf16.mxu0 0
        %1361 = vmatpush2.bf16.xpose.msra.mxu0 0
        %1362 = vmatprep.subr.bf16.mxu0 0
        %1363 = vmatpush2.bf16.xpose.msra.mxu0 0
        %1364 = vmatprep.subr.bf16.mxu0 0
        %1365 = vmatpush2.bf16.xpose.msra.mxu0 0
        %1366 = vmatprep.subr.bf16.mxu0 0
        %1367 = vmatpush2.bf16.xpose.msra.mxu0 0
        %1368 = vmatprep.subr.bf16.mxu0 0
        %1369 = vmatpush2.bf16.xpose.msra.mxu0 0
        %1370 = vmatprep.subr.bf16.mxu0 0
        %1371 = vmatpush2.bf16.xpose.msra.mxu0 0
        %1372 = vmatprep.subr.bf16.mxu0 0
        %1373 = vmatpush2.bf16.xpose.msra.mxu0 0
        %1374 = vmatprep.subr.bf16.mxu0 0
        %1375 = vmatpush2.bf16.xpose.msra.mxu0 0
        %1376 = vmatprep.mubr.bf16.mxu0 0
        %1377 = vmatmul.mubr.bf16.gmra.mxu0 %v1339
        %v1378 = vpop.f32.mrf.mxu0
        %v1379 = vadd.f32 0.0, %v1378
        %v1380 = vpop.f32.mrf.mxu0
        %v1381 = vpop.f32.mrf.mxu0
        %v1382 = vadd.f32 0.0, %v1381
        %v1383 = vpop.f32.mrf.mxu0
        %1384 = vdwg.mxu0
        %v1385 = vmul.f32 %v1379, 0.35355338
        %v1386 = vmul.f32 %v1382, 0.35355338
        %v1387 = vsel %vm1017, %v1385, -inf
        %1388 = vmax.xlane.f32.xlu0 %v1387
        %v1389 = vpop.xlane.xlu0 %1388
        %v1390 = vsel %vm1017, %v1386, -inf
        %1391 = vmax.xlane.f32.xlu0 %v1390
        %v1392 = vpop.xlane.xlu0 %1391
        %v1393 = vsub.f32 %v1385, %v1389
        %v1394 = vsub.f32 %v1386, %v1392
        %v1395 = vmul.f32 %v1393, 1.442695
        %v1396 = vpow.pop %v1395
        %v1397 = vmul.f32 %v1394, 1.442695
        %v1398 = vpow.pop %v1397
        %v1399 = vsel %vm1017, %v1396, 0.0
        %1400 = vadd.xlane.f32.xlu0 %v1399
        %v1401 = vpop.xlane.xlu0 %1400
        %v1402 = vsel %vm1017, %v1398, 0.0
        %1403 = vadd.xlane.f32.xlu0 %v1402
        %v1404 = vpop.xlane.xlu0 %1403
        %v1405 = vrcp.pop %v1401
        %v1406 = vmul.f32 %v1396, %v1405
        %v1407 = vrcp.pop %v1404
        %v1408 = vmul.f32 %v1398, %v1407
        %v1409 = vpack.c.bf16 %v1408, %v1406
        %1410 = vrot.lane.b32.xlu0 %v963, 40
        %v1411 = vpop.permute.xlu0 %1410
        %v1414 = vsel %vm1017, %v1409, 0
        %1416 = vmatprep.subr.bf16.mxu0 0
        %1417 = vmatpush1.bf16.msra.mxu0 0
        %1418 = vmatprep.subr.bf16.mxu0 0
        %1419 = vmatpush1.bf16.msra.mxu0 0
        %1420 = vmatprep.subr.bf16.mxu0 0
        %1421 = vmatpush1.bf16.msra.mxu0 0
        %1422 = vmatprep.subr.bf16.mxu0 0
        %1423 = vmatpush1.bf16.msra.mxu0 0
        %1424 = vmatprep.subr.bf16.mxu0 0
        %1425 = vmatpush1.bf16.msra.mxu0 0
        %1426 = vmatprep.subr.bf16.mxu0 0
        %1427 = vmatpush1.bf16.msra.mxu0 0
        %1428 = vmatprep.subr.bf16.mxu0 0
        %1429 = vmatpush1.bf16.msra.mxu0 0
        %1430 = vmatprep.subr.bf16.mxu0 0
        %1431 = vmatpush1.bf16.msra.mxu0 %v1411
        %1432 = vmatprep.subr.bf16.mxu0 0
        %1433 = vmatpush2.bf16.msra.mxu0 0
        %1434 = vmatprep.subr.bf16.mxu0 0
        %1435 = vmatpush2.bf16.msra.mxu0 0
        %1436 = vmatprep.subr.bf16.mxu0 0
        %1437 = vmatpush2.bf16.msra.mxu0 0
        %1438 = vmatprep.subr.bf16.mxu0 0
        %1439 = vmatpush2.bf16.msra.mxu0 0
        %1440 = vmatprep.subr.bf16.mxu0 0
        %1441 = vmatpush2.bf16.msra.mxu0 0
        %1442 = vmatprep.subr.bf16.mxu0 0
        %1443 = vmatpush2.bf16.msra.mxu0 0
        %1444 = vmatprep.subr.bf16.mxu0 0
        %1445 = vmatpush2.bf16.msra.mxu0 0
        %1446 = vmatprep.subr.bf16.mxu0 0
        %1447 = vmatpush2.bf16.msra.mxu0 0
        %1448 = vmatprep.mubr.bf16.mxu0 0
        %1449 = vmatmul.mubr.bf16.gmra.mxu0 %v1414
        %v1450 = vpop.f32.mrf.mxu0
        %v1451 = vadd.f32 0.0, %v1450
        %v1452 = vpop.f32.mrf.mxu0
        %v1453 = vpop.f32.mrf.mxu0
        %v1454 = vadd.f32 0.0, %v1453
        %v1455 = vpop.f32.mrf.mxu0
        %1456 = vdwg.mxu0
        %1459 = vrot.lane.b32.xlu0 %v1205, 8
        %v1460 = vpop.permute.xlu0 %1459
        %1461 = vrot.lane.b32.xlu0 %v1208, 8
        %v1462 = vpop.permute.xlu0 %1461
        %1467 = vrot.lane.b32.xlu0 %v1328, 16
        %v1468 = vpop.permute.xlu0 %1467
        %1469 = vrot.lane.b32.xlu0 %v1331, 16
        %v1470 = vpop.permute.xlu0 %1469
        %1475 = vrot.lane.b32.xlu0 %v1451, 24
        %v1476 = vpop.permute.xlu0 %1475
        %1477 = vrot.lane.b32.xlu0 %v1454, 24
        %v1478 = vpop.permute.xlu0 %1477
        %v1481 = vsel %vm967, %v1082, %v1460
        %v1482 = vsel %vm967, %v1085, %v1462
        %v1483 = vsel %vm1017, %v1481, %v1468
        %v1484 = vsel %vm1017, %v1482, %v1470
        %vm1485 = vcmask 195584
        %v1486 = vsel %vm1485, %v1483, %v1476
        %v1487 = vsel %vm1485, %v1484, %v1478
        %v1488 = vpack.c.bf16 %v1487, %v1486
        %v1490 = vlaneseq
        %v1491 = vshrl.u32 %v1490, 7
        %v1492 = vsub.s32 0, %v1491
        %v1493 = vrot.slane %v962, %v1492
        %v1499 = vunpack.c.l.b16 %v958
        %v1500 = vunpack.c.l.b16 %v959
        %v1501 = vunpack.c.l.b16 %v960
        %v1502 = vunpack.c.l.b16 %v961
        %v1503 = vpack.c.b16 %v1500, %v1499
        %v1504 = vpack.c.b16 %v1502, %v1501
        %v1508 = vsel %vm913, %v1488, 0
        %1510 = vmatprep.subr.bf16.mxu0 0
        %1511 = vmatpush1.bf16.msra.mxu0 0
        %1512 = vmatprep.subr.bf16.mxu0 0
        %1513 = vmatpush1.bf16.msra.mxu0 0
        %1514 = vmatprep.subr.bf16.mxu0 0
        %1515 = vmatpush1.bf16.msra.mxu0 0
        %1516 = vmatprep.subr.bf16.mxu0 0
        %1517 = vmatpush1.bf16.msra.mxu0 0
        %1518 = vmatprep.subr.bf16.mxu0 0
        %1519 = vmatpush1.bf16.msra.mxu0 0
        %1520 = vmatprep.subr.bf16.mxu0 0
        %1521 = vmatpush1.bf16.msra.mxu0 0
        %1522 = vmatprep.subr.bf16.mxu0 0
        %1523 = vmatpush1.bf16.msra.mxu0 %v1504
        %1524 = vmatprep.subr.bf16.mxu0 0
        %1525 = vmatpush1.bf16.msra.mxu0 %v1503
        %1526 = vmatprep.subr.bf16.mxu0 0
        %1527 = vmatpush2.bf16.msra.mxu0 0
        %1528 = vmatprep.subr.bf16.mxu0 0
        %1529 = vmatpush2.bf16.msra.mxu0 0
        %1530 = vmatprep.subr.bf16.mxu0 0
        %1531 = vmatpush2.bf16.msra.mxu0 0
        %1532 = vmatprep.subr.bf16.mxu0 0
        %1533 = vmatpush2.bf16.msra.mxu0 0
        %1534 = vmatprep.subr.bf16.mxu0 0
        %1535 = vmatpush2.bf16.msra.mxu0 0
        %1536 = vmatprep.subr.bf16.mxu0 0
        %1537 = vmatpush2.bf16.msra.mxu0 0
        %1538 = vmatprep.subr.bf16.mxu0 0
        %1539 = vmatpush2.bf16.msra.mxu0 0
        %1540 = vmatprep.subr.bf16.mxu0 0
        %1541 = vmatpush2.bf16.msra.mxu0 0
        %1542 = vmatprep.mubr.bf16.mxu0 0
        %1543 = vmatmul.mubr.bf16.gmra.mxu0 %v1508
        %v1544 = vpop.f32.mrf.mxu0
        %v1545 = vadd.f32 %v1493, %v1544
        %v1546 = vpop.f32.mrf.mxu0
        %v1547 = vpop.f32.mrf.mxu0
        %v1548 = vadd.f32 %v1493, %v1547
        %v1549 = vpop.f32.mrf.mxu0
        %1550 = vdwg.mxu0
        %v1551 = vadd.f32 %v883, %v1545
        %v1552 = vadd.f32 %v884, %v1548
        %v1554 = vsel %vm1017, %v887, 0
        %v1557 = vsel %vm1017, %v888, 0
        %1559 = vmatprep.subr.mxu0 0.0
        %1560 = vmatpush1.msra.mxu0 0.0
        %1561 = vmatprep.subr.mxu0 0.0
        %1562 = vmatpush1.msra.mxu0 0.0
        %1563 = vmatprep.subr.mxu0 0.0
        %1564 = vmatpush1.msra.mxu0 0.0
        %1565 = vmatprep.subr.mxu0 0.0
        %1566 = vmatpush1.msra.mxu0 0.0
        %1567 = vmatprep.subr.mxu0 0.0
        %1568 = vmatpush1.msra.mxu0 0.0
        %1569 = vmatprep.subr.mxu0 0.0
        %1570 = vmatpush1.msra.mxu0 0.0
        %1571 = vmatprep.subr.mxu0 0.0
        %1572 = vmatpush1.msra.mxu0 0.0
        %1573 = vmatprep.subr.mxu0 0.0
        %1574 = vmatpush1.msra.mxu0 0.0
        %1575 = vmatprep.subr.mxu0 0.0
        %1576 = vmatpush1.msra.mxu0 0.0
        %1577 = vmatprep.subr.mxu0 0.0
        %1578 = vmatpush1.msra.mxu0 0.0
        %1579 = vmatprep.subr.mxu0 0.0
        %1580 = vmatpush1.msra.mxu0 0.0
        %1581 = vmatprep.subr.mxu0 0.0
        %1582 = vmatpush1.msra.mxu0 0.0
        %1583 = vmatprep.subr.mxu0 0.0
        %1584 = vmatpush1.msra.mxu0 0.0
        %1585 = vmatprep.subr.mxu0 0.0
        %1586 = vmatpush1.msra.mxu0 0.0
        %1587 = vmatprep.subr.mxu0 0.0
        %1588 = vmatpush1.msra.mxu0 %v1552
        %1589 = vmatprep.subr.mxu0 0.0
        %1590 = vmatpush1.msra.mxu0 %v1551
        %1591 = vmatprep.subr.mxu0 0.0
        %1592 = vmatpush2.msra.mxu0 0.0
        %1593 = vmatprep.subr.mxu0 0.0
        %1594 = vmatpush2.msra.mxu0 0.0
        %1595 = vmatprep.subr.mxu0 0.0
        %1596 = vmatpush2.msra.mxu0 0.0
        %1597 = vmatprep.subr.mxu0 0.0
        %1598 = vmatpush2.msra.mxu0 0.0
        %1599 = vmatprep.subr.mxu0 0.0
        %1600 = vmatpush2.msra.mxu0 0.0
        %1601 = vmatprep.subr.mxu0 0.0
        %1602 = vmatpush2.msra.mxu0 0.0
        %1603 = vmatprep.subr.mxu0 0.0
        %1604 = vmatpush2.msra.mxu0 0.0
        %1605 = vmatprep.subr.mxu0 0.0
        %1606 = vmatpush2.msra.mxu0 0.0
        %1607 = vmatprep.subr.mxu0 0.0
        %1608 = vmatpush2.msra.mxu0 0.0
        %1609 = vmatprep.subr.mxu0 0.0
        %1610 = vmatpush2.msra.mxu0 0.0
        %1611 = vmatprep.subr.mxu0 0.0
        %1612 = vmatpush2.msra.mxu0 0.0
        %1613 = vmatprep.subr.mxu0 0.0
        %1614 = vmatpush2.msra.mxu0 0.0
        %1615 = vmatprep.subr.mxu0 0.0
        %1616 = vmatpush2.msra.mxu0 0.0
        %1617 = vmatprep.subr.mxu0 0.0
        %1618 = vmatpush2.msra.mxu0 0.0
        %1619 = vmatprep.subr.mxu0 0.0
        %1620 = vmatpush2.msra.mxu0 0.0
        %1621 = vmatprep.subr.mxu0 0.0
        %1622 = vmatpush2.msra.mxu0 0.0
        %1623 = vmatprep.mubr.f32.mxu0 0.0
        %1624 = vmatmul.mubr.f32.gmra.mxu0 %v1554
        %v1625 = vpop.f32.mrf.mxu0
        %v1626 = vadd.f32 0.0, %v1625
        %v1627 = vpop.f32.mrf.mxu0
        %1628 = vmatprep.mubr.f32.mxu0 0.0
        %1629 = vmatmul.mubr.f32.gmra.mxu0 %v1557
        %v1630 = vpop.f32.mrf.mxu0
        %v1631 = vadd.f32 0.0, %v1630
        %v1632 = vpop.f32.mrf.mxu0
        %1633 = vdwg.mxu0
        %v1634 = vsub.f32 %v1551, %v1626
        %v1635 = vsub.f32 %v1552, %v1631
        %v1636 = vpack.c.bf16 %v1635, %v1634
        %v1637 = vld [vmem:[#allocation10] sm:$0xf]
        %v1638 = vld [vmem:[#allocation10 + $0x4] sm:$0xf]
        %v1639 = vld [vmem:[#allocation10 + $0x8] sm:$0xf]
        %v1640 = vld [vmem:[#allocation10 + $0xc] sm:$0xf]
        %v1641 = vld [vmem:[#allocation11] sm:$0x1]
        %v1643 = vlaneseq
        %v1644 = vshrl.u32 %v1643, 7
        %v1645 = vsub.s32 0, %v1644
        %v1646 = vrot.slane %v1641, %v1645
        %v1652 = vunpack.c.l.b16 %v1637
        %v1653 = vunpack.c.l.b16 %v1638
        %v1654 = vunpack.c.l.b16 %v1639
        %v1655 = vunpack.c.l.b16 %v1640
        %v1656 = vpack.c.b16 %v1653, %v1652
        %v1657 = vpack.c.b16 %v1655, %v1654
        %v1661 = vsel %vm913, %v1636, 0
        %1663 = vmatprep.subr.bf16.mxu0 0
        %1664 = vmatpush1.bf16.msra.mxu0 0
        %1665 = vmatprep.subr.bf16.mxu0 0
        %1666 = vmatpush1.bf16.msra.mxu0 0
        %1667 = vmatprep.subr.bf16.mxu0 0
        %1668 = vmatpush1.bf16.msra.mxu0 0
        %1669 = vmatprep.subr.bf16.mxu0 0
        %1670 = vmatpush1.bf16.msra.mxu0 0
        %1671 = vmatprep.subr.bf16.mxu0 0
        %1672 = vmatpush1.bf16.msra.mxu0 0
        %1673 = vmatprep.subr.bf16.mxu0 0
        %1674 = vmatpush1.bf16.msra.mxu0 0
        %1675 = vmatprep.subr.bf16.mxu0 0
        %1676 = vmatpush1.bf16.msra.mxu0 %v1657
        %1677 = vmatprep.subr.bf16.mxu0 0
        %1678 = vmatpush1.bf16.msra.mxu0 %v1656
        %1679 = vmatprep.subr.bf16.mxu0 0
        %1680 = vmatpush2.bf16.msra.mxu0 0
        %1681 = vmatprep.subr.bf16.mxu0 0
        %1682 = vmatpush2.bf16.msra.mxu0 0
        %1683 = vmatprep.subr.bf16.mxu0 0
        %1684 = vmatpush2.bf16.msra.mxu0 0
        %1685 = vmatprep.subr.bf16.mxu0 0
        %1686 = vmatpush2.bf16.msra.mxu0 0
        %1687 = vmatprep.subr.bf16.mxu0 0
        %1688 = vmatpush2.bf16.msra.mxu0 0
        %1689 = vmatprep.subr.bf16.mxu0 0
        %1690 = vmatpush2.bf16.msra.mxu0 0
        %1691 = vmatprep.subr.bf16.mxu0 0
        %1692 = vmatpush2.bf16.msra.mxu0 0
        %1693 = vmatprep.subr.bf16.mxu0 0
        %1694 = vmatpush2.bf16.msra.mxu0 0
        %1695 = vmatprep.mubr.bf16.mxu0 0
        %1696 = vmatmul.mubr.bf16.gmra.mxu0 %v1661
        %v1697 = vpop.f32.mrf.mxu0
        %v1698 = vadd.f32 %v1646, %v1697
        %v1699 = vpop.f32.mrf.mxu0
        %v1700 = vpop.f32.mrf.mxu0
        %v1701 = vadd.f32 %v1646, %v1700
        %v1702 = vpop.f32.mrf.mxu0
        %1703 = vdwg.mxu0
        %v1704 = vpack.c.bf16 %v886, %v885
        %v1705 = vld [vmem:[#allocation13] sm:$0xf]
        %v1706 = vld [vmem:[#allocation13 + $0x4] sm:$0xf]
        %v1707 = vld [vmem:[#allocation13 + $0x8] sm:$0xf]
        %v1708 = vld [vmem:[#allocation13 + $0xc] sm:$0xf]
        %v1709 = vld [vmem:[#allocation14] sm:$0x1]
        %v1711 = vlaneseq
        %v1712 = vshrl.u32 %v1711, 7
        %v1713 = vsub.s32 0, %v1712
        %v1714 = vrot.slane %v1709, %v1713
        %v1720 = vunpack.c.l.b16 %v1705
        %v1721 = vunpack.c.l.b16 %v1706
        %v1722 = vunpack.c.l.b16 %v1707
        %v1723 = vunpack.c.l.b16 %v1708
        %v1724 = vpack.c.b16 %v1721, %v1720
        %v1725 = vpack.c.b16 %v1723, %v1722
        %v1729 = vsel %vm913, %v1704, 0
        %1731 = vmatprep.subr.bf16.mxu0 0
        %1732 = vmatpush1.bf16.msra.mxu0 0
        %1733 = vmatprep.subr.bf16.mxu0 0
        %1734 = vmatpush1.bf16.msra.mxu0 0
        %1735 = vmatprep.subr.bf16.mxu0 0
        %1736 = vmatpush1.bf16.msra.mxu0 0
        %1737 = vmatprep.subr.bf16.mxu0 0
        %1738 = vmatpush1.bf16.msra.mxu0 0
        %1739 = vmatprep.subr.bf16.mxu0 0
        %1740 = vmatpush1.bf16.msra.mxu0 0
        %1741 = vmatprep.subr.bf16.mxu0 0
        %1742 = vmatpush1.bf16.msra.mxu0 0
        %1743 = vmatprep.subr.bf16.mxu0 0
        %1744 = vmatpush1.bf16.msra.mxu0 %v1725
        %1745 = vmatprep.subr.bf16.mxu0 0
        %1746 = vmatpush1.bf16.msra.mxu0 %v1724
        %1747 = vmatprep.subr.bf16.mxu0 0
        %1748 = vmatpush2.bf16.msra.mxu0 0
        %1749 = vmatprep.subr.bf16.mxu0 0
        %1750 = vmatpush2.bf16.msra.mxu0 0
        %1751 = vmatprep.subr.bf16.mxu0 0
        %1752 = vmatpush2.bf16.msra.mxu0 0
        %1753 = vmatprep.subr.bf16.mxu0 0
        %1754 = vmatpush2.bf16.msra.mxu0 0
        %1755 = vmatprep.subr.bf16.mxu0 0
        %1756 = vmatpush2.bf16.msra.mxu0 0
        %1757 = vmatprep.subr.bf16.mxu0 0
        %1758 = vmatpush2.bf16.msra.mxu0 0
        %1759 = vmatprep.subr.bf16.mxu0 0
        %1760 = vmatpush2.bf16.msra.mxu0 0
        %1761 = vmatprep.subr.bf16.mxu0 0
        %1762 = vmatpush2.bf16.msra.mxu0 0
        %1763 = vmatprep.mubr.bf16.mxu0 0
        %1764 = vmatmul.mubr.bf16.gmra.mxu0 %v1729
        %v1765 = vpop.f32.mrf.mxu0
        %v1766 = vadd.f32 %v1714, %v1765
        %v1767 = vpop.f32.mrf.mxu0
        %v1768 = vpop.f32.mrf.mxu0
        %v1769 = vadd.f32 %v1714, %v1768
        %v1770 = vpop.f32.mrf.mxu0
        %1771 = vdwg.mxu0
        %v1772 = vld [vmem:[#allocation16] sm:$0xf]
        %v1773 = vld [vmem:[#allocation16 + $0x4] sm:$0xf]
        %v1774 = vld [vmem:[#allocation16 + $0x8] sm:$0xf]
        %v1775 = vld [vmem:[#allocation16 + $0xc] sm:$0xf]
        %v1776 = vld [vmem:[#allocation17] sm:$0x1]
        %v1777 = vpack.c.bf16 %v1701, %v1698
        %v1778 = vpack.c.bf16 %v1769, %v1766
        %v1780 = vsel %vm967, %v1777, 0
        %v1783 = vsel %vm967, %v1778, 0
        %1785 = vmatprep.subr.bf16.mxu0 0
        %1786 = vmatpush1.bf16.xpose.msra.mxu0 0
        %1787 = vmatprep.subr.bf16.mxu0 0
        %1788 = vmatpush1.bf16.xpose.msra.mxu0 0
        %1789 = vmatprep.subr.bf16.mxu0 0
        %1790 = vmatpush1.bf16.xpose.msra.mxu0 0
        %1791 = vmatprep.subr.bf16.mxu0 0
        %1792 = vmatpush1.bf16.xpose.msra.mxu0 0
        %1793 = vmatprep.subr.bf16.mxu0 0
        %1794 = vmatpush1.bf16.xpose.msra.mxu0 0
        %1795 = vmatprep.subr.bf16.mxu0 0
        %1796 = vmatpush1.bf16.xpose.msra.mxu0 0
        %1797 = vmatprep.subr.bf16.mxu0 0
        %1798 = vmatpush1.bf16.xpose.msra.mxu0 0
        %1799 = vmatprep.subr.bf16.mxu0 0
        %1800 = vmatpush1.bf16.xpose.msra.mxu0 %v1783
        %1801 = vmatprep.subr.bf16.mxu0 0
        %1802 = vmatpush2.bf16.xpose.msra.mxu0 0
        %1803 = vmatprep.subr.bf16.mxu0 0
        %1804 = vmatpush2.bf16.xpose.msra.mxu0 0
        %1805 = vmatprep.subr.bf16.mxu0 0
        %1806 = vmatpush2.bf16.xpose.msra.mxu0 0
        %1807 = vmatprep.subr.bf16.mxu0 0
        %1808 = vmatpush2.bf16.xpose.msra.mxu0 0
        %1809 = vmatprep.subr.bf16.mxu0 0
        %1810 = vmatpush2.bf16.xpose.msra.mxu0 0
        %1811 = vmatprep.subr.bf16.mxu0 0
        %1812 = vmatpush2.bf16.xpose.msra.mxu0 0
        %1813 = vmatprep.subr.bf16.mxu0 0
        %1814 = vmatpush2.bf16.xpose.msra.mxu0 0
        %1815 = vmatprep.subr.bf16.mxu0 0
        %1816 = vmatpush2.bf16.xpose.msra.mxu0 0
        %1817 = vmatprep.mubr.bf16.mxu0 0
        %1818 = vmatmul.mubr.bf16.gmra.mxu0 %v1780
        %v1819 = vpop.f32.mrf.mxu0
        %v1820 = vadd.f32 0.0, %v1819
        %v1821 = vpop.f32.mrf.mxu0
        %v1822 = vpop.f32.mrf.mxu0
        %v1823 = vadd.f32 0.0, %v1822
        %v1824 = vpop.f32.mrf.mxu0
        %1825 = vdwg.mxu0
        %v1826 = vmul.f32 %v1820, 0.35355338
        %v1827 = vmul.f32 %v1823, 0.35355338
        %vm1828 = vcmask 97280
        %v1829 = vsel %vm1828, %v1826, -inf
        %1830 = vmax.xlane.f32.xlu0 %v1829
        %v1831 = vpop.xlane.xlu0 %1830
        %v1832 = vsel %vm1828, %v1827, -inf
        %1833 = vmax.xlane.f32.xlu0 %v1832
        %v1834 = vpop.xlane.xlu0 %1833
        %v1835 = vsub.f32 %v1826, %v1831
        %v1836 = vsub.f32 %v1827, %v1834
        %v1837 = vmul.f32 %v1835, 1.442695
        %v1838 = vpow.pop %v1837
        %v1839 = vmul.f32 %v1836, 1.442695
        %v1840 = vpow.pop %v1839
        %v1841 = vsel %vm1828, %v1838, 0.0
        %1842 = vadd.xlane.f32.xlu0 %v1841
        %v1843 = vpop.xlane.xlu0 %1842
        %v1844 = vsel %vm1828, %v1840, 0.0
        %1845 = vadd.xlane.f32.xlu0 %v1844
        %v1846 = vpop.xlane.xlu0 %1845
        %v1847 = vrcp.pop %v1843
        %v1848 = vmul.f32 %v1838, %v1847
        %v1849 = vrcp.pop %v1846
        %v1850 = vmul.f32 %v1840, %v1849
        %v1851 = vpack.c.bf16 %v1850, %v1848
        %1853 = vrot.lane.b32.xlu0 %v1778, 96
        %v1854 = vpop.permute.xlu0 %1853
        %v1856 = vsel %vm1828, %v1851, 0
        %vm1858 = vcmask 1045504
        %v1860 = vsel %vm1858, %v1854, 0
        %1862 = vmatprep.subr.bf16.mxu0 0
        %1863 = vmatpush1.bf16.msra.mxu0 0
        %1864 = vmatprep.subr.bf16.mxu0 0
        %1865 = vmatpush1.bf16.msra.mxu0 0
        %1866 = vmatprep.subr.bf16.mxu0 0
        %1867 = vmatpush1.bf16.msra.mxu0 0
        %1868 = vmatprep.subr.bf16.mxu0 0
        %1869 = vmatpush1.bf16.msra.mxu0 0
        %1870 = vmatprep.subr.bf16.mxu0 0
        %1871 = vmatpush1.bf16.msra.mxu0 0
        %1872 = vmatprep.subr.bf16.mxu0 0
        %1873 = vmatpush1.bf16.msra.mxu0 0
        %1874 = vmatprep.subr.bf16.mxu0 0
        %1875 = vmatpush1.bf16.msra.mxu0 0
        %1876 = vmatprep.subr.bf16.mxu0 0
        %1877 = vmatpush1.bf16.msra.mxu0 %v1860
        %1878 = vmatprep.subr.bf16.mxu0 0
        %1879 = vmatpush2.bf16.msra.mxu0 0
        %1880 = vmatprep.subr.bf16.mxu0 0
        %1881 = vmatpush2.bf16.msra.mxu0 0
        %1882 = vmatprep.subr.bf16.mxu0 0
        %1883 = vmatpush2.bf16.msra.mxu0 0
        %1884 = vmatprep.subr.bf16.mxu0 0
        %1885 = vmatpush2.bf16.msra.mxu0 0
        %1886 = vmatprep.subr.bf16.mxu0 0
        %1887 = vmatpush2.bf16.msra.mxu0 0
        %1888 = vmatprep.subr.bf16.mxu0 0
        %1889 = vmatpush2.bf16.msra.mxu0 0
        %1890 = vmatprep.subr.bf16.mxu0 0
        %1891 = vmatpush2.bf16.msra.mxu0 0
        %1892 = vmatprep.subr.bf16.mxu0 0
        %1893 = vmatpush2.bf16.msra.mxu0 0
        %1894 = vmatprep.mubr.bf16.mxu0 0
        %1895 = vmatmul.mubr.bf16.gmra.mxu0 %v1856
        %v1896 = vpop.f32.mrf.mxu0
        %v1897 = vadd.f32 0.0, %v1896
        %v1898 = vpop.f32.mrf.mxu0
        %v1899 = vpop.f32.mrf.mxu0
        %v1900 = vadd.f32 0.0, %v1899
        %v1901 = vpop.f32.mrf.mxu0
        %1902 = vdwg.mxu0
        %1904 = vrot.lane.b32.xlu0 %v1777, 120
        %v1905 = vpop.permute.xlu0 %1904
        %1906 = vrot.lane.b32.xlu0 %v1778, 120
        %v1907 = vpop.permute.xlu0 %1906
        %v1909 = vsel %vm967, %v1905, 0
        %v1912 = vsel %vm967, %v1907, 0
        %1914 = vmatprep.subr.bf16.mxu0 0
        %1915 = vmatpush1.bf16.xpose.msra.mxu0 0
        %1916 = vmatprep.subr.bf16.mxu0 0
        %1917 = vmatpush1.bf16.xpose.msra.mxu0 0
        %1918 = vmatprep.subr.bf16.mxu0 0
        %1919 = vmatpush1.bf16.xpose.msra.mxu0 0
        %1920 = vmatprep.subr.bf16.mxu0 0
        %1921 = vmatpush1.bf16.xpose.msra.mxu0 0
        %1922 = vmatprep.subr.bf16.mxu0 0
        %1923 = vmatpush1.bf16.xpose.msra.mxu0 0
        %1924 = vmatprep.subr.bf16.mxu0 0
        %1925 = vmatpush1.bf16.xpose.msra.mxu0 0
        %1926 = vmatprep.subr.bf16.mxu0 0
        %1927 = vmatpush1.bf16.xpose.msra.mxu0 0
        %1928 = vmatprep.subr.bf16.mxu0 0
        %1929 = vmatpush1.bf16.xpose.msra.mxu0 %v1912
        %1930 = vmatprep.subr.bf16.mxu0 0
        %1931 = vmatpush2.bf16.xpose.msra.mxu0 0
        %1932 = vmatprep.subr.bf16.mxu0 0
        %1933 = vmatpush2.bf16.xpose.msra.mxu0 0
        %1934 = vmatprep.subr.bf16.mxu0 0
        %1935 = vmatpush2.bf16.xpose.msra.mxu0 0
        %1936 = vmatprep.subr.bf16.mxu0 0
        %1937 = vmatpush2.bf16.xpose.msra.mxu0 0
        %1938 = vmatprep.subr.bf16.mxu0 0
        %1939 = vmatpush2.bf16.xpose.msra.mxu0 0
        %1940 = vmatprep.subr.bf16.mxu0 0
        %1941 = vmatpush2.bf16.xpose.msra.mxu0 0
        %1942 = vmatprep.subr.bf16.mxu0 0
        %1943 = vmatpush2.bf16.xpose.msra.mxu0 0
        %1944 = vmatprep.subr.bf16.mxu0 0
        %1945 = vmatpush2.bf16.xpose.msra.mxu0 0
        %1946 = vmatprep.mubr.bf16.mxu0 0
        %1947 = vmatmul.mubr.bf16.gmra.mxu0 %v1909
        %v1948 = vpop.f32.mrf.mxu0
        %v1949 = vadd.f32 0.0, %v1948
        %v1950 = vpop.f32.mrf.mxu0
        %v1951 = vpop.f32.mrf.mxu0
        %v1952 = vadd.f32 0.0, %v1951
        %v1953 = vpop.f32.mrf.mxu0
        %1954 = vdwg.mxu0
        %v1955 = vmul.f32 %v1949, 0.35355338
        %v1956 = vmul.f32 %v1952, 0.35355338
        %v1957 = vsel %vm1828, %v1955, -inf
        %1958 = vmax.xlane.f32.xlu0 %v1957
        %v1959 = vpop.xlane.xlu0 %1958
        %v1960 = vsel %vm1828, %v1956, -inf
        %1961 = vmax.xlane.f32.xlu0 %v1960
        %v1962 = vpop.xlane.xlu0 %1961
        %v1963 = vsub.f32 %v1955, %v1959
        %v1964 = vsub.f32 %v1956, %v1962
        %v1965 = vmul.f32 %v1963, 1.442695
        %v1966 = vpow.pop %v1965
        %v1967 = vmul.f32 %v1964, 1.442695
        %v1968 = vpow.pop %v1967
        %v1969 = vsel %vm1828, %v1966, 0.0
        %1970 = vadd.xlane.f32.xlu0 %v1969
        %v1971 = vpop.xlane.xlu0 %1970
        %v1972 = vsel %vm1828, %v1968, 0.0
        %1973 = vadd.xlane.f32.xlu0 %v1972
        %v1974 = vpop.xlane.xlu0 %1973
        %v1975 = vrcp.pop %v1971
        %v1976 = vmul.f32 %v1966, %v1975
        %v1977 = vrcp.pop %v1974
        %v1978 = vmul.f32 %v1968, %v1977
        %v1979 = vpack.c.bf16 %v1978, %v1976
        %1980 = vrot.lane.b32.xlu0 %v1778, 88
        %v1981 = vpop.permute.xlu0 %1980
        %v1983 = vsel %vm1828, %v1979, 0
        %v1986 = vsel %vm1858, %v1981, 0
        %1988 = vmatprep.subr.bf16.mxu0 0
        %1989 = vmatpush1.bf16.msra.mxu0 0
        %1990 = vmatprep.subr.bf16.mxu0 0
        %1991 = vmatpush1.bf16.msra.mxu0 0
        %1992 = vmatprep.subr.bf16.mxu0 0
        %1993 = vmatpush1.bf16.msra.mxu0 0
        %1994 = vmatprep.subr.bf16.mxu0 0
        %1995 = vmatpush1.bf16.msra.mxu0 0
        %1996 = vmatprep.subr.bf16.mxu0 0
        %1997 = vmatpush1.bf16.msra.mxu0 0
        %1998 = vmatprep.subr.bf16.mxu0 0
        %1999 = vmatpush1.bf16.msra.mxu0 0
        %2000 = vmatprep.subr.bf16.mxu0 0
        %2001 = vmatpush1.bf16.msra.mxu0 0
        %2002 = vmatprep.subr.bf16.mxu0 0
        %2003 = vmatpush1.bf16.msra.mxu0 %v1986
        %2004 = vmatprep.subr.bf16.mxu0 0
        %2005 = vmatpush2.bf16.msra.mxu0 0
        %2006 = vmatprep.subr.bf16.mxu0 0
        %2007 = vmatpush2.bf16.msra.mxu0 0
        %2008 = vmatprep.subr.bf16.mxu0 0
        %2009 = vmatpush2.bf16.msra.mxu0 0
        %2010 = vmatprep.subr.bf16.mxu0 0
        %2011 = vmatpush2.bf16.msra.mxu0 0
        %2012 = vmatprep.subr.bf16.mxu0 0
        %2013 = vmatpush2.bf16.msra.mxu0 0
        %2014 = vmatprep.subr.bf16.mxu0 0
        %2015 = vmatpush2.bf16.msra.mxu0 0
        %2016 = vmatprep.subr.bf16.mxu0 0
        %2017 = vmatpush2.bf16.msra.mxu0 0
        %2018 = vmatprep.subr.bf16.mxu0 0
        %2019 = vmatpush2.bf16.msra.mxu0 0
        %2020 = vmatprep.mubr.bf16.mxu0 0
        %2021 = vmatmul.mubr.bf16.gmra.mxu0 %v1983
        %v2022 = vpop.f32.mrf.mxu0
        %v2023 = vadd.f32 0.0, %v2022
        %v2024 = vpop.f32.mrf.mxu0
        %v2025 = vpop.f32.mrf.mxu0
        %v2026 = vadd.f32 0.0, %v2025
        %v2027 = vpop.f32.mrf.mxu0
        %2028 = vdwg.mxu0
        %2029 = vrot.lane.b32.xlu0 %v1777, 112
        %v2030 = vpop.permute.xlu0 %2029
        %2031 = vrot.lane.b32.xlu0 %v1778, 112
        %v2032 = vpop.permute.xlu0 %2031
        %v2034 = vsel %vm967, %v2030, 0
        %v2037 = vsel %vm967, %v2032, 0
        %2039 = vmatprep.subr.bf16.mxu0 0
        %2040 = vmatpush1.bf16.xpose.msra.mxu0 0
        %2041 = vmatprep.subr.bf16.mxu0 0
        %2042 = vmatpush1.bf16.xpose.msra.mxu0 0
        %2043 = vmatprep.subr.bf16.mxu0 0
        %2044 = vmatpush1.bf16.xpose.msra.mxu0 0
        %2045 = vmatprep.subr.bf16.mxu0 0
        %2046 = vmatpush1.bf16.xpose.msra.mxu0 0
        %2047 = vmatprep.subr.bf16.mxu0 0
        %2048 = vmatpush1.bf16.xpose.msra.mxu0 0
        %2049 = vmatprep.subr.bf16.mxu0 0
        %2050 = vmatpush1.bf16.xpose.msra.mxu0 0
        %2051 = vmatprep.subr.bf16.mxu0 0
        %2052 = vmatpush1.bf16.xpose.msra.mxu0 0
        %2053 = vmatprep.subr.bf16.mxu0 0
        %2054 = vmatpush1.bf16.xpose.msra.mxu0 %v2037
        %2055 = vmatprep.subr.bf16.mxu0 0
        %2056 = vmatpush2.bf16.xpose.msra.mxu0 0
        %2057 = vmatprep.subr.bf16.mxu0 0
        %2058 = vmatpush2.bf16.xpose.msra.mxu0 0
        %2059 = vmatprep.subr.bf16.mxu0 0
        %2060 = vmatpush2.bf16.xpose.msra.mxu0 0
        %2061 = vmatprep.subr.bf16.mxu0 0
        %2062 = vmatpush2.bf16.xpose.msra.mxu0 0
        %2063 = vmatprep.subr.bf16.mxu0 0
        %2064 = vmatpush2.bf16.xpose.msra.mxu0 0
        %2065 = vmatprep.subr.bf16.mxu0 0
        %2066 = vmatpush2.bf16.xpose.msra.mxu0 0
        %2067 = vmatprep.subr.bf16.mxu0 0
        %2068 = vmatpush2.bf16.xpose.msra.mxu0 0
        %2069 = vmatprep.subr.bf16.mxu0 0
        %2070 = vmatpush2.bf16.xpose.msra.mxu0 0
        %2071 = vmatprep.mubr.bf16.mxu0 0
        %2072 = vmatmul.mubr.bf16.gmra.mxu0 %v2034
        %v2073 = vpop.f32.mrf.mxu0
        %v2074 = vadd.f32 0.0, %v2073
        %v2075 = vpop.f32.mrf.mxu0
        %v2076 = vpop.f32.mrf.mxu0
        %v2077 = vadd.f32 0.0, %v2076
        %v2078 = vpop.f32.mrf.mxu0
        %2079 = vdwg.mxu0
        %v2080 = vmul.f32 %v2074, 0.35355338
        %v2081 = vmul.f32 %v2077, 0.35355338
        %v2082 = vsel %vm1828, %v2080, -inf
        %2083 = vmax.xlane.f32.xlu0 %v2082
        %v2084 = vpop.xlane.xlu0 %2083
        %v2085 = vsel %vm1828, %v2081, -inf
        %2086 = vmax.xlane.f32.xlu0 %v2085
        %v2087 = vpop.xlane.xlu0 %2086
        %v2088 = vsub.f32 %v2080, %v2084
        %v2089 = vsub.f32 %v2081, %v2087
        %v2090 = vmul.f32 %v2088, 1.442695
        %v2091 = vpow.pop %v2090
        %v2092 = vmul.f32 %v2089, 1.442695
        %v2093 = vpow.pop %v2092
        %v2094 = vsel %vm1828, %v2091, 0.0
        %2095 = vadd.xlane.f32.xlu0 %v2094
        %v2096 = vpop.xlane.xlu0 %2095
        %v2097 = vsel %vm1828, %v2093, 0.0
        %2098 = vadd.xlane.f32.xlu0 %v2097
        %v2099 = vpop.xlane.xlu0 %2098
        %v2100 = vrcp.pop %v2096
        %v2101 = vmul.f32 %v2091, %v2100
        %v2102 = vrcp.pop %v2099
        %v2103 = vmul.f32 %v2093, %v2102
        %v2104 = vpack.c.bf16 %v2103, %v2101
        %2105 = vrot.lane.b32.xlu0 %v1778, 80
        %v2106 = vpop.permute.xlu0 %2105
        %v2108 = vsel %vm1828, %v2104, 0
        %v2111 = vsel %vm1858, %v2106, 0
        %2113 = vmatprep.subr.bf16.mxu0 0
        %2114 = vmatpush1.bf16.msra.mxu0 0
        %2115 = vmatprep.subr.bf16.mxu0 0
        %2116 = vmatpush1.bf16.msra.mxu0 0
        %2117 = vmatprep.subr.bf16.mxu0 0
        %2118 = vmatpush1.bf16.msra.mxu0 0
        %2119 = vmatprep.subr.bf16.mxu0 0
        %2120 = vmatpush1.bf16.msra.mxu0 0
        %2121 = vmatprep.subr.bf16.mxu0 0
        %2122 = vmatpush1.bf16.msra.mxu0 0
        %2123 = vmatprep.subr.bf16.mxu0 0
        %2124 = vmatpush1.bf16.msra.mxu0 0
        %2125 = vmatprep.subr.bf16.mxu0 0
        %2126 = vmatpush1.bf16.msra.mxu0 0
        %2127 = vmatprep.subr.bf16.mxu0 0
        %2128 = vmatpush1.bf16.msra.mxu0 %v2111
        %2129 = vmatprep.subr.bf16.mxu0 0
        %2130 = vmatpush2.bf16.msra.mxu0 0
        %2131 = vmatprep.subr.bf16.mxu0 0
        %2132 = vmatpush2.bf16.msra.mxu0 0
        %2133 = vmatprep.subr.bf16.mxu0 0
        %2134 = vmatpush2.bf16.msra.mxu0 0
        %2135 = vmatprep.subr.bf16.mxu0 0
        %2136 = vmatpush2.bf16.msra.mxu0 0
        %2137 = vmatprep.subr.bf16.mxu0 0
        %2138 = vmatpush2.bf16.msra.mxu0 0
        %2139 = vmatprep.subr.bf16.mxu0 0
        %2140 = vmatpush2.bf16.msra.mxu0 0
        %2141 = vmatprep.subr.bf16.mxu0 0
        %2142 = vmatpush2.bf16.msra.mxu0 0
        %2143 = vmatprep.subr.bf16.mxu0 0
        %2144 = vmatpush2.bf16.msra.mxu0 0
        %2145 = vmatprep.mubr.bf16.mxu0 0
        %2146 = vmatmul.mubr.bf16.gmra.mxu0 %v2108
        %v2147 = vpop.f32.mrf.mxu0
        %v2148 = vadd.f32 0.0, %v2147
        %v2149 = vpop.f32.mrf.mxu0
        %v2150 = vpop.f32.mrf.mxu0
        %v2151 = vadd.f32 0.0, %v2150
        %v2152 = vpop.f32.mrf.mxu0
        %2153 = vdwg.mxu0
        %2154 = vrot.lane.b32.xlu0 %v1777, 104
        %v2155 = vpop.permute.xlu0 %2154
        %2156 = vrot.lane.b32.xlu0 %v1778, 104
        %v2157 = vpop.permute.xlu0 %2156
        %v2159 = vsel %vm967, %v2155, 0
        %v2162 = vsel %vm967, %v2157, 0
        %2164 = vmatprep.subr.bf16.mxu0 0
        %2165 = vmatpush1.bf16.xpose.msra.mxu0 0
        %2166 = vmatprep.subr.bf16.mxu0 0
        %2167 = vmatpush1.bf16.xpose.msra.mxu0 0
        %2168 = vmatprep.subr.bf16.mxu0 0
        %2169 = vmatpush1.bf16.xpose.msra.mxu0 0
        %2170 = vmatprep.subr.bf16.mxu0 0
        %2171 = vmatpush1.bf16.xpose.msra.mxu0 0
        %2172 = vmatprep.subr.bf16.mxu0 0
        %2173 = vmatpush1.bf16.xpose.msra.mxu0 0
        %2174 = vmatprep.subr.bf16.mxu0 0
        %2175 = vmatpush1.bf16.xpose.msra.mxu0 0
        %2176 = vmatprep.subr.bf16.mxu0 0
        %2177 = vmatpush1.bf16.xpose.msra.mxu0 0
        %2178 = vmatprep.subr.bf16.mxu0 0
        %2179 = vmatpush1.bf16.xpose.msra.mxu0 %v2162
        %2180 = vmatprep.subr.bf16.mxu0 0
        %2181 = vmatpush2.bf16.xpose.msra.mxu0 0
        %2182 = vmatprep.subr.bf16.mxu0 0
        %2183 = vmatpush2.bf16.xpose.msra.mxu0 0
        %2184 = vmatprep.subr.bf16.mxu0 0
        %2185 = vmatpush2.bf16.xpose.msra.mxu0 0
        %2186 = vmatprep.subr.bf16.mxu0 0
        %2187 = vmatpush2.bf16.xpose.msra.mxu0 0
        %2188 = vmatprep.subr.bf16.mxu0 0
        %2189 = vmatpush2.bf16.xpose.msra.mxu0 0
        %2190 = vmatprep.subr.bf16.mxu0 0
        %2191 = vmatpush2.bf16.xpose.msra.mxu0 0
        %2192 = vmatprep.subr.bf16.mxu0 0
        %2193 = vmatpush2.bf16.xpose.msra.mxu0 0
        %2194 = vmatprep.subr.bf16.mxu0 0
        %2195 = vmatpush2.bf16.xpose.msra.mxu0 0
        %2196 = vmatprep.mubr.bf16.mxu0 0
        %2197 = vmatmul.mubr.bf16.gmra.mxu0 %v2159
        %v2198 = vpop.f32.mrf.mxu0
        %v2199 = vadd.f32 0.0, %v2198
        %v2200 = vpop.f32.mrf.mxu0
        %v2201 = vpop.f32.mrf.mxu0
        %v2202 = vadd.f32 0.0, %v2201
        %v2203 = vpop.f32.mrf.mxu0
        %2204 = vdwg.mxu0
        %v2205 = vmul.f32 %v2199, 0.35355338
        %v2206 = vmul.f32 %v2202, 0.35355338
        %v2207 = vsel %vm1828, %v2205, -inf
        %2208 = vmax.xlane.f32.xlu0 %v2207
        %v2209 = vpop.xlane.xlu0 %2208
        %v2210 = vsel %vm1828, %v2206, -inf
        %2211 = vmax.xlane.f32.xlu0 %v2210
        %v2212 = vpop.xlane.xlu0 %2211
        %v2213 = vsub.f32 %v2205, %v2209
        %v2214 = vsub.f32 %v2206, %v2212
        %v2215 = vmul.f32 %v2213, 1.442695
        %v2216 = vpow.pop %v2215
        %v2217 = vmul.f32 %v2214, 1.442695
        %v2218 = vpow.pop %v2217
        %v2219 = vsel %vm1828, %v2216, 0.0
        %2220 = vadd.xlane.f32.xlu0 %v2219
        %v2221 = vpop.xlane.xlu0 %2220
        %v2222 = vsel %vm1828, %v2218, 0.0
        %2223 = vadd.xlane.f32.xlu0 %v2222
        %v2224 = vpop.xlane.xlu0 %2223
        %v2225 = vrcp.pop %v2221
        %v2226 = vmul.f32 %v2216, %v2225
        %v2227 = vrcp.pop %v2224
        %v2228 = vmul.f32 %v2218, %v2227
        %v2229 = vpack.c.bf16 %v2228, %v2226
        %2230 = vrot.lane.b32.xlu0 %v1778, 72
        %v2231 = vpop.permute.xlu0 %2230
        %v2233 = vsel %vm1828, %v2229, 0
        %v2236 = vsel %vm1858, %v2231, 0
        %2238 = vmatprep.subr.bf16.mxu0 0
        %2239 = vmatpush1.bf16.msra.mxu0 0
        %2240 = vmatprep.subr.bf16.mxu0 0
        %2241 = vmatpush1.bf16.msra.mxu0 0
        %2242 = vmatprep.subr.bf16.mxu0 0
        %2243 = vmatpush1.bf16.msra.mxu0 0
        %2244 = vmatprep.subr.bf16.mxu0 0
        %2245 = vmatpush1.bf16.msra.mxu0 0
        %2246 = vmatprep.subr.bf16.mxu0 0
        %2247 = vmatpush1.bf16.msra.mxu0 0
        %2248 = vmatprep.subr.bf16.mxu0 0
        %2249 = vmatpush1.bf16.msra.mxu0 0
        %2250 = vmatprep.subr.bf16.mxu0 0
        %2251 = vmatpush1.bf16.msra.mxu0 0
        %2252 = vmatprep.subr.bf16.mxu0 0
        %2253 = vmatpush1.bf16.msra.mxu0 %v2236
        %2254 = vmatprep.subr.bf16.mxu0 0
        %2255 = vmatpush2.bf16.msra.mxu0 0
        %2256 = vmatprep.subr.bf16.mxu0 0
        %2257 = vmatpush2.bf16.msra.mxu0 0
        %2258 = vmatprep.subr.bf16.mxu0 0
        %2259 = vmatpush2.bf16.msra.mxu0 0
        %2260 = vmatprep.subr.bf16.mxu0 0
        %2261 = vmatpush2.bf16.msra.mxu0 0
        %2262 = vmatprep.subr.bf16.mxu0 0
        %2263 = vmatpush2.bf16.msra.mxu0 0
        %2264 = vmatprep.subr.bf16.mxu0 0
        %2265 = vmatpush2.bf16.msra.mxu0 0
        %2266 = vmatprep.subr.bf16.mxu0 0
        %2267 = vmatpush2.bf16.msra.mxu0 0
        %2268 = vmatprep.subr.bf16.mxu0 0
        %2269 = vmatpush2.bf16.msra.mxu0 0
        %2270 = vmatprep.mubr.bf16.mxu0 0
        %2271 = vmatmul.mubr.bf16.gmra.mxu0 %v2233
        %v2272 = vpop.f32.mrf.mxu0
        %v2273 = vadd.f32 0.0, %v2272
        %v2274 = vpop.f32.mrf.mxu0
        %v2275 = vpop.f32.mrf.mxu0
        %v2276 = vadd.f32 0.0, %v2275
        %v2277 = vpop.f32.mrf.mxu0
        %2278 = vdwg.mxu0
        %2281 = vrot.lane.b32.xlu0 %v2023, 8
        %v2282 = vpop.permute.xlu0 %2281
        %2283 = vrot.lane.b32.xlu0 %v2026, 8
        %v2284 = vpop.permute.xlu0 %2283
        %2289 = vrot.lane.b32.xlu0 %v2148, 16
        %v2290 = vpop.permute.xlu0 %2289
        %2291 = vrot.lane.b32.xlu0 %v2151, 16
        %v2292 = vpop.permute.xlu0 %2291
        %2297 = vrot.lane.b32.xlu0 %v2273, 24
        %v2298 = vpop.permute.xlu0 %2297
        %2299 = vrot.lane.b32.xlu0 %v2276, 24
        %v2300 = vpop.permute.xlu0 %2299
        %v2303 = vsel %vm967, %v1897, %v2282
        %v2304 = vsel %vm967, %v1900, %v2284
        %v2305 = vsel %vm1017, %v2303, %v2290
        %v2306 = vsel %vm1017, %v2304, %v2292
        %v2307 = vsel %vm1485, %v2305, %v2298
        %v2308 = vsel %vm1485, %v2306, %v2300
        %v2309 = vpack.c.bf16 %v2308, %v2307
        %v2311 = vlaneseq
        %v2312 = vshrl.u32 %v2311, 7
        %v2313 = vsub.s32 0, %v2312
        %v2314 = vrot.slane %v1776, %v2313
        %v2320 = vunpack.c.l.b16 %v1772
        %v2321 = vunpack.c.l.b16 %v1773
        %v2322 = vunpack.c.l.b16 %v1774
        %v2323 = vunpack.c.l.b16 %v1775
        %v2324 = vpack.c.b16 %v2321, %v2320
        %v2325 = vpack.c.b16 %v2323, %v2322
        %v2329 = vsel %vm913, %v2309, 0
        %2331 = vmatprep.subr.bf16.mxu0 0
        %2332 = vmatpush1.bf16.msra.mxu0 0
        %2333 = vmatprep.subr.bf16.mxu0 0
        %2334 = vmatpush1.bf16.msra.mxu0 0
        %2335 = vmatprep.subr.bf16.mxu0 0
        %2336 = vmatpush1.bf16.msra.mxu0 0
        %2337 = vmatprep.subr.bf16.mxu0 0
        %2338 = vmatpush1.bf16.msra.mxu0 0
        %2339 = vmatprep.subr.bf16.mxu0 0
        %2340 = vmatpush1.bf16.msra.mxu0 0
        %2341 = vmatprep.subr.bf16.mxu0 0
        %2342 = vmatpush1.bf16.msra.mxu0 0
        %2343 = vmatprep.subr.bf16.mxu0 0
        %2344 = vmatpush1.bf16.msra.mxu0 %v2325
        %2345 = vmatprep.subr.bf16.mxu0 0
        %2346 = vmatpush1.bf16.msra.mxu0 %v2324
        %2347 = vmatprep.subr.bf16.mxu0 0
        %2348 = vmatpush2.bf16.msra.mxu0 0
        %2349 = vmatprep.subr.bf16.mxu0 0
        %2350 = vmatpush2.bf16.msra.mxu0 0
        %2351 = vmatprep.subr.bf16.mxu0 0
        %2352 = vmatpush2.bf16.msra.mxu0 0
        %2353 = vmatprep.subr.bf16.mxu0 0
        %2354 = vmatpush2.bf16.msra.mxu0 0
        %2355 = vmatprep.subr.bf16.mxu0 0
        %2356 = vmatpush2.bf16.msra.mxu0 0
        %2357 = vmatprep.subr.bf16.mxu0 0
        %2358 = vmatpush2.bf16.msra.mxu0 0
        %2359 = vmatprep.subr.bf16.mxu0 0
        %2360 = vmatpush2.bf16.msra.mxu0 0
        %2361 = vmatprep.subr.bf16.mxu0 0
        %2362 = vmatpush2.bf16.msra.mxu0 0
        %2363 = vmatprep.mubr.bf16.mxu0 0
        %2364 = vmatmul.mubr.bf16.gmra.mxu0 %v2329
        %v2365 = vpop.f32.mrf.mxu0
        %v2366 = vadd.f32 %v2314, %v2365
        %v2367 = vpop.f32.mrf.mxu0
        %v2368 = vpop.f32.mrf.mxu0
        %v2369 = vadd.f32 %v2314, %v2368
        %v2370 = vpop.f32.mrf.mxu0
        %2371 = vdwg.mxu0
        %v2372 = vadd.f32 %v1634, %v2366
        %v2373 = vadd.f32 %v1635, %v2369
        %2374 = vmatprep.subr.mxu0 0.0
        %2375 = vmatpush1.msra.mxu0 0.0
        %2376 = vmatprep.subr.mxu0 0.0
        %2377 = vmatpush1.msra.mxu0 0.0
        %2378 = vmatprep.subr.mxu0 0.0
        %2379 = vmatpush1.msra.mxu0 0.0
        %2380 = vmatprep.subr.mxu0 0.0
        %2381 = vmatpush1.msra.mxu0 0.0
        %2382 = vmatprep.subr.mxu0 0.0
        %2383 = vmatpush1.msra.mxu0 0.0
        %2384 = vmatprep.subr.mxu0 0.0
        %2385 = vmatpush1.msra.mxu0 0.0
        %2386 = vmatprep.subr.mxu0 0.0
        %2387 = vmatpush1.msra.mxu0 0.0
        %2388 = vmatprep.subr.mxu0 0.0
        %2389 = vmatpush1.msra.mxu0 0.0
        %2390 = vmatprep.subr.mxu0 0.0
        %2391 = vmatpush1.msra.mxu0 0.0
        %2392 = vmatprep.subr.mxu0 0.0
        %2393 = vmatpush1.msra.mxu0 0.0
        %2394 = vmatprep.subr.mxu0 0.0
        %2395 = vmatpush1.msra.mxu0 0.0
        %2396 = vmatprep.subr.mxu0 0.0
        %2397 = vmatpush1.msra.mxu0 0.0
        %2398 = vmatprep.subr.mxu0 0.0
        %2399 = vmatpush1.msra.mxu0 0.0
        %2400 = vmatprep.subr.mxu0 0.0
        %2401 = vmatpush1.msra.mxu0 0.0
        %2402 = vmatprep.subr.mxu0 0.0
        %2403 = vmatpush1.msra.mxu0 %v2373
        %2404 = vmatprep.subr.mxu0 0.0
        %2405 = vmatpush1.msra.mxu0 %v2372
        %2406 = vmatprep.subr.mxu0 0.0
        %2407 = vmatpush2.msra.mxu0 0.0
        %2408 = vmatprep.subr.mxu0 0.0
        %2409 = vmatpush2.msra.mxu0 0.0
        %2410 = vmatprep.subr.mxu0 0.0
        %2411 = vmatpush2.msra.mxu0 0.0
        %2412 = vmatprep.subr.mxu0 0.0
        %2413 = vmatpush2.msra.mxu0 0.0
        %2414 = vmatprep.subr.mxu0 0.0
        %2415 = vmatpush2.msra.mxu0 0.0
        %2416 = vmatprep.subr.mxu0 0.0
        %2417 = vmatpush2.msra.mxu0 0.0
        %2418 = vmatprep.subr.mxu0 0.0
        %2419 = vmatpush2.msra.mxu0 0.0
        %2420 = vmatprep.subr.mxu0 0.0
        %2421 = vmatpush2.msra.mxu0 0.0
        %2422 = vmatprep.subr.mxu0 0.0
        %2423 = vmatpush2.msra.mxu0 0.0
        %2424 = vmatprep.subr.mxu0 0.0
        %2425 = vmatpush2.msra.mxu0 0.0
        %2426 = vmatprep.subr.mxu0 0.0
        %2427 = vmatpush2.msra.mxu0 0.0
        %2428 = vmatprep.subr.mxu0 0.0
        %2429 = vmatpush2.msra.mxu0 0.0
        %2430 = vmatprep.subr.mxu0 0.0
        %2431 = vmatpush2.msra.mxu0 0.0
        %2432 = vmatprep.subr.mxu0 0.0
        %2433 = vmatpush2.msra.mxu0 0.0
        %2434 = vmatprep.subr.mxu0 0.0
        %2435 = vmatpush2.msra.mxu0 0.0
        %2436 = vmatprep.subr.mxu0 0.0
        %2437 = vmatpush2.msra.mxu0 0.0
        %2438 = vmatprep.mubr.f32.mxu0 0.0
        %2439 = vmatmul.mubr.f32.gmra.mxu0 %v1554
        %v2440 = vpop.f32.mrf.mxu0
        %v2441 = vadd.f32 0.0, %v2440
        %v2442 = vpop.f32.mrf.mxu0
        %2443 = vmatprep.mubr.f32.mxu0 0.0
        %2444 = vmatmul.mubr.f32.gmra.mxu0 %v1557
        %v2445 = vpop.f32.mrf.mxu0
        %v2446 = vadd.f32 0.0, %v2445
        %v2447 = vpop.f32.mrf.mxu0
        %2448 = vdwg.mxu0
        %v2449 = vsub.f32 %v2372, %v2441
        %v2450 = vsub.f32 %v2373, %v2446
        %v2451 = vpack.c.bf16 %v2450, %v2449
        %v2452 = vld [vmem:[#allocation19] sm:$0xf]
        %v2453 = vld [vmem:[#allocation19 + $0x4] sm:$0xf]
        %v2454 = vld [vmem:[#allocation19 + $0x8] sm:$0xf]
        %v2455 = vld [vmem:[#allocation19 + $0xc] sm:$0xf]
        %v2460 = vunpack.c.l.b16 %v2452
        %v2461 = vunpack.c.l.b16 %v2453
        %v2462 = vunpack.c.l.b16 %v2454
        %v2463 = vunpack.c.l.b16 %v2455
        %v2464 = vpack.c.b16 %v2461, %v2460
        %v2465 = vpack.c.b16 %v2463, %v2462
        %v2469 = vsel %vm913, %v2451, 0
        %2471 = vmatprep.subr.bf16.mxu0 0
        %2472 = vmatpush1.bf16.msra.mxu0 0
        %2473 = vmatprep.subr.bf16.mxu0 0
        %2474 = vmatpush1.bf16.msra.mxu0 0
        %2475 = vmatprep.subr.bf16.mxu0 0
        %2476 = vmatpush1.bf16.msra.mxu0 0
        %2477 = vmatprep.subr.bf16.mxu0 0
        %2478 = vmatpush1.bf16.msra.mxu0 0
        %2479 = vmatprep.subr.bf16.mxu0 0
        %2480 = vmatpush1.bf16.msra.mxu0 0
        %2481 = vmatprep.subr.bf16.mxu0 0
        %2482 = vmatpush1.bf16.msra.mxu0 0
        %2483 = vmatprep.subr.bf16.mxu0 0
        %2484 = vmatpush1.bf16.msra.mxu0 %v2465
        %2485 = vmatprep.subr.bf16.mxu0 0
        %2486 = vmatpush1.bf16.msra.mxu0 %v2464
        %2487 = vmatprep.subr.bf16.mxu0 0
        %2488 = vmatpush2.bf16.msra.mxu0 0
        %2489 = vmatprep.subr.bf16.mxu0 0
        %2490 = vmatpush2.bf16.msra.mxu0 0
        %2491 = vmatprep.subr.bf16.mxu0 0
        %2492 = vmatpush2.bf16.msra.mxu0 0
        %2493 = vmatprep.subr.bf16.mxu0 0
        %2494 = vmatpush2.bf16.msra.mxu0 0
        %2495 = vmatprep.subr.bf16.mxu0 0
        %2496 = vmatpush2.bf16.msra.mxu0 0
        %2497 = vmatprep.subr.bf16.mxu0 0
        %2498 = vmatpush2.bf16.msra.mxu0 0
        %2499 = vmatprep.subr.bf16.mxu0 0
        %2500 = vmatpush2.bf16.msra.mxu0 0
        %2501 = vmatprep.subr.bf16.mxu0 0
        %2502 = vmatpush2.bf16.msra.mxu0 0
        %2503 = vmatprep.mubr.bf16.mxu0 0
        %2504 = vmatmul.mubr.bf16.gmra.mxu0 %v2469
        %v2505 = vpop.f32.mrf.mxu0
        %v2506 = vadd.f32 0.0, %v2505
        %v2507 = vpop.f32.mrf.mxu0
        %v2508 = vpop.f32.mrf.mxu0
        %v2509 = vadd.f32 0.0, %v2508
        %v2510 = vpop.f32.mrf.mxu0
        %2511 = vdwg.mxu0
        %v2512 = vmax.f32 %v2506, 0.0
        %v2513 = vmax.f32 %v2509, 0.0
        %v2514 = vpack.c.bf16 %v2513, %v2512
        %v2515 = vld [vmem:[%s15] sm:$0xf]
        %v2516 = vld [vmem:[%s15 + $0x4] sm:$0xf]
        %v2517 = vld [vmem:[%s15 + $0x8] sm:$0xf]
        %v2518 = vld [vmem:[%s15 + $0xc] sm:$0xf]
        %v2519 = vld [vmem:[%s15 + $0x10] sm:$0xf]
        %v2520 = vld [vmem:[%s15 + $0x14] sm:$0xf]
        %v2521 = vld [vmem:[%s15 + $0x18] sm:$0xf]
        %v2522 = vld [vmem:[%s15 + $0x1c] sm:$0xf]
        %v2531 = vunpack.c.l.b16 %v2515
        %v2532 = vunpack.c.l.b16 %v2516
        %v2533 = vunpack.c.l.b16 %v2517
        %v2534 = vunpack.c.l.b16 %v2518
        %v2535 = vunpack.c.l.b16 %v2519
        %v2536 = vunpack.c.l.b16 %v2520
        %v2537 = vunpack.c.l.b16 %v2521
        %v2538 = vunpack.c.l.b16 %v2522
        %v2539 = vpack.c.b16 %v2532, %v2531
        %v2540 = vpack.c.b16 %v2534, %v2533
        %v2541 = vpack.c.b16 %v2536, %v2535
        %v2542 = vpack.c.b16 %v2538, %v2537
        %vm2547 = vcmask 523264
        %v2549 = vsel %vm2547, %v2514, 0
        %2551 = vmatprep.subr.bf16.mxu0 0
        %2552 = vmatpush1.bf16.msra.mxu0 0
        %2553 = vmatprep.subr.bf16.mxu0 0
        %2554 = vmatpush1.bf16.msra.mxu0 0
        %2555 = vmatprep.subr.bf16.mxu0 0
        %2556 = vmatpush1.bf16.msra.mxu0 0
        %2557 = vmatprep.subr.bf16.mxu0 0
        %2558 = vmatpush1.bf16.msra.mxu0 0
        %2559 = vmatprep.subr.bf16.mxu0 0
        %2560 = vmatpush1.bf16.msra.mxu0 %v2542
        %2561 = vmatprep.subr.bf16.mxu0 0
        %2562 = vmatpush1.bf16.msra.mxu0 %v2541
        %2563 = vmatprep.subr.bf16.mxu0 0
        %2564 = vmatpush1.bf16.msra.mxu0 %v2540
        %2565 = vmatprep.subr.bf16.mxu0 0
        %2566 = vmatpush1.bf16.msra.mxu0 %v2539
        %2567 = vmatprep.subr.bf16.mxu0 0
        %2568 = vmatpush2.bf16.msra.mxu0 0
        %2569 = vmatprep.subr.bf16.mxu0 0
        %2570 = vmatpush2.bf16.msra.mxu0 0
        %2571 = vmatprep.subr.bf16.mxu0 0
        %2572 = vmatpush2.bf16.msra.mxu0 0
        %2573 = vmatprep.subr.bf16.mxu0 0
        %2574 = vmatpush2.bf16.msra.mxu0 0
        %2575 = vmatprep.subr.bf16.mxu0 0
        %2576 = vmatpush2.bf16.msra.mxu0 0
        %2577 = vmatprep.subr.bf16.mxu0 0
        %2578 = vmatpush2.bf16.msra.mxu0 0
        %2579 = vmatprep.subr.bf16.mxu0 0
        %2580 = vmatpush2.bf16.msra.mxu0 0
        %2581 = vmatprep.subr.bf16.mxu0 0
        %2582 = vmatpush2.bf16.msra.mxu0 0
        %2583 = vmatprep.mubr.bf16.mxu0 0
        %2584 = vmatmul.mubr.bf16.gmra.mxu0 %v2549
        %v2585 = vpop.f32.mrf.mxu0
        %v2586 = vadd.f32 %v2449, %v2585
        %v2587 = vpop.f32.mrf.mxu0
        %v2588 = vpop.f32.mrf.mxu0
        %v2589 = vadd.f32 %v2450, %v2588
        %v2590 = vpop.f32.mrf.mxu0
        %2591 = vdwg.mxu0
        %2592 = vmatprep.subr.mxu0 0.0
        %2593 = vmatpush1.msra.mxu0 0.0
        %2594 = vmatprep.subr.mxu0 0.0
        %2595 = vmatpush1.msra.mxu0 0.0
        %2596 = vmatprep.subr.mxu0 0.0
        %2597 = vmatpush1.msra.mxu0 0.0
        %2598 = vmatprep.subr.mxu0 0.0
        %2599 = vmatpush1.msra.mxu0 0.0
        %2600 = vmatprep.subr.mxu0 0.0
        %2601 = vmatpush1.msra.mxu0 0.0
        %2602 = vmatprep.subr.mxu0 0.0
        %2603 = vmatpush1.msra.mxu0 0.0
        %2604 = vmatprep.subr.mxu0 0.0
        %2605 = vmatpush1.msra.mxu0 0.0
        %2606 = vmatprep.subr.mxu0 0.0
        %2607 = vmatpush1.msra.mxu0 0.0
        %2608 = vmatprep.subr.mxu0 0.0
        %2609 = vmatpush1.msra.mxu0 0.0
        %2610 = vmatprep.subr.mxu0 0.0
        %2611 = vmatpush1.msra.mxu0 0.0
        %2612 = vmatprep.subr.mxu0 0.0
        %2613 = vmatpush1.msra.mxu0 0.0
        %2614 = vmatprep.subr.mxu0 0.0
        %2615 = vmatpush1.msra.mxu0 0.0
        %2616 = vmatprep.subr.mxu0 0.0
        %2617 = vmatpush1.msra.mxu0 0.0
        %2618 = vmatprep.subr.mxu0 0.0
        %2619 = vmatpush1.msra.mxu0 0.0
        %2620 = vmatprep.subr.mxu0 0.0
        %2621 = vmatpush1.msra.mxu0 %v2589
        %2622 = vmatprep.subr.mxu0 0.0
        %2623 = vmatpush1.msra.mxu0 %v2586
        %2624 = vmatprep.subr.mxu0 0.0
        %2625 = vmatpush2.msra.mxu0 0.0
        %2626 = vmatprep.subr.mxu0 0.0
        %2627 = vmatpush2.msra.mxu0 0.0
        %2628 = vmatprep.subr.mxu0 0.0
        %2629 = vmatpush2.msra.mxu0 0.0
        %2630 = vmatprep.subr.mxu0 0.0
        %2631 = vmatpush2.msra.mxu0 0.0
        %2632 = vmatprep.subr.mxu0 0.0
        %2633 = vmatpush2.msra.mxu0 0.0
        %2634 = vmatprep.subr.mxu0 0.0
        %2635 = vmatpush2.msra.mxu0 0.0
        %2636 = vmatprep.subr.mxu0 0.0
        %2637 = vmatpush2.msra.mxu0 0.0
        %2638 = vmatprep.subr.mxu0 0.0
        %2639 = vmatpush2.msra.mxu0 0.0
        %2640 = vmatprep.subr.mxu0 0.0
        %2641 = vmatpush2.msra.mxu0 0.0
        %2642 = vmatprep.subr.mxu0 0.0
        %2643 = vmatpush2.msra.mxu0 0.0
        %2644 = vmatprep.subr.mxu0 0.0
        %2645 = vmatpush2.msra.mxu0 0.0
        %2646 = vmatprep.subr.mxu0 0.0
        %2647 = vmatpush2.msra.mxu0 0.0
        %2648 = vmatprep.subr.mxu0 0.0
        %2649 = vmatpush2.msra.mxu0 0.0
        %2650 = vmatprep.subr.mxu0 0.0
        %2651 = vmatpush2.msra.mxu0 0.0
        %2652 = vmatprep.subr.mxu0 0.0
        %2653 = vmatpush2.msra.mxu0 0.0
        %2654 = vmatprep.subr.mxu0 0.0
        %2655 = vmatpush2.msra.mxu0 0.0
        %2656 = vmatprep.mubr.f32.mxu0 0.0
        %2657 = vmatmul.mubr.f32.gmra.mxu0 %v1554
        %v2658 = vpop.f32.mrf.mxu0
        %v2659 = vadd.f32 0.0, %v2658
        %v2660 = vpop.f32.mrf.mxu0
        %2661 = vmatprep.mubr.f32.mxu0 0.0
        %2662 = vmatmul.mubr.f32.gmra.mxu0 %v1557
        %v2663 = vpop.f32.mrf.mxu0
        %v2664 = vadd.f32 0.0, %v2663
        %v2665 = vpop.f32.mrf.mxu0
        %2666 = vdwg.mxu0
        %v2667 = vsub.f32 %v2586, %v2659
        %v2668 = vsub.f32 %v2589, %v2664
        %2669 = vst.msk [vmem:[%s877] sm:$0xff] %vm913, %v2667
        %2670 = vst.msk [vmem:[%s877 + $0x8] sm:$0xff] %vm913, %v2668
        %2672 = vrot.lane.b32.xlu0 %v2446, 32
        %v2673 = vpop.permute.xlu0 %2672
        %2676 = vrot.lane.b32.xlu0 %v2664, 64
        %v2677 = vpop.permute.xlu0 %2676
        %v2679 = vsel %vm913, %v1631, %v2673
        %v2680 = vsel %vm2547, %v2679, %v2677
        %v2681 = vpack.c.bf16 %v2680, %v2680
        %v2682 = vld [vmem:[%s16] sm:$0xff]
        %v2683 = vld [vmem:[%s16 + $0x8] sm:$0xff]
        %v2684 = vld [vmem:[%s16 + $0x10] sm:$0xff]
        %v2685 = vld [vmem:[%s16 + $0x18] sm:$0xff]
        %v2686 = vld [vmem:[%s16 + $0x20] sm:$0xff]
        %v2687 = vld [vmem:[%s16 + $0x28] sm:$0xff]
        %v2688 = vld [vmem:[%s16 + $0x30] sm:$0xff]
        %v2689 = vld [vmem:[%s16 + $0x38] sm:$0xff]
        %v2690 = vld [vmem:[%s16 + $0x40] sm:$0xff]
        %v2691 = vld [vmem:[%s16 + $0x48] sm:$0xff]
        %v2692 = vld [vmem:[%s16 + $0x50] sm:$0xff]
        %v2693 = vld [vmem:[%s16 + $0x58] sm:$0xff]
        %v2694 = vld [vmem:[#allocation20] sm:$0x3]
        %v2696 = vlaneseq
        %v2697 = vshrl.u32 %v2696, 7
        %v2698 = vsub.s32 0, %v2697
        %v2699 = vrot.slane %v2694, %v2698
        %v2700 = vlaneseq
        %v2701 = vshrl.u32 %v2700, 7
        %v2702 = vsub.s32 1, %v2701
        %v2703 = vrot.slane %v2694, %v2702
        %v2718 = vunpack.c.l.b16 %v2682
        %v2719 = vunpack.c.h.b16 %v2682
        %v2720 = vunpack.c.l.b16 %v2683
        %v2721 = vunpack.c.h.b16 %v2683
        %v2722 = vunpack.c.l.b16 %v2684
        %v2723 = vunpack.c.h.b16 %v2684
        %v2724 = vunpack.c.l.b16 %v2685
        %v2725 = vunpack.c.h.b16 %v2685
        %v2726 = vunpack.c.l.b16 %v2686
        %v2727 = vunpack.c.h.b16 %v2686
        %v2728 = vunpack.c.l.b16 %v2687
        %v2729 = vunpack.c.h.b16 %v2687
        %v2730 = vunpack.c.l.b16 %v2688
        %v2731 = vunpack.c.h.b16 %v2688
        %v2732 = vunpack.c.l.b16 %v2689
        %v2733 = vunpack.c.h.b16 %v2689
        %v2734 = vunpack.c.l.b16 %v2690
        %v2735 = vunpack.c.h.b16 %v2690
        %v2736 = vunpack.c.l.b16 %v2691
        %v2737 = vunpack.c.h.b16 %v2691
        %v2738 = vunpack.c.l.b16 %v2692
        %v2739 = vunpack.c.h.b16 %v2692
        %v2740 = vunpack.c.l.b16 %v2693
        %v2741 = vunpack.c.h.b16 %v2693
        %v2742 = vpack.c.b16 %v2720, %v2718
        %v2743 = vpack.c.b16 %v2721, %v2719
        %v2744 = vpack.c.b16 %v2724, %v2722
        %v2745 = vpack.c.b16 %v2725, %v2723
        %v2746 = vpack.c.b16 %v2728, %v2726
        %v2747 = vpack.c.b16 %v2729, %v2727
        %v2748 = vpack.c.b16 %v2732, %v2730
        %v2749 = vpack.c.b16 %v2733, %v2731
        %v2750 = vpack.c.b16 %v2736, %v2734
        %v2751 = vpack.c.b16 %v2737, %v2735
        %v2752 = vpack.c.b16 %v2740, %v2738
        %v2753 = vpack.c.b16 %v2741, %v2739
        %vm2766 = vcmask 785408
        %v2768 = vsel %vm2766, %v2681, 0
        %2770 = vmatprep.subr.bf16.mxu0 0
        %2771 = vmatpush1.bf16.msra.mxu0 0
        %2772 = vmatprep.subr.bf16.mxu0 0
        %2773 = vmatpush1.bf16.msra.mxu0 0
        %2774 = vmatprep.subr.bf16.mxu0 %v2753
        %2775 = vmatpush1.bf16.msra.mxu0 %v2752
        %2776 = vmatprep.subr.bf16.mxu0 %v2751
        %2777 = vmatpush1.bf16.msra.mxu0 %v2750
        %2778 = vmatprep.subr.bf16.mxu0 %v2749
        %2779 = vmatpush1.bf16.msra.mxu0 %v2748
        %2780 = vmatprep.subr.bf16.mxu0 %v2747
        %2781 = vmatpush1.bf16.msra.mxu0 %v2746
        %2782 = vmatprep.subr.bf16.mxu0 %v2745
        %2783 = vmatpush1.bf16.msra.mxu0 %v2744
        %2784 = vmatprep.subr.bf16.mxu0 %v2743
        %2785 = vmatpush1.bf16.msra.mxu0 %v2742
        %2786 = vmatprep.subr.bf16.mxu0 0
        %2787 = vmatpush2.bf16.msra.mxu0 0
        %2788 = vmatprep.subr.bf16.mxu0 0
        %2789 = vmatpush2.bf16.msra.mxu0 0
        %2790 = vmatprep.subr.bf16.mxu0 0
        %2791 = vmatpush2.bf16.msra.mxu0 0
        %2792 = vmatprep.subr.bf16.mxu0 0
        %2793 = vmatpush2.bf16.msra.mxu0 0
        %2794 = vmatprep.subr.bf16.mxu0 0
        %2795 = vmatpush2.bf16.msra.mxu0 0
        %2796 = vmatprep.subr.bf16.mxu0 0
        %2797 = vmatpush2.bf16.msra.mxu0 0
        %2798 = vmatprep.subr.bf16.mxu0 0
        %2799 = vmatpush2.bf16.msra.mxu0 0
        %2800 = vmatprep.subr.bf16.mxu0 0
        %2801 = vmatpush2.bf16.msra.mxu0 0
        %2802 = vmatprep.mubr.bf16.mxu0 0
        %2803 = vmatmul.mubr.bf16.gmra.mxu0 %v2768
        %v2804 = vpop.f32.mrf.mxu0
        %v2805 = vadd.f32 %v2699, %v2804
        %v2806 = vpop.f32.mrf.mxu0
        %v2807 = vadd.f32 %v2703, %v2806
        %v2808 = vpop.f32.mrf.mxu0
        %v2809 = vpop.f32.mrf.mxu0
        %2810 = vdwg.mxu0
        %v2811 = vld [vmem:[#allocation22] sm:$0x3]
        %v2813 = vlaneseq
        %v2814 = vshrl.u32 %v2813, 7
        %v2815 = vsub.s32 0, %v2814
        %v2816 = vrot.slane %v2811, %v2815
        %v2817 = vlaneseq
        %v2818 = vshrl.u32 %v2817, 7
        %v2819 = vsub.s32 1, %v2818
        %v2820 = vrot.slane %v2811, %v2819
        %v2823 = vmul.f32 %v2805, %v2816
        %v2824 = vmul.f32 %v2807, %v2820
        %v2825 = vsel %vm2547, %v2824, 0.0
        %v2826 = vadd.f32 %v2823, %v2825
        %2827 = vadd.xlane.f32.xlu0 %v2826
        %v2828 = vpop.xlane.xlu0 %2827
        %v2829 = vld [vmem:[#allocation2] sm:$0x1]
        %v2831 = vlaneseq
        %v2832 = vshrl.u32 %v2831, 7
        %v2833 = vsub.s32 0, %v2832
        %v2834 = vrot.slane %v2829, %v2833
        %v2836 = vadd.f32 %v2828, %v2834
        %v2837 = vld [vmem:[%s872] sm:$0xff]
        %v2838 = vadd.f32 %v2837, %v2836
        %vm2839 = vcmask 7168
        %2840 = vst.msk [vmem:[%s881] sm:$0xff] %vm2839, %v2838
        %p2841 = scmp.lt.s32.totalorder %s42, 1
        %s2842 = scalar_select %p2841, %s42, 1
        %s2843 = smul.addr %s2842, 2
        %s2844 = smul.addr %s2843, 8
        %s2845 = scalar_lea.vmem %s20, %s2844
        %p2846 = scmp.lt.s32.totalorder %s42, 1
        %s2847 = scalar_select %p2846, %s42, 1
        %s2848 = smul.addr %s2847, 8
        %s2849 = scalar_lea.vmem %s21, %s2848
        // Predicated region
        $region153: #{decoder_stack_forward.2} parent=99 // pred_check
          %p2850 = pneg %p495
        $region154: #{decoder_stack_forward.2} parent=99 // pred_check_branch
          %2852 = sbr.rel (%p2850) target = $region156
        $region155: #{decoder_stack_forward.2} parent=99 // pred_region
          _
        $region156: #{decoder_stack_forward.2} parent=99 // pred_fallthru
          _
        // Predicated region
        $region157: #{decoder_stack_forward.2} parent=99 // pred_check
          %p2853 = pneg %p521
        $region158: #{decoder_stack_forward.2} parent=99 // pred_check_branch
          %2855 = sbr.rel (%p2853) target = $region160
        $region159: #{decoder_stack_forward.2} parent=99 // pred_region
          _
        $region160: #{decoder_stack_forward.2} parent=99 // pred_fallthru
          _
      $region100: #{decoder_stack_forward.2} parent=5 // pred_fallthru
        _
      %p2856 = scmp.le.s32.totalorder 2, %s37
      // Predicated region
      $region161: #{decoder_stack_forward.2} parent=5 // pred_check
        %p2857 = pneg %p2856
      $region162: #{decoder_stack_forward.2} parent=5 // pred_check_branch
        %2859 = sbr.rel (%p2857) target = $region164
      $region163: #{decoder_stack_forward.2} parent=5 // pred_region
        %s2860 = ssub.s32 %s37, 2
        // Predicated region
        $region165: #{decoder_stack_forward.2} parent=163 // pred_check
          %p2861 = pneg %p501
        $region166: #{decoder_stack_forward.2} parent=163 // pred_check_branch
          %2863 = sbr.rel (%p2861) target = $region168
        $region167: #{decoder_stack_forward.2} parent=163 // pred_region
          %p2864 = scmp.lt.s32.totalorder %s43, 1
          %s2865 = scalar_select %p2864, %s43, 1
          %s2866 = smul.addr %s2865, 2
          %s2867 = smul.addr %s2866, 8
          %s2868 = scalar_lea.vmem %s20, %s2867
        $region168: #{decoder_stack_forward.2} parent=163 // pred_fallthru
          _
        // Predicated region
        $region169: #{decoder_stack_forward.2} parent=163 // pred_check
          %p2869 = pneg %p527
        $region170: #{decoder_stack_forward.2} parent=163 // pred_check_branch
          %2871 = sbr.rel (%p2869) target = $region172
        $region171: #{decoder_stack_forward.2} parent=163 // pred_region
          %p2872 = scmp.lt.s32.totalorder %s43, 1
          %s2873 = scalar_select %p2872, %s43, 1
          %s2874 = smul.addr %s2873, 8
          %s2875 = scalar_lea.vmem %s21, %s2874
        $region172: #{decoder_stack_forward.2} parent=163 // pred_fallthru
          _
      $region164: #{decoder_stack_forward.2} parent=5 // pred_fallthru
        _
    $region6: #{decoder_stack_forward.2} parent=1 // loop_footer
      %s41 = sadd.s32 1, %s37
    $region7: #{decoder_stack_forward.2} parent=1 // loop_footer_branch
      %36 = sbr.rel target = $region3
    $region8: #{decoder_stack_forward.2} parent=1 // loop_exit
      _
    %2876 = vsyncpa [#allocation4], 1
    %s2877 = scalar_lea.sflag [#allocation4], 1
    %2878 = vsyncpa %s2877, 1
    %2879 = vsyncpa [#allocation6], 1
    %2880 = vsyncpa [#allocation9], 1
    %2881 = vsyncpa [#allocation12], 1
    %2882 = vsyncpa [#allocation15], 1
    %2883 = vsyncpa [#allocation18], 1
    %2884 = vsyncpa [#allocation21], 1

// kernel: decoder_stack_forward.3
$region0: #{decoder_stack_forward.3}
  #allocation0 [shape = 'u32[]', space=smem, size = 0x4, offset = 0x4, fixed_abs, tag = 'smem constant byte address 0x4 - core index']
  #allocation1 [shape = 'u32[144,128]{1,0:T(1,128)}', space=vmem, size = 0x12000, scoped, tag = 'internal scratch']
  #allocation2 [shape = 'f32[1,1]{1,0:T(1,128)S(1)}', space=vmem, size = 0x200, scoped, tag = 'scoped memory for decoder_stack_forward.3']
  %s0 = inlined_call_operand.vmem [shape: f32[2,12,32], index: 0, kind: input, shape index: {}]
  %s1 = inlined_call_operand.vmem [shape: f32[2,16,32], index: 1, kind: input, shape index: {}]
  %s2 = inlined_call_operand.vmem [shape: f32[2,8,1], index: 2, kind: input, shape index: {}]
  %s3 = inlined_call_operand.vmem [shape: f32[16,16], index: 3, kind: input, shape index: {}]
  %s4 = inlined_call_operand.vmem [shape: bf16[32,96], index: 4, kind: input, shape index: {}]
  %s5 = inlined_call_operand.vmem [shape: f32[1,96], index: 5, kind: input, shape index: {}]
  %s6 = inlined_call_operand.vmem [shape: bf16[32,32], index: 6, kind: input, shape index: {}]
  %s7 = inlined_call_operand.vmem [shape: f32[1,32], index: 7, kind: input, shape index: {}]
  %s8 = inlined_call_operand.vmem [shape: bf16[32,32], index: 8, kind: input, shape index: {}]
  %s9 = inlined_call_operand.vmem [shape: f32[1,32], index: 9, kind: input, shape index: {}]
  %s10 = inlined_call_operand.vmem [shape: bf16[32,64], index: 10, kind: input, shape index: {}]
  %s11 = inlined_call_operand.vmem [shape: f32[1,64], index: 11, kind: input, shape index: {}]
  %s12 = inlined_call_operand.vmem [shape: bf16[32,32], index: 12, kind: input, shape index: {}]
  %s13 = inlined_call_operand.vmem [shape: f32[1,32], index: 13, kind: input, shape index: {}]
  %s14 = inlined_call_operand.vmem [shape: bf16[32,64], index: 14, kind: input, shape index: {}]
  %s15 = inlined_call_operand.vmem [shape: bf16[64,32], index: 15, kind: input, shape index: {}]
  %s16 = inlined_call_operand.vmem [shape: bf16[96,192], index: 16, kind: input, shape index: {}]
  %s17 = inlined_call_operand.vmem [shape: f32[1,192], index: 17, kind: input, shape index: {}]
  %s18 = inlined_call_operand.vmem [shape: f32[1,192], index: 18, kind: input, shape index: {}]
  %s19 = inlined_call_operand.<no memory space> [shape: f32[1,1], index: 19, kind: input, shape index: {}]
  %s20 = inlined_call_operand.hbm [shape: f32[2,16,32], index: 20, kind: output, shape index: {0}]
  %s21 = inlined_call_operand.vmem [shape: f32[2,8,1], index: 21, kind: output, shape index: {1}]
  %22 = xla_tuple %s20, %s21
  %s23 = sld [smem:[#allocation0]]
  $region121: #{decoder_stack_forward.3} parent=0
    _
  %s25 = ssub.s32 1, %s23
  %s26 = scalar_select 0, %s25, %s23
  %v27 = vstv %s19
  %28 = vst [vmem:[#allocation2] sm:$0x1] %v27
  $region1: #{decoder_stack_forward.3} parent=0
    #allocation3 [shape = 'u8[16384]{0}', space=vmem, size = 0x4000, scoped, tag = 'output window, operand 0']
    #allocation4 [shape = 's32[2]{0}', space=sflag, size = 0x8, scoped, tag = 'scoped memory for decoder_stack_forward.3']
    %29 = vsyncpa [#allocation4], 0
    %s30 = scalar_lea.sflag [#allocation4], 1
    %31 = vsyncpa %s30, 0
    loop: start=0, step=1, limit=4
    $region2: #{decoder_stack_forward.3} parent=1 // loop_pre_header
      _
    $region3: #{decoder_stack_forward.3} parent=1 // loop_header
      %s33 = sphi 0, %s37
      %p34 = scmp.ge.s32.totalorder %s33, 4
      %s43 = sphi 0, %s45
      %s46 = sphi 0, %s43
      %s47 = sphi 0, %s46
      %s63 = sphi 0, %s47
      %s69 = sphi 0, %s71
      %s72 = sphi 0, %s69
      %s73 = sphi 0, %s72
      %s89 = sphi 0, %s73
      %s95 = sphi 0, %s97
      %s98 = sphi 0, %s95
      %s99 = sphi 0, %s98
      %s115 = sphi 0, %s99
      %s119 = sphi 0, %s119
      %s121 = sphi 0, %s119
      %s122 = sphi 0, %s121
      %s136 = sphi 0, %s122
      %s140 = sphi 0, %s140
      %s142 = sphi 0, %s140
      %s143 = sphi 0, %s142
      %s157 = sphi 0, %s143
      %s161 = sphi 0, %s161
      %s163 = sphi 0, %s161
      %s164 = sphi 0, %s163
      %s178 = sphi 0, %s164
      %s182 = sphi 0, %s182
      %s184 = sphi 0, %s182
      %s185 = sphi 0, %s184
      %s199 = sphi 0, %s185
      %s203 = sphi 0, %s203
      %s205 = sphi 0, %s203
      %s206 = sphi 0, %s205
      %s220 = sphi 0, %s206
      %s224 = sphi 0, %s224
      %s226 = sphi 0, %s224
      %s227 = sphi 0, %s226
      %s241 = sphi 0, %s227
      %s245 = sphi 0, %s245
      %s247 = sphi 0, %s245
      %s248 = sphi 0, %s247
      %s262 = sphi 0, %s248
      %s266 = sphi 0, %s266
      %s268 = sphi 0, %s266
      %s269 = sphi 0, %s268
      %s283 = sphi 0, %s269
      %s287 = sphi 0, %s287
      %s289 = sphi 0, %s287
      %s290 = sphi 0, %s289
      %s304 = sphi 0, %s290
      %s308 = sphi 0, %s308
      %s310 = sphi 0, %s308
      %s311 = sphi 0, %s310
      %s325 = sphi 0, %s311
      %s329 = sphi 0, %s329
      %s331 = sphi 0, %s329
      %s332 = sphi 0, %s331
      %s346 = sphi 0, %s332
      %s350 = sphi 0, %s350
      %s352 = sphi 0, %s350
      %s353 = sphi 0, %s352
      %s367 = sphi 0, %s353
      %s371 = sphi 0, %s371
      %s373 = sphi 0, %s371
      %s374 = sphi 0, %s373
      %s388 = sphi 0, %s374
      %s392 = sphi 0, %s392
      %s394 = sphi 0, %s392
      %s395 = sphi 0, %s394
      %s409 = sphi 0, %s395
      %s413 = sphi 0, %s413
      %s415 = sphi 0, %s413
      %s416 = sphi 0, %s415
      %s430 = sphi 0, %s416
      %s434 = sphi 0, %s434
      %s436 = sphi 0, %s434
      %s437 = sphi 0, %s436
      %s451 = sphi 0, %s437
      %s455 = sphi 0, %s455
      %s457 = sphi 0, %s455
      %s458 = sphi 0, %s457
      %s472 = sphi 0, %s458
      %s478 = sphi 0, %s480
      %s481 = sphi 0, %s478
      %s482 = sphi 0, %s481
      %s498 = sphi 0, %s482
      %s504 = sphi 0, %s506
      %s507 = sphi 0, %s504
      %s508 = sphi 0, %s507
      %s524 = sphi 0, %s508
    $region4: #{decoder_stack_forward.3} parent=1 // loop_header_branch
      %36 = sbr.rel (%p34) target = $region8
    $region5: #{decoder_stack_forward.3} parent=1 // loop_body
      %s38 = ssub.s32 %s33, 1
      %s39 = ssub.s32 %s33, 2
      %s40 = sadd.s32 %s33, 1
      %s41 = ssub.s32 %s33, %s40
      %p42 = scmp.eq.s32.totalorder %s41, 0
      %s44 = sadd.s32 %s43, 1
      %s45 = scalar_select %p42, %s43, %s44
      %p48 = pneg %p42
      %p49 = scmp.eq.s32.totalorder %s33, 1
      %p50 = por %p48, %p49
      %p51 = scmp.ne.s32.totalorder %s43, %s46
      %p52 = scmp.eq.s32.totalorder %s33, 0
      %p53 = por %p51, %p52
      %p54 = scmp.ne.s32.totalorder %s43, %s46
      %p55 = scmp.eq.s32.totalorder %s38, 1
      %p56 = por %p54, %p55
      %p57 = scmp.ne.s32.totalorder %s46, %s47
      %p58 = scmp.eq.s32.totalorder %s38, 0
      %p59 = por %p57, %p58
      %p60 = scmp.ne.s32.totalorder %s46, %s47
      %p61 = scmp.eq.s32.totalorder %s39, 1
      %p62 = por %p60, %p61
      %p64 = scmp.ne.s32.totalorder %s47, %s63
      %p65 = scmp.eq.s32.totalorder %s39, 0
      %p66 = por %p64, %p65
      %s67 = ssub.s32 %s33, %s40
      %p68 = scmp.eq.s32.totalorder %s67, 0
      %s70 = sadd.s32 %s69, 1
      %s71 = scalar_select %p68, %s69, %s70
      %p74 = pneg %p68
      %p75 = scmp.eq.s32.totalorder %s33, 1
      %p76 = por %p74, %p75
      %p77 = scmp.ne.s32.totalorder %s69, %s72
      %p78 = scmp.eq.s32.totalorder %s33, 0
      %p79 = por %p77, %p78
      %p80 = scmp.ne.s32.totalorder %s69, %s72
      %p81 = scmp.eq.s32.totalorder %s38, 1
      %p82 = por %p80, %p81
      %p83 = scmp.ne.s32.totalorder %s72, %s73
      %p84 = scmp.eq.s32.totalorder %s38, 0
      %p85 = por %p83, %p84
      %p86 = scmp.ne.s32.totalorder %s72, %s73
      %p87 = scmp.eq.s32.totalorder %s39, 1
      %p88 = por %p86, %p87
      %p90 = scmp.ne.s32.totalorder %s73, %s89
      %p91 = scmp.eq.s32.totalorder %s39, 0
      %p92 = por %p90, %p91
      %s93 = ssub.s32 %s33, %s40
      %p94 = scmp.eq.s32.totalorder %s93, 0
      %s96 = sadd.s32 %s95, 1
      %s97 = scalar_select %p94, %s95, %s96
      %p100 = pneg %p94
      %p101 = scmp.eq.s32.totalorder %s33, 1
      %p102 = por %p100, %p101
      %p103 = scmp.ne.s32.totalorder %s95, %s98
      %p104 = scmp.eq.s32.totalorder %s33, 0
      %p105 = por %p103, %p104
      %p106 = scmp.ne.s32.totalorder %s95, %s98
      %p107 = scmp.eq.s32.totalorder %s38, 1
      %p108 = por %p106, %p107
      %p109 = scmp.ne.s32.totalorder %s98, %s99
      %p110 = scmp.eq.s32.totalorder %s38, 0
      %p111 = por %p109, %p110
      %p112 = scmp.ne.s32.totalorder %s98, %s99
      %p113 = scmp.eq.s32.totalorder %s39, 1
      %p114 = por %p112, %p113
      %p116 = scmp.ne.s32.totalorder %s99, %s115
      %p117 = scmp.eq.s32.totalorder %s39, 0
      %p118 = por %p116, %p117
      %s120 = sadd.s32 %s119, 1
      %p123 = scmp.eq.s32.totalorder %s33, 1
      %p124 = scmp.ne.s32.totalorder %s119, %s121
      %p125 = scmp.eq.s32.totalorder %s33, 0
      %p126 = por %p124, %p125
      %p127 = scmp.ne.s32.totalorder %s119, %s121
      %p128 = scmp.eq.s32.totalorder %s38, 1
      %p129 = por %p127, %p128
      %p130 = scmp.ne.s32.totalorder %s121, %s122
      %p131 = scmp.eq.s32.totalorder %s38, 0
      %p132 = por %p130, %p131
      %p133 = scmp.ne.s32.totalorder %s121, %s122
      %p134 = scmp.eq.s32.totalorder %s39, 1
      %p135 = por %p133, %p134
      %p137 = scmp.ne.s32.totalorder %s122, %s136
      %p138 = scmp.eq.s32.totalorder %s39, 0
      %p139 = por %p137, %p138
      %s141 = sadd.s32 %s140, 1
      %p144 = scmp.eq.s32.totalorder %s33, 1
      %p145 = scmp.ne.s32.totalorder %s140, %s142
      %p146 = scmp.eq.s32.totalorder %s33, 0
      %p147 = por %p145, %p146
      %p148 = scmp.ne.s32.totalorder %s140, %s142
      %p149 = scmp.eq.s32.totalorder %s38, 1
      %p150 = por %p148, %p149
      %p151 = scmp.ne.s32.totalorder %s142, %s143
      %p152 = scmp.eq.s32.totalorder %s38, 0
      %p153 = por %p151, %p152
      %p154 = scmp.ne.s32.totalorder %s142, %s143
      %p155 = scmp.eq.s32.totalorder %s39, 1
      %p156 = por %p154, %p155
      %p158 = scmp.ne.s32.totalorder %s143, %s157
      %p159 = scmp.eq.s32.totalorder %s39, 0
      %p160 = por %p158, %p159
      %s162 = sadd.s32 %s161, 1
      %p165 = scmp.eq.s32.totalorder %s33, 1
      %p166 = scmp.ne.s32.totalorder %s161, %s163
      %p167 = scmp.eq.s32.totalorder %s33, 0
      %p168 = por %p166, %p167
      %p169 = scmp.ne.s32.totalorder %s161, %s163
      %p170 = scmp.eq.s32.totalorder %s38, 1
      %p171 = por %p169, %p170
      %p172 = scmp.ne.s32.totalorder %s163, %s164
      %p173 = scmp.eq.s32.totalorder %s38, 0
      %p174 = por %p172, %p173
      %p175 = scmp.ne.s32.totalorder %s163, %s164
      %p176 = scmp.eq.s32.totalorder %s39, 1
      %p177 = por %p175, %p176
      %p179 = scmp.ne.s32.totalorder %s164, %s178
      %p180 = scmp.eq.s32.totalorder %s39, 0
      %p181 = por %p179, %p180
      %s183 = sadd.s32 %s182, 1
      %p186 = scmp.eq.s32.totalorder %s33, 1
      %p187 = scmp.ne.s32.totalorder %s182, %s184
      %p188 = scmp.eq.s32.totalorder %s33, 0
      %p189 = por %p187, %p188
      %p190 = scmp.ne.s32.totalorder %s182, %s184
      %p191 = scmp.eq.s32.totalorder %s38, 1
      %p192 = por %p190, %p191
      %p193 = scmp.ne.s32.totalorder %s184, %s185
      %p194 = scmp.eq.s32.totalorder %s38, 0
      %p195 = por %p193, %p194
      %p196 = scmp.ne.s32.totalorder %s184, %s185
      %p197 = scmp.eq.s32.totalorder %s39, 1
      %p198 = por %p196, %p197
      %p200 = scmp.ne.s32.totalorder %s185, %s199
      %p201 = scmp.eq.s32.totalorder %s39, 0
      %p202 = por %p200, %p201
      %s204 = sadd.s32 %s203, 1
      %p207 = scmp.eq.s32.totalorder %s33, 1
      %p208 = scmp.ne.s32.totalorder %s203, %s205
      %p209 = scmp.eq.s32.totalorder %s33, 0
      %p210 = por %p208, %p209
      %p211 = scmp.ne.s32.totalorder %s203, %s205
      %p212 = scmp.eq.s32.totalorder %s38, 1
      %p213 = por %p211, %p212
      %p214 = scmp.ne.s32.totalorder %s205, %s206
      %p215 = scmp.eq.s32.totalorder %s38, 0
      %p216 = por %p214, %p215
      %p217 = scmp.ne.s32.totalorder %s205, %s206
      %p218 = scmp.eq.s32.totalorder %s39, 1
      %p219 = por %p217, %p218
      %p221 = scmp.ne.s32.totalorder %s206, %s220
      %p222 = scmp.eq.s32.totalorder %s39, 0
      %p223 = por %p221, %p222
      %s225 = sadd.s32 %s224, 1
      %p228 = scmp.eq.s32.totalorder %s33, 1
      %p229 = scmp.ne.s32.totalorder %s224, %s226
      %p230 = scmp.eq.s32.totalorder %s33, 0
      %p231 = por %p229, %p230
      %p232 = scmp.ne.s32.totalorder %s224, %s226
      %p233 = scmp.eq.s32.totalorder %s38, 1
      %p234 = por %p232, %p233
      %p235 = scmp.ne.s32.totalorder %s226, %s227
      %p236 = scmp.eq.s32.totalorder %s38, 0
      %p237 = por %p235, %p236
      %p238 = scmp.ne.s32.totalorder %s226, %s227
      %p239 = scmp.eq.s32.totalorder %s39, 1
      %p240 = por %p238, %p239
      %p242 = scmp.ne.s32.totalorder %s227, %s241
      %p243 = scmp.eq.s32.totalorder %s39, 0
      %p244 = por %p242, %p243
      %s246 = sadd.s32 %s245, 1
      %p249 = scmp.eq.s32.totalorder %s33, 1
      %p250 = scmp.ne.s32.totalorder %s245, %s247
      %p251 = scmp.eq.s32.totalorder %s33, 0
      %p252 = por %p250, %p251
      %p253 = scmp.ne.s32.totalorder %s245, %s247
      %p254 = scmp.eq.s32.totalorder %s38, 1
      %p255 = por %p253, %p254
      %p256 = scmp.ne.s32.totalorder %s247, %s248
      %p257 = scmp.eq.s32.totalorder %s38, 0
      %p258 = por %p256, %p257
      %p259 = scmp.ne.s32.totalorder %s247, %s248
      %p260 = scmp.eq.s32.totalorder %s39, 1
      %p261 = por %p259, %p260
      %p263 = scmp.ne.s32.totalorder %s248, %s262
      %p264 = scmp.eq.s32.totalorder %s39, 0
      %p265 = por %p263, %p264
      %s267 = sadd.s32 %s266, 1
      %p270 = scmp.eq.s32.totalorder %s33, 1
      %p271 = scmp.ne.s32.totalorder %s266, %s268
      %p272 = scmp.eq.s32.totalorder %s33, 0
      %p273 = por %p271, %p272
      %p274 = scmp.ne.s32.totalorder %s266, %s268
      %p275 = scmp.eq.s32.totalorder %s38, 1
      %p276 = por %p274, %p275
      %p277 = scmp.ne.s32.totalorder %s268, %s269
      %p278 = scmp.eq.s32.totalorder %s38, 0
      %p279 = por %p277, %p278
      %p280 = scmp.ne.s32.totalorder %s268, %s269
      %p281 = scmp.eq.s32.totalorder %s39, 1
      %p282 = por %p280, %p281
      %p284 = scmp.ne.s32.totalorder %s269, %s283
      %p285 = scmp.eq.s32.totalorder %s39, 0
      %p286 = por %p284, %p285
      %s288 = sadd.s32 %s287, 1
      %p291 = scmp.eq.s32.totalorder %s33, 1
      %p292 = scmp.ne.s32.totalorder %s287, %s289
      %p293 = scmp.eq.s32.totalorder %s33, 0
      %p294 = por %p292, %p293
      %p295 = scmp.ne.s32.totalorder %s287, %s289
      %p296 = scmp.eq.s32.totalorder %s38, 1
      %p297 = por %p295, %p296
      %p298 = scmp.ne.s32.totalorder %s289, %s290
      %p299 = scmp.eq.s32.totalorder %s38, 0
      %p300 = por %p298, %p299
      %p301 = scmp.ne.s32.totalorder %s289, %s290
      %p302 = scmp.eq.s32.totalorder %s39, 1
      %p303 = por %p301, %p302
      %p305 = scmp.ne.s32.totalorder %s290, %s304
      %p306 = scmp.eq.s32.totalorder %s39, 0
      %p307 = por %p305, %p306
      %s309 = sadd.s32 %s308, 1
      %p312 = scmp.eq.s32.totalorder %s33, 1
      %p313 = scmp.ne.s32.totalorder %s308, %s310
      %p314 = scmp.eq.s32.totalorder %s33, 0
      %p315 = por %p313, %p314
      %p316 = scmp.ne.s32.totalorder %s308, %s310
      %p317 = scmp.eq.s32.totalorder %s38, 1
      %p318 = por %p316, %p317
      %p319 = scmp.ne.s32.totalorder %s310, %s311
      %p320 = scmp.eq.s32.totalorder %s38, 0
      %p321 = por %p319, %p320
      %p322 = scmp.ne.s32.totalorder %s310, %s311
      %p323 = scmp.eq.s32.totalorder %s39, 1
      %p324 = por %p322, %p323
      %p326 = scmp.ne.s32.totalorder %s311, %s325
      %p327 = scmp.eq.s32.totalorder %s39, 0
      %p328 = por %p326, %p327
      %s330 = sadd.s32 %s329, 1
      %p333 = scmp.eq.s32.totalorder %s33, 1
      %p334 = scmp.ne.s32.totalorder %s329, %s331
      %p335 = scmp.eq.s32.totalorder %s33, 0
      %p336 = por %p334, %p335
      %p337 = scmp.ne.s32.totalorder %s329, %s331
      %p338 = scmp.eq.s32.totalorder %s38, 1
      %p339 = por %p337, %p338
      %p340 = scmp.ne.s32.totalorder %s331, %s332
      %p341 = scmp.eq.s32.totalorder %s38, 0
      %p342 = por %p340, %p341
      %p343 = scmp.ne.s32.totalorder %s331, %s332
      %p344 = scmp.eq.s32.totalorder %s39, 1
      %p345 = por %p343, %p344
      %p347 = scmp.ne.s32.totalorder %s332, %s346
      %p348 = scmp.eq.s32.totalorder %s39, 0
      %p349 = por %p347, %p348
      %s351 = sadd.s32 %s350, 1
      %p354 = scmp.eq.s32.totalorder %s33, 1
      %p355 = scmp.ne.s32.totalorder %s350, %s352
      %p356 = scmp.eq.s32.totalorder %s33, 0
      %p357 = por %p355, %p356
      %p358 = scmp.ne.s32.totalorder %s350, %s352
      %p359 = scmp.eq.s32.totalorder %s38, 1
      %p360 = por %p358, %p359
      %p361 = scmp.ne.s32.totalorder %s352, %s353
      %p362 = scmp.eq.s32.totalorder %s38, 0
      %p363 = por %p361, %p362
      %p364 = scmp.ne.s32.totalorder %s352, %s353
      %p365 = scmp.eq.s32.totalorder %s39, 1
      %p366 = por %p364, %p365
      %p368 = scmp.ne.s32.totalorder %s353, %s367
      %p369 = scmp.eq.s32.totalorder %s39, 0
      %p370 = por %p368, %p369
      %s372 = sadd.s32 %s371, 1
      %p375 = scmp.eq.s32.totalorder %s33, 1
      %p376 = scmp.ne.s32.totalorder %s371, %s373
      %p377 = scmp.eq.s32.totalorder %s33, 0
      %p378 = por %p376, %p377
      %p379 = scmp.ne.s32.totalorder %s371, %s373
      %p380 = scmp.eq.s32.totalorder %s38, 1
      %p381 = por %p379, %p380
      %p382 = scmp.ne.s32.totalorder %s373, %s374
      %p383 = scmp.eq.s32.totalorder %s38, 0
      %p384 = por %p382, %p383
      %p385 = scmp.ne.s32.totalorder %s373, %s374
      %p386 = scmp.eq.s32.totalorder %s39, 1
      %p387 = por %p385, %p386
      %p389 = scmp.ne.s32.totalorder %s374, %s388
      %p390 = scmp.eq.s32.totalorder %s39, 0
      %p391 = por %p389, %p390
      %s393 = sadd.s32 %s392, 1
      %p396 = scmp.eq.s32.totalorder %s33, 1
      %p397 = scmp.ne.s32.totalorder %s392, %s394
      %p398 = scmp.eq.s32.totalorder %s33, 0
      %p399 = por %p397, %p398
      %p400 = scmp.ne.s32.totalorder %s392, %s394
      %p401 = scmp.eq.s32.totalorder %s38, 1
      %p402 = por %p400, %p401
      %p403 = scmp.ne.s32.totalorder %s394, %s395
      %p404 = scmp.eq.s32.totalorder %s38, 0
      %p405 = por %p403, %p404
      %p406 = scmp.ne.s32.totalorder %s394, %s395
      %p407 = scmp.eq.s32.totalorder %s39, 1
      %p408 = por %p406, %p407
      %p410 = scmp.ne.s32.totalorder %s395, %s409
      %p411 = scmp.eq.s32.totalorder %s39, 0
      %p412 = por %p410, %p411
      %s414 = sadd.s32 %s413, 1
      %p417 = scmp.eq.s32.totalorder %s33, 1
      %p418 = scmp.ne.s32.totalorder %s413, %s415
      %p419 = scmp.eq.s32.totalorder %s33, 0
      %p420 = por %p418, %p419
      %p421 = scmp.ne.s32.totalorder %s413, %s415
      %p422 = scmp.eq.s32.totalorder %s38, 1
      %p423 = por %p421, %p422
      %p424 = scmp.ne.s32.totalorder %s415, %s416
      %p425 = scmp.eq.s32.totalorder %s38, 0
      %p426 = por %p424, %p425
      %p427 = scmp.ne.s32.totalorder %s415, %s416
      %p428 = scmp.eq.s32.totalorder %s39, 1
      %p429 = por %p427, %p428
      %p431 = scmp.ne.s32.totalorder %s416, %s430
      %p432 = scmp.eq.s32.totalorder %s39, 0
      %p433 = por %p431, %p432
      %s435 = sadd.s32 %s434, 1
      %p438 = scmp.eq.s32.totalorder %s33, 1
      %p439 = scmp.ne.s32.totalorder %s434, %s436
      %p440 = scmp.eq.s32.totalorder %s33, 0
      %p441 = por %p439, %p440
      %p442 = scmp.ne.s32.totalorder %s434, %s436
      %p443 = scmp.eq.s32.totalorder %s38, 1
      %p444 = por %p442, %p443
      %p445 = scmp.ne.s32.totalorder %s436, %s437
      %p446 = scmp.eq.s32.totalorder %s38, 0
      %p447 = por %p445, %p446
      %p448 = scmp.ne.s32.totalorder %s436, %s437
      %p449 = scmp.eq.s32.totalorder %s39, 1
      %p450 = por %p448, %p449
      %p452 = scmp.ne.s32.totalorder %s437, %s451
      %p453 = scmp.eq.s32.totalorder %s39, 0
      %p454 = por %p452, %p453
      %s456 = sadd.s32 %s455, 1
      %p459 = scmp.eq.s32.totalorder %s33, 1
      %p460 = scmp.ne.s32.totalorder %s455, %s457
      %p461 = scmp.eq.s32.totalorder %s33, 0
      %p462 = por %p460, %p461
      %p463 = scmp.ne.s32.totalorder %s455, %s457
      %p464 = scmp.eq.s32.totalorder %s38, 1
      %p465 = por %p463, %p464
      %p466 = scmp.ne.s32.totalorder %s457, %s458
      %p467 = scmp.eq.s32.totalorder %s38, 0
      %p468 = por %p466, %p467
      %p469 = scmp.ne.s32.totalorder %s457, %s458
      %p470 = scmp.eq.s32.totalorder %s39, 1
      %p471 = por %p469, %p470
      %p473 = scmp.ne.s32.totalorder %s458, %s472
      %p474 = scmp.eq.s32.totalorder %s39, 0
      %p475 = por %p473, %p474
      %s476 = ssub.s32 %s33, %s40
      %p477 = scmp.eq.s32.totalorder %s476, 0
      %s479 = sadd.s32 %s478, 1
      %s480 = scalar_select %p477, %s478, %s479
      %p483 = pneg %p477
      %p484 = scmp.eq.s32.totalorder %s33, 1
      %p485 = por %p483, %p484
      %p486 = scmp.ne.s32.totalorder %s478, %s481
      %p487 = scmp.eq.s32.totalorder %s33, 0
      %p488 = por %p486, %p487
      %p489 = scmp.ne.s32.totalorder %s478, %s481
      %p490 = scmp.eq.s32.totalorder %s38, 1
      %p491 = por %p489, %p490
      %p492 = scmp.ne.s32.totalorder %s481, %s482
      %p493 = scmp.eq.s32.totalorder %s38, 0
      %p494 = por %p492, %p493
      %p495 = scmp.ne.s32.totalorder %s481, %s482
      %p496 = scmp.eq.s32.totalorder %s39, 1
      %p497 = por %p495, %p496
      %p499 = scmp.ne.s32.totalorder %s482, %s498
      %p500 = scmp.eq.s32.totalorder %s39, 0
      %p501 = por %p499, %p500
      %s502 = ssub.s32 %s33, %s40
      %p503 = scmp.eq.s32.totalorder %s502, 0
      %s505 = sadd.s32 %s504, 1
      %s506 = scalar_select %p503, %s504, %s505
      %p509 = pneg %p503
      %p510 = scmp.eq.s32.totalorder %s33, 1
      %p511 = por %p509, %p510
      %p512 = scmp.ne.s32.totalorder %s504, %s507
      %p513 = scmp.eq.s32.totalorder %s33, 0
      %p514 = por %p512, %p513
      %p515 = scmp.ne.s32.totalorder %s504, %s507
      %p516 = scmp.eq.s32.totalorder %s38, 1
      %p517 = por %p515, %p516
      %p518 = scmp.ne.s32.totalorder %s507, %s508
      %p519 = scmp.eq.s32.totalorder %s38, 0
      %p520 = por %p518, %p519
      %p521 = scmp.ne.s32.totalorder %s507, %s508
      %p522 = scmp.eq.s32.totalorder %s39, 1
      %p523 = por %p521, %p522
      %p525 = scmp.ne.s32.totalorder %s508, %s524
      %p526 = scmp.eq.s32.totalorder %s39, 0
      %p527 = por %p525, %p526
      %p528 = scmp.le.s32.totalorder 1, %s33
      %p529 = scmp.lt.s32.totalorder %s33, 3
      %p530 = pnand %p528, %p529
      %p531 = pneg %p530
      // Predicated region
      $region9: #{decoder_stack_forward.3} parent=5 // pred_check
        _
      $region10: #{decoder_stack_forward.3} parent=5 // pred_check_branch
        %533 = sbr.rel (%p530) target = $region12
      $region11: #{decoder_stack_forward.3} parent=5 // pred_region
        %s534 = ssub.s32 %s33, 1
        // Predicated region
        $region13: #{decoder_stack_forward.3} parent=11 // pred_check
          %p535 = pneg %p132
        $region14: #{decoder_stack_forward.3} parent=11 // pred_check_branch
          %537 = sbr.rel (%p535) target = $region16
        $region15: #{decoder_stack_forward.3} parent=11 // pred_region
          _
        $region16: #{decoder_stack_forward.3} parent=11 // pred_fallthru
          _
        // Predicated region
        $region17: #{decoder_stack_forward.3} parent=11 // pred_check
          %p538 = pneg %p153
        $region18: #{decoder_stack_forward.3} parent=11 // pred_check_branch
          %540 = sbr.rel (%p538) target = $region20
        $region19: #{decoder_stack_forward.3} parent=11 // pred_region
          _
        $region20: #{decoder_stack_forward.3} parent=11 // pred_fallthru
          _
        // Predicated region
        $region21: #{decoder_stack_forward.3} parent=11 // pred_check
          %p541 = pneg %p174
        $region22: #{decoder_stack_forward.3} parent=11 // pred_check_branch
          %543 = sbr.rel (%p541) target = $region24
        $region23: #{decoder_stack_forward.3} parent=11 // pred_region
          _
        $region24: #{decoder_stack_forward.3} parent=11 // pred_fallthru
          _
        // Predicated region
        $region25: #{decoder_stack_forward.3} parent=11 // pred_check
          %p544 = pneg %p195
        $region26: #{decoder_stack_forward.3} parent=11 // pred_check_branch
          %546 = sbr.rel (%p544) target = $region28
        $region27: #{decoder_stack_forward.3} parent=11 // pred_region
          _
        $region28: #{decoder_stack_forward.3} parent=11 // pred_fallthru
          _
        // Predicated region
        $region29: #{decoder_stack_forward.3} parent=11 // pred_check
          %p547 = pneg %p216
        $region30: #{decoder_stack_forward.3} parent=11 // pred_check_branch
          %549 = sbr.rel (%p547) target = $region32
        $region31: #{decoder_stack_forward.3} parent=11 // pred_region
          _
        $region32: #{decoder_stack_forward.3} parent=11 // pred_fallthru
          _
        // Predicated region
        $region33: #{decoder_stack_forward.3} parent=11 // pred_check
          %p550 = pneg %p237
        $region34: #{decoder_stack_forward.3} parent=11 // pred_check_branch
          %552 = sbr.rel (%p550) target = $region36
        $region35: #{decoder_stack_forward.3} parent=11 // pred_region
          _
        $region36: #{decoder_stack_forward.3} parent=11 // pred_fallthru
          _
        // Predicated region
        $region37: #{decoder_stack_forward.3} parent=11 // pred_check
          %p553 = pneg %p258
        $region38: #{decoder_stack_forward.3} parent=11 // pred_check_branch
          %555 = sbr.rel (%p553) target = $region40
        $region39: #{decoder_stack_forward.3} parent=11 // pred_region
          _
        $region40: #{decoder_stack_forward.3} parent=11 // pred_fallthru
          _
        // Predicated region
        $region41: #{decoder_stack_forward.3} parent=11 // pred_check
          %p556 = pneg %p279
        $region42: #{decoder_stack_forward.3} parent=11 // pred_check_branch
          %558 = sbr.rel (%p556) target = $region44
        $region43: #{decoder_stack_forward.3} parent=11 // pred_region
          _
        $region44: #{decoder_stack_forward.3} parent=11 // pred_fallthru
          _
        // Predicated region
        $region45: #{decoder_stack_forward.3} parent=11 // pred_check
          %p559 = pneg %p300
        $region46: #{decoder_stack_forward.3} parent=11 // pred_check_branch
          %561 = sbr.rel (%p559) target = $region48
        $region47: #{decoder_stack_forward.3} parent=11 // pred_region
          _
        $region48: #{decoder_stack_forward.3} parent=11 // pred_fallthru
          _
        // Predicated region
        $region49: #{decoder_stack_forward.3} parent=11 // pred_check
          %p562 = pneg %p321
        $region50: #{decoder_stack_forward.3} parent=11 // pred_check_branch
          %564 = sbr.rel (%p562) target = $region52
        $region51: #{decoder_stack_forward.3} parent=11 // pred_region
          _
        $region52: #{decoder_stack_forward.3} parent=11 // pred_fallthru
          _
        // Predicated region
        $region53: #{decoder_stack_forward.3} parent=11 // pred_check
          %p565 = pneg %p342
        $region54: #{decoder_stack_forward.3} parent=11 // pred_check_branch
          %567 = sbr.rel (%p565) target = $region56
        $region55: #{decoder_stack_forward.3} parent=11 // pred_region
          _
        $region56: #{decoder_stack_forward.3} parent=11 // pred_fallthru
          _
        // Predicated region
        $region57: #{decoder_stack_forward.3} parent=11 // pred_check
          %p568 = pneg %p363
        $region58: #{decoder_stack_forward.3} parent=11 // pred_check_branch
          %570 = sbr.rel (%p568) target = $region60
        $region59: #{decoder_stack_forward.3} parent=11 // pred_region
          _
        $region60: #{decoder_stack_forward.3} parent=11 // pred_fallthru
          _
        // Predicated region
        $region61: #{decoder_stack_forward.3} parent=11 // pred_check
          %p571 = pneg %p384
        $region62: #{decoder_stack_forward.3} parent=11 // pred_check_branch
          %573 = sbr.rel (%p571) target = $region64
        $region63: #{decoder_stack_forward.3} parent=11 // pred_region
          _
        $region64: #{decoder_stack_forward.3} parent=11 // pred_fallthru
          _
        // Predicated region
        $region65: #{decoder_stack_forward.3} parent=11 // pred_check
          %p574 = pneg %p405
        $region66: #{decoder_stack_forward.3} parent=11 // pred_check_branch
          %576 = sbr.rel (%p574) target = $region68
        $region67: #{decoder_stack_forward.3} parent=11 // pred_region
          _
        $region68: #{decoder_stack_forward.3} parent=11 // pred_fallthru
          _
        // Predicated region
        $region69: #{decoder_stack_forward.3} parent=11 // pred_check
          %p577 = pneg %p426
        $region70: #{decoder_stack_forward.3} parent=11 // pred_check_branch
          %579 = sbr.rel (%p577) target = $region72
        $region71: #{decoder_stack_forward.3} parent=11 // pred_region
          _
        $region72: #{decoder_stack_forward.3} parent=11 // pred_fallthru
          _
        // Predicated region
        $region73: #{decoder_stack_forward.3} parent=11 // pred_check
          %p580 = pneg %p447
        $region74: #{decoder_stack_forward.3} parent=11 // pred_check_branch
          %582 = sbr.rel (%p580) target = $region76
        $region75: #{decoder_stack_forward.3} parent=11 // pred_region
          _
        $region76: #{decoder_stack_forward.3} parent=11 // pred_fallthru
          _
        // Predicated region
        $region77: #{decoder_stack_forward.3} parent=11 // pred_check
          %p583 = pneg %p468
        $region78: #{decoder_stack_forward.3} parent=11 // pred_check_branch
          %585 = sbr.rel (%p583) target = $region80
        $region79: #{decoder_stack_forward.3} parent=11 // pred_region
          _
        $region80: #{decoder_stack_forward.3} parent=11 // pred_fallthru
          _
      $region12: #{decoder_stack_forward.3} parent=5 // pred_fallthru
        _
      %p586 = scmp.lt.s32.totalorder %s33, 2
      // Predicated region
      $region81: #{decoder_stack_forward.3} parent=5 // pred_check
        %p587 = pneg %p586
      $region82: #{decoder_stack_forward.3} parent=5 // pred_check_branch
        %589 = sbr.rel (%p587) target = $region84
      $region83: #{decoder_stack_forward.3} parent=5 // pred_region
        // Predicated region
        $region85: #{decoder_stack_forward.3} parent=83 // pred_check
          %p590 = pneg %p53
        $region86: #{decoder_stack_forward.3} parent=83 // pred_check_branch
          %592 = sbr.rel (%p590) target = $region88
        $region87: #{decoder_stack_forward.3} parent=83 // pred_region
          %p593 = scmp.lt.s32.totalorder %s33, 1
          %s594 = scalar_select %p593, %s33, 1
          %s595 = smul.addr %s594, 2
          %s596 = smul.addr %s595, 8
          %s597 = scalar_lea.vmem %s0, %s596
        $region88: #{decoder_stack_forward.3} parent=83 // pred_fallthru
          _
        // Predicated region
        $region89: #{decoder_stack_forward.3} parent=83 // pred_check
          %p598 = pneg %p79
        $region90: #{decoder_stack_forward.3} parent=83 // pred_check_branch
          %600 = sbr.rel (%p598) target = $region92
        $region91: #{decoder_stack_forward.3} parent=83 // pred_region
          %p601 = scmp.lt.s32.totalorder %s33, 1
          %s602 = scalar_select %p601, %s33, 1
          %s603 = smul.addr %s602, 2
          %s604 = smul.addr %s603, 8
          %s605 = scalar_lea.vmem %s1, %s604
        $region92: #{decoder_stack_forward.3} parent=83 // pred_fallthru
          _
        // Predicated region
        $region93: #{decoder_stack_forward.3} parent=83 // pred_check
          %p606 = pneg %p105
        $region94: #{decoder_stack_forward.3} parent=83 // pred_check_branch
          %608 = sbr.rel (%p606) target = $region96
        $region95: #{decoder_stack_forward.3} parent=83 // pred_region
          %p609 = scmp.lt.s32.totalorder %s33, 1
          %s610 = scalar_select %p609, %s33, 1
          %s611 = smul.addr %s610, 8
          %s612 = scalar_lea.vmem %s2, %s611
        $region96: #{decoder_stack_forward.3} parent=83 // pred_fallthru
          _
      $region84: #{decoder_stack_forward.3} parent=5 // pred_fallthru
        _
      %p613 = scmp.le.s32.totalorder 1, %s33
      %p614 = scmp.lt.s32.totalorder %s33, 3
      %p615 = pnand %p613, %p614
      %p616 = pneg %p615
      // Predicated region
      $region97: #{decoder_stack_forward.3} parent=5 // pred_check
        _
      $region98: #{decoder_stack_forward.3} parent=5 // pred_check_branch
        %618 = sbr.rel (%p615) target = $region100
      $region99: #{decoder_stack_forward.3} parent=5 // pred_region
        %s619 = ssub.s32 %s33, 1
        %p620 = scmp.lt.s32.totalorder %s38, 1
        %s621 = scalar_select %p620, %s38, 1
        %s622 = smul.addr %s621, 2
        %s623 = smul.addr %s622, 8
        %s624 = scalar_lea.vmem %s0, %s623
        %p625 = pneg %p59
        %p626 = pneg %p56
        %p627 = scmp.lt.s32.totalorder %s38, 1
        %s628 = scalar_select %p627, %s38, 1
        %s629 = smul.addr %s628, 2
        %s630 = smul.addr %s629, 8
        %s631 = scalar_lea.vmem %s1, %s630
        %p632 = pneg %p85
        %p633 = pneg %p82
        %p634 = scmp.lt.s32.totalorder %s38, 1
        %s635 = scalar_select %p634, %s38, 1
        %s636 = smul.addr %s635, 8
        %s637 = scalar_lea.vmem %s2, %s636
        %p638 = pneg %p111
        %p639 = pneg %p108
        %p640 = pneg %p132
        %p641 = pneg %p129
        %p642 = pneg %p153
        %p643 = pneg %p150
        %p644 = pneg %p174
        %p645 = pneg %p171
        %p646 = pneg %p195
        %p647 = pneg %p192
        %p648 = pneg %p216
        %p649 = pneg %p213
        %p650 = pneg %p237
        %p651 = pneg %p234
        %p652 = pneg %p258
        %p653 = pneg %p255
        %p654 = pneg %p279
        %p655 = pneg %p276
        %p656 = pneg %p300
        %p657 = pneg %p297
        %p658 = pneg %p321
        %p659 = pneg %p318
        %p660 = pneg %p342
        %p661 = pneg %p339
        %p662 = pneg %p363
        %p663 = pneg %p360
        %p664 = pneg %p384
        %p665 = pneg %p381
        %p666 = pneg %p405
        %p667 = pneg %p402
        %p668 = pneg %p426
        %p669 = pneg %p423
        %p670 = pneg %p447
        %p671 = pneg %p444
        %p672 = pneg %p468
        %p673 = pneg %p465
        %p674 = pneg %p494
        %p675 = pneg %p491
        %s676 = sand.u32 %s481, 1
        %s677 = scalar_lea.sflag [#allocation4], %s676
        %s678 = sand.u32 %s481, 1
        %s679 = smul.addr %s678, 16
        %s680 = scalar_lea.vmem [#allocation3], %s679
        %p681 = pneg %p520
        %p682 = pneg %p517
        %p683 = scmp.lt.s32.totalorder %s38, 1
        %s684 = scalar_select %p683, %s38, 1
        %s685 = smul.addr %s684, 8
        %s686 = scalar_lea.vmem %s21, %s685
        %p687 = scmp.lt.s32.totalorder %s38, 1
        %s688 = scalar_select %p687, %s38, 1
        %s689 = smul.addr %s688, 2
        %s690 = smul.addr %s689, 8
        %s691 = scalar_lea.vmem %s0, %s690
        %p692 = scmp.lt.s32.totalorder %s38, 1
        %s693 = scalar_select %p692, %s38, 1
        %s694 = smul.addr %s693, 2
        %s695 = smul.addr %s694, 8
        %s696 = scalar_lea.vmem %s1, %s695
        %p697 = scmp.lt.s32.totalorder %s38, 1
        %s698 = scalar_select %p697, %s38, 1
        %s699 = smul.addr %s698, 8
        %s700 = scalar_lea.vmem %s2, %s699
        %p701 = scmp.lt.s32.totalorder %s38, 1
        %s702 = scalar_select %p701, %s38, 1
        %s703 = smul.addr %s702, 8
        %s704 = scalar_lea.vmem %s21, %s703
        %v706 = vld [vmem:[%s696] sm:$0xff]
        %v707 = vld [vmem:[%s696 + $0x8] sm:$0xff]
        %v708 = vld [vmem:[%s691] sm:$0xff]
        %v709 = vld [vmem:[%s691 + $0x8] sm:$0xf]
        %v710 = vld [vmem:[%s3] sm:$0xff]
        %v711 = vld [vmem:[%s3 + $0x8] sm:$0xff]
        %v712 = vpack.c.bf16 %v707, %v706
        %v713 = vld [vmem:[%s4] sm:$0xf]
        %v714 = vld [vmem:[%s4 + $0x4] sm:$0xf]
        %v715 = vld [vmem:[%s4 + $0x8] sm:$0xf]
        %v716 = vld [vmem:[%s4 + $0xc] sm:$0xf]
        %v717 = vld [vmem:[%s5] sm:$0x1]
        %v719 = vlaneseq
        %v720 = vshrl.u32 %v719, 7
        %v721 = vsub.s32 0, %v720
        %v722 = vrot.slane %v717, %v721
        %v728 = vunpack.c.l.b16 %v713
        %v729 = vunpack.c.l.b16 %v714
        %v730 = vunpack.c.l.b16 %v715
        %v731 = vunpack.c.l.b16 %v716
        %v732 = vpack.c.b16 %v729, %v728
        %v733 = vpack.c.b16 %v731, %v730
        %vm736 = vcmask 261120
        %v738 = vsel %vm736, %v712, 0
        %740 = vmatprep.subr.bf16.mxu0 0
        %741 = vmatpush1.bf16.msra.mxu0 0
        %742 = vmatprep.subr.bf16.mxu0 0
        %743 = vmatpush1.bf16.msra.mxu0 0
        %744 = vmatprep.subr.bf16.mxu0 0
        %745 = vmatpush1.bf16.msra.mxu0 0
        %746 = vmatprep.subr.bf16.mxu0 0
        %747 = vmatpush1.bf16.msra.mxu0 0
        %748 = vmatprep.subr.bf16.mxu0 0
        %749 = vmatpush1.bf16.msra.mxu0 0
        %750 = vmatprep.subr.bf16.mxu0 0
        %751 = vmatpush1.bf16.msra.mxu0 0
        %752 = vmatprep.subr.bf16.mxu0 0
        %753 = vmatpush1.bf16.msra.mxu0 %v733
        %754 = vmatprep.subr.bf16.mxu0 0
        %755 = vmatpush1.bf16.msra.mxu0 %v732
        %756 = vmatprep.subr.bf16.mxu0 0
        %757 = vmatpush2.bf16.msra.mxu0 0
        %758 = vmatprep.subr.bf16.mxu0 0
        %759 = vmatpush2.bf16.msra.mxu0 0
        %760 = vmatprep.subr.bf16.mxu0 0
        %761 = vmatpush2.bf16.msra.mxu0 0
        %762 = vmatprep.subr.bf16.mxu0 0
        %763 = vmatpush2.bf16.msra.mxu0 0
        %764 = vmatprep.subr.bf16.mxu0 0
        %765 = vmatpush2.bf16.msra.mxu0 0
        %766 = vmatprep.subr.bf16.mxu0 0
        %767 = vmatpush2.bf16.msra.mxu0 0
        %768 = vmatprep.subr.bf16.mxu0 0
        %769 = vmatpush2.bf16.msra.mxu0 0
        %770 = vmatprep.subr.bf16.mxu0 0
        %771 = vmatpush2.bf16.msra.mxu0 0
        %772 = vmatprep.mubr.bf16.mxu0 0
        %773 = vmatmul.mubr.bf16.gmra.mxu0 %v738
        %v774 = vpop.f32.mrf.mxu0
        %v775 = vadd.f32 %v722, %v774
        %v776 = vpop.f32.mrf.mxu0
        %v777 = vpop.f32.mrf.mxu0
        %v778 = vadd.f32 %v722, %v777
        %v779 = vpop.f32.mrf.mxu0
        %780 = vdwg.mxu0
        %v781 = vld [vmem:[%s6] sm:$0xf]
        %v782 = vld [vmem:[%s6 + $0x4] sm:$0xf]
        %v783 = vld [vmem:[%s6 + $0x8] sm:$0xf]
        %v784 = vld [vmem:[%s6 + $0xc] sm:$0xf]
        %v785 = vld [vmem:[%s7] sm:$0x1]
        %v786 = vpack.c.bf16 %v778, %v775
        %788 = vrot.lane.b32.xlu0 %v786, 96
        %v789 = vpop.permute.xlu0 %788
        %vm790 = vcmask 64512
        %v792 = vsel %vm790, %v786, 0
        %v795 = vsel %vm790, %v789, 0
        %797 = vmatprep.subr.bf16.mxu0 0
        %798 = vmatpush1.bf16.xpose.msra.mxu0 0
        %799 = vmatprep.subr.bf16.mxu0 0
        %800 = vmatpush1.bf16.xpose.msra.mxu0 0
        %801 = vmatprep.subr.bf16.mxu0 0
        %802 = vmatpush1.bf16.xpose.msra.mxu0 0
        %803 = vmatprep.subr.bf16.mxu0 0
        %804 = vmatpush1.bf16.xpose.msra.mxu0 0
        %805 = vmatprep.subr.bf16.mxu0 0
        %806 = vmatpush1.bf16.xpose.msra.mxu0 0
        %807 = vmatprep.subr.bf16.mxu0 0
        %808 = vmatpush1.bf16.xpose.msra.mxu0 0
        %809 = vmatprep.subr.bf16.mxu0 0
        %810 = vmatpush1.bf16.xpose.msra.mxu0 0
        %811 = vmatprep.subr.bf16.mxu0 0
        %812 = vmatpush1.bf16.xpose.msra.mxu0 %v795
        %813 = vmatprep.subr.bf16.mxu0 0
        %814 = vmatpush2.bf16.xpose.msra.mxu0 0
        %815 = vmatprep.subr.bf16.mxu0 0
        %816 = vmatpush2.bf16.xpose.msra.mxu0 0
        %817 = vmatprep.subr.bf16.mxu0 0
        %818 = vmatpush2.bf16.xpose.msra.mxu0 0
        %819 = vmatprep.subr.bf16.mxu0 0
        %820 = vmatpush2.bf16.xpose.msra.mxu0 0
        %821 = vmatprep.subr.bf16.mxu0 0
        %822 = vmatpush2.bf16.xpose.msra.mxu0 0
        %823 = vmatprep.subr.bf16.mxu0 0
        %824 = vmatpush2.bf16.xpose.msra.mxu0 0
        %825 = vmatprep.subr.bf16.mxu0 0
        %826 = vmatpush2.bf16.xpose.msra.mxu0 0
        %827 = vmatprep.subr.bf16.mxu0 0
        %828 = vmatpush2.bf16.xpose.msra.mxu0 0
        %829 = vmatprep.mubr.bf16.mxu0 0
        %830 = vmatmul.mubr.bf16.gmra.mxu0 %v792
        %v831 = vpop.f32.mrf.mxu0
        %v832 = vadd.f32 0.0, %v831
        %v833 = vpop.f32.mrf.mxu0
        %v834 = vpop.f32.mrf.mxu0
        %v835 = vadd.f32 0.0, %v834
        %v836 = vpop.f32.mrf.mxu0
        %837 = vdwg.mxu0
        %v838 = vmul.f32 %v832, 0.35355338
        %v839 = vmul.f32 %v835, 0.35355338
        %vm840 = vcmask 130048
        %v841 = vsel %vm840, %v838, -inf
        %842 = vmax.xlane.f32.xlu0 %v841
        %v843 = vpop.xlane.xlu0 %842
        %v844 = vsel %vm840, %v839, -inf
        %845 = vmax.xlane.f32.xlu0 %v844
        %v846 = vpop.xlane.xlu0 %845
        %v847 = vsub.f32 %v838, %v843
        %v848 = vsub.f32 %v839, %v846
        %v849 = vmul.f32 %v847, 1.442695
        %v850 = vpow.pop %v849
        %v851 = vmul.f32 %v848, 1.442695
        %v852 = vpow.pop %v851
        %v853 = vsel %vm840, %v850, 0.0
        %854 = vadd.xlane.f32.xlu0 %v853
        %v855 = vpop.xlane.xlu0 %854
        %v856 = vsel %vm840, %v852, 0.0
        %857 = vadd.xlane.f32.xlu0 %v856
        %v858 = vpop.xlane.xlu0 %857
        %v859 = vrcp.pop %v855
        %v860 = vmul.f32 %v850, %v859
        %v861 = vrcp.pop %v858
        %v862 = vmul.f32 %v852, %v861
        %v863 = vpack.c.bf16 %v862, %v860
        %864 = vrot.lane.b32.xlu0 %v786, 64
        %v865 = vpop.permute.xlu0 %864
        %v868 = vsel %vm840, %v863, 0
        %870 = vmatprep.subr.bf16.mxu0 0
        %871 = vmatpush1.bf16.msra.mxu0 0
        %872 = vmatprep.subr.bf16.mxu0 0
        %873 = vmatpush1.bf16.msra.mxu0 0
        %874 = vmatprep.subr.bf16.mxu0 0
        %875 = vmatpush1.bf16.msra.mxu0 0
        %876 = vmatprep.subr.bf16.mxu0 0
        %877 = vmatpush1.bf16.msra.mxu0 0
        %878 = vmatprep.subr.bf16.mxu0 0
        %879 = vmatpush1.bf16.msra.mxu0 0
        %880 = vmatprep.subr.bf16.mxu0 0
        %881 = vmatpush1.bf16.msra.mxu0 0
        %882 = vmatprep.subr.bf16.mxu0 0
        %883 = vmatpush1.bf16.msra.mxu0 0
        %884 = vmatprep.subr.bf16.mxu0 0
        %885 = vmatpush1.bf16.msra.mxu0 %v865
        %886 = vmatprep.subr.bf16.mxu0 0
        %887 = vmatpush2.bf16.msra.mxu0 0
        %888 = vmatprep.subr.bf16.mxu0 0
        %889 = vmatpush2.bf16.msra.mxu0 0
        %890 = vmatprep.subr.bf16.mxu0 0
        %891 = vmatpush2.bf16.msra.mxu0 0
        %892 = vmatprep.subr.bf16.mxu0 0
        %893 = vmatpush2.bf16.msra.mxu0 0
        %894 = vmatprep.subr.bf16.mxu0 0
        %895 = vmatpush2.bf16.msra.mxu0 0
        %896 = vmatprep.subr.bf16.mxu0 0
        %897 = vmatpush2.bf16.msra.mxu0 0
        %898 = vmatprep.subr.bf16.mxu0 0
        %899 = vmatpush2.bf16.msra.mxu0 0
        %900 = vmatprep.subr.bf16.mxu0 0
        %901 = vmatpush2.bf16.msra.mxu0 0
        %902 = vmatprep.mubr.bf16.mxu0 0
        %903 = vmatmul.mubr.bf16.gmra.mxu0 %v868
        %v904 = vpop.f32.mrf.mxu0
        %v905 = vadd.f32 0.0, %v904
        %v906 = vpop.f32.mrf.mxu0
        %v907 = vpop.f32.mrf.mxu0
        %v908 = vadd.f32 0.0, %v907
        %v909 = vpop.f32.mrf.mxu0
        %910 = vdwg.mxu0
        %911 = vrot.lane.b32.xlu0 %v786, 120
        %v912 = vpop.permute.xlu0 %911
        %913 = vrot.lane.b32.xlu0 %v786, 88
        %v914 = vpop.permute.xlu0 %913
        %v916 = vsel %vm790, %v912, 0
        %v919 = vsel %vm790, %v914, 0
        %921 = vmatprep.subr.bf16.mxu0 0
        %922 = vmatpush1.bf16.xpose.msra.mxu0 0
        %923 = vmatprep.subr.bf16.mxu0 0
        %924 = vmatpush1.bf16.xpose.msra.mxu0 0
        %925 = vmatprep.subr.bf16.mxu0 0
        %926 = vmatpush1.bf16.xpose.msra.mxu0 0
        %927 = vmatprep.subr.bf16.mxu0 0
        %928 = vmatpush1.bf16.xpose.msra.mxu0 0
        %929 = vmatprep.subr.bf16.mxu0 0
        %930 = vmatpush1.bf16.xpose.msra.mxu0 0
        %931 = vmatprep.subr.bf16.mxu0 0
        %932 = vmatpush1.bf16.xpose.msra.mxu0 0
        %933 = vmatprep.subr.bf16.mxu0 0
        %934 = vmatpush1.bf16.xpose.msra.mxu0 0
        %935 = vmatprep.subr.bf16.mxu0 0
        %936 = vmatpush1.bf16.xpose.msra.mxu0 %v919
        %937 = vmatprep.subr.bf16.mxu0 0
        %938 = vmatpush2.bf16.xpose.msra.mxu0 0
        %939 = vmatprep.subr.bf16.mxu0 0
        %940 = vmatpush2.bf16.xpose.msra.mxu0 0
        %941 = vmatprep.subr.bf16.mxu0 0
        %942 = vmatpush2.bf16.xpose.msra.mxu0 0
        %943 = vmatprep.subr.bf16.mxu0 0
        %944 = vmatpush2.bf16.xpose.msra.mxu0 0
        %945 = vmatprep.subr.bf16.mxu0 0
        %946 = vmatpush2.bf16.xpose.msra.mxu0 0
        %947 = vmatprep.subr.bf16.mxu0 0
        %948 = vmatpush2.bf16.xpose.msra.mxu0 0
        %949 = vmatprep.subr.bf16.mxu0 0
        %950 = vmatpush2.bf16.xpose.msra.mxu0 0
        %951 = vmatprep.subr.bf16.mxu0 0
        %952 = vmatpush2.bf16.xpose.msra.mxu0 0
        %953 = vmatprep.mubr.bf16.mxu0 0
        %954 = vmatmul.mubr.bf16.gmra.mxu0 %v916
        %v955 = vpop.f32.mrf.mxu0
        %v956 = vadd.f32 0.0, %v955
        %v957 = vpop.f32.mrf.mxu0
        %v958 = vpop.f32.mrf.mxu0
        %v959 = vadd.f32 0.0, %v958
        %v960 = vpop.f32.mrf.mxu0
        %961 = vdwg.mxu0
        %v962 = vmul.f32 %v956, 0.35355338
        %v963 = vmul.f32 %v959, 0.35355338
        %v964 = vsel %vm840, %v962, -inf
        %965 = vmax.xlane.f32.xlu0 %v964
        %v966 = vpop.xlane.xlu0 %965
        %v967 = vsel %vm840, %v963, -inf
        %968 = vmax.xlane.f32.xlu0 %v967
        %v969 = vpop.xlane.xlu0 %968
        %v970 = vsub.f32 %v962, %v966
        %v971 = vsub.f32 %v963, %v969
        %v972 = vmul.f32 %v970, 1.442695
        %v973 = vpow.pop %v972
        %v974 = vmul.f32 %v971, 1.442695
        %v975 = vpow.pop %v974
        %v976 = vsel %vm840, %v973, 0.0
        %977 = vadd.xlane.f32.xlu0 %v976
        %v978 = vpop.xlane.xlu0 %977
        %v979 = vsel %vm840, %v975, 0.0
        %980 = vadd.xlane.f32.xlu0 %v979
        %v981 = vpop.xlane.xlu0 %980
        %v982 = vrcp.pop %v978
        %v983 = vmul.f32 %v973, %v982
        %v984 = vrcp.pop %v981
        %v985 = vmul.f32 %v975, %v984
        %v986 = vpack.c.bf16 %v985, %v983
        %987 = vrot.lane.b32.xlu0 %v786, 56
        %v988 = vpop.permute.xlu0 %987
        %v991 = vsel %vm840, %v986, 0
        %993 = vmatprep.subr.bf16.mxu0 0
        %994 = vmatpush1.bf16.msra.mxu0 0
        %995 = vmatprep.subr.bf16.mxu0 0
        %996 = vmatpush1.bf16.msra.mxu0 0
        %997 = vmatprep.subr.bf16.mxu0 0
        %998 = vmatpush1.bf16.msra.mxu0 0
        %999 = vmatprep.subr.bf16.mxu0 0
        %1000 = vmatpush1.bf16.msra.mxu0 0
        %1001 = vmatprep.subr.bf16.mxu0 0
        %1002 = vmatpush1.bf16.msra.mxu0 0
        %1003 = vmatprep.subr.bf16.mxu0 0
        %1004 = vmatpush1.bf16.msra.mxu0 0
        %1005 = vmatprep.subr.bf16.mxu0 0
        %1006 = vmatpush1.bf16.msra.mxu0 0
        %1007 = vmatprep.subr.bf16.mxu0 0
        %1008 = vmatpush1.bf16.msra.mxu0 %v988
        %1009 = vmatprep.subr.bf16.mxu0 0
        %1010 = vmatpush2.bf16.msra.mxu0 0
        %1011 = vmatprep.subr.bf16.mxu0 0
        %1012 = vmatpush2.bf16.msra.mxu0 0
        %1013 = vmatprep.subr.bf16.mxu0 0
        %1014 = vmatpush2.bf16.msra.mxu0 0
        %1015 = vmatprep.subr.bf16.mxu0 0
        %1016 = vmatpush2.bf16.msra.mxu0 0
        %1017 = vmatprep.subr.bf16.mxu0 0
        %1018 = vmatpush2.bf16.msra.mxu0 0
        %1019 = vmatprep.subr.bf16.mxu0 0
        %1020 = vmatpush2.bf16.msra.mxu0 0
        %1021 = vmatprep.subr.bf16.mxu0 0
        %1022 = vmatpush2.bf16.msra.mxu0 0
        %1023 = vmatprep.subr.bf16.mxu0 0
        %1024 = vmatpush2.bf16.msra.mxu0 0
        %1025 = vmatprep.mubr.bf16.mxu0 0
        %1026 = vmatmul.mubr.bf16.gmra.mxu0 %v991
        %v1027 = vpop.f32.mrf.mxu0
        %v1028 = vadd.f32 0.0, %v1027
        %v1029 = vpop.f32.mrf.mxu0
        %v1030 = vpop.f32.mrf.mxu0
        %v1031 = vadd.f32 0.0, %v1030
        %v1032 = vpop.f32.mrf.mxu0
        %1033 = vdwg.mxu0
        %1034 = vrot.lane.b32.xlu0 %v786, 112
        %v1035 = vpop.permute.xlu0 %1034
        %1036 = vrot.lane.b32.xlu0 %v786, 80
        %v1037 = vpop.permute.xlu0 %1036
        %v1039 = vsel %vm790, %v1035, 0
        %v1042 = vsel %vm790, %v1037, 0
        %1044 = vmatprep.subr.bf16.mxu0 0
        %1045 = vmatpush1.bf16.xpose.msra.mxu0 0
        %1046 = vmatprep.subr.bf16.mxu0 0
        %1047 = vmatpush1.bf16.xpose.msra.mxu0 0
        %1048 = vmatprep.subr.bf16.mxu0 0
        %1049 = vmatpush1.bf16.xpose.msra.mxu0 0
        %1050 = vmatprep.subr.bf16.mxu0 0
        %1051 = vmatpush1.bf16.xpose.msra.mxu0 0
        %1052 = vmatprep.subr.bf16.mxu0 0
        %1053 = vmatpush1.bf16.xpose.msra.mxu0 0
        %1054 = vmatprep.subr.bf16.mxu0 0
        %1055 = vmatpush1.bf16.xpose.msra.mxu0 0
        %1056 = vmatprep.subr.bf16.mxu0 0
        %1057 = vmatpush1.bf16.xpose.msra.mxu0 0
        %1058 = vmatprep.subr.bf16.mxu0 0
        %1059 = vmatpush1.bf16.xpose.msra.mxu0 %v1042
        %1060 = vmatprep.subr.bf16.mxu0 0
        %1061 = vmatpush2.bf16.xpose.msra.mxu0 0
        %1062 = vmatprep.subr.bf16.mxu0 0
        %1063 = vmatpush2.bf16.xpose.msra.mxu0 0
        %1064 = vmatprep.subr.bf16.mxu0 0
        %1065 = vmatpush2.bf16.xpose.msra.mxu0 0
        %1066 = vmatprep.subr.bf16.mxu0 0
        %1067 = vmatpush2.bf16.xpose.msra.mxu0 0
        %1068 = vmatprep.subr.bf16.mxu0 0
        %1069 = vmatpush2.bf16.xpose.msra.mxu0 0
        %1070 = vmatprep.subr.bf16.mxu0 0
        %1071 = vmatpush2.bf16.xpose.msra.mxu0 0
        %1072 = vmatprep.subr.bf16.mxu0 0
        %1073 = vmatpush2.bf16.xpose.msra.mxu0 0
        %1074 = vmatprep.subr.bf16.mxu0 0
        %1075 = vmatpush2.bf16.xpose.msra.mxu0 0
        %1076 = vmatprep.mubr.bf16.mxu0 0
        %1077 = vmatmul.mubr.bf16.gmra.mxu0 %v1039
        %v1078 = vpop.f32.mrf.mxu0
        %v1079 = vadd.f32 0.0, %v1078
        %v1080 = vpop.f32.mrf.mxu0
        %v1081 = vpop.f32.mrf.mxu0
        %v1082 = vadd.f32 0.0, %v1081
        %v1083 = vpop.f32.mrf.mxu0
        %1084 = vdwg.mxu0
        %v1085 = vmul.f32 %v1079, 0.35355338
        %v1086 = vmul.f32 %v1082, 0.35355338
        %v1087 = vsel %vm840, %v1085, -inf
        %1088 = vmax.xlane.f32.xlu0 %v1087
        %v1089 = vpop.xlane.xlu0 %1088
        %v1090 = vsel %vm840, %v1086, -inf
        %1091 = vmax.xlane.f32.xlu0 %v1090
        %v1092 = vpop.xlane.xlu0 %1091
        %v1093 = vsub.f32 %v1085, %v1089
        %v1094 = vsub.f32 %v1086, %v1092
        %v1095 = vmul.f32 %v1093, 1.442695
        %v1096 = vpow.pop %v1095
        %v1097 = vmul.f32 %v1094, 1.442695
        %v1098 = vpow.pop %v1097
        %v1099 = vsel %vm840, %v1096, 0.0
        %1100 = vadd.xlane.f32.xlu0 %v1099
        %v1101 = vpop.xlane.xlu0 %1100
        %v1102 = vsel %vm840, %v1098, 0.0
        %1103 = vadd.xlane.f32.xlu0 %v1102
        %v1104 = vpop.xlane.xlu0 %1103
        %v1105 = vrcp.pop %v1101
        %v1106 = vmul.f32 %v1096, %v1105
        %v1107 = vrcp.pop %v1104
        %v1108 = vmul.f32 %v1098, %v1107
        %v1109 = vpack.c.bf16 %v1108, %v1106
        %1110 = vrot.lane.b32.xlu0 %v786, 48
        %v1111 = vpop.permute.xlu0 %1110
        %v1114 = vsel %vm840, %v1109, 0
        %1116 = vmatprep.subr.bf16.mxu0 0
        %1117 = vmatpush1.bf16.msra.mxu0 0
        %1118 = vmatprep.subr.bf16.mxu0 0
        %1119 = vmatpush1.bf16.msra.mxu0 0
        %1120 = vmatprep.subr.bf16.mxu0 0
        %1121 = vmatpush1.bf16.msra.mxu0 0
        %1122 = vmatprep.subr.bf16.mxu0 0
        %1123 = vmatpush1.bf16.msra.mxu0 0
        %1124 = vmatprep.subr.bf16.mxu0 0
        %1125 = vmatpush1.bf16.msra.mxu0 0
        %1126 = vmatprep.subr.bf16.mxu0 0
        %1127 = vmatpush1.bf16.msra.mxu0 0
        %1128 = vmatprep.subr.bf16.mxu0 0
        %1129 = vmatpush1.bf16.msra.mxu0 0
        %1130 = vmatprep.subr.bf16.mxu0 0
        %1131 = vmatpush1.bf16.msra.mxu0 %v1111
        %1132 = vmatprep.subr.bf16.mxu0 0
        %1133 = vmatpush2.bf16.msra.mxu0 0
        %1134 = vmatprep.subr.bf16.mxu0 0
        %1135 = vmatpush2.bf16.msra.mxu0 0
        %1136 = vmatprep.subr.bf16.mxu0 0
        %1137 = vmatpush2.bf16.msra.mxu0 0
        %1138 = vmatprep.subr.bf16.mxu0 0
        %1139 = vmatpush2.bf16.msra.mxu0 0
        %1140 = vmatprep.subr.bf16.mxu0 0
        %1141 = vmatpush2.bf16.msra.mxu0 0
        %1142 = vmatprep.subr.bf16.mxu0 0
        %1143 = vmatpush2.bf16.msra.mxu0 0
        %1144 = vmatprep.subr.bf16.mxu0 0
        %1145 = vmatpush2.bf16.msra.mxu0 0
        %1146 = vmatprep.subr.bf16.mxu0 0
        %1147 = vmatpush2.bf16.msra.mxu0 0
        %1148 = vmatprep.mubr.bf16.mxu0 0
        %1149 = vmatmul.mubr.bf16.gmra.mxu0 %v1114
        %v1150 = vpop.f32.mrf.mxu0
        %v1151 = vadd.f32 0.0, %v1150
        %v1152 = vpop.f32.mrf.mxu0
        %v1153 = vpop.f32.mrf.mxu0
        %v1154 = vadd.f32 0.0, %v1153
        %v1155 = vpop.f32.mrf.mxu0
        %1156 = vdwg.mxu0
        %1157 = vrot.lane.b32.xlu0 %v786, 104
        %v1158 = vpop.permute.xlu0 %1157
        %1159 = vrot.lane.b32.xlu0 %v786, 72
        %v1160 = vpop.permute.xlu0 %1159
        %v1162 = vsel %vm790, %v1158, 0
        %v1165 = vsel %vm790, %v1160, 0
        %1167 = vmatprep.subr.bf16.mxu0 0
        %1168 = vmatpush1.bf16.xpose.msra.mxu0 0
        %1169 = vmatprep.subr.bf16.mxu0 0
        %1170 = vmatpush1.bf16.xpose.msra.mxu0 0
        %1171 = vmatprep.subr.bf16.mxu0 0
        %1172 = vmatpush1.bf16.xpose.msra.mxu0 0
        %1173 = vmatprep.subr.bf16.mxu0 0
        %1174 = vmatpush1.bf16.xpose.msra.mxu0 0
        %1175 = vmatprep.subr.bf16.mxu0 0
        %1176 = vmatpush1.bf16.xpose.msra.mxu0 0
        %1177 = vmatprep.subr.bf16.mxu0 0
        %1178 = vmatpush1.bf16.xpose.msra.mxu0 0
        %1179 = vmatprep.subr.bf16.mxu0 0
        %1180 = vmatpush1.bf16.xpose.msra.mxu0 0
        %1181 = vmatprep.subr.bf16.mxu0 0
        %1182 = vmatpush1.bf16.xpose.msra.mxu0 %v1165
        %1183 = vmatprep.subr.bf16.mxu0 0
        %1184 = vmatpush2.bf16.xpose.msra.mxu0 0
        %1185 = vmatprep.subr.bf16.mxu0 0
        %1186 = vmatpush2.bf16.xpose.msra.mxu0 0
        %1187 = vmatprep.subr.bf16.mxu0 0
        %1188 = vmatpush2.bf16.xpose.msra.mxu0 0
        %1189 = vmatprep.subr.bf16.mxu0 0
        %1190 = vmatpush2.bf16.xpose.msra.mxu0 0
        %1191 = vmatprep.subr.bf16.mxu0 0
        %1192 = vmatpush2.bf16.xpose.msra.mxu0 0
        %1193 = vmatprep.subr.bf16.mxu0 0
        %1194 = vmatpush2.bf16.xpose.msra.mxu0 0
        %1195 = vmatprep.subr.bf16.mxu0 0
        %1196 = vmatpush2.bf16.xpose.msra.mxu0 0
        %1197 = vmatprep.subr.bf16.mxu0 0
        %1198 = vmatpush2.bf16.xpose.msra.mxu0 0
        %1199 = vmatprep.mubr.bf16.mxu0 0
        %1200 = vmatmul.mubr.bf16.gmra.mxu0 %v1162
        %v1201 = vpop.f32.mrf.mxu0
        %v1202 = vadd.f32 0.0, %v1201
        %v1203 = vpop.f32.mrf.mxu0
        %v1204 = vpop.f32.mrf.mxu0
        %v1205 = vadd.f32 0.0, %v1204
        %v1206 = vpop.f32.mrf.mxu0
        %1207 = vdwg.mxu0
        %v1208 = vmul.f32 %v1202, 0.35355338
        %v1209 = vmul.f32 %v1205, 0.35355338
        %v1210 = vsel %vm840, %v1208, -inf
        %1211 = vmax.xlane.f32.xlu0 %v1210
        %v1212 = vpop.xlane.xlu0 %1211
        %v1213 = vsel %vm840, %v1209, -inf
        %1214 = vmax.xlane.f32.xlu0 %v1213
        %v1215 = vpop.xlane.xlu0 %1214
        %v1216 = vsub.f32 %v1208, %v1212
        %v1217 = vsub.f32 %v1209, %v1215
        %v1218 = vmul.f32 %v1216, 1.442695
        %v1219 = vpow.pop %v1218
        %v1220 = vmul.f32 %v1217, 1.442695
        %v1221 = vpow.pop %v1220
        %v1222 = vsel %vm840, %v1219, 0.0
        %1223 = vadd.xlane.f32.xlu0 %v1222
        %v1224 = vpop.xlane.xlu0 %1223
        %v1225 = vsel %vm840, %v1221, 0.0
        %1226 = vadd.xlane.f32.xlu0 %v1225
        %v1227 = vpop.xlane.xlu0 %1226
        %v1228 = vrcp.pop %v1224
        %v1229 = vmul.f32 %v1219, %v1228
        %v1230 = vrcp.pop %v1227
        %v1231 = vmul.f32 %v1221, %v1230
        %v1232 = vpack.c.bf16 %v1231, %v1229
        %1233 = vrot.lane.b32.xlu0 %v786, 40
        %v1234 = vpop.permute.xlu0 %1233
        %v1237 = vsel %vm840, %v1232, 0
        %1239 = vmatprep.subr.bf16.mxu0 0
        %1240 = vmatpush1.bf16.msra.mxu0 0
        %1241 = vmatprep.subr.bf16.mxu0 0
        %1242 = vmatpush1.bf16.msra.mxu0 0
        %1243 = vmatprep.subr.bf16.mxu0 0
        %1244 = vmatpush1.bf16.msra.mxu0 0
        %1245 = vmatprep.subr.bf16.mxu0 0
        %1246 = vmatpush1.bf16.msra.mxu0 0
        %1247 = vmatprep.subr.bf16.mxu0 0
        %1248 = vmatpush1.bf16.msra.mxu0 0
        %1249 = vmatprep.subr.bf16.mxu0 0
        %1250 = vmatpush1.bf16.msra.mxu0 0
        %1251 = vmatprep.subr.bf16.mxu0 0
        %1252 = vmatpush1.bf16.msra.mxu0 0
        %1253 = vmatprep.subr.bf16.mxu0 0
        %1254 = vmatpush1.bf16.msra.mxu0 %v1234
        %1255 = vmatprep.subr.bf16.mxu0 0
        %1256 = vmatpush2.bf16.msra.mxu0 0
        %1257 = vmatprep.subr.bf16.mxu0 0
        %1258 = vmatpush2.bf16.msra.mxu0 0
        %1259 = vmatprep.subr.bf16.mxu0 0
        %1260 = vmatpush2.bf16.msra.mxu0 0
        %1261 = vmatprep.subr.bf16.mxu0 0
        %1262 = vmatpush2.bf16.msra.mxu0 0
        %1263 = vmatprep.subr.bf16.mxu0 0
        %1264 = vmatpush2.bf16.msra.mxu0 0
        %1265 = vmatprep.subr.bf16.mxu0 0
        %1266 = vmatpush2.bf16.msra.mxu0 0
        %1267 = vmatprep.subr.bf16.mxu0 0
        %1268 = vmatpush2.bf16.msra.mxu0 0
        %1269 = vmatprep.subr.bf16.mxu0 0
        %1270 = vmatpush2.bf16.msra.mxu0 0
        %1271 = vmatprep.mubr.bf16.mxu0 0
        %1272 = vmatmul.mubr.bf16.gmra.mxu0 %v1237
        %v1273 = vpop.f32.mrf.mxu0
        %v1274 = vadd.f32 0.0, %v1273
        %v1275 = vpop.f32.mrf.mxu0
        %v1276 = vpop.f32.mrf.mxu0
        %v1277 = vadd.f32 0.0, %v1276
        %v1278 = vpop.f32.mrf.mxu0
        %1279 = vdwg.mxu0
        %1282 = vrot.lane.b32.xlu0 %v1028, 8
        %v1283 = vpop.permute.xlu0 %1282
        %1284 = vrot.lane.b32.xlu0 %v1031, 8
        %v1285 = vpop.permute.xlu0 %1284
        %1290 = vrot.lane.b32.xlu0 %v1151, 16
        %v1291 = vpop.permute.xlu0 %1290
        %1292 = vrot.lane.b32.xlu0 %v1154, 16
        %v1293 = vpop.permute.xlu0 %1292
        %1298 = vrot.lane.b32.xlu0 %v1274, 24
        %v1299 = vpop.permute.xlu0 %1298
        %1300 = vrot.lane.b32.xlu0 %v1277, 24
        %v1301 = vpop.permute.xlu0 %1300
        %v1304 = vsel %vm790, %v905, %v1283
        %v1305 = vsel %vm790, %v908, %v1285
        %v1306 = vsel %vm840, %v1304, %v1291
        %v1307 = vsel %vm840, %v1305, %v1293
        %vm1308 = vcmask 195584
        %v1309 = vsel %vm1308, %v1306, %v1299
        %v1310 = vsel %vm1308, %v1307, %v1301
        %v1311 = vpack.c.bf16 %v1310, %v1309
        %v1313 = vlaneseq
        %v1314 = vshrl.u32 %v1313, 7
        %v1315 = vsub.s32 0, %v1314
        %v1316 = vrot.slane %v785, %v1315
        %v1322 = vunpack.c.l.b16 %v781
        %v1323 = vunpack.c.l.b16 %v782
        %v1324 = vunpack.c.l.b16 %v783
        %v1325 = vunpack.c.l.b16 %v784
        %v1326 = vpack.c.b16 %v1323, %v1322
        %v1327 = vpack.c.b16 %v1325, %v1324
        %v1331 = vsel %vm736, %v1311, 0
        %1333 = vmatprep.subr.bf16.mxu0 0
        %1334 = vmatpush1.bf16.msra.mxu0 0
        %1335 = vmatprep.subr.bf16.mxu0 0
        %1336 = vmatpush1.bf16.msra.mxu0 0
        %1337 = vmatprep.subr.bf16.mxu0 0
        %1338 = vmatpush1.bf16.msra.mxu0 0
        %1339 = vmatprep.subr.bf16.mxu0 0
        %1340 = vmatpush1.bf16.msra.mxu0 0
        %1341 = vmatprep.subr.bf16.mxu0 0
        %1342 = vmatpush1.bf16.msra.mxu0 0
        %1343 = vmatprep.subr.bf16.mxu0 0
        %1344 = vmatpush1.bf16.msra.mxu0 0
        %1345 = vmatprep.subr.bf16.mxu0 0
        %1346 = vmatpush1.bf16.msra.mxu0 %v1327
        %1347 = vmatprep.subr.bf16.mxu0 0
        %1348 = vmatpush1.bf16.msra.mxu0 %v1326
        %1349 = vmatprep.subr.bf16.mxu0 0
        %1350 = vmatpush2.bf16.msra.mxu0 0
        %1351 = vmatprep.subr.bf16.mxu0 0
        %1352 = vmatpush2.bf16.msra.mxu0 0
        %1353 = vmatprep.subr.bf16.mxu0 0
        %1354 = vmatpush2.bf16.msra.mxu0 0
        %1355 = vmatprep.subr.bf16.mxu0 0
        %1356 = vmatpush2.bf16.msra.mxu0 0
        %1357 = vmatprep.subr.bf16.mxu0 0
        %1358 = vmatpush2.bf16.msra.mxu0 0
        %1359 = vmatprep.subr.bf16.mxu0 0
        %1360 = vmatpush2.bf16.msra.mxu0 0
        %1361 = vmatprep.subr.bf16.mxu0 0
        %1362 = vmatpush2.bf16.msra.mxu0 0
        %1363 = vmatprep.subr.bf16.mxu0 0
        %1364 = vmatpush2.bf16.msra.mxu0 0
        %1365 = vmatprep.mubr.bf16.mxu0 0
        %1366 = vmatmul.mubr.bf16.gmra.mxu0 %v1331
        %v1367 = vpop.f32.mrf.mxu0
        %v1368 = vadd.f32 %v1316, %v1367
        %v1369 = vpop.f32.mrf.mxu0
        %v1370 = vpop.f32.mrf.mxu0
        %v1371 = vadd.f32 %v1316, %v1370
        %v1372 = vpop.f32.mrf.mxu0
        %1373 = vdwg.mxu0
        %v1374 = vadd.f32 %v706, %v1368
        %v1375 = vadd.f32 %v707, %v1371
        %v1377 = vsel %vm840, %v710, 0
        %v1380 = vsel %vm840, %v711, 0
        %1382 = vmatprep.subr.mxu0 0.0
        %1383 = vmatpush1.msra.mxu0 0.0
        %1384 = vmatprep.subr.mxu0 0.0
        %1385 = vmatpush1.msra.mxu0 0.0
        %1386 = vmatprep.subr.mxu0 0.0
        %1387 = vmatpush1.msra.mxu0 0.0
        %1388 = vmatprep.subr.mxu0 0.0
        %1389 = vmatpush1.msra.mxu0 0.0
        %1390 = vmatprep.subr.mxu0 0.0
        %1391 = vmatpush1.msra.mxu0 0.0
        %1392 = vmatprep.subr.mxu0 0.0
        %1393 = vmatpush1.msra.mxu0 0.0
        %1394 = vmatprep.subr.mxu0 0.0
        %1395 = vmatpush1.msra.mxu0 0.0
        %1396 = vmatprep.subr.mxu0 0.0
        %1397 = vmatpush1.msra.mxu0 0.0
        %1398 = vmatprep.subr.mxu0 0.0
        %1399 = vmatpush1.msra.mxu0 0.0
        %1400 = vmatprep.subr.mxu0 0.0
        %1401 = vmatpush1.msra.mxu0 0.0
        %1402 = vmatprep.subr.mxu0 0.0
        %1403 = vmatpush1.msra.mxu0 0.0
        %1404 = vmatprep.subr.mxu0 0.0
        %1405 = vmatpush1.msra.mxu0 0.0
        %1406 = vmatprep.subr.mxu0 0.0
        %1407 = vmatpush1.msra.mxu0 0.0
        %1408 = vmatprep.subr.mxu0 0.0
        %1409 = vmatpush1.msra.mxu0 0.0
        %1410 = vmatprep.subr.mxu0 0.0
        %1411 = vmatpush1.msra.mxu0 %v1375
        %1412 = vmatprep.subr.mxu0 0.0
        %1413 = vmatpush1.msra.mxu0 %v1374
        %1414 = vmatprep.subr.mxu0 0.0
        %1415 = vmatpush2.msra.mxu0 0.0
        %1416 = vmatprep.subr.mxu0 0.0
        %1417 = vmatpush2.msra.mxu0 0.0
        %1418 = vmatprep.subr.mxu0 0.0
        %1419 = vmatpush2.msra.mxu0 0.0
        %1420 = vmatprep.subr.mxu0 0.0
        %1421 = vmatpush2.msra.mxu0 0.0
        %1422 = vmatprep.subr.mxu0 0.0
        %1423 = vmatpush2.msra.mxu0 0.0
        %1424 = vmatprep.subr.mxu0 0.0
        %1425 = vmatpush2.msra.mxu0 0.0
        %1426 = vmatprep.subr.mxu0 0.0
        %1427 = vmatpush2.msra.mxu0 0.0
        %1428 = vmatprep.subr.mxu0 0.0
        %1429 = vmatpush2.msra.mxu0 0.0
        %1430 = vmatprep.subr.mxu0 0.0
        %1431 = vmatpush2.msra.mxu0 0.0
        %1432 = vmatprep.subr.mxu0 0.0
        %1433 = vmatpush2.msra.mxu0 0.0
        %1434 = vmatprep.subr.mxu0 0.0
        %1435 = vmatpush2.msra.mxu0 0.0
        %1436 = vmatprep.subr.mxu0 0.0
        %1437 = vmatpush2.msra.mxu0 0.0
        %1438 = vmatprep.subr.mxu0 0.0
        %1439 = vmatpush2.msra.mxu0 0.0
        %1440 = vmatprep.subr.mxu0 0.0
        %1441 = vmatpush2.msra.mxu0 0.0
        %1442 = vmatprep.subr.mxu0 0.0
        %1443 = vmatpush2.msra.mxu0 0.0
        %1444 = vmatprep.subr.mxu0 0.0
        %1445 = vmatpush2.msra.mxu0 0.0
        %1446 = vmatprep.mubr.f32.mxu0 0.0
        %1447 = vmatmul.mubr.f32.gmra.mxu0 %v1377
        %v1448 = vpop.f32.mrf.mxu0
        %v1449 = vadd.f32 0.0, %v1448
        %v1450 = vpop.f32.mrf.mxu0
        %1451 = vmatprep.mubr.f32.mxu0 0.0
        %1452 = vmatmul.mubr.f32.gmra.mxu0 %v1380
        %v1453 = vpop.f32.mrf.mxu0
        %v1454 = vadd.f32 0.0, %v1453
        %v1455 = vpop.f32.mrf.mxu0
        %1456 = vdwg.mxu0
        %v1457 = vsub.f32 %v1374, %v1449
        %v1458 = vsub.f32 %v1375, %v1454
        %v1459 = vpack.c.bf16 %v1458, %v1457
        %v1460 = vld [vmem:[%s8] sm:$0xf]
        %v1461 = vld [vmem:[%s8 + $0x4] sm:$0xf]
        %v1462 = vld [vmem:[%s8 + $0x8] sm:$0xf]
        %v1463 = vld [vmem:[%s8 + $0xc] sm:$0xf]
        %v1464 = vld [vmem:[%s9] sm:$0x1]
        %v1466 = vlaneseq
        %v1467 = vshrl.u32 %v1466, 7
        %v1468 = vsub.s32 0, %v1467
        %v1469 = vrot.slane %v1464, %v1468
        %v1475 = vunpack.c.l.b16 %v1460
        %v1476 = vunpack.c.l.b16 %v1461
        %v1477 = vunpack.c.l.b16 %v1462
        %v1478 = vunpack.c.l.b16 %v1463
        %v1479 = vpack.c.b16 %v1476, %v1475
        %v1480 = vpack.c.b16 %v1478, %v1477
        %v1484 = vsel %vm736, %v1459, 0
        %1486 = vmatprep.subr.bf16.mxu0 0
        %1487 = vmatpush1.bf16.msra.mxu0 0
        %1488 = vmatprep.subr.bf16.mxu0 0
        %1489 = vmatpush1.bf16.msra.mxu0 0
        %1490 = vmatprep.subr.bf16.mxu0 0
        %1491 = vmatpush1.bf16.msra.mxu0 0
        %1492 = vmatprep.subr.bf16.mxu0 0
        %1493 = vmatpush1.bf16.msra.mxu0 0
        %1494 = vmatprep.subr.bf16.mxu0 0
        %1495 = vmatpush1.bf16.msra.mxu0 0
        %1496 = vmatprep.subr.bf16.mxu0 0
        %1497 = vmatpush1.bf16.msra.mxu0 0
        %1498 = vmatprep.subr.bf16.mxu0 0
        %1499 = vmatpush1.bf16.msra.mxu0 %v1480
        %1500 = vmatprep.subr.bf16.mxu0 0
        %1501 = vmatpush1.bf16.msra.mxu0 %v1479
        %1502 = vmatprep.subr.bf16.mxu0 0
        %1503 = vmatpush2.bf16.msra.mxu0 0
        %1504 = vmatprep.subr.bf16.mxu0 0
        %1505 = vmatpush2.bf16.msra.mxu0 0
        %1506 = vmatprep.subr.bf16.mxu0 0
        %1507 = vmatpush2.bf16.msra.mxu0 0
        %1508 = vmatprep.subr.bf16.mxu0 0
        %1509 = vmatpush2.bf16.msra.mxu0 0
        %1510 = vmatprep.subr.bf16.mxu0 0
        %1511 = vmatpush2.bf16.msra.mxu0 0
        %1512 = vmatprep.subr.bf16.mxu0 0
        %1513 = vmatpush2.bf16.msra.mxu0 0
        %1514 = vmatprep.subr.bf16.mxu0 0
        %1515 = vmatpush2.bf16.msra.mxu0 0
        %1516 = vmatprep.subr.bf16.mxu0 0
        %1517 = vmatpush2.bf16.msra.mxu0 0
        %1518 = vmatprep.mubr.bf16.mxu0 0
        %1519 = vmatmul.mubr.bf16.gmra.mxu0 %v1484
        %v1520 = vpop.f32.mrf.mxu0
        %v1521 = vadd.f32 %v1469, %v1520
        %v1522 = vpop.f32.mrf.mxu0
        %v1523 = vpop.f32.mrf.mxu0
        %v1524 = vadd.f32 %v1469, %v1523
        %v1525 = vpop.f32.mrf.mxu0
        %1526 = vdwg.mxu0
        %v1527 = vpack.c.bf16 %v709, %v708
        %v1528 = vld [vmem:[%s10] sm:$0xf]
        %v1529 = vld [vmem:[%s10 + $0x4] sm:$0xf]
        %v1530 = vld [vmem:[%s10 + $0x8] sm:$0xf]
        %v1531 = vld [vmem:[%s10 + $0xc] sm:$0xf]
        %v1532 = vld [vmem:[%s11] sm:$0x1]
        %v1534 = vlaneseq
        %v1535 = vshrl.u32 %v1534, 7
        %v1536 = vsub.s32 0, %v1535
        %v1537 = vrot.slane %v1532, %v1536
        %v1543 = vunpack.c.l.b16 %v1528
        %v1544 = vunpack.c.l.b16 %v1529
        %v1545 = vunpack.c.l.b16 %v1530
        %v1546 = vunpack.c.l.b16 %v1531
        %v1547 = vpack.c.b16 %v1544, %v1543
        %v1548 = vpack.c.b16 %v1546, %v1545
        %v1552 = vsel %vm736, %v1527, 0
        %1554 = vmatprep.subr.bf16.mxu0 0
        %1555 = vmatpush1.bf16.msra.mxu0 0
        %1556 = vmatprep.subr.bf16.mxu0 0
        %1557 = vmatpush1.bf16.msra.mxu0 0
        %1558 = vmatprep.subr.bf16.mxu0 0
        %1559 = vmatpush1.bf16.msra.mxu0 0
        %1560 = vmatprep.subr.bf16.mxu0 0
        %1561 = vmatpush1.bf16.msra.mxu0 0
        %1562 = vmatprep.subr.bf16.mxu0 0
        %1563 = vmatpush1.bf16.msra.mxu0 0
        %1564 = vmatprep.subr.bf16.mxu0 0
        %1565 = vmatpush1.bf16.msra.mxu0 0
        %1566 = vmatprep.subr.bf16.mxu0 0
        %1567 = vmatpush1.bf16.msra.mxu0 %v1548
        %1568 = vmatprep.subr.bf16.mxu0 0
        %1569 = vmatpush1.bf16.msra.mxu0 %v1547
        %1570 = vmatprep.subr.bf16.mxu0 0
        %1571 = vmatpush2.bf16.msra.mxu0 0
        %1572 = vmatprep.subr.bf16.mxu0 0
        %1573 = vmatpush2.bf16.msra.mxu0 0
        %1574 = vmatprep.subr.bf16.mxu0 0
        %1575 = vmatpush2.bf16.msra.mxu0 0
        %1576 = vmatprep.subr.bf16.mxu0 0
        %1577 = vmatpush2.bf16.msra.mxu0 0
        %1578 = vmatprep.subr.bf16.mxu0 0
        %1579 = vmatpush2.bf16.msra.mxu0 0
        %1580 = vmatprep.subr.bf16.mxu0 0
        %1581 = vmatpush2.bf16.msra.mxu0 0
        %1582 = vmatprep.subr.bf16.mxu0 0
        %1583 = vmatpush2.bf16.msra.mxu0 0
        %1584 = vmatprep.subr.bf16.mxu0 0
        %1585 = vmatpush2.bf16.msra.mxu0 0
        %1586 = vmatprep.mubr.bf16.mxu0 0
        %1587 = vmatmul.mubr.bf16.gmra.mxu0 %v1552
        %v1588 = vpop.f32.mrf.mxu0
        %v1589 = vadd.f32 %v1537, %v1588
        %v1590 = vpop.f32.mrf.mxu0
        %v1591 = vpop.f32.mrf.mxu0
        %v1592 = vadd.f32 %v1537, %v1591
        %v1593 = vpop.f32.mrf.mxu0
        %1594 = vdwg.mxu0
        %v1595 = vld [vmem:[%s12] sm:$0xf]
        %v1596 = vld [vmem:[%s12 + $0x4] sm:$0xf]
        %v1597 = vld [vmem:[%s12 + $0x8] sm:$0xf]
        %v1598 = vld [vmem:[%s12 + $0xc] sm:$0xf]
        %v1599 = vld [vmem:[%s13] sm:$0x1]
        %v1600 = vpack.c.bf16 %v1524, %v1521
        %v1601 = vpack.c.bf16 %v1592, %v1589
        %v1603 = vsel %vm790, %v1600, 0
        %v1606 = vsel %vm790, %v1601, 0
        %1608 = vmatprep.subr.bf16.mxu0 0
        %1609 = vmatpush1.bf16.xpose.msra.mxu0 0
        %1610 = vmatprep.subr.bf16.mxu0 0
        %1611 = vmatpush1.bf16.xpose.msra.mxu0 0
        %1612 = vmatprep.subr.bf16.mxu0 0
        %1613 = vmatpush1.bf16.xpose.msra.mxu0 0
        %1614 = vmatprep.subr.bf16.mxu0 0
        %1615 = vmatpush1.bf16.xpose.msra.mxu0 0
        %1616 = vmatprep.subr.bf16.mxu0 0
        %1617 = vmatpush1.bf16.xpose.msra.mxu0 0
        %1618 = vmatprep.subr.bf16.mxu0 0
        %1619 = vmatpush1.bf16.xpose.msra.mxu0 0
        %1620 = vmatprep.subr.bf16.mxu0 0
        %1621 = vmatpush1.bf16.xpose.msra.mxu0 0
        %1622 = vmatprep.subr.bf16.mxu0 0
        %1623 = vmatpush1.bf16.xpose.msra.mxu0 %v1606
        %1624 = vmatprep.subr.bf16.mxu0 0
        %1625 = vmatpush2.bf16.xpose.msra.mxu0 0
        %1626 = vmatprep.subr.bf16.mxu0 0
        %1627 = vmatpush2.bf16.xpose.msra.mxu0 0
        %1628 = vmatprep.subr.bf16.mxu0 0
        %1629 = vmatpush2.bf16.xpose.msra.mxu0 0
        %1630 = vmatprep.subr.bf16.mxu0 0
        %1631 = vmatpush2.bf16.xpose.msra.mxu0 0
        %1632 = vmatprep.subr.bf16.mxu0 0
        %1633 = vmatpush2.bf16.xpose.msra.mxu0 0
        %1634 = vmatprep.subr.bf16.mxu0 0
        %1635 = vmatpush2.bf16.xpose.msra.mxu0 0
        %1636 = vmatprep.subr.bf16.mxu0 0
        %1637 = vmatpush2.bf16.xpose.msra.mxu0 0
        %1638 = vmatprep.subr.bf16.mxu0 0
        %1639 = vmatpush2.bf16.xpose.msra.mxu0 0
        %1640 = vmatprep.mubr.bf16.mxu0 0
        %1641 = vmatmul.mubr.bf16.gmra.mxu0 %v1603
        %v1642 = vpop.f32.mrf.mxu0
        %v1643 = vadd.f32 0.0, %v1642
        %v1644 = vpop.f32.mrf.mxu0
        %v1645 = vpop.f32.mrf.mxu0
        %v1646 = vadd.f32 0.0, %v1645
        %v1647 = vpop.f32.mrf.mxu0
        %1648 = vdwg.mxu0
        %v1649 = vmul.f32 %v1643, 0.35355338
        %v1650 = vmul.f32 %v1646, 0.35355338
        %vm1651 = vcmask 97280
        %v1652 = vsel %vm1651, %v1649, -inf
        %1653 = vmax.xlane.f32.xlu0 %v1652
        %v1654 = vpop.xlane.xlu0 %1653
        %v1655 = vsel %vm1651, %v1650, -inf
        %1656 = vmax.xlane.f32.xlu0 %v1655
        %v1657 = vpop.xlane.xlu0 %1656
        %v1658 = vsub.f32 %v1649, %v1654
        %v1659 = vsub.f32 %v1650, %v1657
        %v1660 = vmul.f32 %v1658, 1.442695
        %v1661 = vpow.pop %v1660
        %v1662 = vmul.f32 %v1659, 1.442695
        %v1663 = vpow.pop %v1662
        %v1664 = vsel %vm1651, %v1661, 0.0
        %1665 = vadd.xlane.f32.xlu0 %v1664
        %v1666 = vpop.xlane.xlu0 %1665
        %v1667 = vsel %vm1651, %v1663, 0.0
        %1668 = vadd.xlane.f32.xlu0 %v1667
        %v1669 = vpop.xlane.xlu0 %1668
        %v1670 = vrcp.pop %v1666
        %v1671 = vmul.f32 %v1661, %v1670
        %v1672 = vrcp.pop %v1669
        %v1673 = vmul.f32 %v1663, %v1672
        %v1674 = vpack.c.bf16 %v1673, %v1671
        %1676 = vrot.lane.b32.xlu0 %v1601, 96
        %v1677 = vpop.permute.xlu0 %1676
        %v1679 = vsel %vm1651, %v1674, 0
        %vm1681 = vcmask 1045504
        %v1683 = vsel %vm1681, %v1677, 0
        %1685 = vmatprep.subr.bf16.mxu0 0
        %1686 = vmatpush1.bf16.msra.mxu0 0
        %1687 = vmatprep.subr.bf16.mxu0 0
        %1688 = vmatpush1.bf16.msra.mxu0 0
        %1689 = vmatprep.subr.bf16.mxu0 0
        %1690 = vmatpush1.bf16.msra.mxu0 0
        %1691 = vmatprep.subr.bf16.mxu0 0
        %1692 = vmatpush1.bf16.msra.mxu0 0
        %1693 = vmatprep.subr.bf16.mxu0 0
        %1694 = vmatpush1.bf16.msra.mxu0 0
        %1695 = vmatprep.subr.bf16.mxu0 0
        %1696 = vmatpush1.bf16.msra.mxu0 0
        %1697 = vmatprep.subr.bf16.mxu0 0
        %1698 = vmatpush1.bf16.msra.mxu0 0
        %1699 = vmatprep.subr.bf16.mxu0 0
        %1700 = vmatpush1.bf16.msra.mxu0 %v1683
        %1701 = vmatprep.subr.bf16.mxu0 0
        %1702 = vmatpush2.bf16.msra.mxu0 0
        %1703 = vmatprep.subr.bf16.mxu0 0
        %1704 = vmatpush2.bf16.msra.mxu0 0
        %1705 = vmatprep.subr.bf16.mxu0 0
        %1706 = vmatpush2.bf16.msra.mxu0 0
        %1707 = vmatprep.subr.bf16.mxu0 0
        %1708 = vmatpush2.bf16.msra.mxu0 0
        %1709 = vmatprep.subr.bf16.mxu0 0
        %1710 = vmatpush2.bf16.msra.mxu0 0
        %1711 = vmatprep.subr.bf16.mxu0 0
        %1712 = vmatpush2.bf16.msra.mxu0 0
        %1713 = vmatprep.subr.bf16.mxu0 0
        %1714 = vmatpush2.bf16.msra.mxu0 0
        %1715 = vmatprep.subr.bf16.mxu0 0
        %1716 = vmatpush2.bf16.msra.mxu0 0
        %1717 = vmatprep.mubr.bf16.mxu0 0
        %1718 = vmatmul.mubr.bf16.gmra.mxu0 %v1679
        %v1719 = vpop.f32.mrf.mxu0
        %v1720 = vadd.f32 0.0, %v1719
        %v1721 = vpop.f32.mrf.mxu0
        %v1722 = vpop.f32.mrf.mxu0
        %v1723 = vadd.f32 0.0, %v1722
        %v1724 = vpop.f32.mrf.mxu0
        %1725 = vdwg.mxu0
        %1727 = vrot.lane.b32.xlu0 %v1600, 120
        %v1728 = vpop.permute.xlu0 %1727
        %1729 = vrot.lane.b32.xlu0 %v1601, 120
        %v1730 = vpop.permute.xlu0 %1729
        %v1732 = vsel %vm790, %v1728, 0
        %v1735 = vsel %vm790, %v1730, 0
        %1737 = vmatprep.subr.bf16.mxu0 0
        %1738 = vmatpush1.bf16.xpose.msra.mxu0 0
        %1739 = vmatprep.subr.bf16.mxu0 0
        %1740 = vmatpush1.bf16.xpose.msra.mxu0 0
        %1741 = vmatprep.subr.bf16.mxu0 0
        %1742 = vmatpush1.bf16.xpose.msra.mxu0 0
        %1743 = vmatprep.subr.bf16.mxu0 0
        %1744 = vmatpush1.bf16.xpose.msra.mxu0 0
        %1745 = vmatprep.subr.bf16.mxu0 0
        %1746 = vmatpush1.bf16.xpose.msra.mxu0 0
        %1747 = vmatprep.subr.bf16.mxu0 0
        %1748 = vmatpush1.bf16.xpose.msra.mxu0 0
        %1749 = vmatprep.subr.bf16.mxu0 0
        %1750 = vmatpush1.bf16.xpose.msra.mxu0 0
        %1751 = vmatprep.subr.bf16.mxu0 0
        %1752 = vmatpush1.bf16.xpose.msra.mxu0 %v1735
        %1753 = vmatprep.subr.bf16.mxu0 0
        %1754 = vmatpush2.bf16.xpose.msra.mxu0 0
        %1755 = vmatprep.subr.bf16.mxu0 0
        %1756 = vmatpush2.bf16.xpose.msra.mxu0 0
        %1757 = vmatprep.subr.bf16.mxu0 0
        %1758 = vmatpush2.bf16.xpose.msra.mxu0 0
        %1759 = vmatprep.subr.bf16.mxu0 0
        %1760 = vmatpush2.bf16.xpose.msra.mxu0 0
        %1761 = vmatprep.subr.bf16.mxu0 0
        %1762 = vmatpush2.bf16.xpose.msra.mxu0 0
        %1763 = vmatprep.subr.bf16.mxu0 0
        %1764 = vmatpush2.bf16.xpose.msra.mxu0 0
        %1765 = vmatprep.subr.bf16.mxu0 0
        %1766 = vmatpush2.bf16.xpose.msra.mxu0 0
        %1767 = vmatprep.subr.bf16.mxu0 0
        %1768 = vmatpush2.bf16.xpose.msra.mxu0 0
        %1769 = vmatprep.mubr.bf16.mxu0 0
        %1770 = vmatmul.mubr.bf16.gmra.mxu0 %v1732
        %v1771 = vpop.f32.mrf.mxu0
        %v1772 = vadd.f32 0.0, %v1771
        %v1773 = vpop.f32.mrf.mxu0
        %v1774 = vpop.f32.mrf.mxu0
        %v1775 = vadd.f32 0.0, %v1774
        %v1776 = vpop.f32.mrf.mxu0
        %1777 = vdwg.mxu0
        %v1778 = vmul.f32 %v1772, 0.35355338
        %v1779 = vmul.f32 %v1775, 0.35355338
        %v1780 = vsel %vm1651, %v1778, -inf
        %1781 = vmax.xlane.f32.xlu0 %v1780
        %v1782 = vpop.xlane.xlu0 %1781
        %v1783 = vsel %vm1651, %v1779, -inf
        %1784 = vmax.xlane.f32.xlu0 %v1783
        %v1785 = vpop.xlane.xlu0 %1784
        %v1786 = vsub.f32 %v1778, %v1782
        %v1787 = vsub.f32 %v1779, %v1785
        %v1788 = vmul.f32 %v1786, 1.442695
        %v1789 = vpow.pop %v1788
        %v1790 = vmul.f32 %v1787, 1.442695
        %v1791 = vpow.pop %v1790
        %v1792 = vsel %vm1651, %v1789, 0.0
        %1793 = vadd.xlane.f32.xlu0 %v1792
        %v1794 = vpop.xlane.xlu0 %1793
        %v1795 = vsel %vm1651, %v1791, 0.0
        %1796 = vadd.xlane.f32.xlu0 %v1795
        %v1797 = vpop.xlane.xlu0 %1796
        %v1798 = vrcp.pop %v1794
        %v1799 = vmul.f32 %v1789, %v1798
        %v1800 = vrcp.pop %v1797
        %v1801 = vmul.f32 %v1791, %v1800
        %v1802 = vpack.c.bf16 %v1801, %v1799
        %1803 = vrot.lane.b32.xlu0 %v1601, 88
        %v1804 = vpop.permute.xlu0 %1803
        %v1806 = vsel %vm1651, %v1802, 0
        %v1809 = vsel %vm1681, %v1804, 0
        %1811 = vmatprep.subr.bf16.mxu0 0
        %1812 = vmatpush1.bf16.msra.mxu0 0
        %1813 = vmatprep.subr.bf16.mxu0 0
        %1814 = vmatpush1.bf16.msra.mxu0 0
        %1815 = vmatprep.subr.bf16.mxu0 0
        %1816 = vmatpush1.bf16.msra.mxu0 0
        %1817 = vmatprep.subr.bf16.mxu0 0
        %1818 = vmatpush1.bf16.msra.mxu0 0
        %1819 = vmatprep.subr.bf16.mxu0 0
        %1820 = vmatpush1.bf16.msra.mxu0 0
        %1821 = vmatprep.subr.bf16.mxu0 0
        %1822 = vmatpush1.bf16.msra.mxu0 0
        %1823 = vmatprep.subr.bf16.mxu0 0
        %1824 = vmatpush1.bf16.msra.mxu0 0
        %1825 = vmatprep.subr.bf16.mxu0 0
        %1826 = vmatpush1.bf16.msra.mxu0 %v1809
        %1827 = vmatprep.subr.bf16.mxu0 0
        %1828 = vmatpush2.bf16.msra.mxu0 0
        %1829 = vmatprep.subr.bf16.mxu0 0
        %1830 = vmatpush2.bf16.msra.mxu0 0
        %1831 = vmatprep.subr.bf16.mxu0 0
        %1832 = vmatpush2.bf16.msra.mxu0 0
        %1833 = vmatprep.subr.bf16.mxu0 0
        %1834 = vmatpush2.bf16.msra.mxu0 0
        %1835 = vmatprep.subr.bf16.mxu0 0
        %1836 = vmatpush2.bf16.msra.mxu0 0
        %1837 = vmatprep.subr.bf16.mxu0 0
        %1838 = vmatpush2.bf16.msra.mxu0 0
        %1839 = vmatprep.subr.bf16.mxu0 0
        %1840 = vmatpush2.bf16.msra.mxu0 0
        %1841 = vmatprep.subr.bf16.mxu0 0
        %1842 = vmatpush2.bf16.msra.mxu0 0
        %1843 = vmatprep.mubr.bf16.mxu0 0
        %1844 = vmatmul.mubr.bf16.gmra.mxu0 %v1806
        %v1845 = vpop.f32.mrf.mxu0
        %v1846 = vadd.f32 0.0, %v1845
        %v1847 = vpop.f32.mrf.mxu0
        %v1848 = vpop.f32.mrf.mxu0
        %v1849 = vadd.f32 0.0, %v1848
        %v1850 = vpop.f32.mrf.mxu0
        %1851 = vdwg.mxu0
        %1852 = vrot.lane.b32.xlu0 %v1600, 112
        %v1853 = vpop.permute.xlu0 %1852
        %1854 = vrot.lane.b32.xlu0 %v1601, 112
        %v1855 = vpop.permute.xlu0 %1854
        %v1857 = vsel %vm790, %v1853, 0
        %v1860 = vsel %vm790, %v1855, 0
        %1862 = vmatprep.subr.bf16.mxu0 0
        %1863 = vmatpush1.bf16.xpose.msra.mxu0 0
        %1864 = vmatprep.subr.bf16.mxu0 0
        %1865 = vmatpush1.bf16.xpose.msra.mxu0 0
        %1866 = vmatprep.subr.bf16.mxu0 0
        %1867 = vmatpush1.bf16.xpose.msra.mxu0 0
        %1868 = vmatprep.subr.bf16.mxu0 0
        %1869 = vmatpush1.bf16.xpose.msra.mxu0 0
        %1870 = vmatprep.subr.bf16.mxu0 0
        %1871 = vmatpush1.bf16.xpose.msra.mxu0 0
        %1872 = vmatprep.subr.bf16.mxu0 0
        %1873 = vmatpush1.bf16.xpose.msra.mxu0 0
        %1874 = vmatprep.subr.bf16.mxu0 0
        %1875 = vmatpush1.bf16.xpose.msra.mxu0 0
        %1876 = vmatprep.subr.bf16.mxu0 0
        %1877 = vmatpush1.bf16.xpose.msra.mxu0 %v1860
        %1878 = vmatprep.subr.bf16.mxu0 0
        %1879 = vmatpush2.bf16.xpose.msra.mxu0 0
        %1880 = vmatprep.subr.bf16.mxu0 0
        %1881 = vmatpush2.bf16.xpose.msra.mxu0 0
        %1882 = vmatprep.subr.bf16.mxu0 0
        %1883 = vmatpush2.bf16.xpose.msra.mxu0 0
        %1884 = vmatprep.subr.bf16.mxu0 0
        %1885 = vmatpush2.bf16.xpose.msra.mxu0 0
        %1886 = vmatprep.subr.bf16.mxu0 0
        %1887 = vmatpush2.bf16.xpose.msra.mxu0 0
        %1888 = vmatprep.subr.bf16.mxu0 0
        %1889 = vmatpush2.bf16.xpose.msra.mxu0 0
        %1890 = vmatprep.subr.bf16.mxu0 0
        %1891 = vmatpush2.bf16.xpose.msra.mxu0 0
        %1892 = vmatprep.subr.bf16.mxu0 0
        %1893 = vmatpush2.bf16.xpose.msra.mxu0 0
        %1894 = vmatprep.mubr.bf16.mxu0 0
        %1895 = vmatmul.mubr.bf16.gmra.mxu0 %v1857
        %v1896 = vpop.f32.mrf.mxu0
        %v1897 = vadd.f32 0.0, %v1896
        %v1898 = vpop.f32.mrf.mxu0
        %v1899 = vpop.f32.mrf.mxu0
        %v1900 = vadd.f32 0.0, %v1899
        %v1901 = vpop.f32.mrf.mxu0
        %1902 = vdwg.mxu0
        %v1903 = vmul.f32 %v1897, 0.35355338
        %v1904 = vmul.f32 %v1900, 0.35355338
        %v1905 = vsel %vm1651, %v1903, -inf
        %1906 = vmax.xlane.f32.xlu0 %v1905
        %v1907 = vpop.xlane.xlu0 %1906
        %v1908 = vsel %vm1651, %v1904, -inf
        %1909 = vmax.xlane.f32.xlu0 %v1908
        %v1910 = vpop.xlane.xlu0 %1909
        %v1911 = vsub.f32 %v1903, %v1907
        %v1912 = vsub.f32 %v1904, %v1910
        %v1913 = vmul.f32 %v1911, 1.442695
        %v1914 = vpow.pop %v1913
        %v1915 = vmul.f32 %v1912, 1.442695
        %v1916 = vpow.pop %v1915
        %v1917 = vsel %vm1651, %v1914, 0.0
        %1918 = vadd.xlane.f32.xlu0 %v1917
        %v1919 = vpop.xlane.xlu0 %1918
        %v1920 = vsel %vm1651, %v1916, 0.0
        %1921 = vadd.xlane.f32.xlu0 %v1920
        %v1922 = vpop.xlane.xlu0 %1921
        %v1923 = vrcp.pop %v1919
        %v1924 = vmul.f32 %v1914, %v1923
        %v1925 = vrcp.pop %v1922
        %v1926 = vmul.f32 %v1916, %v1925
        %v1927 = vpack.c.bf16 %v1926, %v1924
        %1928 = vrot.lane.b32.xlu0 %v1601, 80
        %v1929 = vpop.permute.xlu0 %1928
        %v1931 = vsel %vm1651, %v1927, 0
        %v1934 = vsel %vm1681, %v1929, 0
        %1936 = vmatprep.subr.bf16.mxu0 0
        %1937 = vmatpush1.bf16.msra.mxu0 0
        %1938 = vmatprep.subr.bf16.mxu0 0
        %1939 = vmatpush1.bf16.msra.mxu0 0
        %1940 = vmatprep.subr.bf16.mxu0 0
        %1941 = vmatpush1.bf16.msra.mxu0 0
        %1942 = vmatprep.subr.bf16.mxu0 0
        %1943 = vmatpush1.bf16.msra.mxu0 0
        %1944 = vmatprep.subr.bf16.mxu0 0
        %1945 = vmatpush1.bf16.msra.mxu0 0
        %1946 = vmatprep.subr.bf16.mxu0 0
        %1947 = vmatpush1.bf16.msra.mxu0 0
        %1948 = vmatprep.subr.bf16.mxu0 0
        %1949 = vmatpush1.bf16.msra.mxu0 0
        %1950 = vmatprep.subr.bf16.mxu0 0
        %1951 = vmatpush1.bf16.msra.mxu0 %v1934
        %1952 = vmatprep.subr.bf16.mxu0 0
        %1953 = vmatpush2.bf16.msra.mxu0 0
        %1954 = vmatprep.subr.bf16.mxu0 0
        %1955 = vmatpush2.bf16.msra.mxu0 0
        %1956 = vmatprep.subr.bf16.mxu0 0
        %1957 = vmatpush2.bf16.msra.mxu0 0
        %1958 = vmatprep.subr.bf16.mxu0 0
        %1959 = vmatpush2.bf16.msra.mxu0 0
        %1960 = vmatprep.subr.bf16.mxu0 0
        %1961 = vmatpush2.bf16.msra.mxu0 0
        %1962 = vmatprep.subr.bf16.mxu0 0
        %1963 = vmatpush2.bf16.msra.mxu0 0
        %1964 = vmatprep.subr.bf16.mxu0 0
        %1965 = vmatpush2.bf16.msra.mxu0 0
        %1966 = vmatprep.subr.bf16.mxu0 0
        %1967 = vmatpush2.bf16.msra.mxu0 0
        %1968 = vmatprep.mubr.bf16.mxu0 0
        %1969 = vmatmul.mubr.bf16.gmra.mxu0 %v1931
        %v1970 = vpop.f32.mrf.mxu0
        %v1971 = vadd.f32 0.0, %v1970
        %v1972 = vpop.f32.mrf.mxu0
        %v1973 = vpop.f32.mrf.mxu0
        %v1974 = vadd.f32 0.0, %v1973
        %v1975 = vpop.f32.mrf.mxu0
        %1976 = vdwg.mxu0
        %1977 = vrot.lane.b32.xlu0 %v1600, 104
        %v1978 = vpop.permute.xlu0 %1977
        %1979 = vrot.lane.b32.xlu0 %v1601, 104
        %v1980 = vpop.permute.xlu0 %1979
        %v1982 = vsel %vm790, %v1978, 0
        %v1985 = vsel %vm790, %v1980, 0
        %1987 = vmatprep.subr.bf16.mxu0 0
        %1988 = vmatpush1.bf16.xpose.msra.mxu0 0
        %1989 = vmatprep.subr.bf16.mxu0 0
        %1990 = vmatpush1.bf16.xpose.msra.mxu0 0
        %1991 = vmatprep.subr.bf16.mxu0 0
        %1992 = vmatpush1.bf16.xpose.msra.mxu0 0
        %1993 = vmatprep.subr.bf16.mxu0 0
        %1994 = vmatpush1.bf16.xpose.msra.mxu0 0
        %1995 = vmatprep.subr.bf16.mxu0 0
        %1996 = vmatpush1.bf16.xpose.msra.mxu0 0
        %1997 = vmatprep.subr.bf16.mxu0 0
        %1998 = vmatpush1.bf16.xpose.msra.mxu0 0
        %1999 = vmatprep.subr.bf16.mxu0 0
        %2000 = vmatpush1.bf16.xpose.msra.mxu0 0
        %2001 = vmatprep.subr.bf16.mxu0 0
        %2002 = vmatpush1.bf16.xpose.msra.mxu0 %v1985
        %2003 = vmatprep.subr.bf16.mxu0 0
        %2004 = vmatpush2.bf16.xpose.msra.mxu0 0
        %2005 = vmatprep.subr.bf16.mxu0 0
        %2006 = vmatpush2.bf16.xpose.msra.mxu0 0
        %2007 = vmatprep.subr.bf16.mxu0 0
        %2008 = vmatpush2.bf16.xpose.msra.mxu0 0
        %2009 = vmatprep.subr.bf16.mxu0 0
        %2010 = vmatpush2.bf16.xpose.msra.mxu0 0
        %2011 = vmatprep.subr.bf16.mxu0 0
        %2012 = vmatpush2.bf16.xpose.msra.mxu0 0
        %2013 = vmatprep.subr.bf16.mxu0 0
        %2014 = vmatpush2.bf16.xpose.msra.mxu0 0
        %2015 = vmatprep.subr.bf16.mxu0 0
        %2016 = vmatpush2.bf16.xpose.msra.mxu0 0
        %2017 = vmatprep.subr.bf16.mxu0 0
        %2018 = vmatpush2.bf16.xpose.msra.mxu0 0
        %2019 = vmatprep.mubr.bf16.mxu0 0
        %2020 = vmatmul.mubr.bf16.gmra.mxu0 %v1982
        %v2021 = vpop.f32.mrf.mxu0
        %v2022 = vadd.f32 0.0, %v2021
        %v2023 = vpop.f32.mrf.mxu0
        %v2024 = vpop.f32.mrf.mxu0
        %v2025 = vadd.f32 0.0, %v2024
        %v2026 = vpop.f32.mrf.mxu0
        %2027 = vdwg.mxu0
        %v2028 = vmul.f32 %v2022, 0.35355338
        %v2029 = vmul.f32 %v2025, 0.35355338
        %v2030 = vsel %vm1651, %v2028, -inf
        %2031 = vmax.xlane.f32.xlu0 %v2030
        %v2032 = vpop.xlane.xlu0 %2031
        %v2033 = vsel %vm1651, %v2029, -inf
        %2034 = vmax.xlane.f32.xlu0 %v2033
        %v2035 = vpop.xlane.xlu0 %2034
        %v2036 = vsub.f32 %v2028, %v2032
        %v2037 = vsub.f32 %v2029, %v2035
        %v2038 = vmul.f32 %v2036, 1.442695
        %v2039 = vpow.pop %v2038
        %v2040 = vmul.f32 %v2037, 1.442695
        %v2041 = vpow.pop %v2040
        %v2042 = vsel %vm1651, %v2039, 0.0
        %2043 = vadd.xlane.f32.xlu0 %v2042
        %v2044 = vpop.xlane.xlu0 %2043
        %v2045 = vsel %vm1651, %v2041, 0.0
        %2046 = vadd.xlane.f32.xlu0 %v2045
        %v2047 = vpop.xlane.xlu0 %2046
        %v2048 = vrcp.pop %v2044
        %v2049 = vmul.f32 %v2039, %v2048
        %v2050 = vrcp.pop %v2047
        %v2051 = vmul.f32 %v2041, %v2050
        %v2052 = vpack.c.bf16 %v2051, %v2049
        %2053 = vrot.lane.b32.xlu0 %v1601, 72
        %v2054 = vpop.permute.xlu0 %2053
        %v2056 = vsel %vm1651, %v2052, 0
        %v2059 = vsel %vm1681, %v2054, 0
        %2061 = vmatprep.subr.bf16.mxu0 0
        %2062 = vmatpush1.bf16.msra.mxu0 0
        %2063 = vmatprep.subr.bf16.mxu0 0
        %2064 = vmatpush1.bf16.msra.mxu0 0
        %2065 = vmatprep.subr.bf16.mxu0 0
        %2066 = vmatpush1.bf16.msra.mxu0 0
        %2067 = vmatprep.subr.bf16.mxu0 0
        %2068 = vmatpush1.bf16.msra.mxu0 0
        %2069 = vmatprep.subr.bf16.mxu0 0
        %2070 = vmatpush1.bf16.msra.mxu0 0
        %2071 = vmatprep.subr.bf16.mxu0 0
        %2072 = vmatpush1.bf16.msra.mxu0 0
        %2073 = vmatprep.subr.bf16.mxu0 0
        %2074 = vmatpush1.bf16.msra.mxu0 0
        %2075 = vmatprep.subr.bf16.mxu0 0
        %2076 = vmatpush1.bf16.msra.mxu0 %v2059
        %2077 = vmatprep.subr.bf16.mxu0 0
        %2078 = vmatpush2.bf16.msra.mxu0 0
        %2079 = vmatprep.subr.bf16.mxu0 0
        %2080 = vmatpush2.bf16.msra.mxu0 0
        %2081 = vmatprep.subr.bf16.mxu0 0
        %2082 = vmatpush2.bf16.msra.mxu0 0
        %2083 = vmatprep.subr.bf16.mxu0 0
        %2084 = vmatpush2.bf16.msra.mxu0 0
        %2085 = vmatprep.subr.bf16.mxu0 0
        %2086 = vmatpush2.bf16.msra.mxu0 0
        %2087 = vmatprep.subr.bf16.mxu0 0
        %2088 = vmatpush2.bf16.msra.mxu0 0
        %2089 = vmatprep.subr.bf16.mxu0 0
        %2090 = vmatpush2.bf16.msra.mxu0 0
        %2091 = vmatprep.subr.bf16.mxu0 0
        %2092 = vmatpush2.bf16.msra.mxu0 0
        %2093 = vmatprep.mubr.bf16.mxu0 0
        %2094 = vmatmul.mubr.bf16.gmra.mxu0 %v2056
        %v2095 = vpop.f32.mrf.mxu0
        %v2096 = vadd.f32 0.0, %v2095
        %v2097 = vpop.f32.mrf.mxu0
        %v2098 = vpop.f32.mrf.mxu0
        %v2099 = vadd.f32 0.0, %v2098
        %v2100 = vpop.f32.mrf.mxu0
        %2101 = vdwg.mxu0
        %2104 = vrot.lane.b32.xlu0 %v1846, 8
        %v2105 = vpop.permute.xlu0 %2104
        %2106 = vrot.lane.b32.xlu0 %v1849, 8
        %v2107 = vpop.permute.xlu0 %2106
        %2112 = vrot.lane.b32.xlu0 %v1971, 16
        %v2113 = vpop.permute.xlu0 %2112
        %2114 = vrot.lane.b32.xlu0 %v1974, 16
        %v2115 = vpop.permute.xlu0 %2114
        %2120 = vrot.lane.b32.xlu0 %v2096, 24
        %v2121 = vpop.permute.xlu0 %2120
        %2122 = vrot.lane.b32.xlu0 %v2099, 24
        %v2123 = vpop.permute.xlu0 %2122
        %v2126 = vsel %vm790, %v1720, %v2105
        %v2127 = vsel %vm790, %v1723, %v2107
        %v2128 = vsel %vm840, %v2126, %v2113
        %v2129 = vsel %vm840, %v2127, %v2115
        %v2130 = vsel %vm1308, %v2128, %v2121
        %v2131 = vsel %vm1308, %v2129, %v2123
        %v2132 = vpack.c.bf16 %v2131, %v2130
        %v2134 = vlaneseq
        %v2135 = vshrl.u32 %v2134, 7
        %v2136 = vsub.s32 0, %v2135
        %v2137 = vrot.slane %v1599, %v2136
        %v2143 = vunpack.c.l.b16 %v1595
        %v2144 = vunpack.c.l.b16 %v1596
        %v2145 = vunpack.c.l.b16 %v1597
        %v2146 = vunpack.c.l.b16 %v1598
        %v2147 = vpack.c.b16 %v2144, %v2143
        %v2148 = vpack.c.b16 %v2146, %v2145
        %v2152 = vsel %vm736, %v2132, 0
        %2154 = vmatprep.subr.bf16.mxu0 0
        %2155 = vmatpush1.bf16.msra.mxu0 0
        %2156 = vmatprep.subr.bf16.mxu0 0
        %2157 = vmatpush1.bf16.msra.mxu0 0
        %2158 = vmatprep.subr.bf16.mxu0 0
        %2159 = vmatpush1.bf16.msra.mxu0 0
        %2160 = vmatprep.subr.bf16.mxu0 0
        %2161 = vmatpush1.bf16.msra.mxu0 0
        %2162 = vmatprep.subr.bf16.mxu0 0
        %2163 = vmatpush1.bf16.msra.mxu0 0
        %2164 = vmatprep.subr.bf16.mxu0 0
        %2165 = vmatpush1.bf16.msra.mxu0 0
        %2166 = vmatprep.subr.bf16.mxu0 0
        %2167 = vmatpush1.bf16.msra.mxu0 %v2148
        %2168 = vmatprep.subr.bf16.mxu0 0
        %2169 = vmatpush1.bf16.msra.mxu0 %v2147
        %2170 = vmatprep.subr.bf16.mxu0 0
        %2171 = vmatpush2.bf16.msra.mxu0 0
        %2172 = vmatprep.subr.bf16.mxu0 0
        %2173 = vmatpush2.bf16.msra.mxu0 0
        %2174 = vmatprep.subr.bf16.mxu0 0
        %2175 = vmatpush2.bf16.msra.mxu0 0
        %2176 = vmatprep.subr.bf16.mxu0 0
        %2177 = vmatpush2.bf16.msra.mxu0 0
        %2178 = vmatprep.subr.bf16.mxu0 0
        %2179 = vmatpush2.bf16.msra.mxu0 0
        %2180 = vmatprep.subr.bf16.mxu0 0
        %2181 = vmatpush2.bf16.msra.mxu0 0
        %2182 = vmatprep.subr.bf16.mxu0 0
        %2183 = vmatpush2.bf16.msra.mxu0 0
        %2184 = vmatprep.subr.bf16.mxu0 0
        %2185 = vmatpush2.bf16.msra.mxu0 0
        %2186 = vmatprep.mubr.bf16.mxu0 0
        %2187 = vmatmul.mubr.bf16.gmra.mxu0 %v2152
        %v2188 = vpop.f32.mrf.mxu0
        %v2189 = vadd.f32 %v2137, %v2188
        %v2190 = vpop.f32.mrf.mxu0
        %v2191 = vpop.f32.mrf.mxu0
        %v2192 = vadd.f32 %v2137, %v2191
        %v2193 = vpop.f32.mrf.mxu0
        %2194 = vdwg.mxu0
        %v2195 = vadd.f32 %v1457, %v2189
        %v2196 = vadd.f32 %v1458, %v2192
        %2197 = vmatprep.subr.mxu0 0.0
        %2198 = vmatpush1.msra.mxu0 0.0
        %2199 = vmatprep.subr.mxu0 0.0
        %2200 = vmatpush1.msra.mxu0 0.0
        %2201 = vmatprep.subr.mxu0 0.0
        %2202 = vmatpush1.msra.mxu0 0.0
        %2203 = vmatprep.subr.mxu0 0.0
        %2204 = vmatpush1.msra.mxu0 0.0
        %2205 = vmatprep.subr.mxu0 0.0
        %2206 = vmatpush1.msra.mxu0 0.0
        %2207 = vmatprep.subr.mxu0 0.0
        %2208 = vmatpush1.msra.mxu0 0.0
        %2209 = vmatprep.subr.mxu0 0.0
        %2210 = vmatpush1.msra.mxu0 0.0
        %2211 = vmatprep.subr.mxu0 0.0
        %2212 = vmatpush1.msra.mxu0 0.0
        %2213 = vmatprep.subr.mxu0 0.0
        %2214 = vmatpush1.msra.mxu0 0.0
        %2215 = vmatprep.subr.mxu0 0.0
        %2216 = vmatpush1.msra.mxu0 0.0
        %2217 = vmatprep.subr.mxu0 0.0
        %2218 = vmatpush1.msra.mxu0 0.0
        %2219 = vmatprep.subr.mxu0 0.0
        %2220 = vmatpush1.msra.mxu0 0.0
        %2221 = vmatprep.subr.mxu0 0.0
        %2222 = vmatpush1.msra.mxu0 0.0
        %2223 = vmatprep.subr.mxu0 0.0
        %2224 = vmatpush1.msra.mxu0 0.0
        %2225 = vmatprep.subr.mxu0 0.0
        %2226 = vmatpush1.msra.mxu0 %v2196
        %2227 = vmatprep.subr.mxu0 0.0
        %2228 = vmatpush1.msra.mxu0 %v2195
        %2229 = vmatprep.subr.mxu0 0.0
        %2230 = vmatpush2.msra.mxu0 0.0
        %2231 = vmatprep.subr.mxu0 0.0
        %2232 = vmatpush2.msra.mxu0 0.0
        %2233 = vmatprep.subr.mxu0 0.0
        %2234 = vmatpush2.msra.mxu0 0.0
        %2235 = vmatprep.subr.mxu0 0.0
        %2236 = vmatpush2.msra.mxu0 0.0
        %2237 = vmatprep.subr.mxu0 0.0
        %2238 = vmatpush2.msra.mxu0 0.0
        %2239 = vmatprep.subr.mxu0 0.0
        %2240 = vmatpush2.msra.mxu0 0.0
        %2241 = vmatprep.subr.mxu0 0.0
        %2242 = vmatpush2.msra.mxu0 0.0
        %2243 = vmatprep.subr.mxu0 0.0
        %2244 = vmatpush2.msra.mxu0 0.0
        %2245 = vmatprep.subr.mxu0 0.0
        %2246 = vmatpush2.msra.mxu0 0.0
        %2247 = vmatprep.subr.mxu0 0.0
        %2248 = vmatpush2.msra.mxu0 0.0
        %2249 = vmatprep.subr.mxu0 0.0
        %2250 = vmatpush2.msra.mxu0 0.0
        %2251 = vmatprep.subr.mxu0 0.0
        %2252 = vmatpush2.msra.mxu0 0.0
        %2253 = vmatprep.subr.mxu0 0.0
        %2254 = vmatpush2.msra.mxu0 0.0
        %2255 = vmatprep.subr.mxu0 0.0
        %2256 = vmatpush2.msra.mxu0 0.0
        %2257 = vmatprep.subr.mxu0 0.0
        %2258 = vmatpush2.msra.mxu0 0.0
        %2259 = vmatprep.subr.mxu0 0.0
        %2260 = vmatpush2.msra.mxu0 0.0
        %2261 = vmatprep.mubr.f32.mxu0 0.0
        %2262 = vmatmul.mubr.f32.gmra.mxu0 %v1377
        %v2263 = vpop.f32.mrf.mxu0
        %v2264 = vadd.f32 0.0, %v2263
        %v2265 = vpop.f32.mrf.mxu0
        %2266 = vmatprep.mubr.f32.mxu0 0.0
        %2267 = vmatmul.mubr.f32.gmra.mxu0 %v1380
        %v2268 = vpop.f32.mrf.mxu0
        %v2269 = vadd.f32 0.0, %v2268
        %v2270 = vpop.f32.mrf.mxu0
        %2271 = vdwg.mxu0
        %v2272 = vsub.f32 %v2195, %v2264
        %v2273 = vsub.f32 %v2196, %v2269
        %v2274 = vpack.c.bf16 %v2273, %v2272
        %v2275 = vld [vmem:[%s14] sm:$0xf]
        %v2276 = vld [vmem:[%s14 + $0x4] sm:$0xf]
        %v2277 = vld [vmem:[%s14 + $0x8] sm:$0xf]
        %v2278 = vld [vmem:[%s14 + $0xc] sm:$0xf]
        %v2283 = vunpack.c.l.b16 %v2275
        %v2284 = vunpack.c.l.b16 %v2276
        %v2285 = vunpack.c.l.b16 %v2277
        %v2286 = vunpack.c.l.b16 %v2278
        %v2287 = vpack.c.b16 %v2284, %v2283
        %v2288 = vpack.c.b16 %v2286, %v2285
        %v2292 = vsel %vm736, %v2274, 0
        %2294 = vmatprep.subr.bf16.mxu0 0
        %2295 = vmatpush1.bf16.msra.mxu0 0
        %2296 = vmatprep.subr.bf16.mxu0 0
        %2297 = vmatpush1.bf16.msra.mxu0 0
        %2298 = vmatprep.subr.bf16.mxu0 0
        %2299 = vmatpush1.bf16.msra.mxu0 0
        %2300 = vmatprep.subr.bf16.mxu0 0
        %2301 = vmatpush1.bf16.msra.mxu0 0
        %2302 = vmatprep.subr.bf16.mxu0 0
        %2303 = vmatpush1.bf16.msra.mxu0 0
        %2304 = vmatprep.subr.bf16.mxu0 0
        %2305 = vmatpush1.bf16.msra.mxu0 0
        %2306 = vmatprep.subr.bf16.mxu0 0
        %2307 = vmatpush1.bf16.msra.mxu0 %v2288
        %2308 = vmatprep.subr.bf16.mxu0 0
        %2309 = vmatpush1.bf16.msra.mxu0 %v2287
        %2310 = vmatprep.subr.bf16.mxu0 0
        %2311 = vmatpush2.bf16.msra.mxu0 0
        %2312 = vmatprep.subr.bf16.mxu0 0
        %2313 = vmatpush2.bf16.msra.mxu0 0
        %2314 = vmatprep.subr.bf16.mxu0 0
        %2315 = vmatpush2.bf16.msra.mxu0 0
        %2316 = vmatprep.subr.bf16.mxu0 0
        %2317 = vmatpush2.bf16.msra.mxu0 0
        %2318 = vmatprep.subr.bf16.mxu0 0
        %2319 = vmatpush2.bf16.msra.mxu0 0
        %2320 = vmatprep.subr.bf16.mxu0 0
        %2321 = vmatpush2.bf16.msra.mxu0 0
        %2322 = vmatprep.subr.bf16.mxu0 0
        %2323 = vmatpush2.bf16.msra.mxu0 0
        %2324 = vmatprep.subr.bf16.mxu0 0
        %2325 = vmatpush2.bf16.msra.mxu0 0
        %2326 = vmatprep.mubr.bf16.mxu0 0
        %2327 = vmatmul.mubr.bf16.gmra.mxu0 %v2292
        %v2328 = vpop.f32.mrf.mxu0
        %v2329 = vadd.f32 0.0, %v2328
        %v2330 = vpop.f32.mrf.mxu0
        %v2331 = vpop.f32.mrf.mxu0
        %v2332 = vadd.f32 0.0, %v2331
        %v2333 = vpop.f32.mrf.mxu0
        %2334 = vdwg.mxu0
        %v2335 = vmax.f32 %v2329, 0.0
        %v2336 = vmax.f32 %v2332, 0.0
        %v2337 = vpack.c.bf16 %v2336, %v2335
        %v2338 = vld [vmem:[%s15] sm:$0xf]
        %v2339 = vld [vmem:[%s15 + $0x4] sm:$0xf]
        %v2340 = vld [vmem:[%s15 + $0x8] sm:$0xf]
        %v2341 = vld [vmem:[%s15 + $0xc] sm:$0xf]
        %v2342 = vld [vmem:[%s15 + $0x10] sm:$0xf]
        %v2343 = vld [vmem:[%s15 + $0x14] sm:$0xf]
        %v2344 = vld [vmem:[%s15 + $0x18] sm:$0xf]
        %v2345 = vld [vmem:[%s15 + $0x1c] sm:$0xf]
        %v2354 = vunpack.c.l.b16 %v2338
        %v2355 = vunpack.c.l.b16 %v2339
        %v2356 = vunpack.c.l.b16 %v2340
        %v2357 = vunpack.c.l.b16 %v2341
        %v2358 = vunpack.c.l.b16 %v2342
        %v2359 = vunpack.c.l.b16 %v2343
        %v2360 = vunpack.c.l.b16 %v2344
        %v2361 = vunpack.c.l.b16 %v2345
        %v2362 = vpack.c.b16 %v2355, %v2354
        %v2363 = vpack.c.b16 %v2357, %v2356
        %v2364 = vpack.c.b16 %v2359, %v2358
        %v2365 = vpack.c.b16 %v2361, %v2360
        %vm2370 = vcmask 523264
        %v2372 = vsel %vm2370, %v2337, 0
        %2374 = vmatprep.subr.bf16.mxu0 0
        %2375 = vmatpush1.bf16.msra.mxu0 0
        %2376 = vmatprep.subr.bf16.mxu0 0
        %2377 = vmatpush1.bf16.msra.mxu0 0
        %2378 = vmatprep.subr.bf16.mxu0 0
        %2379 = vmatpush1.bf16.msra.mxu0 0
        %2380 = vmatprep.subr.bf16.mxu0 0
        %2381 = vmatpush1.bf16.msra.mxu0 0
        %2382 = vmatprep.subr.bf16.mxu0 0
        %2383 = vmatpush1.bf16.msra.mxu0 %v2365
        %2384 = vmatprep.subr.bf16.mxu0 0
        %2385 = vmatpush1.bf16.msra.mxu0 %v2364
        %2386 = vmatprep.subr.bf16.mxu0 0
        %2387 = vmatpush1.bf16.msra.mxu0 %v2363
        %2388 = vmatprep.subr.bf16.mxu0 0
        %2389 = vmatpush1.bf16.msra.mxu0 %v2362
        %2390 = vmatprep.subr.bf16.mxu0 0
        %2391 = vmatpush2.bf16.msra.mxu0 0
        %2392 = vmatprep.subr.bf16.mxu0 0
        %2393 = vmatpush2.bf16.msra.mxu0 0
        %2394 = vmatprep.subr.bf16.mxu0 0
        %2395 = vmatpush2.bf16.msra.mxu0 0
        %2396 = vmatprep.subr.bf16.mxu0 0
        %2397 = vmatpush2.bf16.msra.mxu0 0
        %2398 = vmatprep.subr.bf16.mxu0 0
        %2399 = vmatpush2.bf16.msra.mxu0 0
        %2400 = vmatprep.subr.bf16.mxu0 0
        %2401 = vmatpush2.bf16.msra.mxu0 0
        %2402 = vmatprep.subr.bf16.mxu0 0
        %2403 = vmatpush2.bf16.msra.mxu0 0
        %2404 = vmatprep.subr.bf16.mxu0 0
        %2405 = vmatpush2.bf16.msra.mxu0 0
        %2406 = vmatprep.mubr.bf16.mxu0 0
        %2407 = vmatmul.mubr.bf16.gmra.mxu0 %v2372
        %v2408 = vpop.f32.mrf.mxu0
        %v2409 = vadd.f32 %v2272, %v2408
        %v2410 = vpop.f32.mrf.mxu0
        %v2411 = vpop.f32.mrf.mxu0
        %v2412 = vadd.f32 %v2273, %v2411
        %v2413 = vpop.f32.mrf.mxu0
        %2414 = vdwg.mxu0
        %2415 = vmatprep.subr.mxu0 0.0
        %2416 = vmatpush1.msra.mxu0 0.0
        %2417 = vmatprep.subr.mxu0 0.0
        %2418 = vmatpush1.msra.mxu0 0.0
        %2419 = vmatprep.subr.mxu0 0.0
        %2420 = vmatpush1.msra.mxu0 0.0
        %2421 = vmatprep.subr.mxu0 0.0
        %2422 = vmatpush1.msra.mxu0 0.0
        %2423 = vmatprep.subr.mxu0 0.0
        %2424 = vmatpush1.msra.mxu0 0.0
        %2425 = vmatprep.subr.mxu0 0.0
        %2426 = vmatpush1.msra.mxu0 0.0
        %2427 = vmatprep.subr.mxu0 0.0
        %2428 = vmatpush1.msra.mxu0 0.0
        %2429 = vmatprep.subr.mxu0 0.0
        %2430 = vmatpush1.msra.mxu0 0.0
        %2431 = vmatprep.subr.mxu0 0.0
        %2432 = vmatpush1.msra.mxu0 0.0
        %2433 = vmatprep.subr.mxu0 0.0
        %2434 = vmatpush1.msra.mxu0 0.0
        %2435 = vmatprep.subr.mxu0 0.0
        %2436 = vmatpush1.msra.mxu0 0.0
        %2437 = vmatprep.subr.mxu0 0.0
        %2438 = vmatpush1.msra.mxu0 0.0
        %2439 = vmatprep.subr.mxu0 0.0
        %2440 = vmatpush1.msra.mxu0 0.0
        %2441 = vmatprep.subr.mxu0 0.0
        %2442 = vmatpush1.msra.mxu0 0.0
        %2443 = vmatprep.subr.mxu0 0.0
        %2444 = vmatpush1.msra.mxu0 %v2412
        %2445 = vmatprep.subr.mxu0 0.0
        %2446 = vmatpush1.msra.mxu0 %v2409
        %2447 = vmatprep.subr.mxu0 0.0
        %2448 = vmatpush2.msra.mxu0 0.0
        %2449 = vmatprep.subr.mxu0 0.0
        %2450 = vmatpush2.msra.mxu0 0.0
        %2451 = vmatprep.subr.mxu0 0.0
        %2452 = vmatpush2.msra.mxu0 0.0
        %2453 = vmatprep.subr.mxu0 0.0
        %2454 = vmatpush2.msra.mxu0 0.0
        %2455 = vmatprep.subr.mxu0 0.0
        %2456 = vmatpush2.msra.mxu0 0.0
        %2457 = vmatprep.subr.mxu0 0.0
        %2458 = vmatpush2.msra.mxu0 0.0
        %2459 = vmatprep.subr.mxu0 0.0
        %2460 = vmatpush2.msra.mxu0 0.0
        %2461 = vmatprep.subr.mxu0 0.0
        %2462 = vmatpush2.msra.mxu0 0.0
        %2463 = vmatprep.subr.mxu0 0.0
        %2464 = vmatpush2.msra.mxu0 0.0
        %2465 = vmatprep.subr.mxu0 0.0
        %2466 = vmatpush2.msra.mxu0 0.0
        %2467 = vmatprep.subr.mxu0 0.0
        %2468 = vmatpush2.msra.mxu0 0.0
        %2469 = vmatprep.subr.mxu0 0.0
        %2470 = vmatpush2.msra.mxu0 0.0
        %2471 = vmatprep.subr.mxu0 0.0
        %2472 = vmatpush2.msra.mxu0 0.0
        %2473 = vmatprep.subr.mxu0 0.0
        %2474 = vmatpush2.msra.mxu0 0.0
        %2475 = vmatprep.subr.mxu0 0.0
        %2476 = vmatpush2.msra.mxu0 0.0
        %2477 = vmatprep.subr.mxu0 0.0
        %2478 = vmatpush2.msra.mxu0 0.0
        %2479 = vmatprep.mubr.f32.mxu0 0.0
        %2480 = vmatmul.mubr.f32.gmra.mxu0 %v1377
        %v2481 = vpop.f32.mrf.mxu0
        %v2482 = vadd.f32 0.0, %v2481
        %v2483 = vpop.f32.mrf.mxu0
        %2484 = vmatprep.mubr.f32.mxu0 0.0
        %2485 = vmatmul.mubr.f32.gmra.mxu0 %v1380
        %v2486 = vpop.f32.mrf.mxu0
        %v2487 = vadd.f32 0.0, %v2486
        %v2488 = vpop.f32.mrf.mxu0
        %2489 = vdwg.mxu0
        %v2490 = vsub.f32 %v2409, %v2482
        %v2491 = vsub.f32 %v2412, %v2487
        %2492 = vst.msk [vmem:[%s680] sm:$0xff] %vm736, %v2490
        %2493 = vst.msk [vmem:[%s680 + $0x8] sm:$0xff] %vm736, %v2491
        %2495 = vrot.lane.b32.xlu0 %v2269, 32
        %v2496 = vpop.permute.xlu0 %2495
        %2499 = vrot.lane.b32.xlu0 %v2487, 64
        %v2500 = vpop.permute.xlu0 %2499
        %v2502 = vsel %vm736, %v1454, %v2496
        %v2503 = vsel %vm2370, %v2502, %v2500
        %v2504 = vpack.c.bf16 %v2503, %v2503
        %v2505 = vld [vmem:[%s16] sm:$0xff]
        %v2506 = vld [vmem:[%s16 + $0x8] sm:$0xff]
        %v2507 = vld [vmem:[%s16 + $0x10] sm:$0xff]
        %v2508 = vld [vmem:[%s16 + $0x18] sm:$0xff]
        %v2509 = vld [vmem:[%s16 + $0x20] sm:$0xff]
        %v2510 = vld [vmem:[%s16 + $0x28] sm:$0xff]
        %v2511 = vld [vmem:[%s16 + $0x30] sm:$0xff]
        %v2512 = vld [vmem:[%s16 + $0x38] sm:$0xff]
        %v2513 = vld [vmem:[%s16 + $0x40] sm:$0xff]
        %v2514 = vld [vmem:[%s16 + $0x48] sm:$0xff]
        %v2515 = vld [vmem:[%s16 + $0x50] sm:$0xff]
        %v2516 = vld [vmem:[%s16 + $0x58] sm:$0xff]
        %v2517 = vld [vmem:[%s17] sm:$0x3]
        %v2519 = vlaneseq
        %v2520 = vshrl.u32 %v2519, 7
        %v2521 = vsub.s32 0, %v2520
        %v2522 = vrot.slane %v2517, %v2521
        %v2523 = vlaneseq
        %v2524 = vshrl.u32 %v2523, 7
        %v2525 = vsub.s32 1, %v2524
        %v2526 = vrot.slane %v2517, %v2525
        %v2541 = vunpack.c.l.b16 %v2505
        %v2542 = vunpack.c.h.b16 %v2505
        %v2543 = vunpack.c.l.b16 %v2506
        %v2544 = vunpack.c.h.b16 %v2506
        %v2545 = vunpack.c.l.b16 %v2507
        %v2546 = vunpack.c.h.b16 %v2507
        %v2547 = vunpack.c.l.b16 %v2508
        %v2548 = vunpack.c.h.b16 %v2508
        %v2549 = vunpack.c.l.b16 %v2509
        %v2550 = vunpack.c.h.b16 %v2509
        %v2551 = vunpack.c.l.b16 %v2510
        %v2552 = vunpack.c.h.b16 %v2510
        %v2553 = vunpack.c.l.b16 %v2511
        %v2554 = vunpack.c.h.b16 %v2511
        %v2555 = vunpack.c.l.b16 %v2512
        %v2556 = vunpack.c.h.b16 %v2512
        %v2557 = vunpack.c.l.b16 %v2513
        %v2558 = vunpack.c.h.b16 %v2513
        %v2559 = vunpack.c.l.b16 %v2514
        %v2560 = vunpack.c.h.b16 %v2514
        %v2561 = vunpack.c.l.b16 %v2515
        %v2562 = vunpack.c.h.b16 %v2515
        %v2563 = vunpack.c.l.b16 %v2516
        %v2564 = vunpack.c.h.b16 %v2516
        %v2565 = vpack.c.b16 %v2543, %v2541
        %v2566 = vpack.c.b16 %v2544, %v2542
        %v2567 = vpack.c.b16 %v2547, %v2545
        %v2568 = vpack.c.b16 %v2548, %v2546
        %v2569 = vpack.c.b16 %v2551, %v2549
        %v2570 = vpack.c.b16 %v2552, %v2550
        %v2571 = vpack.c.b16 %v2555, %v2553
        %v2572 = vpack.c.b16 %v2556, %v2554
        %v2573 = vpack.c.b16 %v2559, %v2557
        %v2574 = vpack.c.b16 %v2560, %v2558
        %v2575 = vpack.c.b16 %v2563, %v2561
        %v2576 = vpack.c.b16 %v2564, %v2562
        %vm2589 = vcmask 785408
        %v2591 = vsel %vm2589, %v2504, 0
        %2593 = vmatprep.subr.bf16.mxu0 0
        %2594 = vmatpush1.bf16.msra.mxu0 0
        %2595 = vmatprep.subr.bf16.mxu0 0
        %2596 = vmatpush1.bf16.msra.mxu0 0
        %2597 = vmatprep.subr.bf16.mxu0 %v2576
        %2598 = vmatpush1.bf16.msra.mxu0 %v2575
        %2599 = vmatprep.subr.bf16.mxu0 %v2574
        %2600 = vmatpush1.bf16.msra.mxu0 %v2573
        %2601 = vmatprep.subr.bf16.mxu0 %v2572
        %2602 = vmatpush1.bf16.msra.mxu0 %v2571
        %2603 = vmatprep.subr.bf16.mxu0 %v2570
        %2604 = vmatpush1.bf16.msra.mxu0 %v2569
        %2605 = vmatprep.subr.bf16.mxu0 %v2568
        %2606 = vmatpush1.bf16.msra.mxu0 %v2567
        %2607 = vmatprep.subr.bf16.mxu0 %v2566
        %2608 = vmatpush1.bf16.msra.mxu0 %v2565
        %2609 = vmatprep.subr.bf16.mxu0 0
        %2610 = vmatpush2.bf16.msra.mxu0 0
        %2611 = vmatprep.subr.bf16.mxu0 0
        %2612 = vmatpush2.bf16.msra.mxu0 0
        %2613 = vmatprep.subr.bf16.mxu0 0
        %2614 = vmatpush2.bf16.msra.mxu0 0
        %2615 = vmatprep.subr.bf16.mxu0 0
        %2616 = vmatpush2.bf16.msra.mxu0 0
        %2617 = vmatprep.subr.bf16.mxu0 0
        %2618 = vmatpush2.bf16.msra.mxu0 0
        %2619 = vmatprep.subr.bf16.mxu0 0
        %2620 = vmatpush2.bf16.msra.mxu0 0
        %2621 = vmatprep.subr.bf16.mxu0 0
        %2622 = vmatpush2.bf16.msra.mxu0 0
        %2623 = vmatprep.subr.bf16.mxu0 0
        %2624 = vmatpush2.bf16.msra.mxu0 0
        %2625 = vmatprep.mubr.bf16.mxu0 0
        %2626 = vmatmul.mubr.bf16.gmra.mxu0 %v2591
        %v2627 = vpop.f32.mrf.mxu0
        %v2628 = vadd.f32 %v2522, %v2627
        %v2629 = vpop.f32.mrf.mxu0
        %v2630 = vadd.f32 %v2526, %v2629
        %v2631 = vpop.f32.mrf.mxu0
        %v2632 = vpop.f32.mrf.mxu0
        %2633 = vdwg.mxu0
        %v2634 = vld [vmem:[%s18] sm:$0x3]
        %v2636 = vlaneseq
        %v2637 = vshrl.u32 %v2636, 7
        %v2638 = vsub.s32 0, %v2637
        %v2639 = vrot.slane %v2634, %v2638
        %v2640 = vlaneseq
        %v2641 = vshrl.u32 %v2640, 7
        %v2642 = vsub.s32 1, %v2641
        %v2643 = vrot.slane %v2634, %v2642
        %v2646 = vmul.f32 %v2628, %v2639
        %v2647 = vmul.f32 %v2630, %v2643
        %v2648 = vsel %vm2370, %v2647, 0.0
        %v2649 = vadd.f32 %v2646, %v2648
        %2650 = vadd.xlane.f32.xlu0 %v2649
        %v2651 = vpop.xlane.xlu0 %2650
        %v2652 = vld [vmem:[#allocation2] sm:$0x1]
        %v2654 = vlaneseq
        %v2655 = vshrl.u32 %v2654, 7
        %v2656 = vsub.s32 0, %v2655
        %v2657 = vrot.slane %v2652, %v2656
        %v2659 = vadd.f32 %v2651, %v2657
        %v2660 = vld [vmem:[%s700] sm:$0xff]
        %v2661 = vadd.f32 %v2660, %v2659
        %vm2662 = vcmask 7168
        %2663 = vst.msk [vmem:[%s704] sm:$0xff] %vm2662, %v2661
        %s2664 = sand.u32 %s481, 1
        %s2665 = scalar_lea.sflag [#allocation4], %s2664
        %s2666 = sand.u32 %s481, 1
        %s2667 = smul.addr %s2666, 16
        %s2668 = scalar_lea.vmem [#allocation3], %s2667
        %p2669 = scmp.lt.s32.totalorder %s38, 1
        %s2670 = scalar_select %p2669, %s38, 1
        %s2671 = smul.addr %s2670, 8
        %s2672 = scalar_lea.vmem %s21, %s2671
        // Predicated region
        $region101: #{decoder_stack_forward.3} parent=99 // pred_check
          %p2673 = pneg %p491
        $region102: #{decoder_stack_forward.3} parent=99 // pred_check_branch
          %2675 = sbr.rel (%p2673) target = $region104
        $region103: #{decoder_stack_forward.3} parent=99 // pred_region
          %s2677 = ssub.s32 256, 256
          %2678 = vsyncadd %s2665, %s2677
          %s2679 = smul.addr %s38, 2
          %s2680 = smul.addr %s2679, 128
          %s2681 = scalar_lea.hbm %s20, %s2680
          %s2682 = sshll.u32 %s2668, 4
          %s2683 = int_to_ptr.vmem [resolvable:$true] %s2682
          %2688 = dma.vmem_to_hbm [thread:$0]  %s2683, 256, %s2681, %s2665, 128, 128, 8
        $region104: #{decoder_stack_forward.3} parent=99 // pred_fallthru
          _
        // Predicated region
        $region105: #{decoder_stack_forward.3} parent=99 // pred_check
          %p2689 = pneg %p517
        $region106: #{decoder_stack_forward.3} parent=99 // pred_check_branch
          %2691 = sbr.rel (%p2689) target = $region108
        $region107: #{decoder_stack_forward.3} parent=99 // pred_region
          _
        $region108: #{decoder_stack_forward.3} parent=99 // pred_fallthru
          _
      $region100: #{decoder_stack_forward.3} parent=5 // pred_fallthru
        _
      %p2692 = scmp.le.s32.totalorder 2, %s33
      // Predicated region
      $region109: #{decoder_stack_forward.3} parent=5 // pred_check
        %p2693 = pneg %p2692
      $region110: #{decoder_stack_forward.3} parent=5 // pred_check_branch
        %2695 = sbr.rel (%p2693) target = $region112
      $region111: #{decoder_stack_forward.3} parent=5 // pred_region
        %s2696 = ssub.s32 %s33, 2
        // Predicated region
        $region113: #{decoder_stack_forward.3} parent=111 // pred_check
          %p2697 = pneg %p497
        $region114: #{decoder_stack_forward.3} parent=111 // pred_check_branch
          %2699 = sbr.rel (%p2697) target = $region116
        $region115: #{decoder_stack_forward.3} parent=111 // pred_region
          %s2700 = sand.u32 %s482, 1
          %s2701 = scalar_lea.sflag [#allocation4], %s2700
          %s2702 = sand.u32 %s482, 1
          %s2703 = smul.addr %s2702, 16
          %s2704 = scalar_lea.vmem [#allocation3], %s2703
          %2705 = dma.done %s2701, 256
        $region116: #{decoder_stack_forward.3} parent=111 // pred_fallthru
          _
        // Predicated region
        $region117: #{decoder_stack_forward.3} parent=111 // pred_check
          %p2706 = pneg %p523
        $region118: #{decoder_stack_forward.3} parent=111 // pred_check_branch
          %2708 = sbr.rel (%p2706) target = $region120
        $region119: #{decoder_stack_forward.3} parent=111 // pred_region
          %p2709 = scmp.lt.s32.totalorder %s39, 1
          %s2710 = scalar_select %p2709, %s39, 1
          %s2711 = smul.addr %s2710, 8
          %s2712 = scalar_lea.vmem %s21, %s2711
        $region120: #{decoder_stack_forward.3} parent=111 // pred_fallthru
          _
      $region112: #{decoder_stack_forward.3} parent=5 // pred_fallthru
        _
    $region6: #{decoder_stack_forward.3} parent=1 // loop_footer
      %s37 = sadd.s32 1, %s33
    $region7: #{decoder_stack_forward.3} parent=1 // loop_footer_branch
      %32 = sbr.rel target = $region3
    $region8: #{decoder_stack_forward.3} parent=1 // loop_exit
      _
    %2713 = vsyncpa [#allocation4], 1
    %s2714 = scalar_lea.sflag [#allocation4], 1
    %2715 = vsyncpa %s2714, 1

</llo_original>
